<compile_context>
chip_gen: v7x
topology: tpu7x:2x2x1
jax: 0.10.0
libtpu: 0.0.40
codegen_flags: <defaults>
</compile_context>

<pallas_src>
import functools

import jax
import jax.numpy as jnp
from jax.experimental import pallas as pl
from jax.experimental.pallas import tpu as pltpu


# ---------------------------------------------------------------------------
# In-kernel helpers.  Padded flat layout: one image = ((H+2)*(W+2), C) rows;
# the conv output span S = H*(W+2) - 2 starts at flat row P_LO = W + 3.
# ---------------------------------------------------------------------------
def _conv3x3_relu(get_rows, w_ref, b_ref, mask, *, s, wp):
    """3x3 'same' conv + bias + ReLU on the padded flat layout.

    get_rows(off) -> (S, Cin) f32 rows starting at flat row P_LO + off.
    w_ref         -> (9, Cin, Cout) bf16 (tap-major: dh major, dw minor).
    b_ref         -> (1, Cout) f32.
    mask          -> (S, 1) f32: 1 on interior pixels, 0 on pad columns.
    """
    cout = w_ref.shape[-1]
    acc = jnp.zeros((s, cout), jnp.float32)
    tap = 0
    for dh in (-1, 0, 1):
        for dw in (-1, 0, 1):
            off = dh * wp + dw                       # static Python int
            rows = get_rows(off).astype(jnp.bfloat16)
            acc = acc + jnp.dot(rows, w_ref[tap],
                                preferred_element_type=jnp.float32)
            tap += 1
    # Single masked-ReLU pass keeps the pad columns exactly zero for the next
    # conv / the pooling reduction (replaces the old 8 per-tap mask multiplies).
    return jnp.maximum(acc + b_ref[...], 0.0) * mask


def _features(mask_ref, x_ref, w1_ref, b1_ref, w2_ref, b2_ref, fbuf_ref,
              *, s, p_lo, wp, mp):
    """Backbone conv3x3+ReLU -> transition conv3x3+ReLU, fully VMEM resident."""
    mask = mask_ref[...]                             # (S, 1) f32

    # conv 1: padded input (auto-DMA'd, already zero-padded) -> features.
    feat = _conv3x3_relu(
        lambda off: x_ref[0, p_lo + off:p_lo + off + s, :],
        w1_ref, b1_ref, mask, s=s, wp=wp)

    # Stage features in the padded flat layout: zero ONLY the two (W+3)-row
    # guard bands, then one store of the computed span (no full-buffer zeroing,
    # no input copy pass).
    cf = fbuf_ref.shape[-1]
    fbuf_ref[0:p_lo, :] = jnp.zeros((p_lo, cf), fbuf_ref.dtype)
    fbuf_ref[p_lo + s:mp, :] = jnp.zeros((mp - p_lo - s, cf), fbuf_ref.dtype)
    fbuf_ref[p_lo:p_lo + s, :] = feat

    # conv 2: features -> transition features (returned as an f32 value).
    return _conv3x3_relu(
        lambda off: fbuf_ref[p_lo + off:p_lo + off + s, :],
        w2_ref, b2_ref, mask, s=s, wp=wp)


def _pred_kernel(mask_ref, x_ref, w1_ref, b1_ref, w2_ref, b2_ref,
                 wfc_ref, bfc_ref, pred_ref, fbuf_ref,
                 *, s, p_lo, wp, mp, hw):
    trans = _features(mask_ref, x_ref, w1_ref, b1_ref, w2_ref, b2_ref,
                      fbuf_ref, s=s, p_lo=p_lo, wp=wp, mp=mp)
    # Global average pool: f32 row reduction (pad columns are already zero),
    # then a tiny f32 FC.  No bf16 pooling matrix.
    pooled = jnp.sum(trans, axis=0, keepdims=True) * (1.0 / hw)   # (1, Ct)
    pred_ref[0] = (jnp.dot(pooled, wfc_ref[...],
                           preferred_element_type=jnp.float32) + bfc_ref[...])


def _cam_kernel(mask_ref, x_ref, w1_ref, b1_ref, w2_ref, b2_ref,
                wfc_ref, cam_ref, fbuf_ref, *, s, p_lo, wp, mp):
    trans = _features(mask_ref, x_ref, w1_ref, b1_ref, w2_ref, b2_ref,
                      fbuf_ref, s=s, p_lo=p_lo, wp=wp, mp=mp)
    # Class-activation maps: per-pixel features x FC weights (bias-free);
    # written back as bf16 with exactly K columns (no 128-lane f32 padding).
    cam = jnp.dot(trans.astype(jnp.bfloat16), wfc_ref[...],
                  preferred_element_type=jnp.float32)
    cam_ref[0] = cam.astype(cam_ref.dtype)


# ---------------------------------------------------------------------------
# UnifiedNetwork.forward wrapper
# ---------------------------------------------------------------------------
def _fixed_spec(shape):
    """Full-array block with a constant index map (stays VMEM resident)."""
    zeros = (0,) * len(shape)
    return pl.BlockSpec(shape, lambda i, _z=zeros: _z)


@functools.partial(jax.jit, static_argnames=("return_cam",))
def unified_network_forward(x_nchw, params, return_cam=False):
    """Returns logits (N, K), or per-class CAMs (N, K, H, W) if return_cam."""
    x = jnp.transpose(x_nchw, (0, 2, 3, 1)).astype(jnp.float32)   # NCHW -> NHWC
    n, h, w, c_in = x.shape
    wp = w + 2                         # padded row width
    mp = (h + 2) * wp                  # padded flat rows per image
    p_lo = wp + 1                      # first interior pixel in the flat layout
    s = h * wp - 2                     # contiguous span covering all interiors
    hw = h * w

    # Zero-pad spatially once; activations stay in this padded flat layout
    # end-to-end, so no per-tap boundary masking is needed inside the kernel.
    x_flat = jnp.pad(x, ((0, 0), (1, 1), (1, 1), (0, 0))).reshape(n, mp, c_in)

    # Interior-column mask for the span (shared across all images; DMA'd once
    # and kept VMEM resident via a constant index map).
    cols = (jnp.arange(s, dtype=jnp.int32) + p_lo) % wp
    mask = ((cols >= 1) & (cols <= w)).astype(jnp.float32).reshape(s, 1)

    c_feat = params["w_backbone"].shape[-1]
    c_trans = params["w_trans"].shape[-1]
    k = params["w_fc"].shape[-1]

    w1 = params["w_backbone"].reshape(9, c_in, c_feat).astype(jnp.bfloat16)
    b1 = params["b_backbone"].reshape(1, c_feat).astype(jnp.float32)
    w2 = params["w_trans"].reshape(9, c_feat, c_trans).astype(jnp.bfloat16)
    b2 = params["b_trans"].reshape(1, c_trans).astype(jnp.float32)

    common_specs = [
        _fixed_spec((s, 1)),                                   # interior mask
        pl.BlockSpec((1, mp, c_in), lambda i: (i, 0, 0)),      # x, per image
        _fixed_spec((9, c_in, c_feat)), _fixed_spec((1, c_feat)),
        _fixed_spec((9, c_feat, c_trans)), _fixed_spec((1, c_trans)),
    ]
    scratch = [pltpu.VMEM((mp, c_feat), jnp.float32)]
    cparams = pltpu.CompilerParams(
        dimension_semantics=("parallel",),        # megacore sharding on v7x
        vmem_limit_bytes=32 * 1024 * 1024)        # safe on v5e/v6e/v7x

    if return_cam:
        wfc_b = params["w_fc"].astype(jnp.bfloat16)            # (Ct, K)
        cam = pl.pallas_call(
            functools.partial(_cam_kernel, s=s, p_lo=p_lo, wp=wp, mp=mp),
            out_shape=jax.ShapeDtypeStruct((n, s, k), jnp.bfloat16),
            grid=(n,),
            in_specs=common_specs + [_fixed_spec((c_trans, k))],
            out_specs=pl.BlockSpec((1, s, k), lambda i: (i, 0, 0)),
            scratch_shapes=scratch,
            compiler_params=cparams,
        )(mask, x_flat, w1, b1, w2, b2, wfc_b)
        # Re-embed the flat span into (H, W): pure XLA reshaping in the wrapper.
        cam = jnp.pad(cam.astype(jnp.float32),
                      ((0, 0), (p_lo, mp - p_lo - s), (0, 0)))
        cam = cam.reshape(n, h + 2, wp, k)[:, 1:h + 1, 1:w + 1, :]
        return jnp.transpose(cam, (0, 3, 1, 2))                # (N, K, H, W)

    wfc = params["w_fc"].astype(jnp.float32)                   # (Ct, K)
    bfc = params["b_fc"].reshape(1, k).astype(jnp.float32)
    pred = pl.pallas_call(
        functools.partial(_pred_kernel, s=s, p_lo=p_lo, wp=wp, mp=mp, hw=hw),
        out_shape=jax.ShapeDtypeStruct((n, 1, k), jnp.float32),
        grid=(n,),
        in_specs=common_specs + [_fixed_spec((c_trans, k)), _fixed_spec((1, k))],
        out_specs=pl.BlockSpec((1, 1, k), lambda i: (i, 0, 0)),
        scratch_shapes=scratch,
        compiler_params=cparams,
    )(mask, x_flat, w1, b1, w2, b2, wfc, bfc)
    return pred.reshape(n, k)                                  # (N, num_classes)


# ---------------------------------------------------------------------------
# Parameters and a pure-JAX fp32 reference for validation
# ---------------------------------------------------------------------------
def init_params(key, c_in=3, c_feat=16, c_trans=32, num_classes=8):
    def uniform(kk, shape, fan_in):
        bound = 1.0 / (fan_in ** 0.5)
        return jax.random.uniform(kk, shape, jnp.float32, -bound, bound)

    k1, k2, k3, k4, k5, k6 = jax.random.split(key, 6)
    return {
        "w_backbone": uniform(k1, (3, 3, c_in, c_feat), 9 * c_in),
        "b_backbone": uniform(k2, (c_feat,), 9 * c_in),
        "w_trans": uniform(k3, (3, 3, c_feat, c_trans), 9 * c_feat),
        "b_trans": uniform(k4, (c_trans,), 9 * c_feat),
        "w_fc": uniform(k5, (c_trans, num_classes), c_trans),
        "b_fc": uniform(k6, (num_classes,), c_trans),
    }


def _reference_forward(x_nchw, params, return_cam=False):
    x = jnp.transpose(x_nchw, (0, 2, 3, 1)).astype(jnp.float32)

    def conv3x3_relu(inp, wgt, bias):
        _, hh, ww, _ = inp.shape
        xp = jnp.pad(inp, ((0, 0), (1, 1), (1, 1), (0, 0)))
        acc = jnp.zeros(inp.shape[:3] + (wgt.shape[-1],), jnp.float32)
        for kh in range(3):
            for kw in range(3):
                acc = acc + jnp.einsum("nhwc,cd->nhwd",
                                       xp[:, kh:kh + hh, kw:kw + ww, :],
                                       wgt[kh, kw])
        return jnp.maximum(acc + bias, 0.0)

    feat = conv3x3_relu(x, params["w_backbone"], params["b_backbone"])
    trans = conv3x3_relu(feat, params["w_trans"], params["b_trans"])
    if return_cam:
        cam = jnp.einsum("nhwc,ck->nhwk", trans, params["w_fc"])
        return jnp.transpose(cam, (0, 3, 1, 2))
    pooled = jnp.mean(trans, axis=(1, 2))
    return pooled @ params["w_fc"] + params["b_fc"]


if __name__ == "__main__":
    key = jax.random.PRNGKey(0)
    k_param, k_inp = jax.random.split(key)
    params = init_params(k_param, c_in=3, c_feat=16, c_trans=32, num_classes=8)

    x = jax.random.normal(k_inp, (2, 3, 16, 16), jnp.float32)   # NCHW input

    pred = unified_network_forward(x, params, return_cam=False)
    cam = unified_network_forward(x, params, return_cam=True)
    jax.block_until_ready((pred, cam))

    assert pred.shape == (2, 8), pred.shape
    assert cam.shape == (2, 8, 16, 16), cam.shape

    pred_ref = _reference_forward(x, params, return_cam=False)
    cam_ref = _reference_forward(x, params, return_cam=True)
    assert jnp.allclose(pred, pred_ref, rtol=2e-2, atol=2e-2), \
        float(jnp.max(jnp.abs(pred - pred_ref)))
    assert jnp.allclose(cam, cam_ref, rtol=2e-2, atol=2e-2), \
        float(jnp.max(jnp.abs(cam - cam_ref)))

    print("KERNEL_OK")
</pallas_src>

<mosaic_0001>
module attributes {stable_mosaic.version = 11 : i64} {
  func.func @_pred_kernel(%arg0: i32, %arg1: memref<286x1xf32, #tpu.memory_space<vmem>>, %arg2: memref<1x324x3xf32, #tpu.memory_space<vmem>>, %arg3: memref<9x3x16xbf16, #tpu.memory_space<vmem>>, %arg4: memref<1x16xf32, #tpu.memory_space<vmem>>, %arg5: memref<9x16x32xbf16, #tpu.memory_space<vmem>>, %arg6: memref<1x32xf32, #tpu.memory_space<vmem>>, %arg7: memref<32x8xf32, #tpu.memory_space<vmem>>, %arg8: memref<1x8xf32, #tpu.memory_space<vmem>>, %arg9: memref<1x1x8xf32, #tpu.memory_space<vmem>>, %arg10: memref<324x16xf32, #tpu.memory_space<vmem>>) attributes {dimension_semantics = [#tpu.dimension_semantics<parallel>], iteration_bounds = array<i64: 2>, scalar_prefetch = 0 : i64, scratch_operands = 1 : i64, tpu.core_type = #tpu.core_type<tc>, window_params = [{pipeline_mode = #tpu.pipeline_mode<synchronous>, transform_indices = @transform_0, window_bounds = array<i64: 286, 1>}, {transform_indices = @transform_1, window_bounds = array<i64: 1, 324, 3>}, {pipeline_mode = #tpu.pipeline_mode<synchronous>, transform_indices = @transform_2, window_bounds = array<i64: 9, 3, 16>}, {pipeline_mode = #tpu.pipeline_mode<synchronous>, transform_indices = @transform_3, window_bounds = array<i64: 1, 16>}, {pipeline_mode = #tpu.pipeline_mode<synchronous>, transform_indices = @transform_4, window_bounds = array<i64: 9, 16, 32>}, {pipeline_mode = #tpu.pipeline_mode<synchronous>, transform_indices = @transform_5, window_bounds = array<i64: 1, 32>}, {pipeline_mode = #tpu.pipeline_mode<synchronous>, transform_indices = @transform_6, window_bounds = array<i64: 32, 8>}, {pipeline_mode = #tpu.pipeline_mode<synchronous>, transform_indices = @transform_7, window_bounds = array<i64: 1, 8>}, {transform_indices = @transform_8, window_bounds = array<i64: 1, 1, 8>}]} {
    %c0 = arith.constant 0 : index
    %c0_0 = arith.constant 0 : index
    %0 = vector.load %arg1[%c0, %c0_0] : memref<286x1xf32, #tpu.memory_space<vmem>>, vector<286x1xf32>
    %cst = arith.constant 0.000000e+00 : f32
    %1 = vector.broadcast %cst : f32 to vector<286x16xf32>
    %c0_1 = arith.constant 0 : index
    %c0_2 = arith.constant 0 : index
    %c0_3 = arith.constant 0 : index
    %2 = vector.load %arg2[%c0_1, %c0_2, %c0_3] : memref<1x324x3xf32, #tpu.memory_space<vmem>>, vector<1x286x3xf32>
    %3 = vector.shape_cast %2 : vector<1x286x3xf32> to vector<286x3xf32>
    %4 = arith.truncf %3 : vector<286x3xf32> to vector<286x3xbf16>
    %c0_4 = arith.constant 0 : index
    %c0_5 = arith.constant 0 : index
    %c0_6 = arith.constant 0 : index
    %5 = vector.load %arg3[%c0_4, %c0_5, %c0_6] : memref<9x3x16xbf16, #tpu.memory_space<vmem>>, vector<1x3x16xbf16>
    %6 = vector.shape_cast %5 : vector<1x3x16xbf16> to vector<3x16xbf16>
    %cst_7 = arith.constant dense<0.000000e+00> : vector<286x16xf32>
    %7 = tpu.matmul %4, %6, %cst_7 {dimension_numbers = #tpu.dot_dimension_numbers<[1], [0], [0], [1], [0, 0, 1, 1], [], []>} : vector<286x3xbf16>, vector<3x16xbf16>, vector<286x16xf32> -> vector<286x16xf32>
    %8 = arith.addf %1, %7 : vector<286x16xf32>
    %c0_8 = arith.constant 0 : index
    %c1 = arith.constant 1 : index
    %c0_9 = arith.constant 0 : index
    %9 = vector.load %arg2[%c0_8, %c1, %c0_9] : memref<1x324x3xf32, #tpu.memory_space<vmem>>, vector<1x286x3xf32>
    %10 = vector.shape_cast %9 : vector<1x286x3xf32> to vector<286x3xf32>
    %11 = arith.truncf %10 : vector<286x3xf32> to vector<286x3xbf16>
    %c1_10 = arith.constant 1 : index
    %c0_11 = arith.constant 0 : index
    %c0_12 = arith.constant 0 : index
    %12 = vector.load %arg3[%c1_10, %c0_11, %c0_12] : memref<9x3x16xbf16, #tpu.memory_space<vmem>>, vector<1x3x16xbf16>
    %13 = vector.shape_cast %12 : vector<1x3x16xbf16> to vector<3x16xbf16>
    %cst_13 = arith.constant dense<0.000000e+00> : vector<286x16xf32>
    %14 = tpu.matmul %11, %13, %cst_13 {dimension_numbers = #tpu.dot_dimension_numbers<[1], [0], [0], [1], [0, 0, 1, 1], [], []>} : vector<286x3xbf16>, vector<3x16xbf16>, vector<286x16xf32> -> vector<286x16xf32>
    %15 = arith.addf %8, %14 : vector<286x16xf32>
    %c0_14 = arith.constant 0 : index
    %c2 = arith.constant 2 : index
    %c0_15 = arith.constant 0 : index
    %16 = vector.load %arg2[%c0_14, %c2, %c0_15] : memref<1x324x3xf32, #tpu.memory_space<vmem>>, vector<1x286x3xf32>
    %17 = vector.shape_cast %16 : vector<1x286x3xf32> to vector<286x3xf32>
    %18 = arith.truncf %17 : vector<286x3xf32> to vector<286x3xbf16>
    %c2_16 = arith.constant 2 : index
    %c0_17 = arith.constant 0 : index
    %c0_18 = arith.constant 0 : index
    %19 = vector.load %arg3[%c2_16, %c0_17, %c0_18] : memref<9x3x16xbf16, #tpu.memory_space<vmem>>, vector<1x3x16xbf16>
    %20 = vector.shape_cast %19 : vector<1x3x16xbf16> to vector<3x16xbf16>
    %cst_19 = arith.constant dense<0.000000e+00> : vector<286x16xf32>
    %21 = tpu.matmul %18, %20, %cst_19 {dimension_numbers = #tpu.dot_dimension_numbers<[1], [0], [0], [1], [0, 0, 1, 1], [], []>} : vector<286x3xbf16>, vector<3x16xbf16>, vector<286x16xf32> -> vector<286x16xf32>
    %22 = arith.addf %15, %21 : vector<286x16xf32>
    %c0_20 = arith.constant 0 : index
    %c18 = arith.constant 18 : index
    %c0_21 = arith.constant 0 : index
    %23 = vector.load %arg2[%c0_20, %c18, %c0_21] : memref<1x324x3xf32, #tpu.memory_space<vmem>>, vector<1x286x3xf32>
    %24 = vector.shape_cast %23 : vector<1x286x3xf32> to vector<286x3xf32>
    %25 = arith.truncf %24 : vector<286x3xf32> to vector<286x3xbf16>
    %c3 = arith.constant 3 : index
    %c0_22 = arith.constant 0 : index
    %c0_23 = arith.constant 0 : index
    %26 = vector.load %arg3[%c3, %c0_22, %c0_23] : memref<9x3x16xbf16, #tpu.memory_space<vmem>>, vector<1x3x16xbf16>
    %27 = vector.shape_cast %26 : vector<1x3x16xbf16> to vector<3x16xbf16>
    %cst_24 = arith.constant dense<0.000000e+00> : vector<286x16xf32>
    %28 = tpu.matmul %25, %27, %cst_24 {dimension_numbers = #tpu.dot_dimension_numbers<[1], [0], [0], [1], [0, 0, 1, 1], [], []>} : vector<286x3xbf16>, vector<3x16xbf16>, vector<286x16xf32> -> vector<286x16xf32>
    %29 = arith.addf %22, %28 : vector<286x16xf32>
    %c0_25 = arith.constant 0 : index
    %c19 = arith.constant 19 : index
    %c0_26 = arith.constant 0 : index
    %30 = vector.load %arg2[%c0_25, %c19, %c0_26] : memref<1x324x3xf32, #tpu.memory_space<vmem>>, vector<1x286x3xf32>
    %31 = vector.shape_cast %30 : vector<1x286x3xf32> to vector<286x3xf32>
    %32 = arith.truncf %31 : vector<286x3xf32> to vector<286x3xbf16>
    %c4 = arith.constant 4 : index
    %c0_27 = arith.constant 0 : index
    %c0_28 = arith.constant 0 : index
    %33 = vector.load %arg3[%c4, %c0_27, %c0_28] : memref<9x3x16xbf16, #tpu.memory_space<vmem>>, vector<1x3x16xbf16>
    %34 = vector.shape_cast %33 : vector<1x3x16xbf16> to vector<3x16xbf16>
    %cst_29 = arith.constant dense<0.000000e+00> : vector<286x16xf32>
    %35 = tpu.matmul %32, %34, %cst_29 {dimension_numbers = #tpu.dot_dimension_numbers<[1], [0], [0], [1], [0, 0, 1, 1], [], []>} : vector<286x3xbf16>, vector<3x16xbf16>, vector<286x16xf32> -> vector<286x16xf32>
    %36 = arith.addf %29, %35 : vector<286x16xf32>
    %c0_30 = arith.constant 0 : index
    %c20 = arith.constant 20 : index
    %c0_31 = arith.constant 0 : index
    %37 = vector.load %arg2[%c0_30, %c20, %c0_31] : memref<1x324x3xf32, #tpu.memory_space<vmem>>, vector<1x286x3xf32>
    %38 = vector.shape_cast %37 : vector<1x286x3xf32> to vector<286x3xf32>
    %39 = arith.truncf %38 : vector<286x3xf32> to vector<286x3xbf16>
    %c5 = arith.constant 5 : index
    %c0_32 = arith.constant 0 : index
    %c0_33 = arith.constant 0 : index
    %40 = vector.load %arg3[%c5, %c0_32, %c0_33] : memref<9x3x16xbf16, #tpu.memory_space<vmem>>, vector<1x3x16xbf16>
    %41 = vector.shape_cast %40 : vector<1x3x16xbf16> to vector<3x16xbf16>
    %cst_34 = arith.constant dense<0.000000e+00> : vector<286x16xf32>
    %42 = tpu.matmul %39, %41, %cst_34 {dimension_numbers = #tpu.dot_dimension_numbers<[1], [0], [0], [1], [0, 0, 1, 1], [], []>} : vector<286x3xbf16>, vector<3x16xbf16>, vector<286x16xf32> -> vector<286x16xf32>
    %43 = arith.addf %36, %42 : vector<286x16xf32>
    %c0_35 = arith.constant 0 : index
    %c36 = arith.constant 36 : index
    %c0_36 = arith.constant 0 : index
    %44 = vector.load %arg2[%c0_35, %c36, %c0_36] : memref<1x324x3xf32, #tpu.memory_space<vmem>>, vector<1x286x3xf32>
    %45 = vector.shape_cast %44 : vector<1x286x3xf32> to vector<286x3xf32>
    %46 = arith.truncf %45 : vector<286x3xf32> to vector<286x3xbf16>
    %c6 = arith.constant 6 : index
    %c0_37 = arith.constant 0 : index
    %c0_38 = arith.constant 0 : index
    %47 = vector.load %arg3[%c6, %c0_37, %c0_38] : memref<9x3x16xbf16, #tpu.memory_space<vmem>>, vector<1x3x16xbf16>
    %48 = vector.shape_cast %47 : vector<1x3x16xbf16> to vector<3x16xbf16>
    %cst_39 = arith.constant dense<0.000000e+00> : vector<286x16xf32>
    %49 = tpu.matmul %46, %48, %cst_39 {dimension_numbers = #tpu.dot_dimension_numbers<[1], [0], [0], [1], [0, 0, 1, 1], [], []>} : vector<286x3xbf16>, vector<3x16xbf16>, vector<286x16xf32> -> vector<286x16xf32>
    %50 = arith.addf %43, %49 : vector<286x16xf32>
    %c0_40 = arith.constant 0 : index
    %c37 = arith.constant 37 : index
    %c0_41 = arith.constant 0 : index
    %51 = vector.load %arg2[%c0_40, %c37, %c0_41] : memref<1x324x3xf32, #tpu.memory_space<vmem>>, vector<1x286x3xf32>
    %52 = vector.shape_cast %51 : vector<1x286x3xf32> to vector<286x3xf32>
    %53 = arith.truncf %52 : vector<286x3xf32> to vector<286x3xbf16>
    %c7 = arith.constant 7 : index
    %c0_42 = arith.constant 0 : index
    %c0_43 = arith.constant 0 : index
    %54 = vector.load %arg3[%c7, %c0_42, %c0_43] : memref<9x3x16xbf16, #tpu.memory_space<vmem>>, vector<1x3x16xbf16>
    %55 = vector.shape_cast %54 : vector<1x3x16xbf16> to vector<3x16xbf16>
    %cst_44 = arith.constant dense<0.000000e+00> : vector<286x16xf32>
    %56 = tpu.matmul %53, %55, %cst_44 {dimension_numbers = #tpu.dot_dimension_numbers<[1], [0], [0], [1], [0, 0, 1, 1], [], []>} : vector<286x3xbf16>, vector<3x16xbf16>, vector<286x16xf32> -> vector<286x16xf32>
    %57 = arith.addf %50, %56 : vector<286x16xf32>
    %c0_45 = arith.constant 0 : index
    %c38 = arith.constant 38 : index
    %c0_46 = arith.constant 0 : index
    %58 = vector.load %arg2[%c0_45, %c38, %c0_46] : memref<1x324x3xf32, #tpu.memory_space<vmem>>, vector<1x286x3xf32>
    %59 = vector.shape_cast %58 : vector<1x286x3xf32> to vector<286x3xf32>
    %60 = arith.truncf %59 : vector<286x3xf32> to vector<286x3xbf16>
    %c8 = arith.constant 8 : index
    %c0_47 = arith.constant 0 : index
    %c0_48 = arith.constant 0 : index
    %61 = vector.load %arg3[%c8, %c0_47, %c0_48] : memref<9x3x16xbf16, #tpu.memory_space<vmem>>, vector<1x3x16xbf16>
    %62 = vector.shape_cast %61 : vector<1x3x16xbf16> to vector<3x16xbf16>
    %cst_49 = arith.constant dense<0.000000e+00> : vector<286x16xf32>
    %63 = tpu.matmul %60, %62, %cst_49 {dimension_numbers = #tpu.dot_dimension_numbers<[1], [0], [0], [1], [0, 0, 1, 1], [], []>} : vector<286x3xbf16>, vector<3x16xbf16>, vector<286x16xf32> -> vector<286x16xf32>
    %64 = arith.addf %57, %63 : vector<286x16xf32>
    %c0_50 = arith.constant 0 : index
    %c0_51 = arith.constant 0 : index
    %65 = vector.load %arg4[%c0_50, %c0_51] : memref<1x16xf32, #tpu.memory_space<vmem>>, vector<1x16xf32>
    %66 = vector.broadcast %65 : vector<1x16xf32> to vector<286x16xf32>
    %67 = arith.addf %64, %66 : vector<286x16xf32>
    %cst_52 = arith.constant 0.000000e+00 : f32
    %68 = vector.broadcast %cst_52 : f32 to vector<286x16xf32>
    %69 = arith.maximumf %67, %68 : vector<286x16xf32>
    %70 = vector.broadcast %0 : vector<286x1xf32> to vector<286x16xf32>
    %71 = arith.mulf %69, %70 : vector<286x16xf32>
    %cst_53 = arith.constant 0.000000e+00 : f32
    %72 = vector.broadcast %cst_53 : f32 to vector<19x16xf32>
    %c0_54 = arith.constant 0 : index
    %c0_55 = arith.constant 0 : index
    %73 = vector.load %arg10[%c0_54, %c0_55] : memref<324x16xf32, #tpu.memory_space<vmem>>, vector<19x16xf32>
    tpu.vector_store %arg10[%c0_54, %c0_55], %72 {strides = array<i32>} : memref<324x16xf32, #tpu.memory_space<vmem>>, vector<19x16xf32>,
    %cst_56 = arith.constant 0.000000e+00 : f32
    %74 = vector.broadcast %cst_56 : f32 to vector<19x16xf32>
    %c305 = arith.constant 305 : index
    %c0_57 = arith.constant 0 : index
    %75 = vector.load %arg10[%c305, %c0_57] : memref<324x16xf32, #tpu.memory_space<vmem>>, vector<19x16xf32>
    tpu.vector_store %arg10[%c305, %c0_57], %74 {strides = array<i32>} : memref<324x16xf32, #tpu.memory_space<vmem>>, vector<19x16xf32>,
    %c19_58 = arith.constant 19 : index
    %c0_59 = arith.constant 0 : index
    %76 = vector.load %arg10[%c19_58, %c0_59] : memref<324x16xf32, #tpu.memory_space<vmem>>, vector<286x16xf32>
    tpu.vector_store %arg10[%c19_58, %c0_59], %71 {strides = array<i32>} : memref<324x16xf32, #tpu.memory_space<vmem>>, vector<286x16xf32>,
    %cst_60 = arith.constant 0.000000e+00 : f32
    %77 = vector.broadcast %cst_60 : f32 to vector<286x32xf32>
    %c0_61 = arith.constant 0 : index
    %c0_62 = arith.constant 0 : index
    %78 = vector.load %arg10[%c0_61, %c0_62] : memref<324x16xf32, #tpu.memory_space<vmem>>, vector<286x16xf32>
    %79 = arith.truncf %78 : vector<286x16xf32> to vector<286x16xbf16>
    %c0_63 = arith.constant 0 : index
    %c0_64 = arith.constant 0 : index
    %c0_65 = arith.constant 0 : index
    %80 = vector.load %arg5[%c0_63, %c0_64, %c0_65] : memref<9x16x32xbf16, #tpu.memory_space<vmem>>, vector<1x16x32xbf16>
    %81 = vector.shape_cast %80 : vector<1x16x32xbf16> to vector<16x32xbf16>
    %cst_66 = arith.constant dense<0.000000e+00> : vector<286x32xf32>
    %82 = tpu.matmul %79, %81, %cst_66 {dimension_numbers = #tpu.dot_dimension_numbers<[1], [0], [0], [1], [0, 0, 1, 1], [], []>} : vector<286x16xbf16>, vector<16x32xbf16>, vector<286x32xf32> -> vector<286x32xf32>
    %83 = arith.addf %77, %82 : vector<286x32xf32>
    %c1_67 = arith.constant 1 : index
    %c0_68 = arith.constant 0 : index
    %84 = vector.load %arg10[%c1_67, %c0_68] : memref<324x16xf32, #tpu.memory_space<vmem>>, vector<286x16xf32>
    %85 = arith.truncf %84 : vector<286x16xf32> to vector<286x16xbf16>
    %c1_69 = arith.constant 1 : index
    %c0_70 = arith.constant 0 : index
    %c0_71 = arith.constant 0 : index
    %86 = vector.load %arg5[%c1_69, %c0_70, %c0_71] : memref<9x16x32xbf16, #tpu.memory_space<vmem>>, vector<1x16x32xbf16>
    %87 = vector.shape_cast %86 : vector<1x16x32xbf16> to vector<16x32xbf16>
    %cst_72 = arith.constant dense<0.000000e+00> : vector<286x32xf32>
    %88 = tpu.matmul %85, %87, %cst_72 {dimension_numbers = #tpu.dot_dimension_numbers<[1], [0], [0], [1], [0, 0, 1, 1], [], []>} : vector<286x16xbf16>, vector<16x32xbf16>, vector<286x32xf32> -> vector<286x32xf32>
    %89 = arith.addf %83, %88 : vector<286x32xf32>
    %c2_73 = arith.constant 2 : index
    %c0_74 = arith.constant 0 : index
    %90 = vector.load %arg10[%c2_73, %c0_74] : memref<324x16xf32, #tpu.memory_space<vmem>>, vector<286x16xf32>
    %91 = arith.truncf %90 : vector<286x16xf32> to vector<286x16xbf16>
    %c2_75 = arith.constant 2 : index
    %c0_76 = arith.constant 0 : index
    %c0_77 = arith.constant 0 : index
    %92 = vector.load %arg5[%c2_75, %c0_76, %c0_77] : memref<9x16x32xbf16, #tpu.memory_space<vmem>>, vector<1x16x32xbf16>
    %93 = vector.shape_cast %92 : vector<1x16x32xbf16> to vector<16x32xbf16>
    %cst_78 = arith.constant dense<0.000000e+00> : vector<286x32xf32>
    %94 = tpu.matmul %91, %93, %cst_78 {dimension_numbers = #tpu.dot_dimension_numbers<[1], [0], [0], [1], [0, 0, 1, 1], [], []>} : vector<286x16xbf16>, vector<16x32xbf16>, vector<286x32xf32> -> vector<286x32xf32>
    %95 = arith.addf %89, %94 : vector<286x32xf32>
    %c18_79 = arith.constant 18 : index
    %c0_80 = arith.constant 0 : index
    %96 = vector.load %arg10[%c18_79, %c0_80] : memref<324x16xf32, #tpu.memory_space<vmem>>, vector<286x16xf32>
    %97 = arith.truncf %96 : vector<286x16xf32> to vector<286x16xbf16>
    %c3_81 = arith.constant 3 : index
    %c0_82 = arith.constant 0 : index
    %c0_83 = arith.constant 0 : index
    %98 = vector.load %arg5[%c3_81, %c0_82, %c0_83] : memref<9x16x32xbf16, #tpu.memory_space<vmem>>, vector<1x16x32xbf16>
    %99 = vector.shape_cast %98 : vector<1x16x32xbf16> to vector<16x32xbf16>
    %cst_84 = arith.constant dense<0.000000e+00> : vector<286x32xf32>
    %100 = tpu.matmul %97, %99, %cst_84 {dimension_numbers = #tpu.dot_dimension_numbers<[1], [0], [0], [1], [0, 0, 1, 1], [], []>} : vector<286x16xbf16>, vector<16x32xbf16>, vector<286x32xf32> -> vector<286x32xf32>
    %101 = arith.addf %95, %100 : vector<286x32xf32>
    %c19_85 = arith.constant 19 : index
    %c0_86 = arith.constant 0 : index
    %102 = vector.load %arg10[%c19_85, %c0_86] : memref<324x16xf32, #tpu.memory_space<vmem>>, vector<286x16xf32>
    %103 = arith.truncf %102 : vector<286x16xf32> to vector<286x16xbf16>
    %c4_87 = arith.constant 4 : index
    %c0_88 = arith.constant 0 : index
    %c0_89 = arith.constant 0 : index
    %104 = vector.load %arg5[%c4_87, %c0_88, %c0_89] : memref<9x16x32xbf16, #tpu.memory_space<vmem>>, vector<1x16x32xbf16>
    %105 = vector.shape_cast %104 : vector<1x16x32xbf16> to vector<16x32xbf16>
    %cst_90 = arith.constant dense<0.000000e+00> : vector<286x32xf32>
    %106 = tpu.matmul %103, %105, %cst_90 {dimension_numbers = #tpu.dot_dimension_numbers<[1], [0], [0], [1], [0, 0, 1, 1], [], []>} : vector<286x16xbf16>, vector<16x32xbf16>, vector<286x32xf32> -> vector<286x32xf32>
    %107 = arith.addf %101, %106 : vector<286x32xf32>
    %c20_91 = arith.constant 20 : index
    %c0_92 = arith.constant 0 : index
    %108 = vector.load %arg10[%c20_91, %c0_92] : memref<324x16xf32, #tpu.memory_space<vmem>>, vector<286x16xf32>
    %109 = arith.truncf %108 : vector<286x16xf32> to vector<286x16xbf16>
    %c5_93 = arith.constant 5 : index
    %c0_94 = arith.constant 0 : index
    %c0_95 = arith.constant 0 : index
    %110 = vector.load %arg5[%c5_93, %c0_94, %c0_95] : memref<9x16x32xbf16, #tpu.memory_space<vmem>>, vector<1x16x32xbf16>
    %111 = vector.shape_cast %110 : vector<1x16x32xbf16> to vector<16x32xbf16>
    %cst_96 = arith.constant dense<0.000000e+00> : vector<286x32xf32>
    %112 = tpu.matmul %109, %111, %cst_96 {dimension_numbers = #tpu.dot_dimension_numbers<[1], [0], [0], [1], [0, 0, 1, 1], [], []>} : vector<286x16xbf16>, vector<16x32xbf16>, vector<286x32xf32> -> vector<286x32xf32>
    %113 = arith.addf %107, %112 : vector<286x32xf32>
    %c36_97 = arith.constant 36 : index
    %c0_98 = arith.constant 0 : index
    %114 = vector.load %arg10[%c36_97, %c0_98] : memref<324x16xf32, #tpu.memory_space<vmem>>, vector<286x16xf32>
    %115 = arith.truncf %114 : vector<286x16xf32> to vector<286x16xbf16>
    %c6_99 = arith.constant 6 : index
    %c0_100 = arith.constant 0 : index
    %c0_101 = arith.constant 0 : index
    %116 = vector.load %arg5[%c6_99, %c0_100, %c0_101] : memref<9x16x32xbf16, #tpu.memory_space<vmem>>, vector<1x16x32xbf16>
    %117 = vector.shape_cast %116 : vector<1x16x32xbf16> to vector<16x32xbf16>
    %cst_102 = arith.constant dense<0.000000e+00> : vector<286x32xf32>
    %118 = tpu.matmul %115, %117, %cst_102 {dimension_numbers = #tpu.dot_dimension_numbers<[1], [0], [0], [1], [0, 0, 1, 1], [], []>} : vector<286x16xbf16>, vector<16x32xbf16>, vector<286x32xf32> -> vector<286x32xf32>
    %119 = arith.addf %113, %118 : vector<286x32xf32>
    %c37_103 = arith.constant 37 : index
    %c0_104 = arith.constant 0 : index
    %120 = vector.load %arg10[%c37_103, %c0_104] : memref<324x16xf32, #tpu.memory_space<vmem>>, vector<286x16xf32>
    %121 = arith.truncf %120 : vector<286x16xf32> to vector<286x16xbf16>
    %c7_105 = arith.constant 7 : index
    %c0_106 = arith.constant 0 : index
    %c0_107 = arith.constant 0 : index
    %122 = vector.load %arg5[%c7_105, %c0_106, %c0_107] : memref<9x16x32xbf16, #tpu.memory_space<vmem>>, vector<1x16x32xbf16>
    %123 = vector.shape_cast %122 : vector<1x16x32xbf16> to vector<16x32xbf16>
    %cst_108 = arith.constant dense<0.000000e+00> : vector<286x32xf32>
    %124 = tpu.matmul %121, %123, %cst_108 {dimension_numbers = #tpu.dot_dimension_numbers<[1], [0], [0], [1], [0, 0, 1, 1], [], []>} : vector<286x16xbf16>, vector<16x32xbf16>, vector<286x32xf32> -> vector<286x32xf32>
    %125 = arith.addf %119, %124 : vector<286x32xf32>
    %c38_109 = arith.constant 38 : index
    %c0_110 = arith.constant 0 : index
    %126 = vector.load %arg10[%c38_109, %c0_110] : memref<324x16xf32, #tpu.memory_space<vmem>>, vector<286x16xf32>
    %127 = arith.truncf %126 : vector<286x16xf32> to vector<286x16xbf16>
    %c8_111 = arith.constant 8 : index
    %c0_112 = arith.constant 0 : index
    %c0_113 = arith.constant 0 : index
    %128 = vector.load %arg5[%c8_111, %c0_112, %c0_113] : memref<9x16x32xbf16, #tpu.memory_space<vmem>>, vector<1x16x32xbf16>
    %129 = vector.shape_cast %128 : vector<1x16x32xbf16> to vector<16x32xbf16>
    %cst_114 = arith.constant dense<0.000000e+00> : vector<286x32xf32>
    %130 = tpu.matmul %127, %129, %cst_114 {dimension_numbers = #tpu.dot_dimension_numbers<[1], [0], [0], [1], [0, 0, 1, 1], [], []>} : vector<286x16xbf16>, vector<16x32xbf16>, vector<286x32xf32> -> vector<286x32xf32>
    %131 = arith.addf %125, %130 : vector<286x32xf32>
    %c0_115 = arith.constant 0 : index
    %c0_116 = arith.constant 0 : index
    %132 = vector.load %arg6[%c0_115, %c0_116] : memref<1x32xf32, #tpu.memory_space<vmem>>, vector<1x32xf32>
    %133 = vector.broadcast %132 : vector<1x32xf32> to vector<286x32xf32>
    %134 = arith.addf %131, %133 : vector<286x32xf32>
    %cst_117 = arith.constant 0.000000e+00 : f32
    %135 = vector.broadcast %cst_117 : f32 to vector<286x32xf32>
    %136 = arith.maximumf %134, %135 : vector<286x32xf32>
    %137 = vector.broadcast %0 : vector<286x1xf32> to vector<286x32xf32>
    %138 = arith.mulf %136, %137 : vector<286x32xf32>
    %cst_118 = arith.constant dense<0.000000e+00> : vector<32xf32>
    %139 = vector.multi_reduction <add>, %138, %cst_118 [0] : vector<286x32xf32> to vector<32xf32>
    %140 = vector.shape_cast %139 : vector<32xf32> to vector<1x32xf32>
    %cst_119 = arith.constant 3.906250e-03 : f32
    %141 = vector.broadcast %cst_119 : f32 to vector<1x32xf32>
    %142 = arith.mulf %140, %141 : vector<1x32xf32>
    %c0_120 = arith.constant 0 : index
    %c0_121 = arith.constant 0 : index
    %143 = vector.load %arg7[%c0_120, %c0_121] : memref<32x8xf32, #tpu.memory_space<vmem>>, vector<32x8xf32>
    %cst_122 = arith.constant dense<0.000000e+00> : vector<1x8xf32>
    %144 = tpu.matmul %142, %143, %cst_122 {dimension_numbers = #tpu.dot_dimension_numbers<[1], [0], [0], [1], [0, 0, 1, 1], [], []>} : vector<1x32xf32>, vector<32x8xf32>, vector<1x8xf32> -> vector<1x8xf32>
    %c0_123 = arith.constant 0 : index
    %c0_124 = arith.constant 0 : index
    %145 = vector.load %arg8[%c0_123, %c0_124] : memref<1x8xf32, #tpu.memory_space<vmem>>, vector<1x8xf32>
    %146 = arith.addf %144, %145 : vector<1x8xf32>
    %c0_125 = arith.constant 0 : index
    %c0_126 = arith.constant 0 : index
    %c0_127 = arith.constant 0 : index
    %147 = vector.load %arg9[%c0_125, %c0_126, %c0_127] : memref<1x1x8xf32, #tpu.memory_space<vmem>>, vector<1x1x8xf32>
    %148 = vector.shape_cast %147 : vector<1x1x8xf32> to vector<1x8xf32>
    %149 = vector.shape_cast %146 : vector<1x8xf32> to vector<1x1x8xf32>
    tpu.vector_store %arg9[%c0_125, %c0_126, %c0_127], %149 {strides = array<i32>} : memref<1x1x8xf32, #tpu.memory_space<vmem>>, vector<1x1x8xf32>,
    return
  }
  func.func @transform_0(%arg0: i32) -> (i32, i32) {
    %c0_i32 = arith.constant 0 : i32
    %c0_i32_0 = arith.constant 0 : i32
    %c0_i32_1 = arith.constant 0 : i32
    return %c0_i32, %c0_i32_0 : i32, i32
  }
  func.func @transform_1(%arg0: i32) -> (i32, i32, i32) {
    %c0_i32 = arith.constant 0 : i32
    %c0_i32_0 = arith.constant 0 : i32
    %c0_i32_1 = arith.constant 0 : i32
    return %arg0, %c0_i32, %c0_i32_0 : i32, i32, i32
  }
  func.func @transform_2(%arg0: i32) -> (i32, i32, i32) {
    %c0_i32 = arith.constant 0 : i32
    %c0_i32_0 = arith.constant 0 : i32
    %c0_i32_1 = arith.constant 0 : i32
    %c0_i32_2 = arith.constant 0 : i32
    return %c0_i32, %c0_i32_0, %c0_i32_1 : i32, i32, i32
  }
  func.func @transform_3(%arg0: i32) -> (i32, i32) {
    %c0_i32 = arith.constant 0 : i32
    %c0_i32_0 = arith.constant 0 : i32
    %c0_i32_1 = arith.constant 0 : i32
    return %c0_i32, %c0_i32_0 : i32, i32
  }
  func.func @transform_4(%arg0: i32) -> (i32, i32, i32) {
    %c0_i32 = arith.constant 0 : i32
    %c0_i32_0 = arith.constant 0 : i32
    %c0_i32_1 = arith.constant 0 : i32
    %c0_i32_2 = arith.constant 0 : i32
    return %c0_i32, %c0_i32_0, %c0_i32_1 : i32, i32, i32
  }
  func.func @transform_5(%arg0: i32) -> (i32, i32) {
    %c0_i32 = arith.constant 0 : i32
    %c0_i32_0 = arith.constant 0 : i32
    %c0_i32_1 = arith.constant 0 : i32
    return %c0_i32, %c0_i32_0 : i32, i32
  }
  func.func @transform_6(%arg0: i32) -> (i32, i32) {
    %c0_i32 = arith.constant 0 : i32
    %c0_i32_0 = arith.constant 0 : i32
    %c0_i32_1 = arith.constant 0 : i32
    return %c0_i32, %c0_i32_0 : i32, i32
  }
  func.func @transform_7(%arg0: i32) -> (i32, i32) {
    %c0_i32 = arith.constant 0 : i32
    %c0_i32_0 = arith.constant 0 : i32
    %c0_i32_1 = arith.constant 0 : i32
    return %c0_i32, %c0_i32_0 : i32, i32
  }
  func.func @transform_8(%arg0: i32) -> (i32, i32, i32) {
    %c0_i32 = arith.constant 0 : i32
    %c0_i32_0 = arith.constant 0 : i32
    %c0_i32_1 = arith.constant 0 : i32
    return %arg0, %c0_i32, %c0_i32_0 : i32, i32, i32
  }
}

</mosaic_0001>

<llo_original>
// kernel: unified_network_forward.1
$region0: #{unified_network_forward.1}
  #allocation0 [shape = 'u32[]', space=smem, size = 0x4, offset = 0x4, fixed_abs, tag = 'smem constant byte address 0x4 - core index']
  #allocation1 [shape = 'u32[144,128]{1,0:T(1,128)}', space=vmem, size = 0x12000, scoped, tag = 'internal scratch']
  #allocation2 [shape = 'f32[324,16]{1,0:T(8,128)}', space=vmem, size = 0x29000, scoped, tag = 'scratch operand']
  %s0 = inlined_call_operand.vmem [shape: f32[286,1], index: 0, kind: input, shape index: {}]
  %s1 = inlined_call_operand.vmem [shape: f32[2,324,3], index: 1, kind: input, shape index: {}]
  %s2 = inlined_call_operand.vmem [shape: bf16[9,3,16], index: 2, kind: input, shape index: {}]
  %s3 = inlined_call_operand.vmem [shape: f32[1,16], index: 3, kind: input, shape index: {}]
  %s4 = inlined_call_operand.vmem [shape: bf16[9,16,32], index: 4, kind: input, shape index: {}]
  %s5 = inlined_call_operand.vmem [shape: f32[1,32], index: 5, kind: input, shape index: {}]
  %s6 = inlined_call_operand.vmem [shape: f32[32,8], index: 6, kind: input, shape index: {}]
  %s7 = inlined_call_operand.vmem [shape: f32[1,8], index: 7, kind: input, shape index: {}]
  %s8 = inlined_call_operand.hbm [shape: f32[2,1,8], index: 8, kind: output, shape index: {}]
  %s9 = sld [smem:[#allocation0]]
  $region65: #{unified_network_forward.1} parent=0
    _
  %s11 = ssub.s32 1, %s9
  %s12 = scalar_select 0, %s11, %s9
  $region1: #{unified_network_forward.1} parent=0
    #allocation3 [shape = 'u8[1024]{0}', space=vmem, size = 0x400, scoped, tag = 'output window, operand 0']
    #allocation4 [shape = 's32[2]{0}', space=sflag, size = 0x8, scoped, tag = 'scoped memory for unified_network_forward.1']
    %13 = vsyncpa [#allocation4], 0
    %s14 = scalar_lea.sflag [#allocation4], 1
    %15 = vsyncpa %s14, 0
    loop: start=0, step=1, limit=4
    $region2: #{unified_network_forward.1} parent=1 // loop_pre_header
      _
    $region3: #{unified_network_forward.1} parent=1 // loop_header
      %s17 = sphi 0, %s21
      %p18 = scmp.ge.s32.totalorder %s17, 4
      %s25 = sphi 0, %s25
      %s27 = sphi 0, %s25
      %s28 = sphi 0, %s27
      %s42 = sphi 0, %s28
      %s48 = sphi 0, %s50
      %s51 = sphi 0, %s48
      %s52 = sphi 0, %s51
      %s68 = sphi 0, %s52
      %s72 = sphi 0, %s72
      %s74 = sphi 0, %s72
      %s75 = sphi 0, %s74
      %s89 = sphi 0, %s75
      %s93 = sphi 0, %s93
      %s95 = sphi 0, %s93
      %s96 = sphi 0, %s95
      %s110 = sphi 0, %s96
      %s114 = sphi 0, %s114
      %s116 = sphi 0, %s114
      %s117 = sphi 0, %s116
      %s131 = sphi 0, %s117
      %s135 = sphi 0, %s135
      %s137 = sphi 0, %s135
      %s138 = sphi 0, %s137
      %s152 = sphi 0, %s138
      %s156 = sphi 0, %s156
      %s158 = sphi 0, %s156
      %s159 = sphi 0, %s158
      %s173 = sphi 0, %s159
      %s177 = sphi 0, %s177
      %s179 = sphi 0, %s177
      %s180 = sphi 0, %s179
      %s194 = sphi 0, %s180
      %s200 = sphi 0, %s202
      %s203 = sphi 0, %s200
      %s204 = sphi 0, %s203
      %s220 = sphi 0, %s204
    $region4: #{unified_network_forward.1} parent=1 // loop_header_branch
      %20 = sbr.rel (%p18) target = $region8
    $region5: #{unified_network_forward.1} parent=1 // loop_body
      %s22 = ssub.s32 %s17, 1
      %s23 = ssub.s32 %s17, 2
      %s24 = sadd.s32 %s17, 1
      %s26 = sadd.s32 %s25, 1
      %p29 = scmp.eq.s32.totalorder %s17, 1
      %p30 = scmp.ne.s32.totalorder %s25, %s27
      %p31 = scmp.eq.s32.totalorder %s17, 0
      %p32 = por %p30, %p31
      %p33 = scmp.ne.s32.totalorder %s25, %s27
      %p34 = scmp.eq.s32.totalorder %s22, 1
      %p35 = por %p33, %p34
      %p36 = scmp.ne.s32.totalorder %s27, %s28
      %p37 = scmp.eq.s32.totalorder %s22, 0
      %p38 = por %p36, %p37
      %p39 = scmp.ne.s32.totalorder %s27, %s28
      %p40 = scmp.eq.s32.totalorder %s23, 1
      %p41 = por %p39, %p40
      %p43 = scmp.ne.s32.totalorder %s28, %s42
      %p44 = scmp.eq.s32.totalorder %s23, 0
      %p45 = por %p43, %p44
      %s46 = ssub.s32 %s17, %s24
      %p47 = scmp.eq.s32.totalorder %s46, 0
      %s49 = sadd.s32 %s48, 1
      %s50 = scalar_select %p47, %s48, %s49
      %p53 = pneg %p47
      %p54 = scmp.eq.s32.totalorder %s17, 1
      %p55 = por %p53, %p54
      %p56 = scmp.ne.s32.totalorder %s48, %s51
      %p57 = scmp.eq.s32.totalorder %s17, 0
      %p58 = por %p56, %p57
      %p59 = scmp.ne.s32.totalorder %s48, %s51
      %p60 = scmp.eq.s32.totalorder %s22, 1
      %p61 = por %p59, %p60
      %p62 = scmp.ne.s32.totalorder %s51, %s52
      %p63 = scmp.eq.s32.totalorder %s22, 0
      %p64 = por %p62, %p63
      %p65 = scmp.ne.s32.totalorder %s51, %s52
      %p66 = scmp.eq.s32.totalorder %s23, 1
      %p67 = por %p65, %p66
      %p69 = scmp.ne.s32.totalorder %s52, %s68
      %p70 = scmp.eq.s32.totalorder %s23, 0
      %p71 = por %p69, %p70
      %s73 = sadd.s32 %s72, 1
      %p76 = scmp.eq.s32.totalorder %s17, 1
      %p77 = scmp.ne.s32.totalorder %s72, %s74
      %p78 = scmp.eq.s32.totalorder %s17, 0
      %p79 = por %p77, %p78
      %p80 = scmp.ne.s32.totalorder %s72, %s74
      %p81 = scmp.eq.s32.totalorder %s22, 1
      %p82 = por %p80, %p81
      %p83 = scmp.ne.s32.totalorder %s74, %s75
      %p84 = scmp.eq.s32.totalorder %s22, 0
      %p85 = por %p83, %p84
      %p86 = scmp.ne.s32.totalorder %s74, %s75
      %p87 = scmp.eq.s32.totalorder %s23, 1
      %p88 = por %p86, %p87
      %p90 = scmp.ne.s32.totalorder %s75, %s89
      %p91 = scmp.eq.s32.totalorder %s23, 0
      %p92 = por %p90, %p91
      %s94 = sadd.s32 %s93, 1
      %p97 = scmp.eq.s32.totalorder %s17, 1
      %p98 = scmp.ne.s32.totalorder %s93, %s95
      %p99 = scmp.eq.s32.totalorder %s17, 0
      %p100 = por %p98, %p99
      %p101 = scmp.ne.s32.totalorder %s93, %s95
      %p102 = scmp.eq.s32.totalorder %s22, 1
      %p103 = por %p101, %p102
      %p104 = scmp.ne.s32.totalorder %s95, %s96
      %p105 = scmp.eq.s32.totalorder %s22, 0
      %p106 = por %p104, %p105
      %p107 = scmp.ne.s32.totalorder %s95, %s96
      %p108 = scmp.eq.s32.totalorder %s23, 1
      %p109 = por %p107, %p108
      %p111 = scmp.ne.s32.totalorder %s96, %s110
      %p112 = scmp.eq.s32.totalorder %s23, 0
      %p113 = por %p111, %p112
      %s115 = sadd.s32 %s114, 1
      %p118 = scmp.eq.s32.totalorder %s17, 1
      %p119 = scmp.ne.s32.totalorder %s114, %s116
      %p120 = scmp.eq.s32.totalorder %s17, 0
      %p121 = por %p119, %p120
      %p122 = scmp.ne.s32.totalorder %s114, %s116
      %p123 = scmp.eq.s32.totalorder %s22, 1
      %p124 = por %p122, %p123
      %p125 = scmp.ne.s32.totalorder %s116, %s117
      %p126 = scmp.eq.s32.totalorder %s22, 0
      %p127 = por %p125, %p126
      %p128 = scmp.ne.s32.totalorder %s116, %s117
      %p129 = scmp.eq.s32.totalorder %s23, 1
      %p130 = por %p128, %p129
      %p132 = scmp.ne.s32.totalorder %s117, %s131
      %p133 = scmp.eq.s32.totalorder %s23, 0
      %p134 = por %p132, %p133
      %s136 = sadd.s32 %s135, 1
      %p139 = scmp.eq.s32.totalorder %s17, 1
      %p140 = scmp.ne.s32.totalorder %s135, %s137
      %p141 = scmp.eq.s32.totalorder %s17, 0
      %p142 = por %p140, %p141
      %p143 = scmp.ne.s32.totalorder %s135, %s137
      %p144 = scmp.eq.s32.totalorder %s22, 1
      %p145 = por %p143, %p144
      %p146 = scmp.ne.s32.totalorder %s137, %s138
      %p147 = scmp.eq.s32.totalorder %s22, 0
      %p148 = por %p146, %p147
      %p149 = scmp.ne.s32.totalorder %s137, %s138
      %p150 = scmp.eq.s32.totalorder %s23, 1
      %p151 = por %p149, %p150
      %p153 = scmp.ne.s32.totalorder %s138, %s152
      %p154 = scmp.eq.s32.totalorder %s23, 0
      %p155 = por %p153, %p154
      %s157 = sadd.s32 %s156, 1
      %p160 = scmp.eq.s32.totalorder %s17, 1
      %p161 = scmp.ne.s32.totalorder %s156, %s158
      %p162 = scmp.eq.s32.totalorder %s17, 0
      %p163 = por %p161, %p162
      %p164 = scmp.ne.s32.totalorder %s156, %s158
      %p165 = scmp.eq.s32.totalorder %s22, 1
      %p166 = por %p164, %p165
      %p167 = scmp.ne.s32.totalorder %s158, %s159
      %p168 = scmp.eq.s32.totalorder %s22, 0
      %p169 = por %p167, %p168
      %p170 = scmp.ne.s32.totalorder %s158, %s159
      %p171 = scmp.eq.s32.totalorder %s23, 1
      %p172 = por %p170, %p171
      %p174 = scmp.ne.s32.totalorder %s159, %s173
      %p175 = scmp.eq.s32.totalorder %s23, 0
      %p176 = por %p174, %p175
      %s178 = sadd.s32 %s177, 1
      %p181 = scmp.eq.s32.totalorder %s17, 1
      %p182 = scmp.ne.s32.totalorder %s177, %s179
      %p183 = scmp.eq.s32.totalorder %s17, 0
      %p184 = por %p182, %p183
      %p185 = scmp.ne.s32.totalorder %s177, %s179
      %p186 = scmp.eq.s32.totalorder %s22, 1
      %p187 = por %p185, %p186
      %p188 = scmp.ne.s32.totalorder %s179, %s180
      %p189 = scmp.eq.s32.totalorder %s22, 0
      %p190 = por %p188, %p189
      %p191 = scmp.ne.s32.totalorder %s179, %s180
      %p192 = scmp.eq.s32.totalorder %s23, 1
      %p193 = por %p191, %p192
      %p195 = scmp.ne.s32.totalorder %s180, %s194
      %p196 = scmp.eq.s32.totalorder %s23, 0
      %p197 = por %p195, %p196
      %s198 = ssub.s32 %s17, %s24
      %p199 = scmp.eq.s32.totalorder %s198, 0
      %s201 = sadd.s32 %s200, 1
      %s202 = scalar_select %p199, %s200, %s201
      %p205 = pneg %p199
      %p206 = scmp.eq.s32.totalorder %s17, 1
      %p207 = por %p205, %p206
      %p208 = scmp.ne.s32.totalorder %s200, %s203
      %p209 = scmp.eq.s32.totalorder %s17, 0
      %p210 = por %p208, %p209
      %p211 = scmp.ne.s32.totalorder %s200, %s203
      %p212 = scmp.eq.s32.totalorder %s22, 1
      %p213 = por %p211, %p212
      %p214 = scmp.ne.s32.totalorder %s203, %s204
      %p215 = scmp.eq.s32.totalorder %s22, 0
      %p216 = por %p214, %p215
      %p217 = scmp.ne.s32.totalorder %s203, %s204
      %p218 = scmp.eq.s32.totalorder %s23, 1
      %p219 = por %p217, %p218
      %p221 = scmp.ne.s32.totalorder %s204, %s220
      %p222 = scmp.eq.s32.totalorder %s23, 0
      %p223 = por %p221, %p222
      %p224 = scmp.le.s32.totalorder 1, %s17
      %p225 = scmp.lt.s32.totalorder %s17, 3
      %p226 = pnand %p224, %p225
      %p227 = pneg %p226
      // Predicated region
      $region9: #{unified_network_forward.1} parent=5 // pred_check
        _
      $region10: #{unified_network_forward.1} parent=5 // pred_check_branch
        %229 = sbr.rel (%p226) target = $region12
      $region11: #{unified_network_forward.1} parent=5 // pred_region
        %s230 = ssub.s32 %s17, 1
        // Predicated region
        $region13: #{unified_network_forward.1} parent=11 // pred_check
          %p231 = pneg %p38
        $region14: #{unified_network_forward.1} parent=11 // pred_check_branch
          %233 = sbr.rel (%p231) target = $region16
        $region15: #{unified_network_forward.1} parent=11 // pred_region
          _
        $region16: #{unified_network_forward.1} parent=11 // pred_fallthru
          _
        // Predicated region
        $region17: #{unified_network_forward.1} parent=11 // pred_check
          %p234 = pneg %p85
        $region18: #{unified_network_forward.1} parent=11 // pred_check_branch
          %236 = sbr.rel (%p234) target = $region20
        $region19: #{unified_network_forward.1} parent=11 // pred_region
          _
        $region20: #{unified_network_forward.1} parent=11 // pred_fallthru
          _
        // Predicated region
        $region21: #{unified_network_forward.1} parent=11 // pred_check
          %p237 = pneg %p106
        $region22: #{unified_network_forward.1} parent=11 // pred_check_branch
          %239 = sbr.rel (%p237) target = $region24
        $region23: #{unified_network_forward.1} parent=11 // pred_region
          _
        $region24: #{unified_network_forward.1} parent=11 // pred_fallthru
          _
        // Predicated region
        $region25: #{unified_network_forward.1} parent=11 // pred_check
          %p240 = pneg %p127
        $region26: #{unified_network_forward.1} parent=11 // pred_check_branch
          %242 = sbr.rel (%p240) target = $region28
        $region27: #{unified_network_forward.1} parent=11 // pred_region
          _
        $region28: #{unified_network_forward.1} parent=11 // pred_fallthru
          _
        // Predicated region
        $region29: #{unified_network_forward.1} parent=11 // pred_check
          %p243 = pneg %p148
        $region30: #{unified_network_forward.1} parent=11 // pred_check_branch
          %245 = sbr.rel (%p243) target = $region32
        $region31: #{unified_network_forward.1} parent=11 // pred_region
          _
        $region32: #{unified_network_forward.1} parent=11 // pred_fallthru
          _
        // Predicated region
        $region33: #{unified_network_forward.1} parent=11 // pred_check
          %p246 = pneg %p169
        $region34: #{unified_network_forward.1} parent=11 // pred_check_branch
          %248 = sbr.rel (%p246) target = $region36
        $region35: #{unified_network_forward.1} parent=11 // pred_region
          _
        $region36: #{unified_network_forward.1} parent=11 // pred_fallthru
          _
        // Predicated region
        $region37: #{unified_network_forward.1} parent=11 // pred_check
          %p249 = pneg %p190
        $region38: #{unified_network_forward.1} parent=11 // pred_check_branch
          %251 = sbr.rel (%p249) target = $region40
        $region39: #{unified_network_forward.1} parent=11 // pred_region
          _
        $region40: #{unified_network_forward.1} parent=11 // pred_fallthru
          _
      $region12: #{unified_network_forward.1} parent=5 // pred_fallthru
        _
      %p252 = scmp.lt.s32.totalorder %s17, 2
      // Predicated region
      $region41: #{unified_network_forward.1} parent=5 // pred_check
        %p253 = pneg %p252
      $region42: #{unified_network_forward.1} parent=5 // pred_check_branch
        %255 = sbr.rel (%p253) target = $region44
      $region43: #{unified_network_forward.1} parent=5 // pred_region
        // Predicated region
        $region45: #{unified_network_forward.1} parent=43 // pred_check
          %p256 = pneg %p58
        $region46: #{unified_network_forward.1} parent=43 // pred_check_branch
          %258 = sbr.rel (%p256) target = $region48
        $region47: #{unified_network_forward.1} parent=43 // pred_region
          %p259 = scmp.lt.s32.totalorder %s17, 1
          %s260 = scalar_select %p259, %s17, 1
          %s261 = smul.addr %s260, 41
          %s262 = smul.addr %s261, 8
          %s263 = scalar_lea.vmem %s1, %s262
        $region48: #{unified_network_forward.1} parent=43 // pred_fallthru
          _
      $region44: #{unified_network_forward.1} parent=5 // pred_fallthru
        _
      %p264 = scmp.le.s32.totalorder 1, %s17
      %p265 = scmp.lt.s32.totalorder %s17, 3
      %p266 = pnand %p264, %p265
      %p267 = pneg %p266
      // Predicated region
      $region49: #{unified_network_forward.1} parent=5 // pred_check
        _
      $region50: #{unified_network_forward.1} parent=5 // pred_check_branch
        %269 = sbr.rel (%p266) target = $region52
      $region51: #{unified_network_forward.1} parent=5 // pred_region
        %s270 = ssub.s32 %s17, 1
        %p271 = pneg %p38
        %p272 = pneg %p35
        %p273 = scmp.lt.s32.totalorder %s22, 1
        %s274 = scalar_select %p273, %s22, 1
        %s275 = smul.addr %s274, 41
        %s276 = smul.addr %s275, 8
        %s277 = scalar_lea.vmem %s1, %s276
        %p278 = pneg %p64
        %p279 = pneg %p61
        %p280 = pneg %p85
        %p281 = pneg %p82
        %p282 = pneg %p106
        %p283 = pneg %p103
        %p284 = pneg %p127
        %p285 = pneg %p124
        %p286 = pneg %p148
        %p287 = pneg %p145
        %p288 = pneg %p169
        %p289 = pneg %p166
        %p290 = pneg %p190
        %p291 = pneg %p187
        %p292 = pneg %p216
        %p293 = pneg %p213
        %s294 = sand.u32 %s203, 1
        %s295 = scalar_lea.sflag [#allocation4], %s294
        %s296 = sand.u32 %s203, 1
        %s297 = scalar_lea.vmem [#allocation3], %s296
        %p298 = scmp.lt.s32.totalorder %s22, 1
        %s299 = scalar_select %p298, %s22, 1
        %s300 = smul.addr %s299, 41
        %s301 = smul.addr %s300, 8
        %s302 = scalar_lea.vmem %s1, %s301
        %v304 = vld [vmem:[%s0] sm:$0xff]
        %v305 = vld [vmem:[%s0 + $0x8] sm:$0xff]
        %v306 = vld [vmem:[%s0 + $0x10] sm:$0xff]
        %v307 = vld [vmem:[%s0 + $0x18] sm:$0xff]
        %v308 = vld [vmem:[%s0 + $0x20] sm:$0xff]
        %v309 = vld [vmem:[%s0 + $0x28] sm:$0xff]
        %v310 = vld [vmem:[%s0 + $0x30] sm:$0xff]
        %v311 = vld [vmem:[%s0 + $0x38] sm:$0xff]
        %v312 = vld [vmem:[%s0 + $0x40] sm:$0xff]
        %v313 = vld [vmem:[%s0 + $0x48] sm:$0xff]
        %v314 = vld [vmem:[%s0 + $0x50] sm:$0xff]
        %v315 = vld [vmem:[%s0 + $0x58] sm:$0xff]
        %v316 = vld [vmem:[%s0 + $0x60] sm:$0xff]
        %v317 = vld [vmem:[%s0 + $0x68] sm:$0xff]
        %v318 = vld [vmem:[%s0 + $0x70] sm:$0xff]
        %v319 = vld [vmem:[%s0 + $0x78] sm:$0xff]
        %v320 = vld [vmem:[%s0 + $0x80] sm:$0xff]
        %v321 = vld [vmem:[%s0 + $0x88] sm:$0xff]
        %v322 = vld [vmem:[%s0 + $0x90] sm:$0xff]
        %v323 = vld [vmem:[%s0 + $0x98] sm:$0xff]
        %v324 = vld [vmem:[%s0 + $0xa0] sm:$0xff]
        %v325 = vld [vmem:[%s0 + $0xa8] sm:$0xff]
        %v326 = vld [vmem:[%s0 + $0xb0] sm:$0xff]
        %v327 = vld [vmem:[%s0 + $0xb8] sm:$0xff]
        %v328 = vld [vmem:[%s0 + $0xc0] sm:$0xff]
        %v329 = vld [vmem:[%s0 + $0xc8] sm:$0xff]
        %v330 = vld [vmem:[%s0 + $0xd0] sm:$0xff]
        %v331 = vld [vmem:[%s0 + $0xd8] sm:$0xff]
        %v332 = vld [vmem:[%s0 + $0xe0] sm:$0xff]
        %v333 = vld [vmem:[%s0 + $0xe8] sm:$0xff]
        %v334 = vld [vmem:[%s0 + $0xf0] sm:$0xff]
        %v335 = vld [vmem:[%s0 + $0xf8] sm:$0xff]
        %v336 = vld [vmem:[%s0 + $0x100] sm:$0xff]
        %v337 = vld [vmem:[%s0 + $0x108] sm:$0xff]
        %v338 = vld [vmem:[%s0 + $0x110] sm:$0xff]
        %v339 = vld [vmem:[%s0 + $0x118] sm:$0x3f]
        %v340 = vld [vmem:[%s302] sm:$0xff]
        %v341 = vld [vmem:[%s302 + $0x8] sm:$0xff]
        %v342 = vld [vmem:[%s302 + $0x10] sm:$0xff]
        %v343 = vld [vmem:[%s302 + $0x18] sm:$0xff]
        %v344 = vld [vmem:[%s302 + $0x20] sm:$0xff]
        %v345 = vld [vmem:[%s302 + $0x28] sm:$0xff]
        %v346 = vld [vmem:[%s302 + $0x30] sm:$0xff]
        %v347 = vld [vmem:[%s302 + $0x38] sm:$0xff]
        %v348 = vld [vmem:[%s302 + $0x40] sm:$0xff]
        %v349 = vld [vmem:[%s302 + $0x48] sm:$0xff]
        %v350 = vld [vmem:[%s302 + $0x50] sm:$0xff]
        %v351 = vld [vmem:[%s302 + $0x58] sm:$0xff]
        %v352 = vld [vmem:[%s302 + $0x60] sm:$0xff]
        %v353 = vld [vmem:[%s302 + $0x68] sm:$0xff]
        %v354 = vld [vmem:[%s302 + $0x70] sm:$0xff]
        %v355 = vld [vmem:[%s302 + $0x78] sm:$0xff]
        %v356 = vld [vmem:[%s302 + $0x80] sm:$0xff]
        %v357 = vld [vmem:[%s302 + $0x88] sm:$0xff]
        %v358 = vld [vmem:[%s302 + $0x90] sm:$0xff]
        %v359 = vld [vmem:[%s302 + $0x98] sm:$0xff]
        %v360 = vld [vmem:[%s302 + $0xa0] sm:$0xff]
        %v361 = vld [vmem:[%s302 + $0xa8] sm:$0xff]
        %v362 = vld [vmem:[%s302 + $0xb0] sm:$0xff]
        %v363 = vld [vmem:[%s302 + $0xb8] sm:$0xff]
        %v364 = vld [vmem:[%s302 + $0xc0] sm:$0xff]
        %v365 = vld [vmem:[%s302 + $0xc8] sm:$0xff]
        %v366 = vld [vmem:[%s302 + $0xd0] sm:$0xff]
        %v367 = vld [vmem:[%s302 + $0xd8] sm:$0xff]
        %v368 = vld [vmem:[%s302 + $0xe0] sm:$0xff]
        %v369 = vld [vmem:[%s302 + $0xe8] sm:$0xff]
        %v370 = vld [vmem:[%s302 + $0xf0] sm:$0xff]
        %v371 = vld [vmem:[%s302 + $0xf8] sm:$0xff]
        %v372 = vld [vmem:[%s302 + $0x100] sm:$0xff]
        %v373 = vld [vmem:[%s302 + $0x108] sm:$0xff]
        %v374 = vld [vmem:[%s302 + $0x110] sm:$0xff]
        %v375 = vld [vmem:[%s302 + $0x118] sm:$0x3f]
        %v376 = vpack.c.bf16 %v341, %v340
        %v377 = vpack.c.bf16 %v343, %v342
        %v378 = vpack.c.bf16 %v345, %v344
        %v379 = vpack.c.bf16 %v347, %v346
        %v380 = vpack.c.bf16 %v349, %v348
        %v381 = vpack.c.bf16 %v351, %v350
        %v382 = vpack.c.bf16 %v353, %v352
        %v383 = vpack.c.bf16 %v355, %v354
        %v384 = vpack.c.bf16 %v357, %v356
        %v385 = vpack.c.bf16 %v359, %v358
        %v386 = vpack.c.bf16 %v361, %v360
        %v387 = vpack.c.bf16 %v363, %v362
        %v388 = vpack.c.bf16 %v365, %v364
        %v389 = vpack.c.bf16 %v367, %v366
        %v390 = vpack.c.bf16 %v369, %v368
        %v391 = vpack.c.bf16 %v371, %v370
        %v392 = vpack.c.bf16 %v373, %v372
        %v393 = vpack.c.bf16 %v375, %v374
        %v394 = vld [vmem:[%s2] sm:$0x3]
        %v395 = vld [vmem:[%s302 + $0x1] sm:$0xff]
        %v396 = vld [vmem:[%s302 + $0x9] sm:$0xff]
        %v397 = vld [vmem:[%s302 + $0x11] sm:$0xff]
        %v398 = vld [vmem:[%s302 + $0x19] sm:$0xff]
        %v399 = vld [vmem:[%s302 + $0x21] sm:$0xff]
        %v400 = vld [vmem:[%s302 + $0x29] sm:$0xff]
        %v401 = vld [vmem:[%s302 + $0x31] sm:$0xff]
        %v402 = vld [vmem:[%s302 + $0x39] sm:$0xff]
        %v403 = vld [vmem:[%s302 + $0x41] sm:$0xff]
        %v404 = vld [vmem:[%s302 + $0x49] sm:$0xff]
        %v405 = vld [vmem:[%s302 + $0x51] sm:$0xff]
        %v406 = vld [vmem:[%s302 + $0x59] sm:$0xff]
        %v407 = vld [vmem:[%s302 + $0x61] sm:$0xff]
        %v408 = vld [vmem:[%s302 + $0x69] sm:$0xff]
        %v409 = vld [vmem:[%s302 + $0x71] sm:$0xff]
        %v410 = vld [vmem:[%s302 + $0x79] sm:$0xff]
        %v411 = vld [vmem:[%s302 + $0x81] sm:$0xff]
        %v412 = vld [vmem:[%s302 + $0x89] sm:$0xff]
        %v413 = vld [vmem:[%s302 + $0x91] sm:$0xff]
        %v414 = vld [vmem:[%s302 + $0x99] sm:$0xff]
        %v415 = vld [vmem:[%s302 + $0xa1] sm:$0xff]
        %v416 = vld [vmem:[%s302 + $0xa9] sm:$0xff]
        %v417 = vld [vmem:[%s302 + $0xb1] sm:$0xff]
        %v418 = vld [vmem:[%s302 + $0xb9] sm:$0xff]
        %v419 = vld [vmem:[%s302 + $0xc1] sm:$0xff]
        %v420 = vld [vmem:[%s302 + $0xc9] sm:$0xff]
        %v421 = vld [vmem:[%s302 + $0xd1] sm:$0xff]
        %v422 = vld [vmem:[%s302 + $0xd9] sm:$0xff]
        %v423 = vld [vmem:[%s302 + $0xe1] sm:$0xff]
        %v424 = vld [vmem:[%s302 + $0xe9] sm:$0xff]
        %v425 = vld [vmem:[%s302 + $0xf1] sm:$0xff]
        %v426 = vld [vmem:[%s302 + $0xf9] sm:$0xff]
        %v427 = vld [vmem:[%s302 + $0x101] sm:$0xff]
        %v428 = vld [vmem:[%s302 + $0x109] sm:$0xff]
        %v429 = vld [vmem:[%s302 + $0x111] sm:$0xff]
        %v430 = vld [vmem:[%s302 + $0x119] sm:$0x3f]
        %v431 = vpack.c.bf16 %v396, %v395
        %v432 = vpack.c.bf16 %v398, %v397
        %v433 = vpack.c.bf16 %v400, %v399
        %v434 = vpack.c.bf16 %v402, %v401
        %v435 = vpack.c.bf16 %v404, %v403
        %v436 = vpack.c.bf16 %v406, %v405
        %v437 = vpack.c.bf16 %v408, %v407
        %v438 = vpack.c.bf16 %v410, %v409
        %v439 = vpack.c.bf16 %v412, %v411
        %v440 = vpack.c.bf16 %v414, %v413
        %v441 = vpack.c.bf16 %v416, %v415
        %v442 = vpack.c.bf16 %v418, %v417
        %v443 = vpack.c.bf16 %v420, %v419
        %v444 = vpack.c.bf16 %v422, %v421
        %v445 = vpack.c.bf16 %v424, %v423
        %v446 = vpack.c.bf16 %v426, %v425
        %v447 = vpack.c.bf16 %v428, %v427
        %v448 = vpack.c.bf16 %v430, %v429
        %s449 = scalar_lea.vmem %s2, 2
        %v450 = vld [vmem:[%s449] sm:$0x3]
        %vm451 = vcmask 23552
        %v453 = vsel %vm451, %v431, 0
        %v456 = vsel %vm451, %v432, 0
        %v459 = vsel %vm451, %v433, 0
        %v462 = vsel %vm451, %v434, 0
        %v465 = vsel %vm451, %v435, 0
        %v468 = vsel %vm451, %v436, 0
        %v471 = vsel %vm451, %v437, 0
        %v474 = vsel %vm451, %v438, 0
        %v477 = vsel %vm451, %v439, 0
        %v480 = vsel %vm451, %v440, 0
        %v483 = vsel %vm451, %v441, 0
        %v486 = vsel %vm451, %v442, 0
        %v489 = vsel %vm451, %v443, 0
        %v492 = vsel %vm451, %v444, 0
        %v495 = vsel %vm451, %v445, 0
        %v498 = vsel %vm451, %v446, 0
        %v501 = vsel %vm451, %v447, 0
        %v504 = vsel %vm451, %v448, 0
        %vm506 = vcmask 1040384
        %vm507 = vcmask 1041408
        %v508 = vsel %vm506, 4294967295, 65535
        %v509 = vsel %vm507, %v508, 0
        %v511 = vand.u32 %v450, %v509
        %513 = vmatprep.subr.bf16.mxu0 0
        %514 = vmatpush1.bf16.msra.mxu0 %v511
        %515 = vmatprep.subr.bf16.mxu0 0
        %516 = vmatpush1.bf16.msra.mxu0 0
        %517 = vmatprep.subr.bf16.mxu0 0
        %518 = vmatpush1.bf16.msra.mxu0 0
        %519 = vmatprep.subr.bf16.mxu0 0
        %520 = vmatpush1.bf16.msra.mxu0 0
        %521 = vmatprep.subr.bf16.mxu0 0
        %522 = vmatpush1.bf16.msra.mxu0 0
        %523 = vmatprep.subr.bf16.mxu0 0
        %524 = vmatpush1.bf16.msra.mxu0 0
        %525 = vmatprep.subr.bf16.mxu0 0
        %526 = vmatpush1.bf16.msra.mxu0 0
        %527 = vmatprep.subr.bf16.mxu0 0
        %528 = vmatpush1.bf16.msra.mxu0 0
        %529 = vmatprep.subr.bf16.mxu0 0
        %530 = vmatpush1.bf16.msra.mxu0 0
        %531 = vmatprep.subr.bf16.mxu0 0
        %532 = vmatpush1.bf16.msra.mxu0 0
        %533 = vmatprep.subr.bf16.mxu0 0
        %534 = vmatpush1.bf16.msra.mxu0 0
        %535 = vmatprep.subr.bf16.mxu0 0
        %536 = vmatpush1.bf16.msra.mxu0 0
        %537 = vmatprep.subr.bf16.mxu0 0
        %538 = vmatpush1.bf16.msra.mxu0 0
        %539 = vmatprep.subr.bf16.mxu0 0
        %540 = vmatpush1.bf16.msra.mxu0 0
        %541 = vmatprep.subr.bf16.mxu0 0
        %542 = vmatpush1.bf16.msra.mxu0 0
        %543 = vmatprep.subr.bf16.mxu0 0
        %544 = vmatpush1.bf16.msra.mxu0 0
        %545 = vmatprep.mubr.bf16.mxu0 0
        %546 = vmatmul.mubr.bf16.gmra.mrb[0].mxu0 %v453
        %v547 = vpop.f32.mrb[0].mxu0
        %v548 = vadd.f32 0.0, %v547
        %v549 = vpop.f32.mrb[0].mxu0
        %v550 = vpop.f32.mrb[0].mxu0
        %v551 = vadd.f32 0.0, %v550
        %v552 = vpop.f32.mrb[0].mxu0
        %553 = vmatprep.mubr.bf16.mxu0 0
        %554 = vmatmul.mubr.bf16.gmra.mrb[0].mxu0 %v456
        %v555 = vpop.f32.mrb[0].mxu0
        %v556 = vadd.f32 0.0, %v555
        %v557 = vpop.f32.mrb[0].mxu0
        %v558 = vpop.f32.mrb[0].mxu0
        %v559 = vadd.f32 0.0, %v558
        %v560 = vpop.f32.mrb[0].mxu0
        %561 = vmatprep.mubr.bf16.mxu0 0
        %562 = vmatmul.mubr.bf16.gmra.mrb[0].mxu0 %v459
        %v563 = vpop.f32.mrb[0].mxu0
        %v564 = vadd.f32 0.0, %v563
        %v565 = vpop.f32.mrb[0].mxu0
        %v566 = vpop.f32.mrb[0].mxu0
        %v567 = vadd.f32 0.0, %v566
        %v568 = vpop.f32.mrb[0].mxu0
        %569 = vmatprep.mubr.bf16.mxu0 0
        %570 = vmatmul.mubr.bf16.gmra.mrb[0].mxu0 %v462
        %v571 = vpop.f32.mrb[0].mxu0
        %v572 = vadd.f32 0.0, %v571
        %v573 = vpop.f32.mrb[0].mxu0
        %v574 = vpop.f32.mrb[0].mxu0
        %v575 = vadd.f32 0.0, %v574
        %v576 = vpop.f32.mrb[0].mxu0
        %577 = vmatprep.mubr.bf16.mxu0 0
        %578 = vmatmul.mubr.bf16.gmra.mrb[0].mxu0 %v465
        %v579 = vpop.f32.mrb[0].mxu0
        %v580 = vadd.f32 0.0, %v579
        %v581 = vpop.f32.mrb[0].mxu0
        %v582 = vpop.f32.mrb[0].mxu0
        %v583 = vadd.f32 0.0, %v582
        %v584 = vpop.f32.mrb[0].mxu0
        %585 = vmatprep.mubr.bf16.mxu0 0
        %586 = vmatmul.mubr.bf16.gmra.mrb[0].mxu0 %v468
        %v587 = vpop.f32.mrb[0].mxu0
        %v588 = vadd.f32 0.0, %v587
        %v589 = vpop.f32.mrb[0].mxu0
        %v590 = vpop.f32.mrb[0].mxu0
        %v591 = vadd.f32 0.0, %v590
        %v592 = vpop.f32.mrb[0].mxu0
        %593 = vmatprep.mubr.bf16.mxu0 0
        %594 = vmatmul.mubr.bf16.gmra.mrb[0].mxu0 %v471
        %v595 = vpop.f32.mrb[0].mxu0
        %v596 = vadd.f32 0.0, %v595
        %v597 = vpop.f32.mrb[0].mxu0
        %v598 = vpop.f32.mrb[0].mxu0
        %v599 = vadd.f32 0.0, %v598
        %v600 = vpop.f32.mrb[0].mxu0
        %601 = vmatprep.mubr.bf16.mxu0 0
        %602 = vmatmul.mubr.bf16.gmra.mrb[0].mxu0 %v474
        %v603 = vpop.f32.mrb[0].mxu0
        %v604 = vadd.f32 0.0, %v603
        %v605 = vpop.f32.mrb[0].mxu0
        %v606 = vpop.f32.mrb[0].mxu0
        %v607 = vadd.f32 0.0, %v606
        %v608 = vpop.f32.mrb[0].mxu0
        %609 = vmatprep.mubr.bf16.mxu0 0
        %610 = vmatmul.mubr.bf16.gmra.mrb[0].mxu0 %v477
        %v611 = vpop.f32.mrb[0].mxu0
        %v612 = vadd.f32 0.0, %v611
        %v613 = vpop.f32.mrb[0].mxu0
        %v614 = vpop.f32.mrb[0].mxu0
        %v615 = vadd.f32 0.0, %v614
        %v616 = vpop.f32.mrb[0].mxu0
        %617 = vmatprep.mubr.bf16.mxu0 0
        %618 = vmatmul.mubr.bf16.gmra.mrb[0].mxu0 %v480
        %v619 = vpop.f32.mrb[0].mxu0
        %v620 = vadd.f32 0.0, %v619
        %v621 = vpop.f32.mrb[0].mxu0
        %v622 = vpop.f32.mrb[0].mxu0
        %v623 = vadd.f32 0.0, %v622
        %v624 = vpop.f32.mrb[0].mxu0
        %625 = vmatprep.mubr.bf16.mxu0 0
        %626 = vmatmul.mubr.bf16.gmra.mrb[0].mxu0 %v483
        %v627 = vpop.f32.mrb[0].mxu0
        %v628 = vadd.f32 0.0, %v627
        %v629 = vpop.f32.mrb[0].mxu0
        %v630 = vpop.f32.mrb[0].mxu0
        %v631 = vadd.f32 0.0, %v630
        %v632 = vpop.f32.mrb[0].mxu0
        %633 = vmatprep.mubr.bf16.mxu0 0
        %634 = vmatmul.mubr.bf16.gmra.mrb[0].mxu0 %v486
        %v635 = vpop.f32.mrb[0].mxu0
        %v636 = vadd.f32 0.0, %v635
        %v637 = vpop.f32.mrb[0].mxu0
        %v638 = vpop.f32.mrb[0].mxu0
        %v639 = vadd.f32 0.0, %v638
        %v640 = vpop.f32.mrb[0].mxu0
        %641 = vmatprep.mubr.bf16.mxu0 0
        %642 = vmatmul.mubr.bf16.gmra.mrb[0].mxu0 %v489
        %v643 = vpop.f32.mrb[0].mxu0
        %v644 = vadd.f32 0.0, %v643
        %v645 = vpop.f32.mrb[0].mxu0
        %v646 = vpop.f32.mrb[0].mxu0
        %v647 = vadd.f32 0.0, %v646
        %v648 = vpop.f32.mrb[0].mxu0
        %649 = vmatprep.mubr.bf16.mxu0 0
        %650 = vmatmul.mubr.bf16.gmra.mrb[0].mxu0 %v492
        %v651 = vpop.f32.mrb[0].mxu0
        %v652 = vadd.f32 0.0, %v651
        %v653 = vpop.f32.mrb[0].mxu0
        %v654 = vpop.f32.mrb[0].mxu0
        %v655 = vadd.f32 0.0, %v654
        %v656 = vpop.f32.mrb[0].mxu0
        %657 = vmatprep.mubr.bf16.mxu0 0
        %658 = vmatmul.mubr.bf16.gmra.mrb[0].mxu0 %v495
        %v659 = vpop.f32.mrb[0].mxu0
        %v660 = vadd.f32 0.0, %v659
        %v661 = vpop.f32.mrb[0].mxu0
        %v662 = vpop.f32.mrb[0].mxu0
        %v663 = vadd.f32 0.0, %v662
        %v664 = vpop.f32.mrb[0].mxu0
        %665 = vmatprep.mubr.bf16.mxu0 0
        %666 = vmatmul.mubr.bf16.gmra.mrb[0].mxu0 %v498
        %v667 = vpop.f32.mrb[0].mxu0
        %v668 = vadd.f32 0.0, %v667
        %v669 = vpop.f32.mrb[0].mxu0
        %v670 = vpop.f32.mrb[0].mxu0
        %v671 = vadd.f32 0.0, %v670
        %v672 = vpop.f32.mrb[0].mxu0
        %673 = vmatprep.mubr.bf16.mxu0 0
        %674 = vmatmul.mubr.bf16.gmra.mrb[0].mxu0 %v501
        %v675 = vpop.f32.mrb[0].mxu0
        %v676 = vadd.f32 0.0, %v675
        %v677 = vpop.f32.mrb[0].mxu0
        %v678 = vpop.f32.mrb[0].mxu0
        %v679 = vadd.f32 0.0, %v678
        %v680 = vpop.f32.mrb[0].mxu0
        %681 = vmatprep.mubr.bf16.mxu0 0
        %682 = vmatmul.mubr.bf16.gmra.mrb[0].mxu0 %v504
        %v683 = vpop.f32.mrb[0].mxu0
        %v684 = vadd.f32 0.0, %v683
        %v685 = vpop.f32.mrb[0].mxu0
        %v686 = vpop.f32.mrb[0].mxu0
        %v687 = vadd.f32 0.0, %v686
        %v688 = vpop.f32.mrb[0].mxu0
        %689 = vdwg.mxu0
        %v691 = vsel %vm451, %v376, 0
        %v694 = vsel %vm451, %v377, 0
        %v697 = vsel %vm451, %v378, 0
        %v700 = vsel %vm451, %v379, 0
        %v703 = vsel %vm451, %v380, 0
        %v706 = vsel %vm451, %v381, 0
        %v709 = vsel %vm451, %v382, 0
        %v712 = vsel %vm451, %v383, 0
        %v715 = vsel %vm451, %v384, 0
        %v718 = vsel %vm451, %v385, 0
        %v721 = vsel %vm451, %v386, 0
        %v724 = vsel %vm451, %v387, 0
        %v727 = vsel %vm451, %v388, 0
        %v730 = vsel %vm451, %v389, 0
        %v733 = vsel %vm451, %v390, 0
        %v736 = vsel %vm451, %v391, 0
        %v739 = vsel %vm451, %v392, 0
        %v742 = vsel %vm451, %v393, 0
        %v745 = vand.u32 %v394, %v509
        %747 = vmatprep.subr.bf16.mxu0 0
        %748 = vmatpush1.bf16.msra.mxu0 %v745
        %749 = vmatprep.subr.bf16.mxu0 0
        %750 = vmatpush1.bf16.msra.mxu0 0
        %751 = vmatprep.subr.bf16.mxu0 0
        %752 = vmatpush1.bf16.msra.mxu0 0
        %753 = vmatprep.subr.bf16.mxu0 0
        %754 = vmatpush1.bf16.msra.mxu0 0
        %755 = vmatprep.subr.bf16.mxu0 0
        %756 = vmatpush1.bf16.msra.mxu0 0
        %757 = vmatprep.subr.bf16.mxu0 0
        %758 = vmatpush1.bf16.msra.mxu0 0
        %759 = vmatprep.subr.bf16.mxu0 0
        %760 = vmatpush1.bf16.msra.mxu0 0
        %761 = vmatprep.subr.bf16.mxu0 0
        %762 = vmatpush1.bf16.msra.mxu0 0
        %763 = vmatprep.subr.bf16.mxu0 0
        %764 = vmatpush1.bf16.msra.mxu0 0
        %765 = vmatprep.subr.bf16.mxu0 0
        %766 = vmatpush1.bf16.msra.mxu0 0
        %767 = vmatprep.subr.bf16.mxu0 0
        %768 = vmatpush1.bf16.msra.mxu0 0
        %769 = vmatprep.subr.bf16.mxu0 0
        %770 = vmatpush1.bf16.msra.mxu0 0
        %771 = vmatprep.subr.bf16.mxu0 0
        %772 = vmatpush1.bf16.msra.mxu0 0
        %773 = vmatprep.subr.bf16.mxu0 0
        %774 = vmatpush1.bf16.msra.mxu0 0
        %775 = vmatprep.subr.bf16.mxu0 0
        %776 = vmatpush1.bf16.msra.mxu0 0
        %777 = vmatprep.subr.bf16.mxu0 0
        %778 = vmatpush1.bf16.msra.mxu0 0
        %779 = vmatprep.mubr.bf16.mxu0 0
        %780 = vmatmul.mubr.bf16.gmra.mrb[0].mxu0 %v691
        %v781 = vpop.f32.mrb[0].mxu0
        %v782 = vadd.f32 %v548, %v781
        %v783 = vpop.f32.mrb[0].mxu0
        %v784 = vpop.f32.mrb[0].mxu0
        %v785 = vadd.f32 %v551, %v784
        %v786 = vpop.f32.mrb[0].mxu0
        %787 = vmatprep.mubr.bf16.mxu0 0
        %788 = vmatmul.mubr.bf16.gmra.mrb[0].mxu0 %v694
        %v789 = vpop.f32.mrb[0].mxu0
        %v790 = vadd.f32 %v556, %v789
        %v791 = vpop.f32.mrb[0].mxu0
        %v792 = vpop.f32.mrb[0].mxu0
        %v793 = vadd.f32 %v559, %v792
        %v794 = vpop.f32.mrb[0].mxu0
        %795 = vmatprep.mubr.bf16.mxu0 0
        %796 = vmatmul.mubr.bf16.gmra.mrb[0].mxu0 %v697
        %v797 = vpop.f32.mrb[0].mxu0
        %v798 = vadd.f32 %v564, %v797
        %v799 = vpop.f32.mrb[0].mxu0
        %v800 = vpop.f32.mrb[0].mxu0
        %v801 = vadd.f32 %v567, %v800
        %v802 = vpop.f32.mrb[0].mxu0
        %803 = vmatprep.mubr.bf16.mxu0 0
        %804 = vmatmul.mubr.bf16.gmra.mrb[0].mxu0 %v700
        %v805 = vpop.f32.mrb[0].mxu0
        %v806 = vadd.f32 %v572, %v805
        %v807 = vpop.f32.mrb[0].mxu0
        %v808 = vpop.f32.mrb[0].mxu0
        %v809 = vadd.f32 %v575, %v808
        %v810 = vpop.f32.mrb[0].mxu0
        %811 = vmatprep.mubr.bf16.mxu0 0
        %812 = vmatmul.mubr.bf16.gmra.mrb[0].mxu0 %v703
        %v813 = vpop.f32.mrb[0].mxu0
        %v814 = vadd.f32 %v580, %v813
        %v815 = vpop.f32.mrb[0].mxu0
        %v816 = vpop.f32.mrb[0].mxu0
        %v817 = vadd.f32 %v583, %v816
        %v818 = vpop.f32.mrb[0].mxu0
        %819 = vmatprep.mubr.bf16.mxu0 0
        %820 = vmatmul.mubr.bf16.gmra.mrb[0].mxu0 %v706
        %v821 = vpop.f32.mrb[0].mxu0
        %v822 = vadd.f32 %v588, %v821
        %v823 = vpop.f32.mrb[0].mxu0
        %v824 = vpop.f32.mrb[0].mxu0
        %v825 = vadd.f32 %v591, %v824
        %v826 = vpop.f32.mrb[0].mxu0
        %827 = vmatprep.mubr.bf16.mxu0 0
        %828 = vmatmul.mubr.bf16.gmra.mrb[0].mxu0 %v709
        %v829 = vpop.f32.mrb[0].mxu0
        %v830 = vadd.f32 %v596, %v829
        %v831 = vpop.f32.mrb[0].mxu0
        %v832 = vpop.f32.mrb[0].mxu0
        %v833 = vadd.f32 %v599, %v832
        %v834 = vpop.f32.mrb[0].mxu0
        %835 = vmatprep.mubr.bf16.mxu0 0
        %836 = vmatmul.mubr.bf16.gmra.mrb[0].mxu0 %v712
        %v837 = vpop.f32.mrb[0].mxu0
        %v838 = vadd.f32 %v604, %v837
        %v839 = vpop.f32.mrb[0].mxu0
        %v840 = vpop.f32.mrb[0].mxu0
        %v841 = vadd.f32 %v607, %v840
        %v842 = vpop.f32.mrb[0].mxu0
        %843 = vmatprep.mubr.bf16.mxu0 0
        %844 = vmatmul.mubr.bf16.gmra.mrb[0].mxu0 %v715
        %v845 = vpop.f32.mrb[0].mxu0
        %v846 = vadd.f32 %v612, %v845
        %v847 = vpop.f32.mrb[0].mxu0
        %v848 = vpop.f32.mrb[0].mxu0
        %v849 = vadd.f32 %v615, %v848
        %v850 = vpop.f32.mrb[0].mxu0
        %851 = vmatprep.mubr.bf16.mxu0 0
        %852 = vmatmul.mubr.bf16.gmra.mrb[0].mxu0 %v718
        %v853 = vpop.f32.mrb[0].mxu0
        %v854 = vadd.f32 %v620, %v853
        %v855 = vpop.f32.mrb[0].mxu0
        %v856 = vpop.f32.mrb[0].mxu0
        %v857 = vadd.f32 %v623, %v856
        %v858 = vpop.f32.mrb[0].mxu0
        %859 = vmatprep.mubr.bf16.mxu0 0
        %860 = vmatmul.mubr.bf16.gmra.mrb[0].mxu0 %v721
        %v861 = vpop.f32.mrb[0].mxu0
        %v862 = vadd.f32 %v628, %v861
        %v863 = vpop.f32.mrb[0].mxu0
        %v864 = vpop.f32.mrb[0].mxu0
        %v865 = vadd.f32 %v631, %v864
        %v866 = vpop.f32.mrb[0].mxu0
        %867 = vmatprep.mubr.bf16.mxu0 0
        %868 = vmatmul.mubr.bf16.gmra.mrb[0].mxu0 %v724
        %v869 = vpop.f32.mrb[0].mxu0
        %v870 = vadd.f32 %v636, %v869
        %v871 = vpop.f32.mrb[0].mxu0
        %v872 = vpop.f32.mrb[0].mxu0
        %v873 = vadd.f32 %v639, %v872
        %v874 = vpop.f32.mrb[0].mxu0
        %875 = vmatprep.mubr.bf16.mxu0 0
        %876 = vmatmul.mubr.bf16.gmra.mrb[0].mxu0 %v727
        %v877 = vpop.f32.mrb[0].mxu0
        %v878 = vadd.f32 %v644, %v877
        %v879 = vpop.f32.mrb[0].mxu0
        %v880 = vpop.f32.mrb[0].mxu0
        %v881 = vadd.f32 %v647, %v880
        %v882 = vpop.f32.mrb[0].mxu0
        %883 = vmatprep.mubr.bf16.mxu0 0
        %884 = vmatmul.mubr.bf16.gmra.mrb[0].mxu0 %v730
        %v885 = vpop.f32.mrb[0].mxu0
        %v886 = vadd.f32 %v652, %v885
        %v887 = vpop.f32.mrb[0].mxu0
        %v888 = vpop.f32.mrb[0].mxu0
        %v889 = vadd.f32 %v655, %v888
        %v890 = vpop.f32.mrb[0].mxu0
        %891 = vmatprep.mubr.bf16.mxu0 0
        %892 = vmatmul.mubr.bf16.gmra.mrb[0].mxu0 %v733
        %v893 = vpop.f32.mrb[0].mxu0
        %v894 = vadd.f32 %v660, %v893
        %v895 = vpop.f32.mrb[0].mxu0
        %v896 = vpop.f32.mrb[0].mxu0
        %v897 = vadd.f32 %v663, %v896
        %v898 = vpop.f32.mrb[0].mxu0
        %899 = vmatprep.mubr.bf16.mxu0 0
        %900 = vmatmul.mubr.bf16.gmra.mrb[0].mxu0 %v736
        %v901 = vpop.f32.mrb[0].mxu0
        %v902 = vadd.f32 %v668, %v901
        %v903 = vpop.f32.mrb[0].mxu0
        %v904 = vpop.f32.mrb[0].mxu0
        %v905 = vadd.f32 %v671, %v904
        %v906 = vpop.f32.mrb[0].mxu0
        %907 = vmatprep.mubr.bf16.mxu0 0
        %908 = vmatmul.mubr.bf16.gmra.mrb[0].mxu0 %v739
        %v909 = vpop.f32.mrb[0].mxu0
        %v910 = vadd.f32 %v676, %v909
        %v911 = vpop.f32.mrb[0].mxu0
        %v912 = vpop.f32.mrb[0].mxu0
        %v913 = vadd.f32 %v679, %v912
        %v914 = vpop.f32.mrb[0].mxu0
        %915 = vmatprep.mubr.bf16.mxu0 0
        %916 = vmatmul.mubr.bf16.gmra.mrb[0].mxu0 %v742
        %v917 = vpop.f32.mrb[0].mxu0
        %v918 = vadd.f32 %v684, %v917
        %v919 = vpop.f32.mrb[0].mxu0
        %v920 = vpop.f32.mrb[0].mxu0
        %v921 = vadd.f32 %v687, %v920
        %v922 = vpop.f32.mrb[0].mxu0
        %923 = vdwg.mxu0
        %v924 = vld [vmem:[%s302 + $0x2] sm:$0xff]
        %v925 = vld [vmem:[%s302 + $0xa] sm:$0xff]
        %v926 = vld [vmem:[%s302 + $0x12] sm:$0xff]
        %v927 = vld [vmem:[%s302 + $0x1a] sm:$0xff]
        %v928 = vld [vmem:[%s302 + $0x22] sm:$0xff]
        %v929 = vld [vmem:[%s302 + $0x2a] sm:$0xff]
        %v930 = vld [vmem:[%s302 + $0x32] sm:$0xff]
        %v931 = vld [vmem:[%s302 + $0x3a] sm:$0xff]
        %v932 = vld [vmem:[%s302 + $0x42] sm:$0xff]
        %v933 = vld [vmem:[%s302 + $0x4a] sm:$0xff]
        %v934 = vld [vmem:[%s302 + $0x52] sm:$0xff]
        %v935 = vld [vmem:[%s302 + $0x5a] sm:$0xff]
        %v936 = vld [vmem:[%s302 + $0x62] sm:$0xff]
        %v937 = vld [vmem:[%s302 + $0x6a] sm:$0xff]
        %v938 = vld [vmem:[%s302 + $0x72] sm:$0xff]
        %v939 = vld [vmem:[%s302 + $0x7a] sm:$0xff]
        %v940 = vld [vmem:[%s302 + $0x82] sm:$0xff]
        %v941 = vld [vmem:[%s302 + $0x8a] sm:$0xff]
        %v942 = vld [vmem:[%s302 + $0x92] sm:$0xff]
        %v943 = vld [vmem:[%s302 + $0x9a] sm:$0xff]
        %v944 = vld [vmem:[%s302 + $0xa2] sm:$0xff]
        %v945 = vld [vmem:[%s302 + $0xaa] sm:$0xff]
        %v946 = vld [vmem:[%s302 + $0xb2] sm:$0xff]
        %v947 = vld [vmem:[%s302 + $0xba] sm:$0xff]
        %v948 = vld [vmem:[%s302 + $0xc2] sm:$0xff]
        %v949 = vld [vmem:[%s302 + $0xca] sm:$0xff]
        %v950 = vld [vmem:[%s302 + $0xd2] sm:$0xff]
        %v951 = vld [vmem:[%s302 + $0xda] sm:$0xff]
        %v952 = vld [vmem:[%s302 + $0xe2] sm:$0xff]
        %v953 = vld [vmem:[%s302 + $0xea] sm:$0xff]
        %v954 = vld [vmem:[%s302 + $0xf2] sm:$0xff]
        %v955 = vld [vmem:[%s302 + $0xfa] sm:$0xff]
        %v956 = vld [vmem:[%s302 + $0x102] sm:$0xff]
        %v957 = vld [vmem:[%s302 + $0x10a] sm:$0xff]
        %v958 = vld [vmem:[%s302 + $0x112] sm:$0xff]
        %v959 = vld [vmem:[%s302 + $0x11a] sm:$0x3f]
        %v960 = vpack.c.bf16 %v925, %v924
        %v961 = vpack.c.bf16 %v927, %v926
        %v962 = vpack.c.bf16 %v929, %v928
        %v963 = vpack.c.bf16 %v931, %v930
        %v964 = vpack.c.bf16 %v933, %v932
        %v965 = vpack.c.bf16 %v935, %v934
        %v966 = vpack.c.bf16 %v937, %v936
        %v967 = vpack.c.bf16 %v939, %v938
        %v968 = vpack.c.bf16 %v941, %v940
        %v969 = vpack.c.bf16 %v943, %v942
        %v970 = vpack.c.bf16 %v945, %v944
        %v971 = vpack.c.bf16 %v947, %v946
        %v972 = vpack.c.bf16 %v949, %v948
        %v973 = vpack.c.bf16 %v951, %v950
        %v974 = vpack.c.bf16 %v953, %v952
        %v975 = vpack.c.bf16 %v955, %v954
        %v976 = vpack.c.bf16 %v957, %v956
        %v977 = vpack.c.bf16 %v959, %v958
        %s978 = scalar_lea.vmem %s2, 4
        %v979 = vld [vmem:[%s978] sm:$0x3]
        %v981 = vsel %vm451, %v960, 0
        %v984 = vsel %vm451, %v961, 0
        %v987 = vsel %vm451, %v962, 0
        %v990 = vsel %vm451, %v963, 0
        %v993 = vsel %vm451, %v964, 0
        %v996 = vsel %vm451, %v965, 0
        %v999 = vsel %vm451, %v966, 0
        %v1002 = vsel %vm451, %v967, 0
        %v1005 = vsel %vm451, %v968, 0
        %v1008 = vsel %vm451, %v969, 0
        %v1011 = vsel %vm451, %v970, 0
        %v1014 = vsel %vm451, %v971, 0
        %v1017 = vsel %vm451, %v972, 0
        %v1020 = vsel %vm451, %v973, 0
        %v1023 = vsel %vm451, %v974, 0
        %v1026 = vsel %vm451, %v975, 0
        %v1029 = vsel %vm451, %v976, 0
        %v1032 = vsel %vm451, %v977, 0
        %v1035 = vand.u32 %v979, %v509
        %1037 = vmatprep.subr.bf16.mxu0 0
        %1038 = vmatpush1.bf16.msra.mxu0 %v1035
        %1039 = vmatprep.subr.bf16.mxu0 0
        %1040 = vmatpush1.bf16.msra.mxu0 0
        %1041 = vmatprep.subr.bf16.mxu0 0
        %1042 = vmatpush1.bf16.msra.mxu0 0
        %1043 = vmatprep.subr.bf16.mxu0 0
        %1044 = vmatpush1.bf16.msra.mxu0 0
        %1045 = vmatprep.subr.bf16.mxu0 0
        %1046 = vmatpush1.bf16.msra.mxu0 0
        %1047 = vmatprep.subr.bf16.mxu0 0
        %1048 = vmatpush1.bf16.msra.mxu0 0
        %1049 = vmatprep.subr.bf16.mxu0 0
        %1050 = vmatpush1.bf16.msra.mxu0 0
        %1051 = vmatprep.subr.bf16.mxu0 0
        %1052 = vmatpush1.bf16.msra.mxu0 0
        %1053 = vmatprep.subr.bf16.mxu0 0
        %1054 = vmatpush1.bf16.msra.mxu0 0
        %1055 = vmatprep.subr.bf16.mxu0 0
        %1056 = vmatpush1.bf16.msra.mxu0 0
        %1057 = vmatprep.subr.bf16.mxu0 0
        %1058 = vmatpush1.bf16.msra.mxu0 0
        %1059 = vmatprep.subr.bf16.mxu0 0
        %1060 = vmatpush1.bf16.msra.mxu0 0
        %1061 = vmatprep.subr.bf16.mxu0 0
        %1062 = vmatpush1.bf16.msra.mxu0 0
        %1063 = vmatprep.subr.bf16.mxu0 0
        %1064 = vmatpush1.bf16.msra.mxu0 0
        %1065 = vmatprep.subr.bf16.mxu0 0
        %1066 = vmatpush1.bf16.msra.mxu0 0
        %1067 = vmatprep.subr.bf16.mxu0 0
        %1068 = vmatpush1.bf16.msra.mxu0 0
        %1069 = vmatprep.mubr.bf16.mxu0 0
        %1070 = vmatmul.mubr.bf16.gmra.mrb[0].mxu0 %v981
        %v1071 = vpop.f32.mrb[0].mxu0
        %v1072 = vadd.f32 0.0, %v1071
        %v1073 = vpop.f32.mrb[0].mxu0
        %v1074 = vpop.f32.mrb[0].mxu0
        %v1075 = vadd.f32 0.0, %v1074
        %v1076 = vpop.f32.mrb[0].mxu0
        %1077 = vmatprep.mubr.bf16.mxu0 0
        %1078 = vmatmul.mubr.bf16.gmra.mrb[0].mxu0 %v984
        %v1079 = vpop.f32.mrb[0].mxu0
        %v1080 = vadd.f32 0.0, %v1079
        %v1081 = vpop.f32.mrb[0].mxu0
        %v1082 = vpop.f32.mrb[0].mxu0
        %v1083 = vadd.f32 0.0, %v1082
        %v1084 = vpop.f32.mrb[0].mxu0
        %1085 = vmatprep.mubr.bf16.mxu0 0
        %1086 = vmatmul.mubr.bf16.gmra.mrb[0].mxu0 %v987
        %v1087 = vpop.f32.mrb[0].mxu0
        %v1088 = vadd.f32 0.0, %v1087
        %v1089 = vpop.f32.mrb[0].mxu0
        %v1090 = vpop.f32.mrb[0].mxu0
        %v1091 = vadd.f32 0.0, %v1090
        %v1092 = vpop.f32.mrb[0].mxu0
        %1093 = vmatprep.mubr.bf16.mxu0 0
        %1094 = vmatmul.mubr.bf16.gmra.mrb[0].mxu0 %v990
        %v1095 = vpop.f32.mrb[0].mxu0
        %v1096 = vadd.f32 0.0, %v1095
        %v1097 = vpop.f32.mrb[0].mxu0
        %v1098 = vpop.f32.mrb[0].mxu0
        %v1099 = vadd.f32 0.0, %v1098
        %v1100 = vpop.f32.mrb[0].mxu0
        %1101 = vmatprep.mubr.bf16.mxu0 0
        %1102 = vmatmul.mubr.bf16.gmra.mrb[0].mxu0 %v993
        %v1103 = vpop.f32.mrb[0].mxu0
        %v1104 = vadd.f32 0.0, %v1103
        %v1105 = vpop.f32.mrb[0].mxu0
        %v1106 = vpop.f32.mrb[0].mxu0
        %v1107 = vadd.f32 0.0, %v1106
        %v1108 = vpop.f32.mrb[0].mxu0
        %1109 = vmatprep.mubr.bf16.mxu0 0
        %1110 = vmatmul.mubr.bf16.gmra.mrb[0].mxu0 %v996
        %v1111 = vpop.f32.mrb[0].mxu0
        %v1112 = vadd.f32 0.0, %v1111
        %v1113 = vpop.f32.mrb[0].mxu0
        %v1114 = vpop.f32.mrb[0].mxu0
        %v1115 = vadd.f32 0.0, %v1114
        %v1116 = vpop.f32.mrb[0].mxu0
        %1117 = vmatprep.mubr.bf16.mxu0 0
        %1118 = vmatmul.mubr.bf16.gmra.mrb[0].mxu0 %v999
        %v1119 = vpop.f32.mrb[0].mxu0
        %v1120 = vadd.f32 0.0, %v1119
        %v1121 = vpop.f32.mrb[0].mxu0
        %v1122 = vpop.f32.mrb[0].mxu0
        %v1123 = vadd.f32 0.0, %v1122
        %v1124 = vpop.f32.mrb[0].mxu0
        %1125 = vmatprep.mubr.bf16.mxu0 0
        %1126 = vmatmul.mubr.bf16.gmra.mrb[0].mxu0 %v1002
        %v1127 = vpop.f32.mrb[0].mxu0
        %v1128 = vadd.f32 0.0, %v1127
        %v1129 = vpop.f32.mrb[0].mxu0
        %v1130 = vpop.f32.mrb[0].mxu0
        %v1131 = vadd.f32 0.0, %v1130
        %v1132 = vpop.f32.mrb[0].mxu0
        %1133 = vmatprep.mubr.bf16.mxu0 0
        %1134 = vmatmul.mubr.bf16.gmra.mrb[0].mxu0 %v1005
        %v1135 = vpop.f32.mrb[0].mxu0
        %v1136 = vadd.f32 0.0, %v1135
        %v1137 = vpop.f32.mrb[0].mxu0
        %v1138 = vpop.f32.mrb[0].mxu0
        %v1139 = vadd.f32 0.0, %v1138
        %v1140 = vpop.f32.mrb[0].mxu0
        %1141 = vmatprep.mubr.bf16.mxu0 0
        %1142 = vmatmul.mubr.bf16.gmra.mrb[0].mxu0 %v1008
        %v1143 = vpop.f32.mrb[0].mxu0
        %v1144 = vadd.f32 0.0, %v1143
        %v1145 = vpop.f32.mrb[0].mxu0
        %v1146 = vpop.f32.mrb[0].mxu0
        %v1147 = vadd.f32 0.0, %v1146
        %v1148 = vpop.f32.mrb[0].mxu0
        %1149 = vmatprep.mubr.bf16.mxu0 0
        %1150 = vmatmul.mubr.bf16.gmra.mrb[0].mxu0 %v1011
        %v1151 = vpop.f32.mrb[0].mxu0
        %v1152 = vadd.f32 0.0, %v1151
        %v1153 = vpop.f32.mrb[0].mxu0
        %v1154 = vpop.f32.mrb[0].mxu0
        %v1155 = vadd.f32 0.0, %v1154
        %v1156 = vpop.f32.mrb[0].mxu0
        %1157 = vmatprep.mubr.bf16.mxu0 0
        %1158 = vmatmul.mubr.bf16.gmra.mrb[0].mxu0 %v1014
        %v1159 = vpop.f32.mrb[0].mxu0
        %v1160 = vadd.f32 0.0, %v1159
        %v1161 = vpop.f32.mrb[0].mxu0
        %v1162 = vpop.f32.mrb[0].mxu0
        %v1163 = vadd.f32 0.0, %v1162
        %v1164 = vpop.f32.mrb[0].mxu0
        %1165 = vmatprep.mubr.bf16.mxu0 0
        %1166 = vmatmul.mubr.bf16.gmra.mrb[0].mxu0 %v1017
        %v1167 = vpop.f32.mrb[0].mxu0
        %v1168 = vadd.f32 0.0, %v1167
        %v1169 = vpop.f32.mrb[0].mxu0
        %v1170 = vpop.f32.mrb[0].mxu0
        %v1171 = vadd.f32 0.0, %v1170
        %v1172 = vpop.f32.mrb[0].mxu0
        %1173 = vmatprep.mubr.bf16.mxu0 0
        %1174 = vmatmul.mubr.bf16.gmra.mrb[0].mxu0 %v1020
        %v1175 = vpop.f32.mrb[0].mxu0
        %v1176 = vadd.f32 0.0, %v1175
        %v1177 = vpop.f32.mrb[0].mxu0
        %v1178 = vpop.f32.mrb[0].mxu0
        %v1179 = vadd.f32 0.0, %v1178
        %v1180 = vpop.f32.mrb[0].mxu0
        %1181 = vmatprep.mubr.bf16.mxu0 0
        %1182 = vmatmul.mubr.bf16.gmra.mrb[0].mxu0 %v1023
        %v1183 = vpop.f32.mrb[0].mxu0
        %v1184 = vadd.f32 0.0, %v1183
        %v1185 = vpop.f32.mrb[0].mxu0
        %v1186 = vpop.f32.mrb[0].mxu0
        %v1187 = vadd.f32 0.0, %v1186
        %v1188 = vpop.f32.mrb[0].mxu0
        %1189 = vmatprep.mubr.bf16.mxu0 0
        %1190 = vmatmul.mubr.bf16.gmra.mrb[0].mxu0 %v1026
        %v1191 = vpop.f32.mrb[0].mxu0
        %v1192 = vadd.f32 0.0, %v1191
        %v1193 = vpop.f32.mrb[0].mxu0
        %v1194 = vpop.f32.mrb[0].mxu0
        %v1195 = vadd.f32 0.0, %v1194
        %v1196 = vpop.f32.mrb[0].mxu0
        %1197 = vmatprep.mubr.bf16.mxu0 0
        %1198 = vmatmul.mubr.bf16.gmra.mrb[0].mxu0 %v1029
        %v1199 = vpop.f32.mrb[0].mxu0
        %v1200 = vadd.f32 0.0, %v1199
        %v1201 = vpop.f32.mrb[0].mxu0
        %v1202 = vpop.f32.mrb[0].mxu0
        %v1203 = vadd.f32 0.0, %v1202
        %v1204 = vpop.f32.mrb[0].mxu0
        %1205 = vmatprep.mubr.bf16.mxu0 0
        %1206 = vmatmul.mubr.bf16.gmra.mrb[0].mxu0 %v1032
        %v1207 = vpop.f32.mrb[0].mxu0
        %v1208 = vadd.f32 0.0, %v1207
        %v1209 = vpop.f32.mrb[0].mxu0
        %v1210 = vpop.f32.mrb[0].mxu0
        %v1211 = vadd.f32 0.0, %v1210
        %v1212 = vpop.f32.mrb[0].mxu0
        %1213 = vdwg.mxu0
        %v1214 = vadd.f32 %v782, %v1072
        %v1215 = vadd.f32 %v785, %v1075
        %v1216 = vadd.f32 %v790, %v1080
        %v1217 = vadd.f32 %v793, %v1083
        %v1218 = vadd.f32 %v798, %v1088
        %v1219 = vadd.f32 %v801, %v1091
        %v1220 = vadd.f32 %v806, %v1096
        %v1221 = vadd.f32 %v809, %v1099
        %v1222 = vadd.f32 %v814, %v1104
        %v1223 = vadd.f32 %v817, %v1107
        %v1224 = vadd.f32 %v822, %v1112
        %v1225 = vadd.f32 %v825, %v1115
        %v1226 = vadd.f32 %v830, %v1120
        %v1227 = vadd.f32 %v833, %v1123
        %v1228 = vadd.f32 %v838, %v1128
        %v1229 = vadd.f32 %v841, %v1131
        %v1230 = vadd.f32 %v846, %v1136
        %v1231 = vadd.f32 %v849, %v1139
        %v1232 = vadd.f32 %v854, %v1144
        %v1233 = vadd.f32 %v857, %v1147
        %v1234 = vadd.f32 %v862, %v1152
        %v1235 = vadd.f32 %v865, %v1155
        %v1236 = vadd.f32 %v870, %v1160
        %v1237 = vadd.f32 %v873, %v1163
        %v1238 = vadd.f32 %v878, %v1168
        %v1239 = vadd.f32 %v881, %v1171
        %v1240 = vadd.f32 %v886, %v1176
        %v1241 = vadd.f32 %v889, %v1179
        %v1242 = vadd.f32 %v894, %v1184
        %v1243 = vadd.f32 %v897, %v1187
        %v1244 = vadd.f32 %v902, %v1192
        %v1245 = vadd.f32 %v905, %v1195
        %v1246 = vadd.f32 %v910, %v1200
        %v1247 = vadd.f32 %v913, %v1203
        %v1248 = vadd.f32 %v918, %v1208
        %v1249 = vadd.f32 %v921, %v1211
        %v1250 = vld [vmem:[%s302 + $0x12] sm:$0xff]
        %v1251 = vld [vmem:[%s302 + $0x1a] sm:$0xff]
        %v1252 = vld [vmem:[%s302 + $0x22] sm:$0xff]
        %v1253 = vld [vmem:[%s302 + $0x2a] sm:$0xff]
        %v1254 = vld [vmem:[%s302 + $0x32] sm:$0xff]
        %v1255 = vld [vmem:[%s302 + $0x3a] sm:$0xff]
        %v1256 = vld [vmem:[%s302 + $0x42] sm:$0xff]
        %v1257 = vld [vmem:[%s302 + $0x4a] sm:$0xff]
        %v1258 = vld [vmem:[%s302 + $0x52] sm:$0xff]
        %v1259 = vld [vmem:[%s302 + $0x5a] sm:$0xff]
        %v1260 = vld [vmem:[%s302 + $0x62] sm:$0xff]
        %v1261 = vld [vmem:[%s302 + $0x6a] sm:$0xff]
        %v1262 = vld [vmem:[%s302 + $0x72] sm:$0xff]
        %v1263 = vld [vmem:[%s302 + $0x7a] sm:$0xff]
        %v1264 = vld [vmem:[%s302 + $0x82] sm:$0xff]
        %v1265 = vld [vmem:[%s302 + $0x8a] sm:$0xff]
        %v1266 = vld [vmem:[%s302 + $0x92] sm:$0xff]
        %v1267 = vld [vmem:[%s302 + $0x9a] sm:$0xff]
        %v1268 = vld [vmem:[%s302 + $0xa2] sm:$0xff]
        %v1269 = vld [vmem:[%s302 + $0xaa] sm:$0xff]
        %v1270 = vld [vmem:[%s302 + $0xb2] sm:$0xff]
        %v1271 = vld [vmem:[%s302 + $0xba] sm:$0xff]
        %v1272 = vld [vmem:[%s302 + $0xc2] sm:$0xff]
        %v1273 = vld [vmem:[%s302 + $0xca] sm:$0xff]
        %v1274 = vld [vmem:[%s302 + $0xd2] sm:$0xff]
        %v1275 = vld [vmem:[%s302 + $0xda] sm:$0xff]
        %v1276 = vld [vmem:[%s302 + $0xe2] sm:$0xff]
        %v1277 = vld [vmem:[%s302 + $0xea] sm:$0xff]
        %v1278 = vld [vmem:[%s302 + $0xf2] sm:$0xff]
        %v1279 = vld [vmem:[%s302 + $0xfa] sm:$0xff]
        %v1280 = vld [vmem:[%s302 + $0x102] sm:$0xff]
        %v1281 = vld [vmem:[%s302 + $0x10a] sm:$0xff]
        %v1282 = vld [vmem:[%s302 + $0x112] sm:$0xff]
        %v1283 = vld [vmem:[%s302 + $0x11a] sm:$0xff]
        %v1284 = vld [vmem:[%s302 + $0x122] sm:$0xff]
        %v1285 = vld [vmem:[%s302 + $0x12a] sm:$0x3f]
        %v1286 = vpack.c.bf16 %v1251, %v1250
        %v1287 = vpack.c.bf16 %v1253, %v1252
        %v1288 = vpack.c.bf16 %v1255, %v1254
        %v1289 = vpack.c.bf16 %v1257, %v1256
        %v1290 = vpack.c.bf16 %v1259, %v1258
        %v1291 = vpack.c.bf16 %v1261, %v1260
        %v1292 = vpack.c.bf16 %v1263, %v1262
        %v1293 = vpack.c.bf16 %v1265, %v1264
        %v1294 = vpack.c.bf16 %v1267, %v1266
        %v1295 = vpack.c.bf16 %v1269, %v1268
        %v1296 = vpack.c.bf16 %v1271, %v1270
        %v1297 = vpack.c.bf16 %v1273, %v1272
        %v1298 = vpack.c.bf16 %v1275, %v1274
        %v1299 = vpack.c.bf16 %v1277, %v1276
        %v1300 = vpack.c.bf16 %v1279, %v1278
        %v1301 = vpack.c.bf16 %v1281, %v1280
        %v1302 = vpack.c.bf16 %v1283, %v1282
        %v1303 = vpack.c.bf16 %v1285, %v1284
        %s1304 = scalar_lea.vmem %s2, 6
        %v1305 = vld [vmem:[%s1304] sm:$0x3]
        %v1307 = vsel %vm451, %v1286, 0
        %v1310 = vsel %vm451, %v1287, 0
        %v1313 = vsel %vm451, %v1288, 0
        %v1316 = vsel %vm451, %v1289, 0
        %v1319 = vsel %vm451, %v1290, 0
        %v1322 = vsel %vm451, %v1291, 0
        %v1325 = vsel %vm451, %v1292, 0
        %v1328 = vsel %vm451, %v1293, 0
        %v1331 = vsel %vm451, %v1294, 0
        %v1334 = vsel %vm451, %v1295, 0
        %v1337 = vsel %vm451, %v1296, 0
        %v1340 = vsel %vm451, %v1297, 0
        %v1343 = vsel %vm451, %v1298, 0
        %v1346 = vsel %vm451, %v1299, 0
        %v1349 = vsel %vm451, %v1300, 0
        %v1352 = vsel %vm451, %v1301, 0
        %v1355 = vsel %vm451, %v1302, 0
        %v1358 = vsel %vm451, %v1303, 0
        %v1361 = vand.u32 %v1305, %v509
        %1363 = vmatprep.subr.bf16.mxu0 0
        %1364 = vmatpush1.bf16.msra.mxu0 %v1361
        %1365 = vmatprep.subr.bf16.mxu0 0
        %1366 = vmatpush1.bf16.msra.mxu0 0
        %1367 = vmatprep.subr.bf16.mxu0 0
        %1368 = vmatpush1.bf16.msra.mxu0 0
        %1369 = vmatprep.subr.bf16.mxu0 0
        %1370 = vmatpush1.bf16.msra.mxu0 0
        %1371 = vmatprep.subr.bf16.mxu0 0
        %1372 = vmatpush1.bf16.msra.mxu0 0
        %1373 = vmatprep.subr.bf16.mxu0 0
        %1374 = vmatpush1.bf16.msra.mxu0 0
        %1375 = vmatprep.subr.bf16.mxu0 0
        %1376 = vmatpush1.bf16.msra.mxu0 0
        %1377 = vmatprep.subr.bf16.mxu0 0
        %1378 = vmatpush1.bf16.msra.mxu0 0
        %1379 = vmatprep.subr.bf16.mxu0 0
        %1380 = vmatpush1.bf16.msra.mxu0 0
        %1381 = vmatprep.subr.bf16.mxu0 0
        %1382 = vmatpush1.bf16.msra.mxu0 0
        %1383 = vmatprep.subr.bf16.mxu0 0
        %1384 = vmatpush1.bf16.msra.mxu0 0
        %1385 = vmatprep.subr.bf16.mxu0 0
        %1386 = vmatpush1.bf16.msra.mxu0 0
        %1387 = vmatprep.subr.bf16.mxu0 0
        %1388 = vmatpush1.bf16.msra.mxu0 0
        %1389 = vmatprep.subr.bf16.mxu0 0
        %1390 = vmatpush1.bf16.msra.mxu0 0
        %1391 = vmatprep.subr.bf16.mxu0 0
        %1392 = vmatpush1.bf16.msra.mxu0 0
        %1393 = vmatprep.subr.bf16.mxu0 0
        %1394 = vmatpush1.bf16.msra.mxu0 0
        %1395 = vmatprep.mubr.bf16.mxu0 0
        %1396 = vmatmul.mubr.bf16.gmra.mrb[0].mxu0 %v1307
        %v1397 = vpop.f32.mrb[0].mxu0
        %v1398 = vadd.f32 0.0, %v1397
        %v1399 = vpop.f32.mrb[0].mxu0
        %v1400 = vpop.f32.mrb[0].mxu0
        %v1401 = vadd.f32 0.0, %v1400
        %v1402 = vpop.f32.mrb[0].mxu0
        %1403 = vmatprep.mubr.bf16.mxu0 0
        %1404 = vmatmul.mubr.bf16.gmra.mrb[0].mxu0 %v1310
        %v1405 = vpop.f32.mrb[0].mxu0
        %v1406 = vadd.f32 0.0, %v1405
        %v1407 = vpop.f32.mrb[0].mxu0
        %v1408 = vpop.f32.mrb[0].mxu0
        %v1409 = vadd.f32 0.0, %v1408
        %v1410 = vpop.f32.mrb[0].mxu0
        %1411 = vmatprep.mubr.bf16.mxu0 0
        %1412 = vmatmul.mubr.bf16.gmra.mrb[0].mxu0 %v1313
        %v1413 = vpop.f32.mrb[0].mxu0
        %v1414 = vadd.f32 0.0, %v1413
        %v1415 = vpop.f32.mrb[0].mxu0
        %v1416 = vpop.f32.mrb[0].mxu0
        %v1417 = vadd.f32 0.0, %v1416
        %v1418 = vpop.f32.mrb[0].mxu0
        %1419 = vmatprep.mubr.bf16.mxu0 0
        %1420 = vmatmul.mubr.bf16.gmra.mrb[0].mxu0 %v1316
        %v1421 = vpop.f32.mrb[0].mxu0
        %v1422 = vadd.f32 0.0, %v1421
        %v1423 = vpop.f32.mrb[0].mxu0
        %v1424 = vpop.f32.mrb[0].mxu0
        %v1425 = vadd.f32 0.0, %v1424
        %v1426 = vpop.f32.mrb[0].mxu0
        %1427 = vmatprep.mubr.bf16.mxu0 0
        %1428 = vmatmul.mubr.bf16.gmra.mrb[0].mxu0 %v1319
        %v1429 = vpop.f32.mrb[0].mxu0
        %v1430 = vadd.f32 0.0, %v1429
        %v1431 = vpop.f32.mrb[0].mxu0
        %v1432 = vpop.f32.mrb[0].mxu0
        %v1433 = vadd.f32 0.0, %v1432
        %v1434 = vpop.f32.mrb[0].mxu0
        %1435 = vmatprep.mubr.bf16.mxu0 0
        %1436 = vmatmul.mubr.bf16.gmra.mrb[0].mxu0 %v1322
        %v1437 = vpop.f32.mrb[0].mxu0
        %v1438 = vadd.f32 0.0, %v1437
        %v1439 = vpop.f32.mrb[0].mxu0
        %v1440 = vpop.f32.mrb[0].mxu0
        %v1441 = vadd.f32 0.0, %v1440
        %v1442 = vpop.f32.mrb[0].mxu0
        %1443 = vmatprep.mubr.bf16.mxu0 0
        %1444 = vmatmul.mubr.bf16.gmra.mrb[0].mxu0 %v1325
        %v1445 = vpop.f32.mrb[0].mxu0
        %v1446 = vadd.f32 0.0, %v1445
        %v1447 = vpop.f32.mrb[0].mxu0
        %v1448 = vpop.f32.mrb[0].mxu0
        %v1449 = vadd.f32 0.0, %v1448
        %v1450 = vpop.f32.mrb[0].mxu0
        %1451 = vmatprep.mubr.bf16.mxu0 0
        %1452 = vmatmul.mubr.bf16.gmra.mrb[0].mxu0 %v1328
        %v1453 = vpop.f32.mrb[0].mxu0
        %v1454 = vadd.f32 0.0, %v1453
        %v1455 = vpop.f32.mrb[0].mxu0
        %v1456 = vpop.f32.mrb[0].mxu0
        %v1457 = vadd.f32 0.0, %v1456
        %v1458 = vpop.f32.mrb[0].mxu0
        %1459 = vmatprep.mubr.bf16.mxu0 0
        %1460 = vmatmul.mubr.bf16.gmra.mrb[0].mxu0 %v1331
        %v1461 = vpop.f32.mrb[0].mxu0
        %v1462 = vadd.f32 0.0, %v1461
        %v1463 = vpop.f32.mrb[0].mxu0
        %v1464 = vpop.f32.mrb[0].mxu0
        %v1465 = vadd.f32 0.0, %v1464
        %v1466 = vpop.f32.mrb[0].mxu0
        %1467 = vmatprep.mubr.bf16.mxu0 0
        %1468 = vmatmul.mubr.bf16.gmra.mrb[0].mxu0 %v1334
        %v1469 = vpop.f32.mrb[0].mxu0
        %v1470 = vadd.f32 0.0, %v1469
        %v1471 = vpop.f32.mrb[0].mxu0
        %v1472 = vpop.f32.mrb[0].mxu0
        %v1473 = vadd.f32 0.0, %v1472
        %v1474 = vpop.f32.mrb[0].mxu0
        %1475 = vmatprep.mubr.bf16.mxu0 0
        %1476 = vmatmul.mubr.bf16.gmra.mrb[0].mxu0 %v1337
        %v1477 = vpop.f32.mrb[0].mxu0
        %v1478 = vadd.f32 0.0, %v1477
        %v1479 = vpop.f32.mrb[0].mxu0
        %v1480 = vpop.f32.mrb[0].mxu0
        %v1481 = vadd.f32 0.0, %v1480
        %v1482 = vpop.f32.mrb[0].mxu0
        %1483 = vmatprep.mubr.bf16.mxu0 0
        %1484 = vmatmul.mubr.bf16.gmra.mrb[0].mxu0 %v1340
        %v1485 = vpop.f32.mrb[0].mxu0
        %v1486 = vadd.f32 0.0, %v1485
        %v1487 = vpop.f32.mrb[0].mxu0
        %v1488 = vpop.f32.mrb[0].mxu0
        %v1489 = vadd.f32 0.0, %v1488
        %v1490 = vpop.f32.mrb[0].mxu0
        %1491 = vmatprep.mubr.bf16.mxu0 0
        %1492 = vmatmul.mubr.bf16.gmra.mrb[0].mxu0 %v1343
        %v1493 = vpop.f32.mrb[0].mxu0
        %v1494 = vadd.f32 0.0, %v1493
        %v1495 = vpop.f32.mrb[0].mxu0
        %v1496 = vpop.f32.mrb[0].mxu0
        %v1497 = vadd.f32 0.0, %v1496
        %v1498 = vpop.f32.mrb[0].mxu0
        %1499 = vmatprep.mubr.bf16.mxu0 0
        %1500 = vmatmul.mubr.bf16.gmra.mrb[0].mxu0 %v1346
        %v1501 = vpop.f32.mrb[0].mxu0
        %v1502 = vadd.f32 0.0, %v1501
        %v1503 = vpop.f32.mrb[0].mxu0
        %v1504 = vpop.f32.mrb[0].mxu0
        %v1505 = vadd.f32 0.0, %v1504
        %v1506 = vpop.f32.mrb[0].mxu0
        %1507 = vmatprep.mubr.bf16.mxu0 0
        %1508 = vmatmul.mubr.bf16.gmra.mrb[0].mxu0 %v1349
        %v1509 = vpop.f32.mrb[0].mxu0
        %v1510 = vadd.f32 0.0, %v1509
        %v1511 = vpop.f32.mrb[0].mxu0
        %v1512 = vpop.f32.mrb[0].mxu0
        %v1513 = vadd.f32 0.0, %v1512
        %v1514 = vpop.f32.mrb[0].mxu0
        %1515 = vmatprep.mubr.bf16.mxu0 0
        %1516 = vmatmul.mubr.bf16.gmra.mrb[0].mxu0 %v1352
        %v1517 = vpop.f32.mrb[0].mxu0
        %v1518 = vadd.f32 0.0, %v1517
        %v1519 = vpop.f32.mrb[0].mxu0
        %v1520 = vpop.f32.mrb[0].mxu0
        %v1521 = vadd.f32 0.0, %v1520
        %v1522 = vpop.f32.mrb[0].mxu0
        %1523 = vmatprep.mubr.bf16.mxu0 0
        %1524 = vmatmul.mubr.bf16.gmra.mrb[0].mxu0 %v1355
        %v1525 = vpop.f32.mrb[0].mxu0
        %v1526 = vadd.f32 0.0, %v1525
        %v1527 = vpop.f32.mrb[0].mxu0
        %v1528 = vpop.f32.mrb[0].mxu0
        %v1529 = vadd.f32 0.0, %v1528
        %v1530 = vpop.f32.mrb[0].mxu0
        %1531 = vmatprep.mubr.bf16.mxu0 0
        %1532 = vmatmul.mubr.bf16.gmra.mrb[0].mxu0 %v1358
        %v1533 = vpop.f32.mrb[0].mxu0
        %v1534 = vadd.f32 0.0, %v1533
        %v1535 = vpop.f32.mrb[0].mxu0
        %v1536 = vpop.f32.mrb[0].mxu0
        %v1537 = vadd.f32 0.0, %v1536
        %v1538 = vpop.f32.mrb[0].mxu0
        %1539 = vdwg.mxu0
        %v1540 = vadd.f32 %v1214, %v1398
        %v1541 = vadd.f32 %v1215, %v1401
        %v1542 = vadd.f32 %v1216, %v1406
        %v1543 = vadd.f32 %v1217, %v1409
        %v1544 = vadd.f32 %v1218, %v1414
        %v1545 = vadd.f32 %v1219, %v1417
        %v1546 = vadd.f32 %v1220, %v1422
        %v1547 = vadd.f32 %v1221, %v1425
        %v1548 = vadd.f32 %v1222, %v1430
        %v1549 = vadd.f32 %v1223, %v1433
        %v1550 = vadd.f32 %v1224, %v1438
        %v1551 = vadd.f32 %v1225, %v1441
        %v1552 = vadd.f32 %v1226, %v1446
        %v1553 = vadd.f32 %v1227, %v1449
        %v1554 = vadd.f32 %v1228, %v1454
        %v1555 = vadd.f32 %v1229, %v1457
        %v1556 = vadd.f32 %v1230, %v1462
        %v1557 = vadd.f32 %v1231, %v1465
        %v1558 = vadd.f32 %v1232, %v1470
        %v1559 = vadd.f32 %v1233, %v1473
        %v1560 = vadd.f32 %v1234, %v1478
        %v1561 = vadd.f32 %v1235, %v1481
        %v1562 = vadd.f32 %v1236, %v1486
        %v1563 = vadd.f32 %v1237, %v1489
        %v1564 = vadd.f32 %v1238, %v1494
        %v1565 = vadd.f32 %v1239, %v1497
        %v1566 = vadd.f32 %v1240, %v1502
        %v1567 = vadd.f32 %v1241, %v1505
        %v1568 = vadd.f32 %v1242, %v1510
        %v1569 = vadd.f32 %v1243, %v1513
        %v1570 = vadd.f32 %v1244, %v1518
        %v1571 = vadd.f32 %v1245, %v1521
        %v1572 = vadd.f32 %v1246, %v1526
        %v1573 = vadd.f32 %v1247, %v1529
        %v1574 = vadd.f32 %v1248, %v1534
        %v1575 = vadd.f32 %v1249, %v1537
        %v1576 = vld [vmem:[%s302 + $0x13] sm:$0xff]
        %v1577 = vld [vmem:[%s302 + $0x1b] sm:$0xff]
        %v1578 = vld [vmem:[%s302 + $0x23] sm:$0xff]
        %v1579 = vld [vmem:[%s302 + $0x2b] sm:$0xff]
        %v1580 = vld [vmem:[%s302 + $0x33] sm:$0xff]
        %v1581 = vld [vmem:[%s302 + $0x3b] sm:$0xff]
        %v1582 = vld [vmem:[%s302 + $0x43] sm:$0xff]
        %v1583 = vld [vmem:[%s302 + $0x4b] sm:$0xff]
        %v1584 = vld [vmem:[%s302 + $0x53] sm:$0xff]
        %v1585 = vld [vmem:[%s302 + $0x5b] sm:$0xff]
        %v1586 = vld [vmem:[%s302 + $0x63] sm:$0xff]
        %v1587 = vld [vmem:[%s302 + $0x6b] sm:$0xff]
        %v1588 = vld [vmem:[%s302 + $0x73] sm:$0xff]
        %v1589 = vld [vmem:[%s302 + $0x7b] sm:$0xff]
        %v1590 = vld [vmem:[%s302 + $0x83] sm:$0xff]
        %v1591 = vld [vmem:[%s302 + $0x8b] sm:$0xff]
        %v1592 = vld [vmem:[%s302 + $0x93] sm:$0xff]
        %v1593 = vld [vmem:[%s302 + $0x9b] sm:$0xff]
        %v1594 = vld [vmem:[%s302 + $0xa3] sm:$0xff]
        %v1595 = vld [vmem:[%s302 + $0xab] sm:$0xff]
        %v1596 = vld [vmem:[%s302 + $0xb3] sm:$0xff]
        %v1597 = vld [vmem:[%s302 + $0xbb] sm:$0xff]
        %v1598 = vld [vmem:[%s302 + $0xc3] sm:$0xff]
        %v1599 = vld [vmem:[%s302 + $0xcb] sm:$0xff]
        %v1600 = vld [vmem:[%s302 + $0xd3] sm:$0xff]
        %v1601 = vld [vmem:[%s302 + $0xdb] sm:$0xff]
        %v1602 = vld [vmem:[%s302 + $0xe3] sm:$0xff]
        %v1603 = vld [vmem:[%s302 + $0xeb] sm:$0xff]
        %v1604 = vld [vmem:[%s302 + $0xf3] sm:$0xff]
        %v1605 = vld [vmem:[%s302 + $0xfb] sm:$0xff]
        %v1606 = vld [vmem:[%s302 + $0x103] sm:$0xff]
        %v1607 = vld [vmem:[%s302 + $0x10b] sm:$0xff]
        %v1608 = vld [vmem:[%s302 + $0x113] sm:$0xff]
        %v1609 = vld [vmem:[%s302 + $0x11b] sm:$0xff]
        %v1610 = vld [vmem:[%s302 + $0x123] sm:$0xff]
        %v1611 = vld [vmem:[%s302 + $0x12b] sm:$0x3f]
        %v1612 = vpack.c.bf16 %v1577, %v1576
        %v1613 = vpack.c.bf16 %v1579, %v1578
        %v1614 = vpack.c.bf16 %v1581, %v1580
        %v1615 = vpack.c.bf16 %v1583, %v1582
        %v1616 = vpack.c.bf16 %v1585, %v1584
        %v1617 = vpack.c.bf16 %v1587, %v1586
        %v1618 = vpack.c.bf16 %v1589, %v1588
        %v1619 = vpack.c.bf16 %v1591, %v1590
        %v1620 = vpack.c.bf16 %v1593, %v1592
        %v1621 = vpack.c.bf16 %v1595, %v1594
        %v1622 = vpack.c.bf16 %v1597, %v1596
        %v1623 = vpack.c.bf16 %v1599, %v1598
        %v1624 = vpack.c.bf16 %v1601, %v1600
        %v1625 = vpack.c.bf16 %v1603, %v1602
        %v1626 = vpack.c.bf16 %v1605, %v1604
        %v1627 = vpack.c.bf16 %v1607, %v1606
        %v1628 = vpack.c.bf16 %v1609, %v1608
        %v1629 = vpack.c.bf16 %v1611, %v1610
        %s1630 = scalar_lea.vmem %s2, 8
        %v1631 = vld [vmem:[%s1630] sm:$0x3]
        %v1633 = vsel %vm451, %v1612, 0
        %v1636 = vsel %vm451, %v1613, 0
        %v1639 = vsel %vm451, %v1614, 0
        %v1642 = vsel %vm451, %v1615, 0
        %v1645 = vsel %vm451, %v1616, 0
        %v1648 = vsel %vm451, %v1617, 0
        %v1651 = vsel %vm451, %v1618, 0
        %v1654 = vsel %vm451, %v1619, 0
        %v1657 = vsel %vm451, %v1620, 0
        %v1660 = vsel %vm451, %v1621, 0
        %v1663 = vsel %vm451, %v1622, 0
        %v1666 = vsel %vm451, %v1623, 0
        %v1669 = vsel %vm451, %v1624, 0
        %v1672 = vsel %vm451, %v1625, 0
        %v1675 = vsel %vm451, %v1626, 0
        %v1678 = vsel %vm451, %v1627, 0
        %v1681 = vsel %vm451, %v1628, 0
        %v1684 = vsel %vm451, %v1629, 0
        %v1687 = vand.u32 %v1631, %v509
        %1689 = vmatprep.subr.bf16.mxu0 0
        %1690 = vmatpush1.bf16.msra.mxu0 %v1687
        %1691 = vmatprep.subr.bf16.mxu0 0
        %1692 = vmatpush1.bf16.msra.mxu0 0
        %1693 = vmatprep.subr.bf16.mxu0 0
        %1694 = vmatpush1.bf16.msra.mxu0 0
        %1695 = vmatprep.subr.bf16.mxu0 0
        %1696 = vmatpush1.bf16.msra.mxu0 0
        %1697 = vmatprep.subr.bf16.mxu0 0
        %1698 = vmatpush1.bf16.msra.mxu0 0
        %1699 = vmatprep.subr.bf16.mxu0 0
        %1700 = vmatpush1.bf16.msra.mxu0 0
        %1701 = vmatprep.subr.bf16.mxu0 0
        %1702 = vmatpush1.bf16.msra.mxu0 0
        %1703 = vmatprep.subr.bf16.mxu0 0
        %1704 = vmatpush1.bf16.msra.mxu0 0
        %1705 = vmatprep.subr.bf16.mxu0 0
        %1706 = vmatpush1.bf16.msra.mxu0 0
        %1707 = vmatprep.subr.bf16.mxu0 0
        %1708 = vmatpush1.bf16.msra.mxu0 0
        %1709 = vmatprep.subr.bf16.mxu0 0
        %1710 = vmatpush1.bf16.msra.mxu0 0
        %1711 = vmatprep.subr.bf16.mxu0 0
        %1712 = vmatpush1.bf16.msra.mxu0 0
        %1713 = vmatprep.subr.bf16.mxu0 0
        %1714 = vmatpush1.bf16.msra.mxu0 0
        %1715 = vmatprep.subr.bf16.mxu0 0
        %1716 = vmatpush1.bf16.msra.mxu0 0
        %1717 = vmatprep.subr.bf16.mxu0 0
        %1718 = vmatpush1.bf16.msra.mxu0 0
        %1719 = vmatprep.subr.bf16.mxu0 0
        %1720 = vmatpush1.bf16.msra.mxu0 0
        %1721 = vmatprep.mubr.bf16.mxu0 0
        %1722 = vmatmul.mubr.bf16.gmra.mrb[0].mxu0 %v1633
        %v1723 = vpop.f32.mrb[0].mxu0
        %v1724 = vadd.f32 0.0, %v1723
        %v1725 = vpop.f32.mrb[0].mxu0
        %v1726 = vpop.f32.mrb[0].mxu0
        %v1727 = vadd.f32 0.0, %v1726
        %v1728 = vpop.f32.mrb[0].mxu0
        %1729 = vmatprep.mubr.bf16.mxu0 0
        %1730 = vmatmul.mubr.bf16.gmra.mrb[0].mxu0 %v1636
        %v1731 = vpop.f32.mrb[0].mxu0
        %v1732 = vadd.f32 0.0, %v1731
        %v1733 = vpop.f32.mrb[0].mxu0
        %v1734 = vpop.f32.mrb[0].mxu0
        %v1735 = vadd.f32 0.0, %v1734
        %v1736 = vpop.f32.mrb[0].mxu0
        %1737 = vmatprep.mubr.bf16.mxu0 0
        %1738 = vmatmul.mubr.bf16.gmra.mrb[0].mxu0 %v1639
        %v1739 = vpop.f32.mrb[0].mxu0
        %v1740 = vadd.f32 0.0, %v1739
        %v1741 = vpop.f32.mrb[0].mxu0
        %v1742 = vpop.f32.mrb[0].mxu0
        %v1743 = vadd.f32 0.0, %v1742
        %v1744 = vpop.f32.mrb[0].mxu0
        %1745 = vmatprep.mubr.bf16.mxu0 0
        %1746 = vmatmul.mubr.bf16.gmra.mrb[0].mxu0 %v1642
        %v1747 = vpop.f32.mrb[0].mxu0
        %v1748 = vadd.f32 0.0, %v1747
        %v1749 = vpop.f32.mrb[0].mxu0
        %v1750 = vpop.f32.mrb[0].mxu0
        %v1751 = vadd.f32 0.0, %v1750
        %v1752 = vpop.f32.mrb[0].mxu0
        %1753 = vmatprep.mubr.bf16.mxu0 0
        %1754 = vmatmul.mubr.bf16.gmra.mrb[0].mxu0 %v1645
        %v1755 = vpop.f32.mrb[0].mxu0
        %v1756 = vadd.f32 0.0, %v1755
        %v1757 = vpop.f32.mrb[0].mxu0
        %v1758 = vpop.f32.mrb[0].mxu0
        %v1759 = vadd.f32 0.0, %v1758
        %v1760 = vpop.f32.mrb[0].mxu0
        %1761 = vmatprep.mubr.bf16.mxu0 0
        %1762 = vmatmul.mubr.bf16.gmra.mrb[0].mxu0 %v1648
        %v1763 = vpop.f32.mrb[0].mxu0
        %v1764 = vadd.f32 0.0, %v1763
        %v1765 = vpop.f32.mrb[0].mxu0
        %v1766 = vpop.f32.mrb[0].mxu0
        %v1767 = vadd.f32 0.0, %v1766
        %v1768 = vpop.f32.mrb[0].mxu0
        %1769 = vmatprep.mubr.bf16.mxu0 0
        %1770 = vmatmul.mubr.bf16.gmra.mrb[0].mxu0 %v1651
        %v1771 = vpop.f32.mrb[0].mxu0
        %v1772 = vadd.f32 0.0, %v1771
        %v1773 = vpop.f32.mrb[0].mxu0
        %v1774 = vpop.f32.mrb[0].mxu0
        %v1775 = vadd.f32 0.0, %v1774
        %v1776 = vpop.f32.mrb[0].mxu0
        %1777 = vmatprep.mubr.bf16.mxu0 0
        %1778 = vmatmul.mubr.bf16.gmra.mrb[0].mxu0 %v1654
        %v1779 = vpop.f32.mrb[0].mxu0
        %v1780 = vadd.f32 0.0, %v1779
        %v1781 = vpop.f32.mrb[0].mxu0
        %v1782 = vpop.f32.mrb[0].mxu0
        %v1783 = vadd.f32 0.0, %v1782
        %v1784 = vpop.f32.mrb[0].mxu0
        %1785 = vmatprep.mubr.bf16.mxu0 0
        %1786 = vmatmul.mubr.bf16.gmra.mrb[0].mxu0 %v1657
        %v1787 = vpop.f32.mrb[0].mxu0
        %v1788 = vadd.f32 0.0, %v1787
        %v1789 = vpop.f32.mrb[0].mxu0
        %v1790 = vpop.f32.mrb[0].mxu0
        %v1791 = vadd.f32 0.0, %v1790
        %v1792 = vpop.f32.mrb[0].mxu0
        %1793 = vmatprep.mubr.bf16.mxu0 0
        %1794 = vmatmul.mubr.bf16.gmra.mrb[0].mxu0 %v1660
        %v1795 = vpop.f32.mrb[0].mxu0
        %v1796 = vadd.f32 0.0, %v1795
        %v1797 = vpop.f32.mrb[0].mxu0
        %v1798 = vpop.f32.mrb[0].mxu0
        %v1799 = vadd.f32 0.0, %v1798
        %v1800 = vpop.f32.mrb[0].mxu0
        %1801 = vmatprep.mubr.bf16.mxu0 0
        %1802 = vmatmul.mubr.bf16.gmra.mrb[0].mxu0 %v1663
        %v1803 = vpop.f32.mrb[0].mxu0
        %v1804 = vadd.f32 0.0, %v1803
        %v1805 = vpop.f32.mrb[0].mxu0
        %v1806 = vpop.f32.mrb[0].mxu0
        %v1807 = vadd.f32 0.0, %v1806
        %v1808 = vpop.f32.mrb[0].mxu0
        %1809 = vmatprep.mubr.bf16.mxu0 0
        %1810 = vmatmul.mubr.bf16.gmra.mrb[0].mxu0 %v1666
        %v1811 = vpop.f32.mrb[0].mxu0
        %v1812 = vadd.f32 0.0, %v1811
        %v1813 = vpop.f32.mrb[0].mxu0
        %v1814 = vpop.f32.mrb[0].mxu0
        %v1815 = vadd.f32 0.0, %v1814
        %v1816 = vpop.f32.mrb[0].mxu0
        %1817 = vmatprep.mubr.bf16.mxu0 0
        %1818 = vmatmul.mubr.bf16.gmra.mrb[0].mxu0 %v1669
        %v1819 = vpop.f32.mrb[0].mxu0
        %v1820 = vadd.f32 0.0, %v1819
        %v1821 = vpop.f32.mrb[0].mxu0
        %v1822 = vpop.f32.mrb[0].mxu0
        %v1823 = vadd.f32 0.0, %v1822
        %v1824 = vpop.f32.mrb[0].mxu0
        %1825 = vmatprep.mubr.bf16.mxu0 0
        %1826 = vmatmul.mubr.bf16.gmra.mrb[0].mxu0 %v1672
        %v1827 = vpop.f32.mrb[0].mxu0
        %v1828 = vadd.f32 0.0, %v1827
        %v1829 = vpop.f32.mrb[0].mxu0
        %v1830 = vpop.f32.mrb[0].mxu0
        %v1831 = vadd.f32 0.0, %v1830
        %v1832 = vpop.f32.mrb[0].mxu0
        %1833 = vmatprep.mubr.bf16.mxu0 0
        %1834 = vmatmul.mubr.bf16.gmra.mrb[0].mxu0 %v1675
        %v1835 = vpop.f32.mrb[0].mxu0
        %v1836 = vadd.f32 0.0, %v1835
        %v1837 = vpop.f32.mrb[0].mxu0
        %v1838 = vpop.f32.mrb[0].mxu0
        %v1839 = vadd.f32 0.0, %v1838
        %v1840 = vpop.f32.mrb[0].mxu0
        %1841 = vmatprep.mubr.bf16.mxu0 0
        %1842 = vmatmul.mubr.bf16.gmra.mrb[0].mxu0 %v1678
        %v1843 = vpop.f32.mrb[0].mxu0
        %v1844 = vadd.f32 0.0, %v1843
        %v1845 = vpop.f32.mrb[0].mxu0
        %v1846 = vpop.f32.mrb[0].mxu0
        %v1847 = vadd.f32 0.0, %v1846
        %v1848 = vpop.f32.mrb[0].mxu0
        %1849 = vmatprep.mubr.bf16.mxu0 0
        %1850 = vmatmul.mubr.bf16.gmra.mrb[0].mxu0 %v1681
        %v1851 = vpop.f32.mrb[0].mxu0
        %v1852 = vadd.f32 0.0, %v1851
        %v1853 = vpop.f32.mrb[0].mxu0
        %v1854 = vpop.f32.mrb[0].mxu0
        %v1855 = vadd.f32 0.0, %v1854
        %v1856 = vpop.f32.mrb[0].mxu0
        %1857 = vmatprep.mubr.bf16.mxu0 0
        %1858 = vmatmul.mubr.bf16.gmra.mrb[0].mxu0 %v1684
        %v1859 = vpop.f32.mrb[0].mxu0
        %v1860 = vadd.f32 0.0, %v1859
        %v1861 = vpop.f32.mrb[0].mxu0
        %v1862 = vpop.f32.mrb[0].mxu0
        %v1863 = vadd.f32 0.0, %v1862
        %v1864 = vpop.f32.mrb[0].mxu0
        %1865 = vdwg.mxu0
        %v1866 = vadd.f32 %v1540, %v1724
        %v1867 = vadd.f32 %v1541, %v1727
        %v1868 = vadd.f32 %v1542, %v1732
        %v1869 = vadd.f32 %v1543, %v1735
        %v1870 = vadd.f32 %v1544, %v1740
        %v1871 = vadd.f32 %v1545, %v1743
        %v1872 = vadd.f32 %v1546, %v1748
        %v1873 = vadd.f32 %v1547, %v1751
        %v1874 = vadd.f32 %v1548, %v1756
        %v1875 = vadd.f32 %v1549, %v1759
        %v1876 = vadd.f32 %v1550, %v1764
        %v1877 = vadd.f32 %v1551, %v1767
        %v1878 = vadd.f32 %v1552, %v1772
        %v1879 = vadd.f32 %v1553, %v1775
        %v1880 = vadd.f32 %v1554, %v1780
        %v1881 = vadd.f32 %v1555, %v1783
        %v1882 = vadd.f32 %v1556, %v1788
        %v1883 = vadd.f32 %v1557, %v1791
        %v1884 = vadd.f32 %v1558, %v1796
        %v1885 = vadd.f32 %v1559, %v1799
        %v1886 = vadd.f32 %v1560, %v1804
        %v1887 = vadd.f32 %v1561, %v1807
        %v1888 = vadd.f32 %v1562, %v1812
        %v1889 = vadd.f32 %v1563, %v1815
        %v1890 = vadd.f32 %v1564, %v1820
        %v1891 = vadd.f32 %v1565, %v1823
        %v1892 = vadd.f32 %v1566, %v1828
        %v1893 = vadd.f32 %v1567, %v1831
        %v1894 = vadd.f32 %v1568, %v1836
        %v1895 = vadd.f32 %v1569, %v1839
        %v1896 = vadd.f32 %v1570, %v1844
        %v1897 = vadd.f32 %v1571, %v1847
        %v1898 = vadd.f32 %v1572, %v1852
        %v1899 = vadd.f32 %v1573, %v1855
        %v1900 = vadd.f32 %v1574, %v1860
        %v1901 = vadd.f32 %v1575, %v1863
        %v1902 = vld [vmem:[%s302 + $0x14] sm:$0xff]
        %v1903 = vld [vmem:[%s302 + $0x1c] sm:$0xff]
        %v1904 = vld [vmem:[%s302 + $0x24] sm:$0xff]
        %v1905 = vld [vmem:[%s302 + $0x2c] sm:$0xff]
        %v1906 = vld [vmem:[%s302 + $0x34] sm:$0xff]
        %v1907 = vld [vmem:[%s302 + $0x3c] sm:$0xff]
        %v1908 = vld [vmem:[%s302 + $0x44] sm:$0xff]
        %v1909 = vld [vmem:[%s302 + $0x4c] sm:$0xff]
        %v1910 = vld [vmem:[%s302 + $0x54] sm:$0xff]
        %v1911 = vld [vmem:[%s302 + $0x5c] sm:$0xff]
        %v1912 = vld [vmem:[%s302 + $0x64] sm:$0xff]
        %v1913 = vld [vmem:[%s302 + $0x6c] sm:$0xff]
        %v1914 = vld [vmem:[%s302 + $0x74] sm:$0xff]
        %v1915 = vld [vmem:[%s302 + $0x7c] sm:$0xff]
        %v1916 = vld [vmem:[%s302 + $0x84] sm:$0xff]
        %v1917 = vld [vmem:[%s302 + $0x8c] sm:$0xff]
        %v1918 = vld [vmem:[%s302 + $0x94] sm:$0xff]
        %v1919 = vld [vmem:[%s302 + $0x9c] sm:$0xff]
        %v1920 = vld [vmem:[%s302 + $0xa4] sm:$0xff]
        %v1921 = vld [vmem:[%s302 + $0xac] sm:$0xff]
        %v1922 = vld [vmem:[%s302 + $0xb4] sm:$0xff]
        %v1923 = vld [vmem:[%s302 + $0xbc] sm:$0xff]
        %v1924 = vld [vmem:[%s302 + $0xc4] sm:$0xff]
        %v1925 = vld [vmem:[%s302 + $0xcc] sm:$0xff]
        %v1926 = vld [vmem:[%s302 + $0xd4] sm:$0xff]
        %v1927 = vld [vmem:[%s302 + $0xdc] sm:$0xff]
        %v1928 = vld [vmem:[%s302 + $0xe4] sm:$0xff]
        %v1929 = vld [vmem:[%s302 + $0xec] sm:$0xff]
        %v1930 = vld [vmem:[%s302 + $0xf4] sm:$0xff]
        %v1931 = vld [vmem:[%s302 + $0xfc] sm:$0xff]
        %v1932 = vld [vmem:[%s302 + $0x104] sm:$0xff]
        %v1933 = vld [vmem:[%s302 + $0x10c] sm:$0xff]
        %v1934 = vld [vmem:[%s302 + $0x114] sm:$0xff]
        %v1935 = vld [vmem:[%s302 + $0x11c] sm:$0xff]
        %v1936 = vld [vmem:[%s302 + $0x124] sm:$0xff]
        %v1937 = vld [vmem:[%s302 + $0x12c] sm:$0x3f]
        %v1938 = vpack.c.bf16 %v1903, %v1902
        %v1939 = vpack.c.bf16 %v1905, %v1904
        %v1940 = vpack.c.bf16 %v1907, %v1906
        %v1941 = vpack.c.bf16 %v1909, %v1908
        %v1942 = vpack.c.bf16 %v1911, %v1910
        %v1943 = vpack.c.bf16 %v1913, %v1912
        %v1944 = vpack.c.bf16 %v1915, %v1914
        %v1945 = vpack.c.bf16 %v1917, %v1916
        %v1946 = vpack.c.bf16 %v1919, %v1918
        %v1947 = vpack.c.bf16 %v1921, %v1920
        %v1948 = vpack.c.bf16 %v1923, %v1922
        %v1949 = vpack.c.bf16 %v1925, %v1924
        %v1950 = vpack.c.bf16 %v1927, %v1926
        %v1951 = vpack.c.bf16 %v1929, %v1928
        %v1952 = vpack.c.bf16 %v1931, %v1930
        %v1953 = vpack.c.bf16 %v1933, %v1932
        %v1954 = vpack.c.bf16 %v1935, %v1934
        %v1955 = vpack.c.bf16 %v1937, %v1936
        %s1956 = scalar_lea.vmem %s2, 10
        %v1957 = vld [vmem:[%s1956] sm:$0x3]
        %v1959 = vsel %vm451, %v1938, 0
        %v1962 = vsel %vm451, %v1939, 0
        %v1965 = vsel %vm451, %v1940, 0
        %v1968 = vsel %vm451, %v1941, 0
        %v1971 = vsel %vm451, %v1942, 0
        %v1974 = vsel %vm451, %v1943, 0
        %v1977 = vsel %vm451, %v1944, 0
        %v1980 = vsel %vm451, %v1945, 0
        %v1983 = vsel %vm451, %v1946, 0
        %v1986 = vsel %vm451, %v1947, 0
        %v1989 = vsel %vm451, %v1948, 0
        %v1992 = vsel %vm451, %v1949, 0
        %v1995 = vsel %vm451, %v1950, 0
        %v1998 = vsel %vm451, %v1951, 0
        %v2001 = vsel %vm451, %v1952, 0
        %v2004 = vsel %vm451, %v1953, 0
        %v2007 = vsel %vm451, %v1954, 0
        %v2010 = vsel %vm451, %v1955, 0
        %v2013 = vand.u32 %v1957, %v509
        %2015 = vmatprep.subr.bf16.mxu0 0
        %2016 = vmatpush1.bf16.msra.mxu0 %v2013
        %2017 = vmatprep.subr.bf16.mxu0 0
        %2018 = vmatpush1.bf16.msra.mxu0 0
        %2019 = vmatprep.subr.bf16.mxu0 0
        %2020 = vmatpush1.bf16.msra.mxu0 0
        %2021 = vmatprep.subr.bf16.mxu0 0
        %2022 = vmatpush1.bf16.msra.mxu0 0
        %2023 = vmatprep.subr.bf16.mxu0 0
        %2024 = vmatpush1.bf16.msra.mxu0 0
        %2025 = vmatprep.subr.bf16.mxu0 0
        %2026 = vmatpush1.bf16.msra.mxu0 0
        %2027 = vmatprep.subr.bf16.mxu0 0
        %2028 = vmatpush1.bf16.msra.mxu0 0
        %2029 = vmatprep.subr.bf16.mxu0 0
        %2030 = vmatpush1.bf16.msra.mxu0 0
        %2031 = vmatprep.subr.bf16.mxu0 0
        %2032 = vmatpush1.bf16.msra.mxu0 0
        %2033 = vmatprep.subr.bf16.mxu0 0
        %2034 = vmatpush1.bf16.msra.mxu0 0
        %2035 = vmatprep.subr.bf16.mxu0 0
        %2036 = vmatpush1.bf16.msra.mxu0 0
        %2037 = vmatprep.subr.bf16.mxu0 0
        %2038 = vmatpush1.bf16.msra.mxu0 0
        %2039 = vmatprep.subr.bf16.mxu0 0
        %2040 = vmatpush1.bf16.msra.mxu0 0
        %2041 = vmatprep.subr.bf16.mxu0 0
        %2042 = vmatpush1.bf16.msra.mxu0 0
        %2043 = vmatprep.subr.bf16.mxu0 0
        %2044 = vmatpush1.bf16.msra.mxu0 0
        %2045 = vmatprep.subr.bf16.mxu0 0
        %2046 = vmatpush1.bf16.msra.mxu0 0
        %2047 = vmatprep.mubr.bf16.mxu0 0
        %2048 = vmatmul.mubr.bf16.gmra.mrb[0].mxu0 %v1959
        %v2049 = vpop.f32.mrb[0].mxu0
        %v2050 = vadd.f32 0.0, %v2049
        %v2051 = vpop.f32.mrb[0].mxu0
        %v2052 = vpop.f32.mrb[0].mxu0
        %v2053 = vadd.f32 0.0, %v2052
        %v2054 = vpop.f32.mrb[0].mxu0
        %2055 = vmatprep.mubr.bf16.mxu0 0
        %2056 = vmatmul.mubr.bf16.gmra.mrb[0].mxu0 %v1962
        %v2057 = vpop.f32.mrb[0].mxu0
        %v2058 = vadd.f32 0.0, %v2057
        %v2059 = vpop.f32.mrb[0].mxu0
        %v2060 = vpop.f32.mrb[0].mxu0
        %v2061 = vadd.f32 0.0, %v2060
        %v2062 = vpop.f32.mrb[0].mxu0
        %2063 = vmatprep.mubr.bf16.mxu0 0
        %2064 = vmatmul.mubr.bf16.gmra.mrb[0].mxu0 %v1965
        %v2065 = vpop.f32.mrb[0].mxu0
        %v2066 = vadd.f32 0.0, %v2065
        %v2067 = vpop.f32.mrb[0].mxu0
        %v2068 = vpop.f32.mrb[0].mxu0
        %v2069 = vadd.f32 0.0, %v2068
        %v2070 = vpop.f32.mrb[0].mxu0
        %2071 = vmatprep.mubr.bf16.mxu0 0
        %2072 = vmatmul.mubr.bf16.gmra.mrb[0].mxu0 %v1968
        %v2073 = vpop.f32.mrb[0].mxu0
        %v2074 = vadd.f32 0.0, %v2073
        %v2075 = vpop.f32.mrb[0].mxu0
        %v2076 = vpop.f32.mrb[0].mxu0
        %v2077 = vadd.f32 0.0, %v2076
        %v2078 = vpop.f32.mrb[0].mxu0
        %2079 = vmatprep.mubr.bf16.mxu0 0
        %2080 = vmatmul.mubr.bf16.gmra.mrb[0].mxu0 %v1971
        %v2081 = vpop.f32.mrb[0].mxu0
        %v2082 = vadd.f32 0.0, %v2081
        %v2083 = vpop.f32.mrb[0].mxu0
        %v2084 = vpop.f32.mrb[0].mxu0
        %v2085 = vadd.f32 0.0, %v2084
        %v2086 = vpop.f32.mrb[0].mxu0
        %2087 = vmatprep.mubr.bf16.mxu0 0
        %2088 = vmatmul.mubr.bf16.gmra.mrb[0].mxu0 %v1974
        %v2089 = vpop.f32.mrb[0].mxu0
        %v2090 = vadd.f32 0.0, %v2089
        %v2091 = vpop.f32.mrb[0].mxu0
        %v2092 = vpop.f32.mrb[0].mxu0
        %v2093 = vadd.f32 0.0, %v2092
        %v2094 = vpop.f32.mrb[0].mxu0
        %2095 = vmatprep.mubr.bf16.mxu0 0
        %2096 = vmatmul.mubr.bf16.gmra.mrb[0].mxu0 %v1977
        %v2097 = vpop.f32.mrb[0].mxu0
        %v2098 = vadd.f32 0.0, %v2097
        %v2099 = vpop.f32.mrb[0].mxu0
        %v2100 = vpop.f32.mrb[0].mxu0
        %v2101 = vadd.f32 0.0, %v2100
        %v2102 = vpop.f32.mrb[0].mxu0
        %2103 = vmatprep.mubr.bf16.mxu0 0
        %2104 = vmatmul.mubr.bf16.gmra.mrb[0].mxu0 %v1980
        %v2105 = vpop.f32.mrb[0].mxu0
        %v2106 = vadd.f32 0.0, %v2105
        %v2107 = vpop.f32.mrb[0].mxu0
        %v2108 = vpop.f32.mrb[0].mxu0
        %v2109 = vadd.f32 0.0, %v2108
        %v2110 = vpop.f32.mrb[0].mxu0
        %2111 = vmatprep.mubr.bf16.mxu0 0
        %2112 = vmatmul.mubr.bf16.gmra.mrb[0].mxu0 %v1983
        %v2113 = vpop.f32.mrb[0].mxu0
        %v2114 = vadd.f32 0.0, %v2113
        %v2115 = vpop.f32.mrb[0].mxu0
        %v2116 = vpop.f32.mrb[0].mxu0
        %v2117 = vadd.f32 0.0, %v2116
        %v2118 = vpop.f32.mrb[0].mxu0
        %2119 = vmatprep.mubr.bf16.mxu0 0
        %2120 = vmatmul.mubr.bf16.gmra.mrb[0].mxu0 %v1986
        %v2121 = vpop.f32.mrb[0].mxu0
        %v2122 = vadd.f32 0.0, %v2121
        %v2123 = vpop.f32.mrb[0].mxu0
        %v2124 = vpop.f32.mrb[0].mxu0
        %v2125 = vadd.f32 0.0, %v2124
        %v2126 = vpop.f32.mrb[0].mxu0
        %2127 = vmatprep.mubr.bf16.mxu0 0
        %2128 = vmatmul.mubr.bf16.gmra.mrb[0].mxu0 %v1989
        %v2129 = vpop.f32.mrb[0].mxu0
        %v2130 = vadd.f32 0.0, %v2129
        %v2131 = vpop.f32.mrb[0].mxu0
        %v2132 = vpop.f32.mrb[0].mxu0
        %v2133 = vadd.f32 0.0, %v2132
        %v2134 = vpop.f32.mrb[0].mxu0
        %2135 = vmatprep.mubr.bf16.mxu0 0
        %2136 = vmatmul.mubr.bf16.gmra.mrb[0].mxu0 %v1992
        %v2137 = vpop.f32.mrb[0].mxu0
        %v2138 = vadd.f32 0.0, %v2137
        %v2139 = vpop.f32.mrb[0].mxu0
        %v2140 = vpop.f32.mrb[0].mxu0
        %v2141 = vadd.f32 0.0, %v2140
        %v2142 = vpop.f32.mrb[0].mxu0
        %2143 = vmatprep.mubr.bf16.mxu0 0
        %2144 = vmatmul.mubr.bf16.gmra.mrb[0].mxu0 %v1995
        %v2145 = vpop.f32.mrb[0].mxu0
        %v2146 = vadd.f32 0.0, %v2145
        %v2147 = vpop.f32.mrb[0].mxu0
        %v2148 = vpop.f32.mrb[0].mxu0
        %v2149 = vadd.f32 0.0, %v2148
        %v2150 = vpop.f32.mrb[0].mxu0
        %2151 = vmatprep.mubr.bf16.mxu0 0
        %2152 = vmatmul.mubr.bf16.gmra.mrb[0].mxu0 %v1998
        %v2153 = vpop.f32.mrb[0].mxu0
        %v2154 = vadd.f32 0.0, %v2153
        %v2155 = vpop.f32.mrb[0].mxu0
        %v2156 = vpop.f32.mrb[0].mxu0
        %v2157 = vadd.f32 0.0, %v2156
        %v2158 = vpop.f32.mrb[0].mxu0
        %2159 = vmatprep.mubr.bf16.mxu0 0
        %2160 = vmatmul.mubr.bf16.gmra.mrb[0].mxu0 %v2001
        %v2161 = vpop.f32.mrb[0].mxu0
        %v2162 = vadd.f32 0.0, %v2161
        %v2163 = vpop.f32.mrb[0].mxu0
        %v2164 = vpop.f32.mrb[0].mxu0
        %v2165 = vadd.f32 0.0, %v2164
        %v2166 = vpop.f32.mrb[0].mxu0
        %2167 = vmatprep.mubr.bf16.mxu0 0
        %2168 = vmatmul.mubr.bf16.gmra.mrb[0].mxu0 %v2004
        %v2169 = vpop.f32.mrb[0].mxu0
        %v2170 = vadd.f32 0.0, %v2169
        %v2171 = vpop.f32.mrb[0].mxu0
        %v2172 = vpop.f32.mrb[0].mxu0
        %v2173 = vadd.f32 0.0, %v2172
        %v2174 = vpop.f32.mrb[0].mxu0
        %2175 = vmatprep.mubr.bf16.mxu0 0
        %2176 = vmatmul.mubr.bf16.gmra.mrb[0].mxu0 %v2007
        %v2177 = vpop.f32.mrb[0].mxu0
        %v2178 = vadd.f32 0.0, %v2177
        %v2179 = vpop.f32.mrb[0].mxu0
        %v2180 = vpop.f32.mrb[0].mxu0
        %v2181 = vadd.f32 0.0, %v2180
        %v2182 = vpop.f32.mrb[0].mxu0
        %2183 = vmatprep.mubr.bf16.mxu0 0
        %2184 = vmatmul.mubr.bf16.gmra.mrb[0].mxu0 %v2010
        %v2185 = vpop.f32.mrb[0].mxu0
        %v2186 = vadd.f32 0.0, %v2185
        %v2187 = vpop.f32.mrb[0].mxu0
        %v2188 = vpop.f32.mrb[0].mxu0
        %v2189 = vadd.f32 0.0, %v2188
        %v2190 = vpop.f32.mrb[0].mxu0
        %2191 = vdwg.mxu0
        %v2192 = vadd.f32 %v1866, %v2050
        %v2193 = vadd.f32 %v1867, %v2053
        %v2194 = vadd.f32 %v1868, %v2058
        %v2195 = vadd.f32 %v1869, %v2061
        %v2196 = vadd.f32 %v1870, %v2066
        %v2197 = vadd.f32 %v1871, %v2069
        %v2198 = vadd.f32 %v1872, %v2074
        %v2199 = vadd.f32 %v1873, %v2077
        %v2200 = vadd.f32 %v1874, %v2082
        %v2201 = vadd.f32 %v1875, %v2085
        %v2202 = vadd.f32 %v1876, %v2090
        %v2203 = vadd.f32 %v1877, %v2093
        %v2204 = vadd.f32 %v1878, %v2098
        %v2205 = vadd.f32 %v1879, %v2101
        %v2206 = vadd.f32 %v1880, %v2106
        %v2207 = vadd.f32 %v1881, %v2109
        %v2208 = vadd.f32 %v1882, %v2114
        %v2209 = vadd.f32 %v1883, %v2117
        %v2210 = vadd.f32 %v1884, %v2122
        %v2211 = vadd.f32 %v1885, %v2125
        %v2212 = vadd.f32 %v1886, %v2130
        %v2213 = vadd.f32 %v1887, %v2133
        %v2214 = vadd.f32 %v1888, %v2138
        %v2215 = vadd.f32 %v1889, %v2141
        %v2216 = vadd.f32 %v1890, %v2146
        %v2217 = vadd.f32 %v1891, %v2149
        %v2218 = vadd.f32 %v1892, %v2154
        %v2219 = vadd.f32 %v1893, %v2157
        %v2220 = vadd.f32 %v1894, %v2162
        %v2221 = vadd.f32 %v1895, %v2165
        %v2222 = vadd.f32 %v1896, %v2170
        %v2223 = vadd.f32 %v1897, %v2173
        %v2224 = vadd.f32 %v1898, %v2178
        %v2225 = vadd.f32 %v1899, %v2181
        %v2226 = vadd.f32 %v1900, %v2186
        %v2227 = vadd.f32 %v1901, %v2189
        %v2228 = vld [vmem:[%s302 + $0x24] sm:$0xff]
        %v2229 = vld [vmem:[%s302 + $0x2c] sm:$0xff]
        %v2230 = vld [vmem:[%s302 + $0x34] sm:$0xff]
        %v2231 = vld [vmem:[%s302 + $0x3c] sm:$0xff]
        %v2232 = vld [vmem:[%s302 + $0x44] sm:$0xff]
        %v2233 = vld [vmem:[%s302 + $0x4c] sm:$0xff]
        %v2234 = vld [vmem:[%s302 + $0x54] sm:$0xff]
        %v2235 = vld [vmem:[%s302 + $0x5c] sm:$0xff]
        %v2236 = vld [vmem:[%s302 + $0x64] sm:$0xff]
        %v2237 = vld [vmem:[%s302 + $0x6c] sm:$0xff]
        %v2238 = vld [vmem:[%s302 + $0x74] sm:$0xff]
        %v2239 = vld [vmem:[%s302 + $0x7c] sm:$0xff]
        %v2240 = vld [vmem:[%s302 + $0x84] sm:$0xff]
        %v2241 = vld [vmem:[%s302 + $0x8c] sm:$0xff]
        %v2242 = vld [vmem:[%s302 + $0x94] sm:$0xff]
        %v2243 = vld [vmem:[%s302 + $0x9c] sm:$0xff]
        %v2244 = vld [vmem:[%s302 + $0xa4] sm:$0xff]
        %v2245 = vld [vmem:[%s302 + $0xac] sm:$0xff]
        %v2246 = vld [vmem:[%s302 + $0xb4] sm:$0xff]
        %v2247 = vld [vmem:[%s302 + $0xbc] sm:$0xff]
        %v2248 = vld [vmem:[%s302 + $0xc4] sm:$0xff]
        %v2249 = vld [vmem:[%s302 + $0xcc] sm:$0xff]
        %v2250 = vld [vmem:[%s302 + $0xd4] sm:$0xff]
        %v2251 = vld [vmem:[%s302 + $0xdc] sm:$0xff]
        %v2252 = vld [vmem:[%s302 + $0xe4] sm:$0xff]
        %v2253 = vld [vmem:[%s302 + $0xec] sm:$0xff]
        %v2254 = vld [vmem:[%s302 + $0xf4] sm:$0xff]
        %v2255 = vld [vmem:[%s302 + $0xfc] sm:$0xff]
        %v2256 = vld [vmem:[%s302 + $0x104] sm:$0xff]
        %v2257 = vld [vmem:[%s302 + $0x10c] sm:$0xff]
        %v2258 = vld [vmem:[%s302 + $0x114] sm:$0xff]
        %v2259 = vld [vmem:[%s302 + $0x11c] sm:$0xff]
        %v2260 = vld [vmem:[%s302 + $0x124] sm:$0xff]
        %v2261 = vld [vmem:[%s302 + $0x12c] sm:$0xff]
        %v2262 = vld [vmem:[%s302 + $0x134] sm:$0xff]
        %v2263 = vld [vmem:[%s302 + $0x13c] sm:$0x3f]
        %v2264 = vpack.c.bf16 %v2229, %v2228
        %v2265 = vpack.c.bf16 %v2231, %v2230
        %v2266 = vpack.c.bf16 %v2233, %v2232
        %v2267 = vpack.c.bf16 %v2235, %v2234
        %v2268 = vpack.c.bf16 %v2237, %v2236
        %v2269 = vpack.c.bf16 %v2239, %v2238
        %v2270 = vpack.c.bf16 %v2241, %v2240
        %v2271 = vpack.c.bf16 %v2243, %v2242
        %v2272 = vpack.c.bf16 %v2245, %v2244
        %v2273 = vpack.c.bf16 %v2247, %v2246
        %v2274 = vpack.c.bf16 %v2249, %v2248
        %v2275 = vpack.c.bf16 %v2251, %v2250
        %v2276 = vpack.c.bf16 %v2253, %v2252
        %v2277 = vpack.c.bf16 %v2255, %v2254
        %v2278 = vpack.c.bf16 %v2257, %v2256
        %v2279 = vpack.c.bf16 %v2259, %v2258
        %v2280 = vpack.c.bf16 %v2261, %v2260
        %v2281 = vpack.c.bf16 %v2263, %v2262
        %s2282 = scalar_lea.vmem %s2, 12
        %v2283 = vld [vmem:[%s2282] sm:$0x3]
        %v2285 = vsel %vm451, %v2264, 0
        %v2288 = vsel %vm451, %v2265, 0
        %v2291 = vsel %vm451, %v2266, 0
        %v2294 = vsel %vm451, %v2267, 0
        %v2297 = vsel %vm451, %v2268, 0
        %v2300 = vsel %vm451, %v2269, 0
        %v2303 = vsel %vm451, %v2270, 0
        %v2306 = vsel %vm451, %v2271, 0
        %v2309 = vsel %vm451, %v2272, 0
        %v2312 = vsel %vm451, %v2273, 0
        %v2315 = vsel %vm451, %v2274, 0
        %v2318 = vsel %vm451, %v2275, 0
        %v2321 = vsel %vm451, %v2276, 0
        %v2324 = vsel %vm451, %v2277, 0
        %v2327 = vsel %vm451, %v2278, 0
        %v2330 = vsel %vm451, %v2279, 0
        %v2333 = vsel %vm451, %v2280, 0
        %v2336 = vsel %vm451, %v2281, 0
        %v2339 = vand.u32 %v2283, %v509
        %2341 = vmatprep.subr.bf16.mxu0 0
        %2342 = vmatpush1.bf16.msra.mxu0 %v2339
        %2343 = vmatprep.subr.bf16.mxu0 0
        %2344 = vmatpush1.bf16.msra.mxu0 0
        %2345 = vmatprep.subr.bf16.mxu0 0
        %2346 = vmatpush1.bf16.msra.mxu0 0
        %2347 = vmatprep.subr.bf16.mxu0 0
        %2348 = vmatpush1.bf16.msra.mxu0 0
        %2349 = vmatprep.subr.bf16.mxu0 0
        %2350 = vmatpush1.bf16.msra.mxu0 0
        %2351 = vmatprep.subr.bf16.mxu0 0
        %2352 = vmatpush1.bf16.msra.mxu0 0
        %2353 = vmatprep.subr.bf16.mxu0 0
        %2354 = vmatpush1.bf16.msra.mxu0 0
        %2355 = vmatprep.subr.bf16.mxu0 0
        %2356 = vmatpush1.bf16.msra.mxu0 0
        %2357 = vmatprep.subr.bf16.mxu0 0
        %2358 = vmatpush1.bf16.msra.mxu0 0
        %2359 = vmatprep.subr.bf16.mxu0 0
        %2360 = vmatpush1.bf16.msra.mxu0 0
        %2361 = vmatprep.subr.bf16.mxu0 0
        %2362 = vmatpush1.bf16.msra.mxu0 0
        %2363 = vmatprep.subr.bf16.mxu0 0
        %2364 = vmatpush1.bf16.msra.mxu0 0
        %2365 = vmatprep.subr.bf16.mxu0 0
        %2366 = vmatpush1.bf16.msra.mxu0 0
        %2367 = vmatprep.subr.bf16.mxu0 0
        %2368 = vmatpush1.bf16.msra.mxu0 0
        %2369 = vmatprep.subr.bf16.mxu0 0
        %2370 = vmatpush1.bf16.msra.mxu0 0
        %2371 = vmatprep.subr.bf16.mxu0 0
        %2372 = vmatpush1.bf16.msra.mxu0 0
        %2373 = vmatprep.mubr.bf16.mxu0 0
        %2374 = vmatmul.mubr.bf16.gmra.mrb[0].mxu0 %v2285
        %v2375 = vpop.f32.mrb[0].mxu0
        %v2376 = vadd.f32 0.0, %v2375
        %v2377 = vpop.f32.mrb[0].mxu0
        %v2378 = vpop.f32.mrb[0].mxu0
        %v2379 = vadd.f32 0.0, %v2378
        %v2380 = vpop.f32.mrb[0].mxu0
        %2381 = vmatprep.mubr.bf16.mxu0 0
        %2382 = vmatmul.mubr.bf16.gmra.mrb[0].mxu0 %v2288
        %v2383 = vpop.f32.mrb[0].mxu0
        %v2384 = vadd.f32 0.0, %v2383
        %v2385 = vpop.f32.mrb[0].mxu0
        %v2386 = vpop.f32.mrb[0].mxu0
        %v2387 = vadd.f32 0.0, %v2386
        %v2388 = vpop.f32.mrb[0].mxu0
        %2389 = vmatprep.mubr.bf16.mxu0 0
        %2390 = vmatmul.mubr.bf16.gmra.mrb[0].mxu0 %v2291
        %v2391 = vpop.f32.mrb[0].mxu0
        %v2392 = vadd.f32 0.0, %v2391
        %v2393 = vpop.f32.mrb[0].mxu0
        %v2394 = vpop.f32.mrb[0].mxu0
        %v2395 = vadd.f32 0.0, %v2394
        %v2396 = vpop.f32.mrb[0].mxu0
        %2397 = vmatprep.mubr.bf16.mxu0 0
        %2398 = vmatmul.mubr.bf16.gmra.mrb[0].mxu0 %v2294
        %v2399 = vpop.f32.mrb[0].mxu0
        %v2400 = vadd.f32 0.0, %v2399
        %v2401 = vpop.f32.mrb[0].mxu0
        %v2402 = vpop.f32.mrb[0].mxu0
        %v2403 = vadd.f32 0.0, %v2402
        %v2404 = vpop.f32.mrb[0].mxu0
        %2405 = vmatprep.mubr.bf16.mxu0 0
        %2406 = vmatmul.mubr.bf16.gmra.mrb[0].mxu0 %v2297
        %v2407 = vpop.f32.mrb[0].mxu0
        %v2408 = vadd.f32 0.0, %v2407
        %v2409 = vpop.f32.mrb[0].mxu0
        %v2410 = vpop.f32.mrb[0].mxu0
        %v2411 = vadd.f32 0.0, %v2410
        %v2412 = vpop.f32.mrb[0].mxu0
        %2413 = vmatprep.mubr.bf16.mxu0 0
        %2414 = vmatmul.mubr.bf16.gmra.mrb[0].mxu0 %v2300
        %v2415 = vpop.f32.mrb[0].mxu0
        %v2416 = vadd.f32 0.0, %v2415
        %v2417 = vpop.f32.mrb[0].mxu0
        %v2418 = vpop.f32.mrb[0].mxu0
        %v2419 = vadd.f32 0.0, %v2418
        %v2420 = vpop.f32.mrb[0].mxu0
        %2421 = vmatprep.mubr.bf16.mxu0 0
        %2422 = vmatmul.mubr.bf16.gmra.mrb[0].mxu0 %v2303
        %v2423 = vpop.f32.mrb[0].mxu0
        %v2424 = vadd.f32 0.0, %v2423
        %v2425 = vpop.f32.mrb[0].mxu0
        %v2426 = vpop.f32.mrb[0].mxu0
        %v2427 = vadd.f32 0.0, %v2426
        %v2428 = vpop.f32.mrb[0].mxu0
        %2429 = vmatprep.mubr.bf16.mxu0 0
        %2430 = vmatmul.mubr.bf16.gmra.mrb[0].mxu0 %v2306
        %v2431 = vpop.f32.mrb[0].mxu0
        %v2432 = vadd.f32 0.0, %v2431
        %v2433 = vpop.f32.mrb[0].mxu0
        %v2434 = vpop.f32.mrb[0].mxu0
        %v2435 = vadd.f32 0.0, %v2434
        %v2436 = vpop.f32.mrb[0].mxu0
        %2437 = vmatprep.mubr.bf16.mxu0 0
        %2438 = vmatmul.mubr.bf16.gmra.mrb[0].mxu0 %v2309
        %v2439 = vpop.f32.mrb[0].mxu0
        %v2440 = vadd.f32 0.0, %v2439
        %v2441 = vpop.f32.mrb[0].mxu0
        %v2442 = vpop.f32.mrb[0].mxu0
        %v2443 = vadd.f32 0.0, %v2442
        %v2444 = vpop.f32.mrb[0].mxu0
        %2445 = vmatprep.mubr.bf16.mxu0 0
        %2446 = vmatmul.mubr.bf16.gmra.mrb[0].mxu0 %v2312
        %v2447 = vpop.f32.mrb[0].mxu0
        %v2448 = vadd.f32 0.0, %v2447
        %v2449 = vpop.f32.mrb[0].mxu0
        %v2450 = vpop.f32.mrb[0].mxu0
        %v2451 = vadd.f32 0.0, %v2450
        %v2452 = vpop.f32.mrb[0].mxu0
        %2453 = vmatprep.mubr.bf16.mxu0 0
        %2454 = vmatmul.mubr.bf16.gmra.mrb[0].mxu0 %v2315
        %v2455 = vpop.f32.mrb[0].mxu0
        %v2456 = vadd.f32 0.0, %v2455
        %v2457 = vpop.f32.mrb[0].mxu0
        %v2458 = vpop.f32.mrb[0].mxu0
        %v2459 = vadd.f32 0.0, %v2458
        %v2460 = vpop.f32.mrb[0].mxu0
        %2461 = vmatprep.mubr.bf16.mxu0 0
        %2462 = vmatmul.mubr.bf16.gmra.mrb[0].mxu0 %v2318
        %v2463 = vpop.f32.mrb[0].mxu0
        %v2464 = vadd.f32 0.0, %v2463
        %v2465 = vpop.f32.mrb[0].mxu0
        %v2466 = vpop.f32.mrb[0].mxu0
        %v2467 = vadd.f32 0.0, %v2466
        %v2468 = vpop.f32.mrb[0].mxu0
        %2469 = vmatprep.mubr.bf16.mxu0 0
        %2470 = vmatmul.mubr.bf16.gmra.mrb[0].mxu0 %v2321
        %v2471 = vpop.f32.mrb[0].mxu0
        %v2472 = vadd.f32 0.0, %v2471
        %v2473 = vpop.f32.mrb[0].mxu0
        %v2474 = vpop.f32.mrb[0].mxu0
        %v2475 = vadd.f32 0.0, %v2474
        %v2476 = vpop.f32.mrb[0].mxu0
        %2477 = vmatprep.mubr.bf16.mxu0 0
        %2478 = vmatmul.mubr.bf16.gmra.mrb[0].mxu0 %v2324
        %v2479 = vpop.f32.mrb[0].mxu0
        %v2480 = vadd.f32 0.0, %v2479
        %v2481 = vpop.f32.mrb[0].mxu0
        %v2482 = vpop.f32.mrb[0].mxu0
        %v2483 = vadd.f32 0.0, %v2482
        %v2484 = vpop.f32.mrb[0].mxu0
        %2485 = vmatprep.mubr.bf16.mxu0 0
        %2486 = vmatmul.mubr.bf16.gmra.mrb[0].mxu0 %v2327
        %v2487 = vpop.f32.mrb[0].mxu0
        %v2488 = vadd.f32 0.0, %v2487
        %v2489 = vpop.f32.mrb[0].mxu0
        %v2490 = vpop.f32.mrb[0].mxu0
        %v2491 = vadd.f32 0.0, %v2490
        %v2492 = vpop.f32.mrb[0].mxu0
        %2493 = vmatprep.mubr.bf16.mxu0 0
        %2494 = vmatmul.mubr.bf16.gmra.mrb[0].mxu0 %v2330
        %v2495 = vpop.f32.mrb[0].mxu0
        %v2496 = vadd.f32 0.0, %v2495
        %v2497 = vpop.f32.mrb[0].mxu0
        %v2498 = vpop.f32.mrb[0].mxu0
        %v2499 = vadd.f32 0.0, %v2498
        %v2500 = vpop.f32.mrb[0].mxu0
        %2501 = vmatprep.mubr.bf16.mxu0 0
        %2502 = vmatmul.mubr.bf16.gmra.mrb[0].mxu0 %v2333
        %v2503 = vpop.f32.mrb[0].mxu0
        %v2504 = vadd.f32 0.0, %v2503
        %v2505 = vpop.f32.mrb[0].mxu0
        %v2506 = vpop.f32.mrb[0].mxu0
        %v2507 = vadd.f32 0.0, %v2506
        %v2508 = vpop.f32.mrb[0].mxu0
        %2509 = vmatprep.mubr.bf16.mxu0 0
        %2510 = vmatmul.mubr.bf16.gmra.mrb[0].mxu0 %v2336
        %v2511 = vpop.f32.mrb[0].mxu0
        %v2512 = vadd.f32 0.0, %v2511
        %v2513 = vpop.f32.mrb[0].mxu0
        %v2514 = vpop.f32.mrb[0].mxu0
        %v2515 = vadd.f32 0.0, %v2514
        %v2516 = vpop.f32.mrb[0].mxu0
        %2517 = vdwg.mxu0
        %v2518 = vadd.f32 %v2192, %v2376
        %v2519 = vadd.f32 %v2193, %v2379
        %v2520 = vadd.f32 %v2194, %v2384
        %v2521 = vadd.f32 %v2195, %v2387
        %v2522 = vadd.f32 %v2196, %v2392
        %v2523 = vadd.f32 %v2197, %v2395
        %v2524 = vadd.f32 %v2198, %v2400
        %v2525 = vadd.f32 %v2199, %v2403
        %v2526 = vadd.f32 %v2200, %v2408
        %v2527 = vadd.f32 %v2201, %v2411
        %v2528 = vadd.f32 %v2202, %v2416
        %v2529 = vadd.f32 %v2203, %v2419
        %v2530 = vadd.f32 %v2204, %v2424
        %v2531 = vadd.f32 %v2205, %v2427
        %v2532 = vadd.f32 %v2206, %v2432
        %v2533 = vadd.f32 %v2207, %v2435
        %v2534 = vadd.f32 %v2208, %v2440
        %v2535 = vadd.f32 %v2209, %v2443
        %v2536 = vadd.f32 %v2210, %v2448
        %v2537 = vadd.f32 %v2211, %v2451
        %v2538 = vadd.f32 %v2212, %v2456
        %v2539 = vadd.f32 %v2213, %v2459
        %v2540 = vadd.f32 %v2214, %v2464
        %v2541 = vadd.f32 %v2215, %v2467
        %v2542 = vadd.f32 %v2216, %v2472
        %v2543 = vadd.f32 %v2217, %v2475
        %v2544 = vadd.f32 %v2218, %v2480
        %v2545 = vadd.f32 %v2219, %v2483
        %v2546 = vadd.f32 %v2220, %v2488
        %v2547 = vadd.f32 %v2221, %v2491
        %v2548 = vadd.f32 %v2222, %v2496
        %v2549 = vadd.f32 %v2223, %v2499
        %v2550 = vadd.f32 %v2224, %v2504
        %v2551 = vadd.f32 %v2225, %v2507
        %v2552 = vadd.f32 %v2226, %v2512
        %v2553 = vadd.f32 %v2227, %v2515
        %v2554 = vld [vmem:[%s302 + $0x25] sm:$0xff]
        %v2555 = vld [vmem:[%s302 + $0x2d] sm:$0xff]
        %v2556 = vld [vmem:[%s302 + $0x35] sm:$0xff]
        %v2557 = vld [vmem:[%s302 + $0x3d] sm:$0xff]
        %v2558 = vld [vmem:[%s302 + $0x45] sm:$0xff]
        %v2559 = vld [vmem:[%s302 + $0x4d] sm:$0xff]
        %v2560 = vld [vmem:[%s302 + $0x55] sm:$0xff]
        %v2561 = vld [vmem:[%s302 + $0x5d] sm:$0xff]
        %v2562 = vld [vmem:[%s302 + $0x65] sm:$0xff]
        %v2563 = vld [vmem:[%s302 + $0x6d] sm:$0xff]
        %v2564 = vld [vmem:[%s302 + $0x75] sm:$0xff]
        %v2565 = vld [vmem:[%s302 + $0x7d] sm:$0xff]
        %v2566 = vld [vmem:[%s302 + $0x85] sm:$0xff]
        %v2567 = vld [vmem:[%s302 + $0x8d] sm:$0xff]
        %v2568 = vld [vmem:[%s302 + $0x95] sm:$0xff]
        %v2569 = vld [vmem:[%s302 + $0x9d] sm:$0xff]
        %v2570 = vld [vmem:[%s302 + $0xa5] sm:$0xff]
        %v2571 = vld [vmem:[%s302 + $0xad] sm:$0xff]
        %v2572 = vld [vmem:[%s302 + $0xb5] sm:$0xff]
        %v2573 = vld [vmem:[%s302 + $0xbd] sm:$0xff]
        %v2574 = vld [vmem:[%s302 + $0xc5] sm:$0xff]
        %v2575 = vld [vmem:[%s302 + $0xcd] sm:$0xff]
        %v2576 = vld [vmem:[%s302 + $0xd5] sm:$0xff]
        %v2577 = vld [vmem:[%s302 + $0xdd] sm:$0xff]
        %v2578 = vld [vmem:[%s302 + $0xe5] sm:$0xff]
        %v2579 = vld [vmem:[%s302 + $0xed] sm:$0xff]
        %v2580 = vld [vmem:[%s302 + $0xf5] sm:$0xff]
        %v2581 = vld [vmem:[%s302 + $0xfd] sm:$0xff]
        %v2582 = vld [vmem:[%s302 + $0x105] sm:$0xff]
        %v2583 = vld [vmem:[%s302 + $0x10d] sm:$0xff]
        %v2584 = vld [vmem:[%s302 + $0x115] sm:$0xff]
        %v2585 = vld [vmem:[%s302 + $0x11d] sm:$0xff]
        %v2586 = vld [vmem:[%s302 + $0x125] sm:$0xff]
        %v2587 = vld [vmem:[%s302 + $0x12d] sm:$0xff]
        %v2588 = vld [vmem:[%s302 + $0x135] sm:$0xff]
        %v2589 = vld [vmem:[%s302 + $0x13d] sm:$0x3f]
        %v2590 = vpack.c.bf16 %v2555, %v2554
        %v2591 = vpack.c.bf16 %v2557, %v2556
        %v2592 = vpack.c.bf16 %v2559, %v2558
        %v2593 = vpack.c.bf16 %v2561, %v2560
        %v2594 = vpack.c.bf16 %v2563, %v2562
        %v2595 = vpack.c.bf16 %v2565, %v2564
        %v2596 = vpack.c.bf16 %v2567, %v2566
        %v2597 = vpack.c.bf16 %v2569, %v2568
        %v2598 = vpack.c.bf16 %v2571, %v2570
        %v2599 = vpack.c.bf16 %v2573, %v2572
        %v2600 = vpack.c.bf16 %v2575, %v2574
        %v2601 = vpack.c.bf16 %v2577, %v2576
        %v2602 = vpack.c.bf16 %v2579, %v2578
        %v2603 = vpack.c.bf16 %v2581, %v2580
        %v2604 = vpack.c.bf16 %v2583, %v2582
        %v2605 = vpack.c.bf16 %v2585, %v2584
        %v2606 = vpack.c.bf16 %v2587, %v2586
        %v2607 = vpack.c.bf16 %v2589, %v2588
        %s2608 = scalar_lea.vmem %s2, 14
        %v2609 = vld [vmem:[%s2608] sm:$0x3]
        %v2611 = vsel %vm451, %v2590, 0
        %v2614 = vsel %vm451, %v2591, 0
        %v2617 = vsel %vm451, %v2592, 0
        %v2620 = vsel %vm451, %v2593, 0
        %v2623 = vsel %vm451, %v2594, 0
        %v2626 = vsel %vm451, %v2595, 0
        %v2629 = vsel %vm451, %v2596, 0
        %v2632 = vsel %vm451, %v2597, 0
        %v2635 = vsel %vm451, %v2598, 0
        %v2638 = vsel %vm451, %v2599, 0
        %v2641 = vsel %vm451, %v2600, 0
        %v2644 = vsel %vm451, %v2601, 0
        %v2647 = vsel %vm451, %v2602, 0
        %v2650 = vsel %vm451, %v2603, 0
        %v2653 = vsel %vm451, %v2604, 0
        %v2656 = vsel %vm451, %v2605, 0
        %v2659 = vsel %vm451, %v2606, 0
        %v2662 = vsel %vm451, %v2607, 0
        %v2665 = vand.u32 %v2609, %v509
        %2667 = vmatprep.subr.bf16.mxu0 0
        %2668 = vmatpush1.bf16.msra.mxu0 %v2665
        %2669 = vmatprep.subr.bf16.mxu0 0
        %2670 = vmatpush1.bf16.msra.mxu0 0
        %2671 = vmatprep.subr.bf16.mxu0 0
        %2672 = vmatpush1.bf16.msra.mxu0 0
        %2673 = vmatprep.subr.bf16.mxu0 0
        %2674 = vmatpush1.bf16.msra.mxu0 0
        %2675 = vmatprep.subr.bf16.mxu0 0
        %2676 = vmatpush1.bf16.msra.mxu0 0
        %2677 = vmatprep.subr.bf16.mxu0 0
        %2678 = vmatpush1.bf16.msra.mxu0 0
        %2679 = vmatprep.subr.bf16.mxu0 0
        %2680 = vmatpush1.bf16.msra.mxu0 0
        %2681 = vmatprep.subr.bf16.mxu0 0
        %2682 = vmatpush1.bf16.msra.mxu0 0
        %2683 = vmatprep.subr.bf16.mxu0 0
        %2684 = vmatpush1.bf16.msra.mxu0 0
        %2685 = vmatprep.subr.bf16.mxu0 0
        %2686 = vmatpush1.bf16.msra.mxu0 0
        %2687 = vmatprep.subr.bf16.mxu0 0
        %2688 = vmatpush1.bf16.msra.mxu0 0
        %2689 = vmatprep.subr.bf16.mxu0 0
        %2690 = vmatpush1.bf16.msra.mxu0 0
        %2691 = vmatprep.subr.bf16.mxu0 0
        %2692 = vmatpush1.bf16.msra.mxu0 0
        %2693 = vmatprep.subr.bf16.mxu0 0
        %2694 = vmatpush1.bf16.msra.mxu0 0
        %2695 = vmatprep.subr.bf16.mxu0 0
        %2696 = vmatpush1.bf16.msra.mxu0 0
        %2697 = vmatprep.subr.bf16.mxu0 0
        %2698 = vmatpush1.bf16.msra.mxu0 0
        %2699 = vmatprep.mubr.bf16.mxu0 0
        %2700 = vmatmul.mubr.bf16.gmra.mrb[0].mxu0 %v2611
        %v2701 = vpop.f32.mrb[0].mxu0
        %v2702 = vadd.f32 0.0, %v2701
        %v2703 = vpop.f32.mrb[0].mxu0
        %v2704 = vpop.f32.mrb[0].mxu0
        %v2705 = vadd.f32 0.0, %v2704
        %v2706 = vpop.f32.mrb[0].mxu0
        %2707 = vmatprep.mubr.bf16.mxu0 0
        %2708 = vmatmul.mubr.bf16.gmra.mrb[0].mxu0 %v2614
        %v2709 = vpop.f32.mrb[0].mxu0
        %v2710 = vadd.f32 0.0, %v2709
        %v2711 = vpop.f32.mrb[0].mxu0
        %v2712 = vpop.f32.mrb[0].mxu0
        %v2713 = vadd.f32 0.0, %v2712
        %v2714 = vpop.f32.mrb[0].mxu0
        %2715 = vmatprep.mubr.bf16.mxu0 0
        %2716 = vmatmul.mubr.bf16.gmra.mrb[0].mxu0 %v2617
        %v2717 = vpop.f32.mrb[0].mxu0
        %v2718 = vadd.f32 0.0, %v2717
        %v2719 = vpop.f32.mrb[0].mxu0
        %v2720 = vpop.f32.mrb[0].mxu0
        %v2721 = vadd.f32 0.0, %v2720
        %v2722 = vpop.f32.mrb[0].mxu0
        %2723 = vmatprep.mubr.bf16.mxu0 0
        %2724 = vmatmul.mubr.bf16.gmra.mrb[0].mxu0 %v2620
        %v2725 = vpop.f32.mrb[0].mxu0
        %v2726 = vadd.f32 0.0, %v2725
        %v2727 = vpop.f32.mrb[0].mxu0
        %v2728 = vpop.f32.mrb[0].mxu0
        %v2729 = vadd.f32 0.0, %v2728
        %v2730 = vpop.f32.mrb[0].mxu0
        %2731 = vmatprep.mubr.bf16.mxu0 0
        %2732 = vmatmul.mubr.bf16.gmra.mrb[0].mxu0 %v2623
        %v2733 = vpop.f32.mrb[0].mxu0
        %v2734 = vadd.f32 0.0, %v2733
        %v2735 = vpop.f32.mrb[0].mxu0
        %v2736 = vpop.f32.mrb[0].mxu0
        %v2737 = vadd.f32 0.0, %v2736
        %v2738 = vpop.f32.mrb[0].mxu0
        %2739 = vmatprep.mubr.bf16.mxu0 0
        %2740 = vmatmul.mubr.bf16.gmra.mrb[0].mxu0 %v2626
        %v2741 = vpop.f32.mrb[0].mxu0
        %v2742 = vadd.f32 0.0, %v2741
        %v2743 = vpop.f32.mrb[0].mxu0
        %v2744 = vpop.f32.mrb[0].mxu0
        %v2745 = vadd.f32 0.0, %v2744
        %v2746 = vpop.f32.mrb[0].mxu0
        %2747 = vmatprep.mubr.bf16.mxu0 0
        %2748 = vmatmul.mubr.bf16.gmra.mrb[0].mxu0 %v2629
        %v2749 = vpop.f32.mrb[0].mxu0
        %v2750 = vadd.f32 0.0, %v2749
        %v2751 = vpop.f32.mrb[0].mxu0
        %v2752 = vpop.f32.mrb[0].mxu0
        %v2753 = vadd.f32 0.0, %v2752
        %v2754 = vpop.f32.mrb[0].mxu0
        %2755 = vmatprep.mubr.bf16.mxu0 0
        %2756 = vmatmul.mubr.bf16.gmra.mrb[0].mxu0 %v2632
        %v2757 = vpop.f32.mrb[0].mxu0
        %v2758 = vadd.f32 0.0, %v2757
        %v2759 = vpop.f32.mrb[0].mxu0
        %v2760 = vpop.f32.mrb[0].mxu0
        %v2761 = vadd.f32 0.0, %v2760
        %v2762 = vpop.f32.mrb[0].mxu0
        %2763 = vmatprep.mubr.bf16.mxu0 0
        %2764 = vmatmul.mubr.bf16.gmra.mrb[0].mxu0 %v2635
        %v2765 = vpop.f32.mrb[0].mxu0
        %v2766 = vadd.f32 0.0, %v2765
        %v2767 = vpop.f32.mrb[0].mxu0
        %v2768 = vpop.f32.mrb[0].mxu0
        %v2769 = vadd.f32 0.0, %v2768
        %v2770 = vpop.f32.mrb[0].mxu0
        %2771 = vmatprep.mubr.bf16.mxu0 0
        %2772 = vmatmul.mubr.bf16.gmra.mrb[0].mxu0 %v2638
        %v2773 = vpop.f32.mrb[0].mxu0
        %v2774 = vadd.f32 0.0, %v2773
        %v2775 = vpop.f32.mrb[0].mxu0
        %v2776 = vpop.f32.mrb[0].mxu0
        %v2777 = vadd.f32 0.0, %v2776
        %v2778 = vpop.f32.mrb[0].mxu0
        %2779 = vmatprep.mubr.bf16.mxu0 0
        %2780 = vmatmul.mubr.bf16.gmra.mrb[0].mxu0 %v2641
        %v2781 = vpop.f32.mrb[0].mxu0
        %v2782 = vadd.f32 0.0, %v2781
        %v2783 = vpop.f32.mrb[0].mxu0
        %v2784 = vpop.f32.mrb[0].mxu0
        %v2785 = vadd.f32 0.0, %v2784
        %v2786 = vpop.f32.mrb[0].mxu0
        %2787 = vmatprep.mubr.bf16.mxu0 0
        %2788 = vmatmul.mubr.bf16.gmra.mrb[0].mxu0 %v2644
        %v2789 = vpop.f32.mrb[0].mxu0
        %v2790 = vadd.f32 0.0, %v2789
        %v2791 = vpop.f32.mrb[0].mxu0
        %v2792 = vpop.f32.mrb[0].mxu0
        %v2793 = vadd.f32 0.0, %v2792
        %v2794 = vpop.f32.mrb[0].mxu0
        %2795 = vmatprep.mubr.bf16.mxu0 0
        %2796 = vmatmul.mubr.bf16.gmra.mrb[0].mxu0 %v2647
        %v2797 = vpop.f32.mrb[0].mxu0
        %v2798 = vadd.f32 0.0, %v2797
        %v2799 = vpop.f32.mrb[0].mxu0
        %v2800 = vpop.f32.mrb[0].mxu0
        %v2801 = vadd.f32 0.0, %v2800
        %v2802 = vpop.f32.mrb[0].mxu0
        %2803 = vmatprep.mubr.bf16.mxu0 0
        %2804 = vmatmul.mubr.bf16.gmra.mrb[0].mxu0 %v2650
        %v2805 = vpop.f32.mrb[0].mxu0
        %v2806 = vadd.f32 0.0, %v2805
        %v2807 = vpop.f32.mrb[0].mxu0
        %v2808 = vpop.f32.mrb[0].mxu0
        %v2809 = vadd.f32 0.0, %v2808
        %v2810 = vpop.f32.mrb[0].mxu0
        %2811 = vmatprep.mubr.bf16.mxu0 0
        %2812 = vmatmul.mubr.bf16.gmra.mrb[0].mxu0 %v2653
        %v2813 = vpop.f32.mrb[0].mxu0
        %v2814 = vadd.f32 0.0, %v2813
        %v2815 = vpop.f32.mrb[0].mxu0
        %v2816 = vpop.f32.mrb[0].mxu0
        %v2817 = vadd.f32 0.0, %v2816
        %v2818 = vpop.f32.mrb[0].mxu0
        %2819 = vmatprep.mubr.bf16.mxu0 0
        %2820 = vmatmul.mubr.bf16.gmra.mrb[0].mxu0 %v2656
        %v2821 = vpop.f32.mrb[0].mxu0
        %v2822 = vadd.f32 0.0, %v2821
        %v2823 = vpop.f32.mrb[0].mxu0
        %v2824 = vpop.f32.mrb[0].mxu0
        %v2825 = vadd.f32 0.0, %v2824
        %v2826 = vpop.f32.mrb[0].mxu0
        %2827 = vmatprep.mubr.bf16.mxu0 0
        %2828 = vmatmul.mubr.bf16.gmra.mrb[0].mxu0 %v2659
        %v2829 = vpop.f32.mrb[0].mxu0
        %v2830 = vadd.f32 0.0, %v2829
        %v2831 = vpop.f32.mrb[0].mxu0
        %v2832 = vpop.f32.mrb[0].mxu0
        %v2833 = vadd.f32 0.0, %v2832
        %v2834 = vpop.f32.mrb[0].mxu0
        %2835 = vmatprep.mubr.bf16.mxu0 0
        %2836 = vmatmul.mubr.bf16.gmra.mrb[0].mxu0 %v2662
        %v2837 = vpop.f32.mrb[0].mxu0
        %v2838 = vadd.f32 0.0, %v2837
        %v2839 = vpop.f32.mrb[0].mxu0
        %v2840 = vpop.f32.mrb[0].mxu0
        %v2841 = vadd.f32 0.0, %v2840
        %v2842 = vpop.f32.mrb[0].mxu0
        %2843 = vdwg.mxu0
        %v2844 = vadd.f32 %v2518, %v2702
        %v2845 = vadd.f32 %v2519, %v2705
        %v2846 = vadd.f32 %v2520, %v2710
        %v2847 = vadd.f32 %v2521, %v2713
        %v2848 = vadd.f32 %v2522, %v2718
        %v2849 = vadd.f32 %v2523, %v2721
        %v2850 = vadd.f32 %v2524, %v2726
        %v2851 = vadd.f32 %v2525, %v2729
        %v2852 = vadd.f32 %v2526, %v2734
        %v2853 = vadd.f32 %v2527, %v2737
        %v2854 = vadd.f32 %v2528, %v2742
        %v2855 = vadd.f32 %v2529, %v2745
        %v2856 = vadd.f32 %v2530, %v2750
        %v2857 = vadd.f32 %v2531, %v2753
        %v2858 = vadd.f32 %v2532, %v2758
        %v2859 = vadd.f32 %v2533, %v2761
        %v2860 = vadd.f32 %v2534, %v2766
        %v2861 = vadd.f32 %v2535, %v2769
        %v2862 = vadd.f32 %v2536, %v2774
        %v2863 = vadd.f32 %v2537, %v2777
        %v2864 = vadd.f32 %v2538, %v2782
        %v2865 = vadd.f32 %v2539, %v2785
        %v2866 = vadd.f32 %v2540, %v2790
        %v2867 = vadd.f32 %v2541, %v2793
        %v2868 = vadd.f32 %v2542, %v2798
        %v2869 = vadd.f32 %v2543, %v2801
        %v2870 = vadd.f32 %v2544, %v2806
        %v2871 = vadd.f32 %v2545, %v2809
        %v2872 = vadd.f32 %v2546, %v2814
        %v2873 = vadd.f32 %v2547, %v2817
        %v2874 = vadd.f32 %v2548, %v2822
        %v2875 = vadd.f32 %v2549, %v2825
        %v2876 = vadd.f32 %v2550, %v2830
        %v2877 = vadd.f32 %v2551, %v2833
        %v2878 = vadd.f32 %v2552, %v2838
        %v2879 = vadd.f32 %v2553, %v2841
        %v2880 = vld [vmem:[%s302 + $0x26] sm:$0xff]
        %v2881 = vld [vmem:[%s302 + $0x2e] sm:$0xff]
        %v2882 = vld [vmem:[%s302 + $0x36] sm:$0xff]
        %v2883 = vld [vmem:[%s302 + $0x3e] sm:$0xff]
        %v2884 = vld [vmem:[%s302 + $0x46] sm:$0xff]
        %v2885 = vld [vmem:[%s302 + $0x4e] sm:$0xff]
        %v2886 = vld [vmem:[%s302 + $0x56] sm:$0xff]
        %v2887 = vld [vmem:[%s302 + $0x5e] sm:$0xff]
        %v2888 = vld [vmem:[%s302 + $0x66] sm:$0xff]
        %v2889 = vld [vmem:[%s302 + $0x6e] sm:$0xff]
        %v2890 = vld [vmem:[%s302 + $0x76] sm:$0xff]
        %v2891 = vld [vmem:[%s302 + $0x7e] sm:$0xff]
        %v2892 = vld [vmem:[%s302 + $0x86] sm:$0xff]
        %v2893 = vld [vmem:[%s302 + $0x8e] sm:$0xff]
        %v2894 = vld [vmem:[%s302 + $0x96] sm:$0xff]
        %v2895 = vld [vmem:[%s302 + $0x9e] sm:$0xff]
        %v2896 = vld [vmem:[%s302 + $0xa6] sm:$0xff]
        %v2897 = vld [vmem:[%s302 + $0xae] sm:$0xff]
        %v2898 = vld [vmem:[%s302 + $0xb6] sm:$0xff]
        %v2899 = vld [vmem:[%s302 + $0xbe] sm:$0xff]
        %v2900 = vld [vmem:[%s302 + $0xc6] sm:$0xff]
        %v2901 = vld [vmem:[%s302 + $0xce] sm:$0xff]
        %v2902 = vld [vmem:[%s302 + $0xd6] sm:$0xff]
        %v2903 = vld [vmem:[%s302 + $0xde] sm:$0xff]
        %v2904 = vld [vmem:[%s302 + $0xe6] sm:$0xff]
        %v2905 = vld [vmem:[%s302 + $0xee] sm:$0xff]
        %v2906 = vld [vmem:[%s302 + $0xf6] sm:$0xff]
        %v2907 = vld [vmem:[%s302 + $0xfe] sm:$0xff]
        %v2908 = vld [vmem:[%s302 + $0x106] sm:$0xff]
        %v2909 = vld [vmem:[%s302 + $0x10e] sm:$0xff]
        %v2910 = vld [vmem:[%s302 + $0x116] sm:$0xff]
        %v2911 = vld [vmem:[%s302 + $0x11e] sm:$0xff]
        %v2912 = vld [vmem:[%s302 + $0x126] sm:$0xff]
        %v2913 = vld [vmem:[%s302 + $0x12e] sm:$0xff]
        %v2914 = vld [vmem:[%s302 + $0x136] sm:$0xff]
        %v2915 = vld [vmem:[%s302 + $0x13e] sm:$0x3f]
        %v2916 = vpack.c.bf16 %v2881, %v2880
        %v2917 = vpack.c.bf16 %v2883, %v2882
        %v2918 = vpack.c.bf16 %v2885, %v2884
        %v2919 = vpack.c.bf16 %v2887, %v2886
        %v2920 = vpack.c.bf16 %v2889, %v2888
        %v2921 = vpack.c.bf16 %v2891, %v2890
        %v2922 = vpack.c.bf16 %v2893, %v2892
        %v2923 = vpack.c.bf16 %v2895, %v2894
        %v2924 = vpack.c.bf16 %v2897, %v2896
        %v2925 = vpack.c.bf16 %v2899, %v2898
        %v2926 = vpack.c.bf16 %v2901, %v2900
        %v2927 = vpack.c.bf16 %v2903, %v2902
        %v2928 = vpack.c.bf16 %v2905, %v2904
        %v2929 = vpack.c.bf16 %v2907, %v2906
        %v2930 = vpack.c.bf16 %v2909, %v2908
        %v2931 = vpack.c.bf16 %v2911, %v2910
        %v2932 = vpack.c.bf16 %v2913, %v2912
        %v2933 = vpack.c.bf16 %v2915, %v2914
        %s2934 = scalar_lea.vmem %s2, 16
        %v2935 = vld [vmem:[%s2934] sm:$0x3]
        %v2937 = vsel %vm451, %v2916, 0
        %v2940 = vsel %vm451, %v2917, 0
        %v2943 = vsel %vm451, %v2918, 0
        %v2946 = vsel %vm451, %v2919, 0
        %v2949 = vsel %vm451, %v2920, 0
        %v2952 = vsel %vm451, %v2921, 0
        %v2955 = vsel %vm451, %v2922, 0
        %v2958 = vsel %vm451, %v2923, 0
        %v2961 = vsel %vm451, %v2924, 0
        %v2964 = vsel %vm451, %v2925, 0
        %v2967 = vsel %vm451, %v2926, 0
        %v2970 = vsel %vm451, %v2927, 0
        %v2973 = vsel %vm451, %v2928, 0
        %v2976 = vsel %vm451, %v2929, 0
        %v2979 = vsel %vm451, %v2930, 0
        %v2982 = vsel %vm451, %v2931, 0
        %v2985 = vsel %vm451, %v2932, 0
        %v2988 = vsel %vm451, %v2933, 0
        %v2991 = vand.u32 %v2935, %v509
        %2993 = vmatprep.subr.bf16.mxu0 0
        %2994 = vmatpush1.bf16.msra.mxu0 %v2991
        %2995 = vmatprep.subr.bf16.mxu0 0
        %2996 = vmatpush1.bf16.msra.mxu0 0
        %2997 = vmatprep.subr.bf16.mxu0 0
        %2998 = vmatpush1.bf16.msra.mxu0 0
        %2999 = vmatprep.subr.bf16.mxu0 0
        %3000 = vmatpush1.bf16.msra.mxu0 0
        %3001 = vmatprep.subr.bf16.mxu0 0
        %3002 = vmatpush1.bf16.msra.mxu0 0
        %3003 = vmatprep.subr.bf16.mxu0 0
        %3004 = vmatpush1.bf16.msra.mxu0 0
        %3005 = vmatprep.subr.bf16.mxu0 0
        %3006 = vmatpush1.bf16.msra.mxu0 0
        %3007 = vmatprep.subr.bf16.mxu0 0
        %3008 = vmatpush1.bf16.msra.mxu0 0
        %3009 = vmatprep.subr.bf16.mxu0 0
        %3010 = vmatpush1.bf16.msra.mxu0 0
        %3011 = vmatprep.subr.bf16.mxu0 0
        %3012 = vmatpush1.bf16.msra.mxu0 0
        %3013 = vmatprep.subr.bf16.mxu0 0
        %3014 = vmatpush1.bf16.msra.mxu0 0
        %3015 = vmatprep.subr.bf16.mxu0 0
        %3016 = vmatpush1.bf16.msra.mxu0 0
        %3017 = vmatprep.subr.bf16.mxu0 0
        %3018 = vmatpush1.bf16.msra.mxu0 0
        %3019 = vmatprep.subr.bf16.mxu0 0
        %3020 = vmatpush1.bf16.msra.mxu0 0
        %3021 = vmatprep.subr.bf16.mxu0 0
        %3022 = vmatpush1.bf16.msra.mxu0 0
        %3023 = vmatprep.subr.bf16.mxu0 0
        %3024 = vmatpush1.bf16.msra.mxu0 0
        %3025 = vmatprep.mubr.bf16.mxu0 0
        %3026 = vmatmul.mubr.bf16.gmra.mrb[0].mxu0 %v2937
        %v3027 = vpop.f32.mrb[0].mxu0
        %v3028 = vadd.f32 0.0, %v3027
        %v3029 = vpop.f32.mrb[0].mxu0
        %v3030 = vpop.f32.mrb[0].mxu0
        %v3031 = vadd.f32 0.0, %v3030
        %v3032 = vpop.f32.mrb[0].mxu0
        %3033 = vmatprep.mubr.bf16.mxu0 0
        %3034 = vmatmul.mubr.bf16.gmra.mrb[0].mxu0 %v2940
        %v3035 = vpop.f32.mrb[0].mxu0
        %v3036 = vadd.f32 0.0, %v3035
        %v3037 = vpop.f32.mrb[0].mxu0
        %v3038 = vpop.f32.mrb[0].mxu0
        %v3039 = vadd.f32 0.0, %v3038
        %v3040 = vpop.f32.mrb[0].mxu0
        %3041 = vmatprep.mubr.bf16.mxu0 0
        %3042 = vmatmul.mubr.bf16.gmra.mrb[0].mxu0 %v2943
        %v3043 = vpop.f32.mrb[0].mxu0
        %v3044 = vadd.f32 0.0, %v3043
        %v3045 = vpop.f32.mrb[0].mxu0
        %v3046 = vpop.f32.mrb[0].mxu0
        %v3047 = vadd.f32 0.0, %v3046
        %v3048 = vpop.f32.mrb[0].mxu0
        %3049 = vmatprep.mubr.bf16.mxu0 0
        %3050 = vmatmul.mubr.bf16.gmra.mrb[0].mxu0 %v2946
        %v3051 = vpop.f32.mrb[0].mxu0
        %v3052 = vadd.f32 0.0, %v3051
        %v3053 = vpop.f32.mrb[0].mxu0
        %v3054 = vpop.f32.mrb[0].mxu0
        %v3055 = vadd.f32 0.0, %v3054
        %v3056 = vpop.f32.mrb[0].mxu0
        %3057 = vmatprep.mubr.bf16.mxu0 0
        %3058 = vmatmul.mubr.bf16.gmra.mrb[0].mxu0 %v2949
        %v3059 = vpop.f32.mrb[0].mxu0
        %v3060 = vadd.f32 0.0, %v3059
        %v3061 = vpop.f32.mrb[0].mxu0
        %v3062 = vpop.f32.mrb[0].mxu0
        %v3063 = vadd.f32 0.0, %v3062
        %v3064 = vpop.f32.mrb[0].mxu0
        %3065 = vmatprep.mubr.bf16.mxu0 0
        %3066 = vmatmul.mubr.bf16.gmra.mrb[0].mxu0 %v2952
        %v3067 = vpop.f32.mrb[0].mxu0
        %v3068 = vadd.f32 0.0, %v3067
        %v3069 = vpop.f32.mrb[0].mxu0
        %v3070 = vpop.f32.mrb[0].mxu0
        %v3071 = vadd.f32 0.0, %v3070
        %v3072 = vpop.f32.mrb[0].mxu0
        %3073 = vmatprep.mubr.bf16.mxu0 0
        %3074 = vmatmul.mubr.bf16.gmra.mrb[0].mxu0 %v2955
        %v3075 = vpop.f32.mrb[0].mxu0
        %v3076 = vadd.f32 0.0, %v3075
        %v3077 = vpop.f32.mrb[0].mxu0
        %v3078 = vpop.f32.mrb[0].mxu0
        %v3079 = vadd.f32 0.0, %v3078
        %v3080 = vpop.f32.mrb[0].mxu0
        %3081 = vmatprep.mubr.bf16.mxu0 0
        %3082 = vmatmul.mubr.bf16.gmra.mrb[0].mxu0 %v2958
        %v3083 = vpop.f32.mrb[0].mxu0
        %v3084 = vadd.f32 0.0, %v3083
        %v3085 = vpop.f32.mrb[0].mxu0
        %v3086 = vpop.f32.mrb[0].mxu0
        %v3087 = vadd.f32 0.0, %v3086
        %v3088 = vpop.f32.mrb[0].mxu0
        %3089 = vmatprep.mubr.bf16.mxu0 0
        %3090 = vmatmul.mubr.bf16.gmra.mrb[0].mxu0 %v2961
        %v3091 = vpop.f32.mrb[0].mxu0
        %v3092 = vadd.f32 0.0, %v3091
        %v3093 = vpop.f32.mrb[0].mxu0
        %v3094 = vpop.f32.mrb[0].mxu0
        %v3095 = vadd.f32 0.0, %v3094
        %v3096 = vpop.f32.mrb[0].mxu0
        %3097 = vmatprep.mubr.bf16.mxu0 0
        %3098 = vmatmul.mubr.bf16.gmra.mrb[0].mxu0 %v2964
        %v3099 = vpop.f32.mrb[0].mxu0
        %v3100 = vadd.f32 0.0, %v3099
        %v3101 = vpop.f32.mrb[0].mxu0
        %v3102 = vpop.f32.mrb[0].mxu0
        %v3103 = vadd.f32 0.0, %v3102
        %v3104 = vpop.f32.mrb[0].mxu0
        %3105 = vmatprep.mubr.bf16.mxu0 0
        %3106 = vmatmul.mubr.bf16.gmra.mrb[0].mxu0 %v2967
        %v3107 = vpop.f32.mrb[0].mxu0
        %v3108 = vadd.f32 0.0, %v3107
        %v3109 = vpop.f32.mrb[0].mxu0
        %v3110 = vpop.f32.mrb[0].mxu0
        %v3111 = vadd.f32 0.0, %v3110
        %v3112 = vpop.f32.mrb[0].mxu0
        %3113 = vmatprep.mubr.bf16.mxu0 0
        %3114 = vmatmul.mubr.bf16.gmra.mrb[0].mxu0 %v2970
        %v3115 = vpop.f32.mrb[0].mxu0
        %v3116 = vadd.f32 0.0, %v3115
        %v3117 = vpop.f32.mrb[0].mxu0
        %v3118 = vpop.f32.mrb[0].mxu0
        %v3119 = vadd.f32 0.0, %v3118
        %v3120 = vpop.f32.mrb[0].mxu0
        %3121 = vmatprep.mubr.bf16.mxu0 0
        %3122 = vmatmul.mubr.bf16.gmra.mrb[0].mxu0 %v2973
        %v3123 = vpop.f32.mrb[0].mxu0
        %v3124 = vadd.f32 0.0, %v3123
        %v3125 = vpop.f32.mrb[0].mxu0
        %v3126 = vpop.f32.mrb[0].mxu0
        %v3127 = vadd.f32 0.0, %v3126
        %v3128 = vpop.f32.mrb[0].mxu0
        %3129 = vmatprep.mubr.bf16.mxu0 0
        %3130 = vmatmul.mubr.bf16.gmra.mrb[0].mxu0 %v2976
        %v3131 = vpop.f32.mrb[0].mxu0
        %v3132 = vadd.f32 0.0, %v3131
        %v3133 = vpop.f32.mrb[0].mxu0
        %v3134 = vpop.f32.mrb[0].mxu0
        %v3135 = vadd.f32 0.0, %v3134
        %v3136 = vpop.f32.mrb[0].mxu0
        %3137 = vmatprep.mubr.bf16.mxu0 0
        %3138 = vmatmul.mubr.bf16.gmra.mrb[0].mxu0 %v2979
        %v3139 = vpop.f32.mrb[0].mxu0
        %v3140 = vadd.f32 0.0, %v3139
        %v3141 = vpop.f32.mrb[0].mxu0
        %v3142 = vpop.f32.mrb[0].mxu0
        %v3143 = vadd.f32 0.0, %v3142
        %v3144 = vpop.f32.mrb[0].mxu0
        %3145 = vmatprep.mubr.bf16.mxu0 0
        %3146 = vmatmul.mubr.bf16.gmra.mrb[0].mxu0 %v2982
        %v3147 = vpop.f32.mrb[0].mxu0
        %v3148 = vadd.f32 0.0, %v3147
        %v3149 = vpop.f32.mrb[0].mxu0
        %v3150 = vpop.f32.mrb[0].mxu0
        %v3151 = vadd.f32 0.0, %v3150
        %v3152 = vpop.f32.mrb[0].mxu0
        %3153 = vmatprep.mubr.bf16.mxu0 0
        %3154 = vmatmul.mubr.bf16.gmra.mrb[0].mxu0 %v2985
        %v3155 = vpop.f32.mrb[0].mxu0
        %v3156 = vadd.f32 0.0, %v3155
        %v3157 = vpop.f32.mrb[0].mxu0
        %v3158 = vpop.f32.mrb[0].mxu0
        %v3159 = vadd.f32 0.0, %v3158
        %v3160 = vpop.f32.mrb[0].mxu0
        %3161 = vmatprep.mubr.bf16.mxu0 0
        %3162 = vmatmul.mubr.bf16.gmra.mrb[0].mxu0 %v2988
        %v3163 = vpop.f32.mrb[0].mxu0
        %v3164 = vadd.f32 0.0, %v3163
        %v3165 = vpop.f32.mrb[0].mxu0
        %v3166 = vpop.f32.mrb[0].mxu0
        %v3167 = vadd.f32 0.0, %v3166
        %v3168 = vpop.f32.mrb[0].mxu0
        %3169 = vdwg.mxu0
        %v3170 = vadd.f32 %v2844, %v3028
        %v3171 = vadd.f32 %v2845, %v3031
        %v3172 = vadd.f32 %v2846, %v3036
        %v3173 = vadd.f32 %v2847, %v3039
        %v3174 = vadd.f32 %v2848, %v3044
        %v3175 = vadd.f32 %v2849, %v3047
        %v3176 = vadd.f32 %v2850, %v3052
        %v3177 = vadd.f32 %v2851, %v3055
        %v3178 = vadd.f32 %v2852, %v3060
        %v3179 = vadd.f32 %v2853, %v3063
        %v3180 = vadd.f32 %v2854, %v3068
        %v3181 = vadd.f32 %v2855, %v3071
        %v3182 = vadd.f32 %v2856, %v3076
        %v3183 = vadd.f32 %v2857, %v3079
        %v3184 = vadd.f32 %v2858, %v3084
        %v3185 = vadd.f32 %v2859, %v3087
        %v3186 = vadd.f32 %v2860, %v3092
        %v3187 = vadd.f32 %v2861, %v3095
        %v3188 = vadd.f32 %v2862, %v3100
        %v3189 = vadd.f32 %v2863, %v3103
        %v3190 = vadd.f32 %v2864, %v3108
        %v3191 = vadd.f32 %v2865, %v3111
        %v3192 = vadd.f32 %v2866, %v3116
        %v3193 = vadd.f32 %v2867, %v3119
        %v3194 = vadd.f32 %v2868, %v3124
        %v3195 = vadd.f32 %v2869, %v3127
        %v3196 = vadd.f32 %v2870, %v3132
        %v3197 = vadd.f32 %v2871, %v3135
        %v3198 = vadd.f32 %v2872, %v3140
        %v3199 = vadd.f32 %v2873, %v3143
        %v3200 = vadd.f32 %v2874, %v3148
        %v3201 = vadd.f32 %v2875, %v3151
        %v3202 = vadd.f32 %v2876, %v3156
        %v3203 = vadd.f32 %v2877, %v3159
        %v3204 = vadd.f32 %v2878, %v3164
        %v3205 = vadd.f32 %v2879, %v3167
        %v3206 = vld [vmem:[%s3] sm:$0x1]
        %v3208 = vlaneseq
        %v3209 = vshrl.u32 %v3208, 7
        %v3210 = vsub.s32 0, %v3209
        %v3211 = vrot.slane %v3206, %v3210
        %v3213 = vadd.f32 %v3170, %v3211
        %v3214 = vadd.f32 %v3171, %v3211
        %v3215 = vadd.f32 %v3172, %v3211
        %v3216 = vadd.f32 %v3173, %v3211
        %v3217 = vadd.f32 %v3174, %v3211
        %v3218 = vadd.f32 %v3175, %v3211
        %v3219 = vadd.f32 %v3176, %v3211
        %v3220 = vadd.f32 %v3177, %v3211
        %v3221 = vadd.f32 %v3178, %v3211
        %v3222 = vadd.f32 %v3179, %v3211
        %v3223 = vadd.f32 %v3180, %v3211
        %v3224 = vadd.f32 %v3181, %v3211
        %v3225 = vadd.f32 %v3182, %v3211
        %v3226 = vadd.f32 %v3183, %v3211
        %v3227 = vadd.f32 %v3184, %v3211
        %v3228 = vadd.f32 %v3185, %v3211
        %v3229 = vadd.f32 %v3186, %v3211
        %v3230 = vadd.f32 %v3187, %v3211
        %v3231 = vadd.f32 %v3188, %v3211
        %v3232 = vadd.f32 %v3189, %v3211
        %v3233 = vadd.f32 %v3190, %v3211
        %v3234 = vadd.f32 %v3191, %v3211
        %v3235 = vadd.f32 %v3192, %v3211
        %v3236 = vadd.f32 %v3193, %v3211
        %v3237 = vadd.f32 %v3194, %v3211
        %v3238 = vadd.f32 %v3195, %v3211
        %v3239 = vadd.f32 %v3196, %v3211
        %v3240 = vadd.f32 %v3197, %v3211
        %v3241 = vadd.f32 %v3198, %v3211
        %v3242 = vadd.f32 %v3199, %v3211
        %v3243 = vadd.f32 %v3200, %v3211
        %v3244 = vadd.f32 %v3201, %v3211
        %v3245 = vadd.f32 %v3202, %v3211
        %v3246 = vadd.f32 %v3203, %v3211
        %v3247 = vadd.f32 %v3204, %v3211
        %v3248 = vadd.f32 %v3205, %v3211
        %v3249 = vmax.f32 %v3213, 0.0
        %v3250 = vmax.f32 %v3214, 0.0
        %v3251 = vmax.f32 %v3215, 0.0
        %v3252 = vmax.f32 %v3216, 0.0
        %v3253 = vmax.f32 %v3217, 0.0
        %v3254 = vmax.f32 %v3218, 0.0
        %v3255 = vmax.f32 %v3219, 0.0
        %v3256 = vmax.f32 %v3220, 0.0
        %v3257 = vmax.f32 %v3221, 0.0
        %v3258 = vmax.f32 %v3222, 0.0
        %v3259 = vmax.f32 %v3223, 0.0
        %v3260 = vmax.f32 %v3224, 0.0
        %v3261 = vmax.f32 %v3225, 0.0
        %v3262 = vmax.f32 %v3226, 0.0
        %v3263 = vmax.f32 %v3227, 0.0
        %v3264 = vmax.f32 %v3228, 0.0
        %v3265 = vmax.f32 %v3229, 0.0
        %v3266 = vmax.f32 %v3230, 0.0
        %v3267 = vmax.f32 %v3231, 0.0
        %v3268 = vmax.f32 %v3232, 0.0
        %v3269 = vmax.f32 %v3233, 0.0
        %v3270 = vmax.f32 %v3234, 0.0
        %v3271 = vmax.f32 %v3235, 0.0
        %v3272 = vmax.f32 %v3236, 0.0
        %v3273 = vmax.f32 %v3237, 0.0
        %v3274 = vmax.f32 %v3238, 0.0
        %v3275 = vmax.f32 %v3239, 0.0
        %v3276 = vmax.f32 %v3240, 0.0
        %v3277 = vmax.f32 %v3241, 0.0
        %v3278 = vmax.f32 %v3242, 0.0
        %v3279 = vmax.f32 %v3243, 0.0
        %v3280 = vmax.f32 %v3244, 0.0
        %v3281 = vmax.f32 %v3245, 0.0
        %v3282 = vmax.f32 %v3246, 0.0
        %v3283 = vmax.f32 %v3247, 0.0
        %v3284 = vmax.f32 %v3248, 0.0
        %3286 = vset.pattern.permute.xlu0 0
        %3287 = vperm.xlu0 %3286, %v304
        %v3288 = vpop.permute.xlu0 %3287
        %3291 = vset.pattern.permute.xlu0 0
        %3292 = vperm.xlu0 %3291, %v305
        %v3293 = vpop.permute.xlu0 %3292
        %3296 = vset.pattern.permute.xlu0 0
        %3297 = vperm.xlu0 %3296, %v306
        %v3298 = vpop.permute.xlu0 %3297
        %3301 = vset.pattern.permute.xlu0 0
        %3302 = vperm.xlu0 %3301, %v307
        %v3303 = vpop.permute.xlu0 %3302
        %3306 = vset.pattern.permute.xlu0 0
        %3307 = vperm.xlu0 %3306, %v308
        %v3308 = vpop.permute.xlu0 %3307
        %3311 = vset.pattern.permute.xlu0 0
        %3312 = vperm.xlu0 %3311, %v309
        %v3313 = vpop.permute.xlu0 %3312
        %3316 = vset.pattern.permute.xlu0 0
        %3317 = vperm.xlu0 %3316, %v310
        %v3318 = vpop.permute.xlu0 %3317
        %3321 = vset.pattern.permute.xlu0 0
        %3322 = vperm.xlu0 %3321, %v311
        %v3323 = vpop.permute.xlu0 %3322
        %3326 = vset.pattern.permute.xlu0 0
        %3327 = vperm.xlu0 %3326, %v312
        %v3328 = vpop.permute.xlu0 %3327
        %3331 = vset.pattern.permute.xlu0 0
        %3332 = vperm.xlu0 %3331, %v313
        %v3333 = vpop.permute.xlu0 %3332
        %3336 = vset.pattern.permute.xlu0 0
        %3337 = vperm.xlu0 %3336, %v314
        %v3338 = vpop.permute.xlu0 %3337
        %3341 = vset.pattern.permute.xlu0 0
        %3342 = vperm.xlu0 %3341, %v315
        %v3343 = vpop.permute.xlu0 %3342
        %3346 = vset.pattern.permute.xlu0 0
        %3347 = vperm.xlu0 %3346, %v316
        %v3348 = vpop.permute.xlu0 %3347
        %3351 = vset.pattern.permute.xlu0 0
        %3352 = vperm.xlu0 %3351, %v317
        %v3353 = vpop.permute.xlu0 %3352
        %3356 = vset.pattern.permute.xlu0 0
        %3357 = vperm.xlu0 %3356, %v318
        %v3358 = vpop.permute.xlu0 %3357
        %3361 = vset.pattern.permute.xlu0 0
        %3362 = vperm.xlu0 %3361, %v319
        %v3363 = vpop.permute.xlu0 %3362
        %3366 = vset.pattern.permute.xlu0 0
        %3367 = vperm.xlu0 %3366, %v320
        %v3368 = vpop.permute.xlu0 %3367
        %3371 = vset.pattern.permute.xlu0 0
        %3372 = vperm.xlu0 %3371, %v321
        %v3373 = vpop.permute.xlu0 %3372
        %3376 = vset.pattern.permute.xlu0 0
        %3377 = vperm.xlu0 %3376, %v322
        %v3378 = vpop.permute.xlu0 %3377
        %3381 = vset.pattern.permute.xlu0 0
        %3382 = vperm.xlu0 %3381, %v323
        %v3383 = vpop.permute.xlu0 %3382
        %3386 = vset.pattern.permute.xlu0 0
        %3387 = vperm.xlu0 %3386, %v324
        %v3388 = vpop.permute.xlu0 %3387
        %3391 = vset.pattern.permute.xlu0 0
        %3392 = vperm.xlu0 %3391, %v325
        %v3393 = vpop.permute.xlu0 %3392
        %3396 = vset.pattern.permute.xlu0 0
        %3397 = vperm.xlu0 %3396, %v326
        %v3398 = vpop.permute.xlu0 %3397
        %3401 = vset.pattern.permute.xlu0 0
        %3402 = vperm.xlu0 %3401, %v327
        %v3403 = vpop.permute.xlu0 %3402
        %3406 = vset.pattern.permute.xlu0 0
        %3407 = vperm.xlu0 %3406, %v328
        %v3408 = vpop.permute.xlu0 %3407
        %3411 = vset.pattern.permute.xlu0 0
        %3412 = vperm.xlu0 %3411, %v329
        %v3413 = vpop.permute.xlu0 %3412
        %3416 = vset.pattern.permute.xlu0 0
        %3417 = vperm.xlu0 %3416, %v330
        %v3418 = vpop.permute.xlu0 %3417
        %3421 = vset.pattern.permute.xlu0 0
        %3422 = vperm.xlu0 %3421, %v331
        %v3423 = vpop.permute.xlu0 %3422
        %3426 = vset.pattern.permute.xlu0 0
        %3427 = vperm.xlu0 %3426, %v332
        %v3428 = vpop.permute.xlu0 %3427
        %3431 = vset.pattern.permute.xlu0 0
        %3432 = vperm.xlu0 %3431, %v333
        %v3433 = vpop.permute.xlu0 %3432
        %3436 = vset.pattern.permute.xlu0 0
        %3437 = vperm.xlu0 %3436, %v334
        %v3438 = vpop.permute.xlu0 %3437
        %3441 = vset.pattern.permute.xlu0 0
        %3442 = vperm.xlu0 %3441, %v335
        %v3443 = vpop.permute.xlu0 %3442
        %3446 = vset.pattern.permute.xlu0 0
        %3447 = vperm.xlu0 %3446, %v336
        %v3448 = vpop.permute.xlu0 %3447
        %3451 = vset.pattern.permute.xlu0 0
        %3452 = vperm.xlu0 %3451, %v337
        %v3453 = vpop.permute.xlu0 %3452
        %3456 = vset.pattern.permute.xlu0 0
        %3457 = vperm.xlu0 %3456, %v338
        %v3458 = vpop.permute.xlu0 %3457
        %3461 = vset.pattern.permute.xlu0 0
        %3462 = vperm.xlu0 %3461, %v339
        %v3463 = vpop.permute.xlu0 %3462
        %v3465 = vmul.f32 %v3249, %v3288
        %v3466 = vmul.f32 %v3250, %v3293
        %v3467 = vmul.f32 %v3251, %v3298
        %v3468 = vmul.f32 %v3252, %v3303
        %v3469 = vmul.f32 %v3253, %v3308
        %v3470 = vmul.f32 %v3254, %v3313
        %v3471 = vmul.f32 %v3255, %v3318
        %v3472 = vmul.f32 %v3256, %v3323
        %v3473 = vmul.f32 %v3257, %v3328
        %v3474 = vmul.f32 %v3258, %v3333
        %v3475 = vmul.f32 %v3259, %v3338
        %v3476 = vmul.f32 %v3260, %v3343
        %v3477 = vmul.f32 %v3261, %v3348
        %v3478 = vmul.f32 %v3262, %v3353
        %v3479 = vmul.f32 %v3263, %v3358
        %v3480 = vmul.f32 %v3264, %v3363
        %v3481 = vmul.f32 %v3265, %v3368
        %v3482 = vmul.f32 %v3266, %v3373
        %v3483 = vmul.f32 %v3267, %v3378
        %v3484 = vmul.f32 %v3268, %v3383
        %v3485 = vmul.f32 %v3269, %v3388
        %v3486 = vmul.f32 %v3270, %v3393
        %v3487 = vmul.f32 %v3271, %v3398
        %v3488 = vmul.f32 %v3272, %v3403
        %v3489 = vmul.f32 %v3273, %v3408
        %v3490 = vmul.f32 %v3274, %v3413
        %v3491 = vmul.f32 %v3275, %v3418
        %v3492 = vmul.f32 %v3276, %v3423
        %v3493 = vmul.f32 %v3277, %v3428
        %v3494 = vmul.f32 %v3278, %v3433
        %v3495 = vmul.f32 %v3279, %v3438
        %v3496 = vmul.f32 %v3280, %v3443
        %v3497 = vmul.f32 %v3281, %v3448
        %v3498 = vmul.f32 %v3282, %v3453
        %v3499 = vmul.f32 %v3283, %v3458
        %v3500 = vmul.f32 %v3284, %v3463
        %vm3501 = vcmask 130048
        %3502 = vst.msk [vmem:[#allocation2] sm:$0xff] %vm3501, 0.0
        %3503 = vst.msk [vmem:[#allocation2 + $0x8] sm:$0xff] %vm3501, 0.0
        %vm3504 = vcmask 124928
        %3505 = vst.msk [vmem:[#allocation2 + $0x10] sm:$0x7] %vm3504, 0.0
        %3506 = vst.msk [vmem:[#allocation2 + $0x131] sm:$0xff] %vm3501, 0.0
        %3507 = vst.msk [vmem:[#allocation2 + $0x139] sm:$0xff] %vm3501, 0.0
        %3508 = vst.msk [vmem:[#allocation2 + $0x141] sm:$0x7] %vm3504, 0.0
        %3509 = vst.msk [vmem:[#allocation2 + $0x13] sm:$0xff] %vm3501, %v3465
        %3510 = vst.msk [vmem:[#allocation2 + $0x1b] sm:$0xff] %vm3501, %v3466
        %3511 = vst.msk [vmem:[#allocation2 + $0x23] sm:$0xff] %vm3501, %v3467
        %3512 = vst.msk [vmem:[#allocation2 + $0x2b] sm:$0xff] %vm3501, %v3468
        %3513 = vst.msk [vmem:[#allocation2 + $0x33] sm:$0xff] %vm3501, %v3469
        %3514 = vst.msk [vmem:[#allocation2 + $0x3b] sm:$0xff] %vm3501, %v3470
        %3515 = vst.msk [vmem:[#allocation2 + $0x43] sm:$0xff] %vm3501, %v3471
        %3516 = vst.msk [vmem:[#allocation2 + $0x4b] sm:$0xff] %vm3501, %v3472
        %3517 = vst.msk [vmem:[#allocation2 + $0x53] sm:$0xff] %vm3501, %v3473
        %3518 = vst.msk [vmem:[#allocation2 + $0x5b] sm:$0xff] %vm3501, %v3474
        %3519 = vst.msk [vmem:[#allocation2 + $0x63] sm:$0xff] %vm3501, %v3475
        %3520 = vst.msk [vmem:[#allocation2 + $0x6b] sm:$0xff] %vm3501, %v3476
        %3521 = vst.msk [vmem:[#allocation2 + $0x73] sm:$0xff] %vm3501, %v3477
        %3522 = vst.msk [vmem:[#allocation2 + $0x7b] sm:$0xff] %vm3501, %v3478
        %3523 = vst.msk [vmem:[#allocation2 + $0x83] sm:$0xff] %vm3501, %v3479
        %3524 = vst.msk [vmem:[#allocation2 + $0x8b] sm:$0xff] %vm3501, %v3480
        %3525 = vst.msk [vmem:[#allocation2 + $0x93] sm:$0xff] %vm3501, %v3481
        %3526 = vst.msk [vmem:[#allocation2 + $0x9b] sm:$0xff] %vm3501, %v3482
        %3527 = vst.msk [vmem:[#allocation2 + $0xa3] sm:$0xff] %vm3501, %v3483
        %3528 = vst.msk [vmem:[#allocation2 + $0xab] sm:$0xff] %vm3501, %v3484
        %3529 = vst.msk [vmem:[#allocation2 + $0xb3] sm:$0xff] %vm3501, %v3485
        %3530 = vst.msk [vmem:[#allocation2 + $0xbb] sm:$0xff] %vm3501, %v3486
        %3531 = vst.msk [vmem:[#allocation2 + $0xc3] sm:$0xff] %vm3501, %v3487
        %3532 = vst.msk [vmem:[#allocation2 + $0xcb] sm:$0xff] %vm3501, %v3488
        %3533 = vst.msk [vmem:[#allocation2 + $0xd3] sm:$0xff] %vm3501, %v3489
        %3534 = vst.msk [vmem:[#allocation2 + $0xdb] sm:$0xff] %vm3501, %v3490
        %3535 = vst.msk [vmem:[#allocation2 + $0xe3] sm:$0xff] %vm3501, %v3491
        %3536 = vst.msk [vmem:[#allocation2 + $0xeb] sm:$0xff] %vm3501, %v3492
        %3537 = vst.msk [vmem:[#allocation2 + $0xf3] sm:$0xff] %vm3501, %v3493
        %3538 = vst.msk [vmem:[#allocation2 + $0xfb] sm:$0xff] %vm3501, %v3494
        %3539 = vst.msk [vmem:[#allocation2 + $0x103] sm:$0xff] %vm3501, %v3495
        %3540 = vst.msk [vmem:[#allocation2 + $0x10b] sm:$0xff] %vm3501, %v3496
        %3541 = vst.msk [vmem:[#allocation2 + $0x113] sm:$0xff] %vm3501, %v3497
        %3542 = vst.msk [vmem:[#allocation2 + $0x11b] sm:$0xff] %vm3501, %v3498
        %3543 = vst.msk [vmem:[#allocation2 + $0x123] sm:$0xff] %vm3501, %v3499
        %vm3544 = vcmask 128000
        %3545 = vst.msk [vmem:[#allocation2 + $0x12b] sm:$0x3f] %vm3544, %v3500
        %v3546 = vld [vmem:[#allocation2] sm:$0xff]
        %v3547 = vld [vmem:[#allocation2 + $0x8] sm:$0xff]
        %v3548 = vld [vmem:[#allocation2 + $0x10] sm:$0xff]
        %v3549 = vld [vmem:[#allocation2 + $0x18] sm:$0xff]
        %v3550 = vld [vmem:[#allocation2 + $0x20] sm:$0xff]
        %v3551 = vld [vmem:[#allocation2 + $0x28] sm:$0xff]
        %v3552 = vld [vmem:[#allocation2 + $0x30] sm:$0xff]
        %v3553 = vld [vmem:[#allocation2 + $0x38] sm:$0xff]
        %v3554 = vld [vmem:[#allocation2 + $0x40] sm:$0xff]
        %v3555 = vld [vmem:[#allocation2 + $0x48] sm:$0xff]
        %v3556 = vld [vmem:[#allocation2 + $0x50] sm:$0xff]
        %v3557 = vld [vmem:[#allocation2 + $0x58] sm:$0xff]
        %v3558 = vld [vmem:[#allocation2 + $0x60] sm:$0xff]
        %v3559 = vld [vmem:[#allocation2 + $0x68] sm:$0xff]
        %v3560 = vld [vmem:[#allocation2 + $0x70] sm:$0xff]
        %v3561 = vld [vmem:[#allocation2 + $0x78] sm:$0xff]
        %v3562 = vld [vmem:[#allocation2 + $0x80] sm:$0xff]
        %v3563 = vld [vmem:[#allocation2 + $0x88] sm:$0xff]
        %v3564 = vld [vmem:[#allocation2 + $0x90] sm:$0xff]
        %v3565 = vld [vmem:[#allocation2 + $0x98] sm:$0xff]
        %v3566 = vld [vmem:[#allocation2 + $0xa0] sm:$0xff]
        %v3567 = vld [vmem:[#allocation2 + $0xa8] sm:$0xff]
        %v3568 = vld [vmem:[#allocation2 + $0xb0] sm:$0xff]
        %v3569 = vld [vmem:[#allocation2 + $0xb8] sm:$0xff]
        %v3570 = vld [vmem:[#allocation2 + $0xc0] sm:$0xff]
        %v3571 = vld [vmem:[#allocation2 + $0xc8] sm:$0xff]
        %v3572 = vld [vmem:[#allocation2 + $0xd0] sm:$0xff]
        %v3573 = vld [vmem:[#allocation2 + $0xd8] sm:$0xff]
        %v3574 = vld [vmem:[#allocation2 + $0xe0] sm:$0xff]
        %v3575 = vld [vmem:[#allocation2 + $0xe8] sm:$0xff]
        %v3576 = vld [vmem:[#allocation2 + $0xf0] sm:$0xff]
        %v3577 = vld [vmem:[#allocation2 + $0xf8] sm:$0xff]
        %v3578 = vld [vmem:[#allocation2 + $0x100] sm:$0xff]
        %v3579 = vld [vmem:[#allocation2 + $0x108] sm:$0xff]
        %v3580 = vld [vmem:[#allocation2 + $0x110] sm:$0xff]
        %v3581 = vld [vmem:[#allocation2 + $0x118] sm:$0x3f]
        %v3582 = vpack.c.bf16 %v3547, %v3546
        %v3583 = vpack.c.bf16 %v3549, %v3548
        %v3584 = vpack.c.bf16 %v3551, %v3550
        %v3585 = vpack.c.bf16 %v3553, %v3552
        %v3586 = vpack.c.bf16 %v3555, %v3554
        %v3587 = vpack.c.bf16 %v3557, %v3556
        %v3588 = vpack.c.bf16 %v3559, %v3558
        %v3589 = vpack.c.bf16 %v3561, %v3560
        %v3590 = vpack.c.bf16 %v3563, %v3562
        %v3591 = vpack.c.bf16 %v3565, %v3564
        %v3592 = vpack.c.bf16 %v3567, %v3566
        %v3593 = vpack.c.bf16 %v3569, %v3568
        %v3594 = vpack.c.bf16 %v3571, %v3570
        %v3595 = vpack.c.bf16 %v3573, %v3572
        %v3596 = vpack.c.bf16 %v3575, %v3574
        %v3597 = vpack.c.bf16 %v3577, %v3576
        %v3598 = vpack.c.bf16 %v3579, %v3578
        %v3599 = vpack.c.bf16 %v3581, %v3580
        %v3600 = vld [vmem:[%s4] sm:$0xf]
        %v3601 = vld [vmem:[%s4 + $0x4] sm:$0xf]
        %v3602 = vld [vmem:[#allocation2 + $0x1] sm:$0xff]
        %v3603 = vld [vmem:[#allocation2 + $0x9] sm:$0xff]
        %v3604 = vld [vmem:[#allocation2 + $0x11] sm:$0xff]
        %v3605 = vld [vmem:[#allocation2 + $0x19] sm:$0xff]
        %v3606 = vld [vmem:[#allocation2 + $0x21] sm:$0xff]
        %v3607 = vld [vmem:[#allocation2 + $0x29] sm:$0xff]
        %v3608 = vld [vmem:[#allocation2 + $0x31] sm:$0xff]
        %v3609 = vld [vmem:[#allocation2 + $0x39] sm:$0xff]
        %v3610 = vld [vmem:[#allocation2 + $0x41] sm:$0xff]
        %v3611 = vld [vmem:[#allocation2 + $0x49] sm:$0xff]
        %v3612 = vld [vmem:[#allocation2 + $0x51] sm:$0xff]
        %v3613 = vld [vmem:[#allocation2 + $0x59] sm:$0xff]
        %v3614 = vld [vmem:[#allocation2 + $0x61] sm:$0xff]
        %v3615 = vld [vmem:[#allocation2 + $0x69] sm:$0xff]
        %v3616 = vld [vmem:[#allocation2 + $0x71] sm:$0xff]
        %v3617 = vld [vmem:[#allocation2 + $0x79] sm:$0xff]
        %v3618 = vld [vmem:[#allocation2 + $0x81] sm:$0xff]
        %v3619 = vld [vmem:[#allocation2 + $0x89] sm:$0xff]
        %v3620 = vld [vmem:[#allocation2 + $0x91] sm:$0xff]
        %v3621 = vld [vmem:[#allocation2 + $0x99] sm:$0xff]
        %v3622 = vld [vmem:[#allocation2 + $0xa1] sm:$0xff]
        %v3623 = vld [vmem:[#allocation2 + $0xa9] sm:$0xff]
        %v3624 = vld [vmem:[#allocation2 + $0xb1] sm:$0xff]
        %v3625 = vld [vmem:[#allocation2 + $0xb9] sm:$0xff]
        %v3626 = vld [vmem:[#allocation2 + $0xc1] sm:$0xff]
        %v3627 = vld [vmem:[#allocation2 + $0xc9] sm:$0xff]
        %v3628 = vld [vmem:[#allocation2 + $0xd1] sm:$0xff]
        %v3629 = vld [vmem:[#allocation2 + $0xd9] sm:$0xff]
        %v3630 = vld [vmem:[#allocation2 + $0xe1] sm:$0xff]
        %v3631 = vld [vmem:[#allocation2 + $0xe9] sm:$0xff]
        %v3632 = vld [vmem:[#allocation2 + $0xf1] sm:$0xff]
        %v3633 = vld [vmem:[#allocation2 + $0xf9] sm:$0xff]
        %v3634 = vld [vmem:[#allocation2 + $0x101] sm:$0xff]
        %v3635 = vld [vmem:[#allocation2 + $0x109] sm:$0xff]
        %v3636 = vld [vmem:[#allocation2 + $0x111] sm:$0xff]
        %v3637 = vld [vmem:[#allocation2 + $0x119] sm:$0x3f]
        %v3638 = vpack.c.bf16 %v3603, %v3602
        %v3639 = vpack.c.bf16 %v3605, %v3604
        %v3640 = vpack.c.bf16 %v3607, %v3606
        %v3641 = vpack.c.bf16 %v3609, %v3608
        %v3642 = vpack.c.bf16 %v3611, %v3610
        %v3643 = vpack.c.bf16 %v3613, %v3612
        %v3644 = vpack.c.bf16 %v3615, %v3614
        %v3645 = vpack.c.bf16 %v3617, %v3616
        %v3646 = vpack.c.bf16 %v3619, %v3618
        %v3647 = vpack.c.bf16 %v3621, %v3620
        %v3648 = vpack.c.bf16 %v3623, %v3622
        %v3649 = vpack.c.bf16 %v3625, %v3624
        %v3650 = vpack.c.bf16 %v3627, %v3626
        %v3651 = vpack.c.bf16 %v3629, %v3628
        %v3652 = vpack.c.bf16 %v3631, %v3630
        %v3653 = vpack.c.bf16 %v3633, %v3632
        %v3654 = vpack.c.bf16 %v3635, %v3634
        %v3655 = vpack.c.bf16 %v3637, %v3636
        %s3656 = scalar_lea.vmem %s4, 8
        %v3657 = vld [vmem:[%s3656] sm:$0xf]
        %v3658 = vld [vmem:[%s3656 + $0x4] sm:$0xf]
        %v3661 = vunpack.c.l.b16 %v3657
        %v3662 = vunpack.c.l.b16 %v3658
        %v3663 = vpack.c.b16 %v3662, %v3661
        %v3666 = vsel %vm3501, %v3638, 0
        %v3669 = vsel %vm3501, %v3639, 0
        %v3672 = vsel %vm3501, %v3640, 0
        %v3675 = vsel %vm3501, %v3641, 0
        %v3678 = vsel %vm3501, %v3642, 0
        %v3681 = vsel %vm3501, %v3643, 0
        %v3684 = vsel %vm3501, %v3644, 0
        %v3687 = vsel %vm3501, %v3645, 0
        %v3690 = vsel %vm3501, %v3646, 0
        %v3693 = vsel %vm3501, %v3647, 0
        %v3696 = vsel %vm3501, %v3648, 0
        %v3699 = vsel %vm3501, %v3649, 0
        %v3702 = vsel %vm3501, %v3650, 0
        %v3705 = vsel %vm3501, %v3651, 0
        %v3708 = vsel %vm3501, %v3652, 0
        %v3711 = vsel %vm3501, %v3653, 0
        %v3714 = vsel %vm3501, %v3654, 0
        %v3717 = vsel %vm3501, %v3655, 0
        %3719 = vmatprep.subr.bf16.mxu0 0
        %3720 = vmatpush1.bf16.msra.mxu0 %v3663
        %3721 = vmatprep.subr.bf16.mxu0 0
        %3722 = vmatpush1.bf16.msra.mxu0 0
        %3723 = vmatprep.subr.bf16.mxu0 0
        %3724 = vmatpush1.bf16.msra.mxu0 0
        %3725 = vmatprep.subr.bf16.mxu0 0
        %3726 = vmatpush1.bf16.msra.mxu0 0
        %3727 = vmatprep.subr.bf16.mxu0 0
        %3728 = vmatpush1.bf16.msra.mxu0 0
        %3729 = vmatprep.subr.bf16.mxu0 0
        %3730 = vmatpush1.bf16.msra.mxu0 0
        %3731 = vmatprep.subr.bf16.mxu0 0
        %3732 = vmatpush1.bf16.msra.mxu0 0
        %3733 = vmatprep.subr.bf16.mxu0 0
        %3734 = vmatpush1.bf16.msra.mxu0 0
        %3735 = vmatprep.subr.bf16.mxu0 0
        %3736 = vmatpush1.bf16.msra.mxu0 0
        %3737 = vmatprep.subr.bf16.mxu0 0
        %3738 = vmatpush1.bf16.msra.mxu0 0
        %3739 = vmatprep.subr.bf16.mxu0 0
        %3740 = vmatpush1.bf16.msra.mxu0 0
        %3741 = vmatprep.subr.bf16.mxu0 0
        %3742 = vmatpush1.bf16.msra.mxu0 0
        %3743 = vmatprep.subr.bf16.mxu0 0
        %3744 = vmatpush1.bf16.msra.mxu0 0
        %3745 = vmatprep.subr.bf16.mxu0 0
        %3746 = vmatpush1.bf16.msra.mxu0 0
        %3747 = vmatprep.subr.bf16.mxu0 0
        %3748 = vmatpush1.bf16.msra.mxu0 0
        %3749 = vmatprep.subr.bf16.mxu0 0
        %3750 = vmatpush1.bf16.msra.mxu0 0
        %3751 = vmatprep.mubr.bf16.mxu0 0
        %3752 = vmatmul.mubr.bf16.gmra.mrb[0].mxu0 %v3666
        %v3753 = vpop.f32.mrb[0].mxu0
        %v3754 = vadd.f32 0.0, %v3753
        %v3755 = vpop.f32.mrb[0].mxu0
        %v3756 = vpop.f32.mrb[0].mxu0
        %v3757 = vadd.f32 0.0, %v3756
        %v3758 = vpop.f32.mrb[0].mxu0
        %3759 = vmatprep.mubr.bf16.mxu0 0
        %3760 = vmatmul.mubr.bf16.gmra.mrb[0].mxu0 %v3669
        %v3761 = vpop.f32.mrb[0].mxu0
        %v3762 = vadd.f32 0.0, %v3761
        %v3763 = vpop.f32.mrb[0].mxu0
        %v3764 = vpop.f32.mrb[0].mxu0
        %v3765 = vadd.f32 0.0, %v3764
        %v3766 = vpop.f32.mrb[0].mxu0
        %3767 = vmatprep.mubr.bf16.mxu0 0
        %3768 = vmatmul.mubr.bf16.gmra.mrb[0].mxu0 %v3672
        %v3769 = vpop.f32.mrb[0].mxu0
        %v3770 = vadd.f32 0.0, %v3769
        %v3771 = vpop.f32.mrb[0].mxu0
        %v3772 = vpop.f32.mrb[0].mxu0
        %v3773 = vadd.f32 0.0, %v3772
        %v3774 = vpop.f32.mrb[0].mxu0
        %3775 = vmatprep.mubr.bf16.mxu0 0
        %3776 = vmatmul.mubr.bf16.gmra.mrb[0].mxu0 %v3675
        %v3777 = vpop.f32.mrb[0].mxu0
        %v3778 = vadd.f32 0.0, %v3777
        %v3779 = vpop.f32.mrb[0].mxu0
        %v3780 = vpop.f32.mrb[0].mxu0
        %v3781 = vadd.f32 0.0, %v3780
        %v3782 = vpop.f32.mrb[0].mxu0
        %3783 = vmatprep.mubr.bf16.mxu0 0
        %3784 = vmatmul.mubr.bf16.gmra.mrb[0].mxu0 %v3678
        %v3785 = vpop.f32.mrb[0].mxu0
        %v3786 = vadd.f32 0.0, %v3785
        %v3787 = vpop.f32.mrb[0].mxu0
        %v3788 = vpop.f32.mrb[0].mxu0
        %v3789 = vadd.f32 0.0, %v3788
        %v3790 = vpop.f32.mrb[0].mxu0
        %3791 = vmatprep.mubr.bf16.mxu0 0
        %3792 = vmatmul.mubr.bf16.gmra.mrb[0].mxu0 %v3681
        %v3793 = vpop.f32.mrb[0].mxu0
        %v3794 = vadd.f32 0.0, %v3793
        %v3795 = vpop.f32.mrb[0].mxu0
        %v3796 = vpop.f32.mrb[0].mxu0
        %v3797 = vadd.f32 0.0, %v3796
        %v3798 = vpop.f32.mrb[0].mxu0
        %3799 = vmatprep.mubr.bf16.mxu0 0
        %3800 = vmatmul.mubr.bf16.gmra.mrb[0].mxu0 %v3684
        %v3801 = vpop.f32.mrb[0].mxu0
        %v3802 = vadd.f32 0.0, %v3801
        %v3803 = vpop.f32.mrb[0].mxu0
        %v3804 = vpop.f32.mrb[0].mxu0
        %v3805 = vadd.f32 0.0, %v3804
        %v3806 = vpop.f32.mrb[0].mxu0
        %3807 = vmatprep.mubr.bf16.mxu0 0
        %3808 = vmatmul.mubr.bf16.gmra.mrb[0].mxu0 %v3687
        %v3809 = vpop.f32.mrb[0].mxu0
        %v3810 = vadd.f32 0.0, %v3809
        %v3811 = vpop.f32.mrb[0].mxu0
        %v3812 = vpop.f32.mrb[0].mxu0
        %v3813 = vadd.f32 0.0, %v3812
        %v3814 = vpop.f32.mrb[0].mxu0
        %3815 = vmatprep.mubr.bf16.mxu0 0
        %3816 = vmatmul.mubr.bf16.gmra.mrb[0].mxu0 %v3690
        %v3817 = vpop.f32.mrb[0].mxu0
        %v3818 = vadd.f32 0.0, %v3817
        %v3819 = vpop.f32.mrb[0].mxu0
        %v3820 = vpop.f32.mrb[0].mxu0
        %v3821 = vadd.f32 0.0, %v3820
        %v3822 = vpop.f32.mrb[0].mxu0
        %3823 = vmatprep.mubr.bf16.mxu0 0
        %3824 = vmatmul.mubr.bf16.gmra.mrb[0].mxu0 %v3693
        %v3825 = vpop.f32.mrb[0].mxu0
        %v3826 = vadd.f32 0.0, %v3825
        %v3827 = vpop.f32.mrb[0].mxu0
        %v3828 = vpop.f32.mrb[0].mxu0
        %v3829 = vadd.f32 0.0, %v3828
        %v3830 = vpop.f32.mrb[0].mxu0
        %3831 = vmatprep.mubr.bf16.mxu0 0
        %3832 = vmatmul.mubr.bf16.gmra.mrb[0].mxu0 %v3696
        %v3833 = vpop.f32.mrb[0].mxu0
        %v3834 = vadd.f32 0.0, %v3833
        %v3835 = vpop.f32.mrb[0].mxu0
        %v3836 = vpop.f32.mrb[0].mxu0
        %v3837 = vadd.f32 0.0, %v3836
        %v3838 = vpop.f32.mrb[0].mxu0
        %3839 = vmatprep.mubr.bf16.mxu0 0
        %3840 = vmatmul.mubr.bf16.gmra.mrb[0].mxu0 %v3699
        %v3841 = vpop.f32.mrb[0].mxu0
        %v3842 = vadd.f32 0.0, %v3841
        %v3843 = vpop.f32.mrb[0].mxu0
        %v3844 = vpop.f32.mrb[0].mxu0
        %v3845 = vadd.f32 0.0, %v3844
        %v3846 = vpop.f32.mrb[0].mxu0
        %3847 = vmatprep.mubr.bf16.mxu0 0
        %3848 = vmatmul.mubr.bf16.gmra.mrb[0].mxu0 %v3702
        %v3849 = vpop.f32.mrb[0].mxu0
        %v3850 = vadd.f32 0.0, %v3849
        %v3851 = vpop.f32.mrb[0].mxu0
        %v3852 = vpop.f32.mrb[0].mxu0
        %v3853 = vadd.f32 0.0, %v3852
        %v3854 = vpop.f32.mrb[0].mxu0
        %3855 = vmatprep.mubr.bf16.mxu0 0
        %3856 = vmatmul.mubr.bf16.gmra.mrb[0].mxu0 %v3705
        %v3857 = vpop.f32.mrb[0].mxu0
        %v3858 = vadd.f32 0.0, %v3857
        %v3859 = vpop.f32.mrb[0].mxu0
        %v3860 = vpop.f32.mrb[0].mxu0
        %v3861 = vadd.f32 0.0, %v3860
        %v3862 = vpop.f32.mrb[0].mxu0
        %3863 = vmatprep.mubr.bf16.mxu0 0
        %3864 = vmatmul.mubr.bf16.gmra.mrb[0].mxu0 %v3708
        %v3865 = vpop.f32.mrb[0].mxu0
        %v3866 = vadd.f32 0.0, %v3865
        %v3867 = vpop.f32.mrb[0].mxu0
        %v3868 = vpop.f32.mrb[0].mxu0
        %v3869 = vadd.f32 0.0, %v3868
        %v3870 = vpop.f32.mrb[0].mxu0
        %3871 = vmatprep.mubr.bf16.mxu0 0
        %3872 = vmatmul.mubr.bf16.gmra.mrb[0].mxu0 %v3711
        %v3873 = vpop.f32.mrb[0].mxu0
        %v3874 = vadd.f32 0.0, %v3873
        %v3875 = vpop.f32.mrb[0].mxu0
        %v3876 = vpop.f32.mrb[0].mxu0
        %v3877 = vadd.f32 0.0, %v3876
        %v3878 = vpop.f32.mrb[0].mxu0
        %3879 = vmatprep.mubr.bf16.mxu0 0
        %3880 = vmatmul.mubr.bf16.gmra.mrb[0].mxu0 %v3714
        %v3881 = vpop.f32.mrb[0].mxu0
        %v3882 = vadd.f32 0.0, %v3881
        %v3883 = vpop.f32.mrb[0].mxu0
        %v3884 = vpop.f32.mrb[0].mxu0
        %v3885 = vadd.f32 0.0, %v3884
        %v3886 = vpop.f32.mrb[0].mxu0
        %3887 = vmatprep.mubr.bf16.mxu0 0
        %3888 = vmatmul.mubr.bf16.gmra.mrb[0].mxu0 %v3717
        %v3889 = vpop.f32.mrb[0].mxu0
        %v3890 = vadd.f32 0.0, %v3889
        %v3891 = vpop.f32.mrb[0].mxu0
        %v3892 = vpop.f32.mrb[0].mxu0
        %v3893 = vadd.f32 0.0, %v3892
        %v3894 = vpop.f32.mrb[0].mxu0
        %3895 = vdwg.mxu0
        %v3898 = vunpack.c.l.b16 %v3600
        %v3899 = vunpack.c.l.b16 %v3601
        %v3900 = vpack.c.b16 %v3899, %v3898
        %v3903 = vsel %vm3501, %v3582, 0
        %v3906 = vsel %vm3501, %v3583, 0
        %v3909 = vsel %vm3501, %v3584, 0
        %v3912 = vsel %vm3501, %v3585, 0
        %v3915 = vsel %vm3501, %v3586, 0
        %v3918 = vsel %vm3501, %v3587, 0
        %v3921 = vsel %vm3501, %v3588, 0
        %v3924 = vsel %vm3501, %v3589, 0
        %v3927 = vsel %vm3501, %v3590, 0
        %v3930 = vsel %vm3501, %v3591, 0
        %v3933 = vsel %vm3501, %v3592, 0
        %v3936 = vsel %vm3501, %v3593, 0
        %v3939 = vsel %vm3501, %v3594, 0
        %v3942 = vsel %vm3501, %v3595, 0
        %v3945 = vsel %vm3501, %v3596, 0
        %v3948 = vsel %vm3501, %v3597, 0
        %v3951 = vsel %vm3501, %v3598, 0
        %v3954 = vsel %vm3501, %v3599, 0
        %3956 = vmatprep.subr.bf16.mxu0 0
        %3957 = vmatpush1.bf16.msra.mxu0 %v3900
        %3958 = vmatprep.subr.bf16.mxu0 0
        %3959 = vmatpush1.bf16.msra.mxu0 0
        %3960 = vmatprep.subr.bf16.mxu0 0
        %3961 = vmatpush1.bf16.msra.mxu0 0
        %3962 = vmatprep.subr.bf16.mxu0 0
        %3963 = vmatpush1.bf16.msra.mxu0 0
        %3964 = vmatprep.subr.bf16.mxu0 0
        %3965 = vmatpush1.bf16.msra.mxu0 0
        %3966 = vmatprep.subr.bf16.mxu0 0
        %3967 = vmatpush1.bf16.msra.mxu0 0
        %3968 = vmatprep.subr.bf16.mxu0 0
        %3969 = vmatpush1.bf16.msra.mxu0 0
        %3970 = vmatprep.subr.bf16.mxu0 0
        %3971 = vmatpush1.bf16.msra.mxu0 0
        %3972 = vmatprep.subr.bf16.mxu0 0
        %3973 = vmatpush1.bf16.msra.mxu0 0
        %3974 = vmatprep.subr.bf16.mxu0 0
        %3975 = vmatpush1.bf16.msra.mxu0 0
        %3976 = vmatprep.subr.bf16.mxu0 0
        %3977 = vmatpush1.bf16.msra.mxu0 0
        %3978 = vmatprep.subr.bf16.mxu0 0
        %3979 = vmatpush1.bf16.msra.mxu0 0
        %3980 = vmatprep.subr.bf16.mxu0 0
        %3981 = vmatpush1.bf16.msra.mxu0 0
        %3982 = vmatprep.subr.bf16.mxu0 0
        %3983 = vmatpush1.bf16.msra.mxu0 0
        %3984 = vmatprep.subr.bf16.mxu0 0
        %3985 = vmatpush1.bf16.msra.mxu0 0
        %3986 = vmatprep.subr.bf16.mxu0 0
        %3987 = vmatpush1.bf16.msra.mxu0 0
        %3988 = vmatprep.mubr.bf16.mxu0 0
        %3989 = vmatmul.mubr.bf16.gmra.mrb[0].mxu0 %v3903
        %v3990 = vpop.f32.mrb[0].mxu0
        %v3991 = vadd.f32 %v3754, %v3990
        %v3992 = vpop.f32.mrb[0].mxu0
        %v3993 = vpop.f32.mrb[0].mxu0
        %v3994 = vadd.f32 %v3757, %v3993
        %v3995 = vpop.f32.mrb[0].mxu0
        %3996 = vmatprep.mubr.bf16.mxu0 0
        %3997 = vmatmul.mubr.bf16.gmra.mrb[0].mxu0 %v3906
        %v3998 = vpop.f32.mrb[0].mxu0
        %v3999 = vadd.f32 %v3762, %v3998
        %v4000 = vpop.f32.mrb[0].mxu0
        %v4001 = vpop.f32.mrb[0].mxu0
        %v4002 = vadd.f32 %v3765, %v4001
        %v4003 = vpop.f32.mrb[0].mxu0
        %4004 = vmatprep.mubr.bf16.mxu0 0
        %4005 = vmatmul.mubr.bf16.gmra.mrb[0].mxu0 %v3909
        %v4006 = vpop.f32.mrb[0].mxu0
        %v4007 = vadd.f32 %v3770, %v4006
        %v4008 = vpop.f32.mrb[0].mxu0
        %v4009 = vpop.f32.mrb[0].mxu0
        %v4010 = vadd.f32 %v3773, %v4009
        %v4011 = vpop.f32.mrb[0].mxu0
        %4012 = vmatprep.mubr.bf16.mxu0 0
        %4013 = vmatmul.mubr.bf16.gmra.mrb[0].mxu0 %v3912
        %v4014 = vpop.f32.mrb[0].mxu0
        %v4015 = vadd.f32 %v3778, %v4014
        %v4016 = vpop.f32.mrb[0].mxu0
        %v4017 = vpop.f32.mrb[0].mxu0
        %v4018 = vadd.f32 %v3781, %v4017
        %v4019 = vpop.f32.mrb[0].mxu0
        %4020 = vmatprep.mubr.bf16.mxu0 0
        %4021 = vmatmul.mubr.bf16.gmra.mrb[0].mxu0 %v3915
        %v4022 = vpop.f32.mrb[0].mxu0
        %v4023 = vadd.f32 %v3786, %v4022
        %v4024 = vpop.f32.mrb[0].mxu0
        %v4025 = vpop.f32.mrb[0].mxu0
        %v4026 = vadd.f32 %v3789, %v4025
        %v4027 = vpop.f32.mrb[0].mxu0
        %4028 = vmatprep.mubr.bf16.mxu0 0
        %4029 = vmatmul.mubr.bf16.gmra.mrb[0].mxu0 %v3918
        %v4030 = vpop.f32.mrb[0].mxu0
        %v4031 = vadd.f32 %v3794, %v4030
        %v4032 = vpop.f32.mrb[0].mxu0
        %v4033 = vpop.f32.mrb[0].mxu0
        %v4034 = vadd.f32 %v3797, %v4033
        %v4035 = vpop.f32.mrb[0].mxu0
        %4036 = vmatprep.mubr.bf16.mxu0 0
        %4037 = vmatmul.mubr.bf16.gmra.mrb[0].mxu0 %v3921
        %v4038 = vpop.f32.mrb[0].mxu0
        %v4039 = vadd.f32 %v3802, %v4038
        %v4040 = vpop.f32.mrb[0].mxu0
        %v4041 = vpop.f32.mrb[0].mxu0
        %v4042 = vadd.f32 %v3805, %v4041
        %v4043 = vpop.f32.mrb[0].mxu0
        %4044 = vmatprep.mubr.bf16.mxu0 0
        %4045 = vmatmul.mubr.bf16.gmra.mrb[0].mxu0 %v3924
        %v4046 = vpop.f32.mrb[0].mxu0
        %v4047 = vadd.f32 %v3810, %v4046
        %v4048 = vpop.f32.mrb[0].mxu0
        %v4049 = vpop.f32.mrb[0].mxu0
        %v4050 = vadd.f32 %v3813, %v4049
        %v4051 = vpop.f32.mrb[0].mxu0
        %4052 = vmatprep.mubr.bf16.mxu0 0
        %4053 = vmatmul.mubr.bf16.gmra.mrb[0].mxu0 %v3927
        %v4054 = vpop.f32.mrb[0].mxu0
        %v4055 = vadd.f32 %v3818, %v4054
        %v4056 = vpop.f32.mrb[0].mxu0
        %v4057 = vpop.f32.mrb[0].mxu0
        %v4058 = vadd.f32 %v3821, %v4057
        %v4059 = vpop.f32.mrb[0].mxu0
        %4060 = vmatprep.mubr.bf16.mxu0 0
        %4061 = vmatmul.mubr.bf16.gmra.mrb[0].mxu0 %v3930
        %v4062 = vpop.f32.mrb[0].mxu0
        %v4063 = vadd.f32 %v3826, %v4062
        %v4064 = vpop.f32.mrb[0].mxu0
        %v4065 = vpop.f32.mrb[0].mxu0
        %v4066 = vadd.f32 %v3829, %v4065
        %v4067 = vpop.f32.mrb[0].mxu0
        %4068 = vmatprep.mubr.bf16.mxu0 0
        %4069 = vmatmul.mubr.bf16.gmra.mrb[0].mxu0 %v3933
        %v4070 = vpop.f32.mrb[0].mxu0
        %v4071 = vadd.f32 %v3834, %v4070
        %v4072 = vpop.f32.mrb[0].mxu0
        %v4073 = vpop.f32.mrb[0].mxu0
        %v4074 = vadd.f32 %v3837, %v4073
        %v4075 = vpop.f32.mrb[0].mxu0
        %4076 = vmatprep.mubr.bf16.mxu0 0
        %4077 = vmatmul.mubr.bf16.gmra.mrb[0].mxu0 %v3936
        %v4078 = vpop.f32.mrb[0].mxu0
        %v4079 = vadd.f32 %v3842, %v4078
        %v4080 = vpop.f32.mrb[0].mxu0
        %v4081 = vpop.f32.mrb[0].mxu0
        %v4082 = vadd.f32 %v3845, %v4081
        %v4083 = vpop.f32.mrb[0].mxu0
        %4084 = vmatprep.mubr.bf16.mxu0 0
        %4085 = vmatmul.mubr.bf16.gmra.mrb[0].mxu0 %v3939
        %v4086 = vpop.f32.mrb[0].mxu0
        %v4087 = vadd.f32 %v3850, %v4086
        %v4088 = vpop.f32.mrb[0].mxu0
        %v4089 = vpop.f32.mrb[0].mxu0
        %v4090 = vadd.f32 %v3853, %v4089
        %v4091 = vpop.f32.mrb[0].mxu0
        %4092 = vmatprep.mubr.bf16.mxu0 0
        %4093 = vmatmul.mubr.bf16.gmra.mrb[0].mxu0 %v3942
        %v4094 = vpop.f32.mrb[0].mxu0
        %v4095 = vadd.f32 %v3858, %v4094
        %v4096 = vpop.f32.mrb[0].mxu0
        %v4097 = vpop.f32.mrb[0].mxu0
        %v4098 = vadd.f32 %v3861, %v4097
        %v4099 = vpop.f32.mrb[0].mxu0
        %4100 = vmatprep.mubr.bf16.mxu0 0
        %4101 = vmatmul.mubr.bf16.gmra.mrb[0].mxu0 %v3945
        %v4102 = vpop.f32.mrb[0].mxu0
        %v4103 = vadd.f32 %v3866, %v4102
        %v4104 = vpop.f32.mrb[0].mxu0
        %v4105 = vpop.f32.mrb[0].mxu0
        %v4106 = vadd.f32 %v3869, %v4105
        %v4107 = vpop.f32.mrb[0].mxu0
        %4108 = vmatprep.mubr.bf16.mxu0 0
        %4109 = vmatmul.mubr.bf16.gmra.mrb[0].mxu0 %v3948
        %v4110 = vpop.f32.mrb[0].mxu0
        %v4111 = vadd.f32 %v3874, %v4110
        %v4112 = vpop.f32.mrb[0].mxu0
        %v4113 = vpop.f32.mrb[0].mxu0
        %v4114 = vadd.f32 %v3877, %v4113
        %v4115 = vpop.f32.mrb[0].mxu0
        %4116 = vmatprep.mubr.bf16.mxu0 0
        %4117 = vmatmul.mubr.bf16.gmra.mrb[0].mxu0 %v3951
        %v4118 = vpop.f32.mrb[0].mxu0
        %v4119 = vadd.f32 %v3882, %v4118
        %v4120 = vpop.f32.mrb[0].mxu0
        %v4121 = vpop.f32.mrb[0].mxu0
        %v4122 = vadd.f32 %v3885, %v4121
        %v4123 = vpop.f32.mrb[0].mxu0
        %4124 = vmatprep.mubr.bf16.mxu0 0
        %4125 = vmatmul.mubr.bf16.gmra.mrb[0].mxu0 %v3954
        %v4126 = vpop.f32.mrb[0].mxu0
        %v4127 = vadd.f32 %v3890, %v4126
        %v4128 = vpop.f32.mrb[0].mxu0
        %v4129 = vpop.f32.mrb[0].mxu0
        %v4130 = vadd.f32 %v3893, %v4129
        %v4131 = vpop.f32.mrb[0].mxu0
        %4132 = vdwg.mxu0
        %v4133 = vld [vmem:[#allocation2 + $0x2] sm:$0xff]
        %v4134 = vld [vmem:[#allocation2 + $0xa] sm:$0xff]
        %v4135 = vld [vmem:[#allocation2 + $0x12] sm:$0xff]
        %v4136 = vld [vmem:[#allocation2 + $0x1a] sm:$0xff]
        %v4137 = vld [vmem:[#allocation2 + $0x22] sm:$0xff]
        %v4138 = vld [vmem:[#allocation2 + $0x2a] sm:$0xff]
        %v4139 = vld [vmem:[#allocation2 + $0x32] sm:$0xff]
        %v4140 = vld [vmem:[#allocation2 + $0x3a] sm:$0xff]
        %v4141 = vld [vmem:[#allocation2 + $0x42] sm:$0xff]
        %v4142 = vld [vmem:[#allocation2 + $0x4a] sm:$0xff]
        %v4143 = vld [vmem:[#allocation2 + $0x52] sm:$0xff]
        %v4144 = vld [vmem:[#allocation2 + $0x5a] sm:$0xff]
        %v4145 = vld [vmem:[#allocation2 + $0x62] sm:$0xff]
        %v4146 = vld [vmem:[#allocation2 + $0x6a] sm:$0xff]
        %v4147 = vld [vmem:[#allocation2 + $0x72] sm:$0xff]
        %v4148 = vld [vmem:[#allocation2 + $0x7a] sm:$0xff]
        %v4149 = vld [vmem:[#allocation2 + $0x82] sm:$0xff]
        %v4150 = vld [vmem:[#allocation2 + $0x8a] sm:$0xff]
        %v4151 = vld [vmem:[#allocation2 + $0x92] sm:$0xff]
        %v4152 = vld [vmem:[#allocation2 + $0x9a] sm:$0xff]
        %v4153 = vld [vmem:[#allocation2 + $0xa2] sm:$0xff]
        %v4154 = vld [vmem:[#allocation2 + $0xaa] sm:$0xff]
        %v4155 = vld [vmem:[#allocation2 + $0xb2] sm:$0xff]
        %v4156 = vld [vmem:[#allocation2 + $0xba] sm:$0xff]
        %v4157 = vld [vmem:[#allocation2 + $0xc2] sm:$0xff]
        %v4158 = vld [vmem:[#allocation2 + $0xca] sm:$0xff]
        %v4159 = vld [vmem:[#allocation2 + $0xd2] sm:$0xff]
        %v4160 = vld [vmem:[#allocation2 + $0xda] sm:$0xff]
        %v4161 = vld [vmem:[#allocation2 + $0xe2] sm:$0xff]
        %v4162 = vld [vmem:[#allocation2 + $0xea] sm:$0xff]
        %v4163 = vld [vmem:[#allocation2 + $0xf2] sm:$0xff]
        %v4164 = vld [vmem:[#allocation2 + $0xfa] sm:$0xff]
        %v4165 = vld [vmem:[#allocation2 + $0x102] sm:$0xff]
        %v4166 = vld [vmem:[#allocation2 + $0x10a] sm:$0xff]
        %v4167 = vld [vmem:[#allocation2 + $0x112] sm:$0xff]
        %v4168 = vld [vmem:[#allocation2 + $0x11a] sm:$0x3f]
        %v4169 = vpack.c.bf16 %v4134, %v4133
        %v4170 = vpack.c.bf16 %v4136, %v4135
        %v4171 = vpack.c.bf16 %v4138, %v4137
        %v4172 = vpack.c.bf16 %v4140, %v4139
        %v4173 = vpack.c.bf16 %v4142, %v4141
        %v4174 = vpack.c.bf16 %v4144, %v4143
        %v4175 = vpack.c.bf16 %v4146, %v4145
        %v4176 = vpack.c.bf16 %v4148, %v4147
        %v4177 = vpack.c.bf16 %v4150, %v4149
        %v4178 = vpack.c.bf16 %v4152, %v4151
        %v4179 = vpack.c.bf16 %v4154, %v4153
        %v4180 = vpack.c.bf16 %v4156, %v4155
        %v4181 = vpack.c.bf16 %v4158, %v4157
        %v4182 = vpack.c.bf16 %v4160, %v4159
        %v4183 = vpack.c.bf16 %v4162, %v4161
        %v4184 = vpack.c.bf16 %v4164, %v4163
        %v4185 = vpack.c.bf16 %v4166, %v4165
        %v4186 = vpack.c.bf16 %v4168, %v4167
        %s4187 = scalar_lea.vmem %s4, 16
        %v4188 = vld [vmem:[%s4187] sm:$0xf]
        %v4189 = vld [vmem:[%s4187 + $0x4] sm:$0xf]
        %v4192 = vunpack.c.l.b16 %v4188
        %v4193 = vunpack.c.l.b16 %v4189
        %v4194 = vpack.c.b16 %v4193, %v4192
        %v4197 = vsel %vm3501, %v4169, 0
        %v4200 = vsel %vm3501, %v4170, 0
        %v4203 = vsel %vm3501, %v4171, 0
        %v4206 = vsel %vm3501, %v4172, 0
        %v4209 = vsel %vm3501, %v4173, 0
        %v4212 = vsel %vm3501, %v4174, 0
        %v4215 = vsel %vm3501, %v4175, 0
        %v4218 = vsel %vm3501, %v4176, 0
        %v4221 = vsel %vm3501, %v4177, 0
        %v4224 = vsel %vm3501, %v4178, 0
        %v4227 = vsel %vm3501, %v4179, 0
        %v4230 = vsel %vm3501, %v4180, 0
        %v4233 = vsel %vm3501, %v4181, 0
        %v4236 = vsel %vm3501, %v4182, 0
        %v4239 = vsel %vm3501, %v4183, 0
        %v4242 = vsel %vm3501, %v4184, 0
        %v4245 = vsel %vm3501, %v4185, 0
        %v4248 = vsel %vm3501, %v4186, 0
        %4250 = vmatprep.subr.bf16.mxu0 0
        %4251 = vmatpush1.bf16.msra.mxu0 %v4194
        %4252 = vmatprep.subr.bf16.mxu0 0
        %4253 = vmatpush1.bf16.msra.mxu0 0
        %4254 = vmatprep.subr.bf16.mxu0 0
        %4255 = vmatpush1.bf16.msra.mxu0 0
        %4256 = vmatprep.subr.bf16.mxu0 0
        %4257 = vmatpush1.bf16.msra.mxu0 0
        %4258 = vmatprep.subr.bf16.mxu0 0
        %4259 = vmatpush1.bf16.msra.mxu0 0
        %4260 = vmatprep.subr.bf16.mxu0 0
        %4261 = vmatpush1.bf16.msra.mxu0 0
        %4262 = vmatprep.subr.bf16.mxu0 0
        %4263 = vmatpush1.bf16.msra.mxu0 0
        %4264 = vmatprep.subr.bf16.mxu0 0
        %4265 = vmatpush1.bf16.msra.mxu0 0
        %4266 = vmatprep.subr.bf16.mxu0 0
        %4267 = vmatpush1.bf16.msra.mxu0 0
        %4268 = vmatprep.subr.bf16.mxu0 0
        %4269 = vmatpush1.bf16.msra.mxu0 0
        %4270 = vmatprep.subr.bf16.mxu0 0
        %4271 = vmatpush1.bf16.msra.mxu0 0
        %4272 = vmatprep.subr.bf16.mxu0 0
        %4273 = vmatpush1.bf16.msra.mxu0 0
        %4274 = vmatprep.subr.bf16.mxu0 0
        %4275 = vmatpush1.bf16.msra.mxu0 0
        %4276 = vmatprep.subr.bf16.mxu0 0
        %4277 = vmatpush1.bf16.msra.mxu0 0
        %4278 = vmatprep.subr.bf16.mxu0 0
        %4279 = vmatpush1.bf16.msra.mxu0 0
        %4280 = vmatprep.subr.bf16.mxu0 0
        %4281 = vmatpush1.bf16.msra.mxu0 0
        %4282 = vmatprep.mubr.bf16.mxu0 0
        %4283 = vmatmul.mubr.bf16.gmra.mrb[0].mxu0 %v4197
        %v4284 = vpop.f32.mrb[0].mxu0
        %v4285 = vadd.f32 0.0, %v4284
        %v4286 = vpop.f32.mrb[0].mxu0
        %v4287 = vpop.f32.mrb[0].mxu0
        %v4288 = vadd.f32 0.0, %v4287
        %v4289 = vpop.f32.mrb[0].mxu0
        %4290 = vmatprep.mubr.bf16.mxu0 0
        %4291 = vmatmul.mubr.bf16.gmra.mrb[0].mxu0 %v4200
        %v4292 = vpop.f32.mrb[0].mxu0
        %v4293 = vadd.f32 0.0, %v4292
        %v4294 = vpop.f32.mrb[0].mxu0
        %v4295 = vpop.f32.mrb[0].mxu0
        %v4296 = vadd.f32 0.0, %v4295
        %v4297 = vpop.f32.mrb[0].mxu0
        %4298 = vmatprep.mubr.bf16.mxu0 0
        %4299 = vmatmul.mubr.bf16.gmra.mrb[0].mxu0 %v4203
        %v4300 = vpop.f32.mrb[0].mxu0
        %v4301 = vadd.f32 0.0, %v4300
        %v4302 = vpop.f32.mrb[0].mxu0
        %v4303 = vpop.f32.mrb[0].mxu0
        %v4304 = vadd.f32 0.0, %v4303
        %v4305 = vpop.f32.mrb[0].mxu0
        %4306 = vmatprep.mubr.bf16.mxu0 0
        %4307 = vmatmul.mubr.bf16.gmra.mrb[0].mxu0 %v4206
        %v4308 = vpop.f32.mrb[0].mxu0
        %v4309 = vadd.f32 0.0, %v4308
        %v4310 = vpop.f32.mrb[0].mxu0
        %v4311 = vpop.f32.mrb[0].mxu0
        %v4312 = vadd.f32 0.0, %v4311
        %v4313 = vpop.f32.mrb[0].mxu0
        %4314 = vmatprep.mubr.bf16.mxu0 0
        %4315 = vmatmul.mubr.bf16.gmra.mrb[0].mxu0 %v4209
        %v4316 = vpop.f32.mrb[0].mxu0
        %v4317 = vadd.f32 0.0, %v4316
        %v4318 = vpop.f32.mrb[0].mxu0
        %v4319 = vpop.f32.mrb[0].mxu0
        %v4320 = vadd.f32 0.0, %v4319
        %v4321 = vpop.f32.mrb[0].mxu0
        %4322 = vmatprep.mubr.bf16.mxu0 0
        %4323 = vmatmul.mubr.bf16.gmra.mrb[0].mxu0 %v4212
        %v4324 = vpop.f32.mrb[0].mxu0
        %v4325 = vadd.f32 0.0, %v4324
        %v4326 = vpop.f32.mrb[0].mxu0
        %v4327 = vpop.f32.mrb[0].mxu0
        %v4328 = vadd.f32 0.0, %v4327
        %v4329 = vpop.f32.mrb[0].mxu0
        %4330 = vmatprep.mubr.bf16.mxu0 0
        %4331 = vmatmul.mubr.bf16.gmra.mrb[0].mxu0 %v4215
        %v4332 = vpop.f32.mrb[0].mxu0
        %v4333 = vadd.f32 0.0, %v4332
        %v4334 = vpop.f32.mrb[0].mxu0
        %v4335 = vpop.f32.mrb[0].mxu0
        %v4336 = vadd.f32 0.0, %v4335
        %v4337 = vpop.f32.mrb[0].mxu0
        %4338 = vmatprep.mubr.bf16.mxu0 0
        %4339 = vmatmul.mubr.bf16.gmra.mrb[0].mxu0 %v4218
        %v4340 = vpop.f32.mrb[0].mxu0
        %v4341 = vadd.f32 0.0, %v4340
        %v4342 = vpop.f32.mrb[0].mxu0
        %v4343 = vpop.f32.mrb[0].mxu0
        %v4344 = vadd.f32 0.0, %v4343
        %v4345 = vpop.f32.mrb[0].mxu0
        %4346 = vmatprep.mubr.bf16.mxu0 0
        %4347 = vmatmul.mubr.bf16.gmra.mrb[0].mxu0 %v4221
        %v4348 = vpop.f32.mrb[0].mxu0
        %v4349 = vadd.f32 0.0, %v4348
        %v4350 = vpop.f32.mrb[0].mxu0
        %v4351 = vpop.f32.mrb[0].mxu0
        %v4352 = vadd.f32 0.0, %v4351
        %v4353 = vpop.f32.mrb[0].mxu0
        %4354 = vmatprep.mubr.bf16.mxu0 0
        %4355 = vmatmul.mubr.bf16.gmra.mrb[0].mxu0 %v4224
        %v4356 = vpop.f32.mrb[0].mxu0
        %v4357 = vadd.f32 0.0, %v4356
        %v4358 = vpop.f32.mrb[0].mxu0
        %v4359 = vpop.f32.mrb[0].mxu0
        %v4360 = vadd.f32 0.0, %v4359
        %v4361 = vpop.f32.mrb[0].mxu0
        %4362 = vmatprep.mubr.bf16.mxu0 0
        %4363 = vmatmul.mubr.bf16.gmra.mrb[0].mxu0 %v4227
        %v4364 = vpop.f32.mrb[0].mxu0
        %v4365 = vadd.f32 0.0, %v4364
        %v4366 = vpop.f32.mrb[0].mxu0
        %v4367 = vpop.f32.mrb[0].mxu0
        %v4368 = vadd.f32 0.0, %v4367
        %v4369 = vpop.f32.mrb[0].mxu0
        %4370 = vmatprep.mubr.bf16.mxu0 0
        %4371 = vmatmul.mubr.bf16.gmra.mrb[0].mxu0 %v4230
        %v4372 = vpop.f32.mrb[0].mxu0
        %v4373 = vadd.f32 0.0, %v4372
        %v4374 = vpop.f32.mrb[0].mxu0
        %v4375 = vpop.f32.mrb[0].mxu0
        %v4376 = vadd.f32 0.0, %v4375
        %v4377 = vpop.f32.mrb[0].mxu0
        %4378 = vmatprep.mubr.bf16.mxu0 0
        %4379 = vmatmul.mubr.bf16.gmra.mrb[0].mxu0 %v4233
        %v4380 = vpop.f32.mrb[0].mxu0
        %v4381 = vadd.f32 0.0, %v4380
        %v4382 = vpop.f32.mrb[0].mxu0
        %v4383 = vpop.f32.mrb[0].mxu0
        %v4384 = vadd.f32 0.0, %v4383
        %v4385 = vpop.f32.mrb[0].mxu0
        %4386 = vmatprep.mubr.bf16.mxu0 0
        %4387 = vmatmul.mubr.bf16.gmra.mrb[0].mxu0 %v4236
        %v4388 = vpop.f32.mrb[0].mxu0
        %v4389 = vadd.f32 0.0, %v4388
        %v4390 = vpop.f32.mrb[0].mxu0
        %v4391 = vpop.f32.mrb[0].mxu0
        %v4392 = vadd.f32 0.0, %v4391
        %v4393 = vpop.f32.mrb[0].mxu0
        %4394 = vmatprep.mubr.bf16.mxu0 0
        %4395 = vmatmul.mubr.bf16.gmra.mrb[0].mxu0 %v4239
        %v4396 = vpop.f32.mrb[0].mxu0
        %v4397 = vadd.f32 0.0, %v4396
        %v4398 = vpop.f32.mrb[0].mxu0
        %v4399 = vpop.f32.mrb[0].mxu0
        %v4400 = vadd.f32 0.0, %v4399
        %v4401 = vpop.f32.mrb[0].mxu0
        %4402 = vmatprep.mubr.bf16.mxu0 0
        %4403 = vmatmul.mubr.bf16.gmra.mrb[0].mxu0 %v4242
        %v4404 = vpop.f32.mrb[0].mxu0
        %v4405 = vadd.f32 0.0, %v4404
        %v4406 = vpop.f32.mrb[0].mxu0
        %v4407 = vpop.f32.mrb[0].mxu0
        %v4408 = vadd.f32 0.0, %v4407
        %v4409 = vpop.f32.mrb[0].mxu0
        %4410 = vmatprep.mubr.bf16.mxu0 0
        %4411 = vmatmul.mubr.bf16.gmra.mrb[0].mxu0 %v4245
        %v4412 = vpop.f32.mrb[0].mxu0
        %v4413 = vadd.f32 0.0, %v4412
        %v4414 = vpop.f32.mrb[0].mxu0
        %v4415 = vpop.f32.mrb[0].mxu0
        %v4416 = vadd.f32 0.0, %v4415
        %v4417 = vpop.f32.mrb[0].mxu0
        %4418 = vmatprep.mubr.bf16.mxu0 0
        %4419 = vmatmul.mubr.bf16.gmra.mrb[0].mxu0 %v4248
        %v4420 = vpop.f32.mrb[0].mxu0
        %v4421 = vadd.f32 0.0, %v4420
        %v4422 = vpop.f32.mrb[0].mxu0
        %v4423 = vpop.f32.mrb[0].mxu0
        %v4424 = vadd.f32 0.0, %v4423
        %v4425 = vpop.f32.mrb[0].mxu0
        %4426 = vdwg.mxu0
        %v4427 = vadd.f32 %v3991, %v4285
        %v4428 = vadd.f32 %v3994, %v4288
        %v4429 = vadd.f32 %v3999, %v4293
        %v4430 = vadd.f32 %v4002, %v4296
        %v4431 = vadd.f32 %v4007, %v4301
        %v4432 = vadd.f32 %v4010, %v4304
        %v4433 = vadd.f32 %v4015, %v4309
        %v4434 = vadd.f32 %v4018, %v4312
        %v4435 = vadd.f32 %v4023, %v4317
        %v4436 = vadd.f32 %v4026, %v4320
        %v4437 = vadd.f32 %v4031, %v4325
        %v4438 = vadd.f32 %v4034, %v4328
        %v4439 = vadd.f32 %v4039, %v4333
        %v4440 = vadd.f32 %v4042, %v4336
        %v4441 = vadd.f32 %v4047, %v4341
        %v4442 = vadd.f32 %v4050, %v4344
        %v4443 = vadd.f32 %v4055, %v4349
        %v4444 = vadd.f32 %v4058, %v4352
        %v4445 = vadd.f32 %v4063, %v4357
        %v4446 = vadd.f32 %v4066, %v4360
        %v4447 = vadd.f32 %v4071, %v4365
        %v4448 = vadd.f32 %v4074, %v4368
        %v4449 = vadd.f32 %v4079, %v4373
        %v4450 = vadd.f32 %v4082, %v4376
        %v4451 = vadd.f32 %v4087, %v4381
        %v4452 = vadd.f32 %v4090, %v4384
        %v4453 = vadd.f32 %v4095, %v4389
        %v4454 = vadd.f32 %v4098, %v4392
        %v4455 = vadd.f32 %v4103, %v4397
        %v4456 = vadd.f32 %v4106, %v4400
        %v4457 = vadd.f32 %v4111, %v4405
        %v4458 = vadd.f32 %v4114, %v4408
        %v4459 = vadd.f32 %v4119, %v4413
        %v4460 = vadd.f32 %v4122, %v4416
        %v4461 = vadd.f32 %v4127, %v4421
        %v4462 = vadd.f32 %v4130, %v4424
        %v4463 = vld [vmem:[#allocation2 + $0x12] sm:$0xff]
        %v4464 = vld [vmem:[#allocation2 + $0x1a] sm:$0xff]
        %v4465 = vld [vmem:[#allocation2 + $0x22] sm:$0xff]
        %v4466 = vld [vmem:[#allocation2 + $0x2a] sm:$0xff]
        %v4467 = vld [vmem:[#allocation2 + $0x32] sm:$0xff]
        %v4468 = vld [vmem:[#allocation2 + $0x3a] sm:$0xff]
        %v4469 = vld [vmem:[#allocation2 + $0x42] sm:$0xff]
        %v4470 = vld [vmem:[#allocation2 + $0x4a] sm:$0xff]
        %v4471 = vld [vmem:[#allocation2 + $0x52] sm:$0xff]
        %v4472 = vld [vmem:[#allocation2 + $0x5a] sm:$0xff]
        %v4473 = vld [vmem:[#allocation2 + $0x62] sm:$0xff]
        %v4474 = vld [vmem:[#allocation2 + $0x6a] sm:$0xff]
        %v4475 = vld [vmem:[#allocation2 + $0x72] sm:$0xff]
        %v4476 = vld [vmem:[#allocation2 + $0x7a] sm:$0xff]
        %v4477 = vld [vmem:[#allocation2 + $0x82] sm:$0xff]
        %v4478 = vld [vmem:[#allocation2 + $0x8a] sm:$0xff]
        %v4479 = vld [vmem:[#allocation2 + $0x92] sm:$0xff]
        %v4480 = vld [vmem:[#allocation2 + $0x9a] sm:$0xff]
        %v4481 = vld [vmem:[#allocation2 + $0xa2] sm:$0xff]
        %v4482 = vld [vmem:[#allocation2 + $0xaa] sm:$0xff]
        %v4483 = vld [vmem:[#allocation2 + $0xb2] sm:$0xff]
        %v4484 = vld [vmem:[#allocation2 + $0xba] sm:$0xff]
        %v4485 = vld [vmem:[#allocation2 + $0xc2] sm:$0xff]
        %v4486 = vld [vmem:[#allocation2 + $0xca] sm:$0xff]
        %v4487 = vld [vmem:[#allocation2 + $0xd2] sm:$0xff]
        %v4488 = vld [vmem:[#allocation2 + $0xda] sm:$0xff]
        %v4489 = vld [vmem:[#allocation2 + $0xe2] sm:$0xff]
        %v4490 = vld [vmem:[#allocation2 + $0xea] sm:$0xff]
        %v4491 = vld [vmem:[#allocation2 + $0xf2] sm:$0xff]
        %v4492 = vld [vmem:[#allocation2 + $0xfa] sm:$0xff]
        %v4493 = vld [vmem:[#allocation2 + $0x102] sm:$0xff]
        %v4494 = vld [vmem:[#allocation2 + $0x10a] sm:$0xff]
        %v4495 = vld [vmem:[#allocation2 + $0x112] sm:$0xff]
        %v4496 = vld [vmem:[#allocation2 + $0x11a] sm:$0xff]
        %v4497 = vld [vmem:[#allocation2 + $0x122] sm:$0xff]
        %v4498 = vld [vmem:[#allocation2 + $0x12a] sm:$0x3f]
        %v4499 = vpack.c.bf16 %v4464, %v4463
        %v4500 = vpack.c.bf16 %v4466, %v4465
        %v4501 = vpack.c.bf16 %v4468, %v4467
        %v4502 = vpack.c.bf16 %v4470, %v4469
        %v4503 = vpack.c.bf16 %v4472, %v4471
        %v4504 = vpack.c.bf16 %v4474, %v4473
        %v4505 = vpack.c.bf16 %v4476, %v4475
        %v4506 = vpack.c.bf16 %v4478, %v4477
        %v4507 = vpack.c.bf16 %v4480, %v4479
        %v4508 = vpack.c.bf16 %v4482, %v4481
        %v4509 = vpack.c.bf16 %v4484, %v4483
        %v4510 = vpack.c.bf16 %v4486, %v4485
        %v4511 = vpack.c.bf16 %v4488, %v4487
        %v4512 = vpack.c.bf16 %v4490, %v4489
        %v4513 = vpack.c.bf16 %v4492, %v4491
        %v4514 = vpack.c.bf16 %v4494, %v4493
        %v4515 = vpack.c.bf16 %v4496, %v4495
        %v4516 = vpack.c.bf16 %v4498, %v4497
        %s4517 = scalar_lea.vmem %s4, 24
        %v4518 = vld [vmem:[%s4517] sm:$0xf]
        %v4519 = vld [vmem:[%s4517 + $0x4] sm:$0xf]
        %v4522 = vunpack.c.l.b16 %v4518
        %v4523 = vunpack.c.l.b16 %v4519
        %v4524 = vpack.c.b16 %v4523, %v4522
        %v4527 = vsel %vm3501, %v4499, 0
        %v4530 = vsel %vm3501, %v4500, 0
        %v4533 = vsel %vm3501, %v4501, 0
        %v4536 = vsel %vm3501, %v4502, 0
        %v4539 = vsel %vm3501, %v4503, 0
        %v4542 = vsel %vm3501, %v4504, 0
        %v4545 = vsel %vm3501, %v4505, 0
        %v4548 = vsel %vm3501, %v4506, 0
        %v4551 = vsel %vm3501, %v4507, 0
        %v4554 = vsel %vm3501, %v4508, 0
        %v4557 = vsel %vm3501, %v4509, 0
        %v4560 = vsel %vm3501, %v4510, 0
        %v4563 = vsel %vm3501, %v4511, 0
        %v4566 = vsel %vm3501, %v4512, 0
        %v4569 = vsel %vm3501, %v4513, 0
        %v4572 = vsel %vm3501, %v4514, 0
        %v4575 = vsel %vm3501, %v4515, 0
        %v4578 = vsel %vm3501, %v4516, 0
        %4580 = vmatprep.subr.bf16.mxu0 0
        %4581 = vmatpush1.bf16.msra.mxu0 %v4524
        %4582 = vmatprep.subr.bf16.mxu0 0
        %4583 = vmatpush1.bf16.msra.mxu0 0
        %4584 = vmatprep.subr.bf16.mxu0 0
        %4585 = vmatpush1.bf16.msra.mxu0 0
        %4586 = vmatprep.subr.bf16.mxu0 0
        %4587 = vmatpush1.bf16.msra.mxu0 0
        %4588 = vmatprep.subr.bf16.mxu0 0
        %4589 = vmatpush1.bf16.msra.mxu0 0
        %4590 = vmatprep.subr.bf16.mxu0 0
        %4591 = vmatpush1.bf16.msra.mxu0 0
        %4592 = vmatprep.subr.bf16.mxu0 0
        %4593 = vmatpush1.bf16.msra.mxu0 0
        %4594 = vmatprep.subr.bf16.mxu0 0
        %4595 = vmatpush1.bf16.msra.mxu0 0
        %4596 = vmatprep.subr.bf16.mxu0 0
        %4597 = vmatpush1.bf16.msra.mxu0 0
        %4598 = vmatprep.subr.bf16.mxu0 0
        %4599 = vmatpush1.bf16.msra.mxu0 0
        %4600 = vmatprep.subr.bf16.mxu0 0
        %4601 = vmatpush1.bf16.msra.mxu0 0
        %4602 = vmatprep.subr.bf16.mxu0 0
        %4603 = vmatpush1.bf16.msra.mxu0 0
        %4604 = vmatprep.subr.bf16.mxu0 0
        %4605 = vmatpush1.bf16.msra.mxu0 0
        %4606 = vmatprep.subr.bf16.mxu0 0
        %4607 = vmatpush1.bf16.msra.mxu0 0
        %4608 = vmatprep.subr.bf16.mxu0 0
        %4609 = vmatpush1.bf16.msra.mxu0 0
        %4610 = vmatprep.subr.bf16.mxu0 0
        %4611 = vmatpush1.bf16.msra.mxu0 0
        %4612 = vmatprep.mubr.bf16.mxu0 0
        %4613 = vmatmul.mubr.bf16.gmra.mrb[0].mxu0 %v4527
        %v4614 = vpop.f32.mrb[0].mxu0
        %v4615 = vadd.f32 0.0, %v4614
        %v4616 = vpop.f32.mrb[0].mxu0
        %v4617 = vpop.f32.mrb[0].mxu0
        %v4618 = vadd.f32 0.0, %v4617
        %v4619 = vpop.f32.mrb[0].mxu0
        %4620 = vmatprep.mubr.bf16.mxu0 0
        %4621 = vmatmul.mubr.bf16.gmra.mrb[0].mxu0 %v4530
        %v4622 = vpop.f32.mrb[0].mxu0
        %v4623 = vadd.f32 0.0, %v4622
        %v4624 = vpop.f32.mrb[0].mxu0
        %v4625 = vpop.f32.mrb[0].mxu0
        %v4626 = vadd.f32 0.0, %v4625
        %v4627 = vpop.f32.mrb[0].mxu0
        %4628 = vmatprep.mubr.bf16.mxu0 0
        %4629 = vmatmul.mubr.bf16.gmra.mrb[0].mxu0 %v4533
        %v4630 = vpop.f32.mrb[0].mxu0
        %v4631 = vadd.f32 0.0, %v4630
        %v4632 = vpop.f32.mrb[0].mxu0
        %v4633 = vpop.f32.mrb[0].mxu0
        %v4634 = vadd.f32 0.0, %v4633
        %v4635 = vpop.f32.mrb[0].mxu0
        %4636 = vmatprep.mubr.bf16.mxu0 0
        %4637 = vmatmul.mubr.bf16.gmra.mrb[0].mxu0 %v4536
        %v4638 = vpop.f32.mrb[0].mxu0
        %v4639 = vadd.f32 0.0, %v4638
        %v4640 = vpop.f32.mrb[0].mxu0
        %v4641 = vpop.f32.mrb[0].mxu0
        %v4642 = vadd.f32 0.0, %v4641
        %v4643 = vpop.f32.mrb[0].mxu0
        %4644 = vmatprep.mubr.bf16.mxu0 0
        %4645 = vmatmul.mubr.bf16.gmra.mrb[0].mxu0 %v4539
        %v4646 = vpop.f32.mrb[0].mxu0
        %v4647 = vadd.f32 0.0, %v4646
        %v4648 = vpop.f32.mrb[0].mxu0
        %v4649 = vpop.f32.mrb[0].mxu0
        %v4650 = vadd.f32 0.0, %v4649
        %v4651 = vpop.f32.mrb[0].mxu0
        %4652 = vmatprep.mubr.bf16.mxu0 0
        %4653 = vmatmul.mubr.bf16.gmra.mrb[0].mxu0 %v4542
        %v4654 = vpop.f32.mrb[0].mxu0
        %v4655 = vadd.f32 0.0, %v4654
        %v4656 = vpop.f32.mrb[0].mxu0
        %v4657 = vpop.f32.mrb[0].mxu0
        %v4658 = vadd.f32 0.0, %v4657
        %v4659 = vpop.f32.mrb[0].mxu0
        %4660 = vmatprep.mubr.bf16.mxu0 0
        %4661 = vmatmul.mubr.bf16.gmra.mrb[0].mxu0 %v4545
        %v4662 = vpop.f32.mrb[0].mxu0
        %v4663 = vadd.f32 0.0, %v4662
        %v4664 = vpop.f32.mrb[0].mxu0
        %v4665 = vpop.f32.mrb[0].mxu0
        %v4666 = vadd.f32 0.0, %v4665
        %v4667 = vpop.f32.mrb[0].mxu0
        %4668 = vmatprep.mubr.bf16.mxu0 0
        %4669 = vmatmul.mubr.bf16.gmra.mrb[0].mxu0 %v4548
        %v4670 = vpop.f32.mrb[0].mxu0
        %v4671 = vadd.f32 0.0, %v4670
        %v4672 = vpop.f32.mrb[0].mxu0
        %v4673 = vpop.f32.mrb[0].mxu0
        %v4674 = vadd.f32 0.0, %v4673
        %v4675 = vpop.f32.mrb[0].mxu0
        %4676 = vmatprep.mubr.bf16.mxu0 0
        %4677 = vmatmul.mubr.bf16.gmra.mrb[0].mxu0 %v4551
        %v4678 = vpop.f32.mrb[0].mxu0
        %v4679 = vadd.f32 0.0, %v4678
        %v4680 = vpop.f32.mrb[0].mxu0
        %v4681 = vpop.f32.mrb[0].mxu0
        %v4682 = vadd.f32 0.0, %v4681
        %v4683 = vpop.f32.mrb[0].mxu0
        %4684 = vmatprep.mubr.bf16.mxu0 0
        %4685 = vmatmul.mubr.bf16.gmra.mrb[0].mxu0 %v4554
        %v4686 = vpop.f32.mrb[0].mxu0
        %v4687 = vadd.f32 0.0, %v4686
        %v4688 = vpop.f32.mrb[0].mxu0
        %v4689 = vpop.f32.mrb[0].mxu0
        %v4690 = vadd.f32 0.0, %v4689
        %v4691 = vpop.f32.mrb[0].mxu0
        %4692 = vmatprep.mubr.bf16.mxu0 0
        %4693 = vmatmul.mubr.bf16.gmra.mrb[0].mxu0 %v4557
        %v4694 = vpop.f32.mrb[0].mxu0
        %v4695 = vadd.f32 0.0, %v4694
        %v4696 = vpop.f32.mrb[0].mxu0
        %v4697 = vpop.f32.mrb[0].mxu0
        %v4698 = vadd.f32 0.0, %v4697
        %v4699 = vpop.f32.mrb[0].mxu0
        %4700 = vmatprep.mubr.bf16.mxu0 0
        %4701 = vmatmul.mubr.bf16.gmra.mrb[0].mxu0 %v4560
        %v4702 = vpop.f32.mrb[0].mxu0
        %v4703 = vadd.f32 0.0, %v4702
        %v4704 = vpop.f32.mrb[0].mxu0
        %v4705 = vpop.f32.mrb[0].mxu0
        %v4706 = vadd.f32 0.0, %v4705
        %v4707 = vpop.f32.mrb[0].mxu0
        %4708 = vmatprep.mubr.bf16.mxu0 0
        %4709 = vmatmul.mubr.bf16.gmra.mrb[0].mxu0 %v4563
        %v4710 = vpop.f32.mrb[0].mxu0
        %v4711 = vadd.f32 0.0, %v4710
        %v4712 = vpop.f32.mrb[0].mxu0
        %v4713 = vpop.f32.mrb[0].mxu0
        %v4714 = vadd.f32 0.0, %v4713
        %v4715 = vpop.f32.mrb[0].mxu0
        %4716 = vmatprep.mubr.bf16.mxu0 0
        %4717 = vmatmul.mubr.bf16.gmra.mrb[0].mxu0 %v4566
        %v4718 = vpop.f32.mrb[0].mxu0
        %v4719 = vadd.f32 0.0, %v4718
        %v4720 = vpop.f32.mrb[0].mxu0
        %v4721 = vpop.f32.mrb[0].mxu0
        %v4722 = vadd.f32 0.0, %v4721
        %v4723 = vpop.f32.mrb[0].mxu0
        %4724 = vmatprep.mubr.bf16.mxu0 0
        %4725 = vmatmul.mubr.bf16.gmra.mrb[0].mxu0 %v4569
        %v4726 = vpop.f32.mrb[0].mxu0
        %v4727 = vadd.f32 0.0, %v4726
        %v4728 = vpop.f32.mrb[0].mxu0
        %v4729 = vpop.f32.mrb[0].mxu0
        %v4730 = vadd.f32 0.0, %v4729
        %v4731 = vpop.f32.mrb[0].mxu0
        %4732 = vmatprep.mubr.bf16.mxu0 0
        %4733 = vmatmul.mubr.bf16.gmra.mrb[0].mxu0 %v4572
        %v4734 = vpop.f32.mrb[0].mxu0
        %v4735 = vadd.f32 0.0, %v4734
        %v4736 = vpop.f32.mrb[0].mxu0
        %v4737 = vpop.f32.mrb[0].mxu0
        %v4738 = vadd.f32 0.0, %v4737
        %v4739 = vpop.f32.mrb[0].mxu0
        %4740 = vmatprep.mubr.bf16.mxu0 0
        %4741 = vmatmul.mubr.bf16.gmra.mrb[0].mxu0 %v4575
        %v4742 = vpop.f32.mrb[0].mxu0
        %v4743 = vadd.f32 0.0, %v4742
        %v4744 = vpop.f32.mrb[0].mxu0
        %v4745 = vpop.f32.mrb[0].mxu0
        %v4746 = vadd.f32 0.0, %v4745
        %v4747 = vpop.f32.mrb[0].mxu0
        %4748 = vmatprep.mubr.bf16.mxu0 0
        %4749 = vmatmul.mubr.bf16.gmra.mrb[0].mxu0 %v4578
        %v4750 = vpop.f32.mrb[0].mxu0
        %v4751 = vadd.f32 0.0, %v4750
        %v4752 = vpop.f32.mrb[0].mxu0
        %v4753 = vpop.f32.mrb[0].mxu0
        %v4754 = vadd.f32 0.0, %v4753
        %v4755 = vpop.f32.mrb[0].mxu0
        %4756 = vdwg.mxu0
        %v4757 = vadd.f32 %v4427, %v4615
        %v4758 = vadd.f32 %v4428, %v4618
        %v4759 = vadd.f32 %v4429, %v4623
        %v4760 = vadd.f32 %v4430, %v4626
        %v4761 = vadd.f32 %v4431, %v4631
        %v4762 = vadd.f32 %v4432, %v4634
        %v4763 = vadd.f32 %v4433, %v4639
        %v4764 = vadd.f32 %v4434, %v4642
        %v4765 = vadd.f32 %v4435, %v4647
        %v4766 = vadd.f32 %v4436, %v4650
        %v4767 = vadd.f32 %v4437, %v4655
        %v4768 = vadd.f32 %v4438, %v4658
        %v4769 = vadd.f32 %v4439, %v4663
        %v4770 = vadd.f32 %v4440, %v4666
        %v4771 = vadd.f32 %v4441, %v4671
        %v4772 = vadd.f32 %v4442, %v4674
        %v4773 = vadd.f32 %v4443, %v4679
        %v4774 = vadd.f32 %v4444, %v4682
        %v4775 = vadd.f32 %v4445, %v4687
        %v4776 = vadd.f32 %v4446, %v4690
        %v4777 = vadd.f32 %v4447, %v4695
        %v4778 = vadd.f32 %v4448, %v4698
        %v4779 = vadd.f32 %v4449, %v4703
        %v4780 = vadd.f32 %v4450, %v4706
        %v4781 = vadd.f32 %v4451, %v4711
        %v4782 = vadd.f32 %v4452, %v4714
        %v4783 = vadd.f32 %v4453, %v4719
        %v4784 = vadd.f32 %v4454, %v4722
        %v4785 = vadd.f32 %v4455, %v4727
        %v4786 = vadd.f32 %v4456, %v4730
        %v4787 = vadd.f32 %v4457, %v4735
        %v4788 = vadd.f32 %v4458, %v4738
        %v4789 = vadd.f32 %v4459, %v4743
        %v4790 = vadd.f32 %v4460, %v4746
        %v4791 = vadd.f32 %v4461, %v4751
        %v4792 = vadd.f32 %v4462, %v4754
        %v4793 = vld [vmem:[#allocation2 + $0x13] sm:$0xff]
        %v4794 = vld [vmem:[#allocation2 + $0x1b] sm:$0xff]
        %v4795 = vld [vmem:[#allocation2 + $0x23] sm:$0xff]
        %v4796 = vld [vmem:[#allocation2 + $0x2b] sm:$0xff]
        %v4797 = vld [vmem:[#allocation2 + $0x33] sm:$0xff]
        %v4798 = vld [vmem:[#allocation2 + $0x3b] sm:$0xff]
        %v4799 = vld [vmem:[#allocation2 + $0x43] sm:$0xff]
        %v4800 = vld [vmem:[#allocation2 + $0x4b] sm:$0xff]
        %v4801 = vld [vmem:[#allocation2 + $0x53] sm:$0xff]
        %v4802 = vld [vmem:[#allocation2 + $0x5b] sm:$0xff]
        %v4803 = vld [vmem:[#allocation2 + $0x63] sm:$0xff]
        %v4804 = vld [vmem:[#allocation2 + $0x6b] sm:$0xff]
        %v4805 = vld [vmem:[#allocation2 + $0x73] sm:$0xff]
        %v4806 = vld [vmem:[#allocation2 + $0x7b] sm:$0xff]
        %v4807 = vld [vmem:[#allocation2 + $0x83] sm:$0xff]
        %v4808 = vld [vmem:[#allocation2 + $0x8b] sm:$0xff]
        %v4809 = vld [vmem:[#allocation2 + $0x93] sm:$0xff]
        %v4810 = vld [vmem:[#allocation2 + $0x9b] sm:$0xff]
        %v4811 = vld [vmem:[#allocation2 + $0xa3] sm:$0xff]
        %v4812 = vld [vmem:[#allocation2 + $0xab] sm:$0xff]
        %v4813 = vld [vmem:[#allocation2 + $0xb3] sm:$0xff]
        %v4814 = vld [vmem:[#allocation2 + $0xbb] sm:$0xff]
        %v4815 = vld [vmem:[#allocation2 + $0xc3] sm:$0xff]
        %v4816 = vld [vmem:[#allocation2 + $0xcb] sm:$0xff]
        %v4817 = vld [vmem:[#allocation2 + $0xd3] sm:$0xff]
        %v4818 = vld [vmem:[#allocation2 + $0xdb] sm:$0xff]
        %v4819 = vld [vmem:[#allocation2 + $0xe3] sm:$0xff]
        %v4820 = vld [vmem:[#allocation2 + $0xeb] sm:$0xff]
        %v4821 = vld [vmem:[#allocation2 + $0xf3] sm:$0xff]
        %v4822 = vld [vmem:[#allocation2 + $0xfb] sm:$0xff]
        %v4823 = vld [vmem:[#allocation2 + $0x103] sm:$0xff]
        %v4824 = vld [vmem:[#allocation2 + $0x10b] sm:$0xff]
        %v4825 = vld [vmem:[#allocation2 + $0x113] sm:$0xff]
        %v4826 = vld [vmem:[#allocation2 + $0x11b] sm:$0xff]
        %v4827 = vld [vmem:[#allocation2 + $0x123] sm:$0xff]
        %v4828 = vld [vmem:[#allocation2 + $0x12b] sm:$0x3f]
        %v4829 = vpack.c.bf16 %v4794, %v4793
        %v4830 = vpack.c.bf16 %v4796, %v4795
        %v4831 = vpack.c.bf16 %v4798, %v4797
        %v4832 = vpack.c.bf16 %v4800, %v4799
        %v4833 = vpack.c.bf16 %v4802, %v4801
        %v4834 = vpack.c.bf16 %v4804, %v4803
        %v4835 = vpack.c.bf16 %v4806, %v4805
        %v4836 = vpack.c.bf16 %v4808, %v4807
        %v4837 = vpack.c.bf16 %v4810, %v4809
        %v4838 = vpack.c.bf16 %v4812, %v4811
        %v4839 = vpack.c.bf16 %v4814, %v4813
        %v4840 = vpack.c.bf16 %v4816, %v4815
        %v4841 = vpack.c.bf16 %v4818, %v4817
        %v4842 = vpack.c.bf16 %v4820, %v4819
        %v4843 = vpack.c.bf16 %v4822, %v4821
        %v4844 = vpack.c.bf16 %v4824, %v4823
        %v4845 = vpack.c.bf16 %v4826, %v4825
        %v4846 = vpack.c.bf16 %v4828, %v4827
        %s4847 = scalar_lea.vmem %s4, 32
        %v4848 = vld [vmem:[%s4847] sm:$0xf]
        %v4849 = vld [vmem:[%s4847 + $0x4] sm:$0xf]
        %v4852 = vunpack.c.l.b16 %v4848
        %v4853 = vunpack.c.l.b16 %v4849
        %v4854 = vpack.c.b16 %v4853, %v4852
        %v4857 = vsel %vm3501, %v4829, 0
        %v4860 = vsel %vm3501, %v4830, 0
        %v4863 = vsel %vm3501, %v4831, 0
        %v4866 = vsel %vm3501, %v4832, 0
        %v4869 = vsel %vm3501, %v4833, 0
        %v4872 = vsel %vm3501, %v4834, 0
        %v4875 = vsel %vm3501, %v4835, 0
        %v4878 = vsel %vm3501, %v4836, 0
        %v4881 = vsel %vm3501, %v4837, 0
        %v4884 = vsel %vm3501, %v4838, 0
        %v4887 = vsel %vm3501, %v4839, 0
        %v4890 = vsel %vm3501, %v4840, 0
        %v4893 = vsel %vm3501, %v4841, 0
        %v4896 = vsel %vm3501, %v4842, 0
        %v4899 = vsel %vm3501, %v4843, 0
        %v4902 = vsel %vm3501, %v4844, 0
        %v4905 = vsel %vm3501, %v4845, 0
        %v4908 = vsel %vm3501, %v4846, 0
        %4910 = vmatprep.subr.bf16.mxu0 0
        %4911 = vmatpush1.bf16.msra.mxu0 %v4854
        %4912 = vmatprep.subr.bf16.mxu0 0
        %4913 = vmatpush1.bf16.msra.mxu0 0
        %4914 = vmatprep.subr.bf16.mxu0 0
        %4915 = vmatpush1.bf16.msra.mxu0 0
        %4916 = vmatprep.subr.bf16.mxu0 0
        %4917 = vmatpush1.bf16.msra.mxu0 0
        %4918 = vmatprep.subr.bf16.mxu0 0
        %4919 = vmatpush1.bf16.msra.mxu0 0
        %4920 = vmatprep.subr.bf16.mxu0 0
        %4921 = vmatpush1.bf16.msra.mxu0 0
        %4922 = vmatprep.subr.bf16.mxu0 0
        %4923 = vmatpush1.bf16.msra.mxu0 0
        %4924 = vmatprep.subr.bf16.mxu0 0
        %4925 = vmatpush1.bf16.msra.mxu0 0
        %4926 = vmatprep.subr.bf16.mxu0 0
        %4927 = vmatpush1.bf16.msra.mxu0 0
        %4928 = vmatprep.subr.bf16.mxu0 0
        %4929 = vmatpush1.bf16.msra.mxu0 0
        %4930 = vmatprep.subr.bf16.mxu0 0
        %4931 = vmatpush1.bf16.msra.mxu0 0
        %4932 = vmatprep.subr.bf16.mxu0 0
        %4933 = vmatpush1.bf16.msra.mxu0 0
        %4934 = vmatprep.subr.bf16.mxu0 0
        %4935 = vmatpush1.bf16.msra.mxu0 0
        %4936 = vmatprep.subr.bf16.mxu0 0
        %4937 = vmatpush1.bf16.msra.mxu0 0
        %4938 = vmatprep.subr.bf16.mxu0 0
        %4939 = vmatpush1.bf16.msra.mxu0 0
        %4940 = vmatprep.subr.bf16.mxu0 0
        %4941 = vmatpush1.bf16.msra.mxu0 0
        %4942 = vmatprep.mubr.bf16.mxu0 0
        %4943 = vmatmul.mubr.bf16.gmra.mrb[0].mxu0 %v4857
        %v4944 = vpop.f32.mrb[0].mxu0
        %v4945 = vadd.f32 0.0, %v4944
        %v4946 = vpop.f32.mrb[0].mxu0
        %v4947 = vpop.f32.mrb[0].mxu0
        %v4948 = vadd.f32 0.0, %v4947
        %v4949 = vpop.f32.mrb[0].mxu0
        %4950 = vmatprep.mubr.bf16.mxu0 0
        %4951 = vmatmul.mubr.bf16.gmra.mrb[0].mxu0 %v4860
        %v4952 = vpop.f32.mrb[0].mxu0
        %v4953 = vadd.f32 0.0, %v4952
        %v4954 = vpop.f32.mrb[0].mxu0
        %v4955 = vpop.f32.mrb[0].mxu0
        %v4956 = vadd.f32 0.0, %v4955
        %v4957 = vpop.f32.mrb[0].mxu0
        %4958 = vmatprep.mubr.bf16.mxu0 0
        %4959 = vmatmul.mubr.bf16.gmra.mrb[0].mxu0 %v4863
        %v4960 = vpop.f32.mrb[0].mxu0
        %v4961 = vadd.f32 0.0, %v4960
        %v4962 = vpop.f32.mrb[0].mxu0
        %v4963 = vpop.f32.mrb[0].mxu0
        %v4964 = vadd.f32 0.0, %v4963
        %v4965 = vpop.f32.mrb[0].mxu0
        %4966 = vmatprep.mubr.bf16.mxu0 0
        %4967 = vmatmul.mubr.bf16.gmra.mrb[0].mxu0 %v4866
        %v4968 = vpop.f32.mrb[0].mxu0
        %v4969 = vadd.f32 0.0, %v4968
        %v4970 = vpop.f32.mrb[0].mxu0
        %v4971 = vpop.f32.mrb[0].mxu0
        %v4972 = vadd.f32 0.0, %v4971
        %v4973 = vpop.f32.mrb[0].mxu0
        %4974 = vmatprep.mubr.bf16.mxu0 0
        %4975 = vmatmul.mubr.bf16.gmra.mrb[0].mxu0 %v4869
        %v4976 = vpop.f32.mrb[0].mxu0
        %v4977 = vadd.f32 0.0, %v4976
        %v4978 = vpop.f32.mrb[0].mxu0
        %v4979 = vpop.f32.mrb[0].mxu0
        %v4980 = vadd.f32 0.0, %v4979
        %v4981 = vpop.f32.mrb[0].mxu0
        %4982 = vmatprep.mubr.bf16.mxu0 0
        %4983 = vmatmul.mubr.bf16.gmra.mrb[0].mxu0 %v4872
        %v4984 = vpop.f32.mrb[0].mxu0
        %v4985 = vadd.f32 0.0, %v4984
        %v4986 = vpop.f32.mrb[0].mxu0
        %v4987 = vpop.f32.mrb[0].mxu0
        %v4988 = vadd.f32 0.0, %v4987
        %v4989 = vpop.f32.mrb[0].mxu0
        %4990 = vmatprep.mubr.bf16.mxu0 0
        %4991 = vmatmul.mubr.bf16.gmra.mrb[0].mxu0 %v4875
        %v4992 = vpop.f32.mrb[0].mxu0
        %v4993 = vadd.f32 0.0, %v4992
        %v4994 = vpop.f32.mrb[0].mxu0
        %v4995 = vpop.f32.mrb[0].mxu0
        %v4996 = vadd.f32 0.0, %v4995
        %v4997 = vpop.f32.mrb[0].mxu0
        %4998 = vmatprep.mubr.bf16.mxu0 0
        %4999 = vmatmul.mubr.bf16.gmra.mrb[0].mxu0 %v4878
        %v5000 = vpop.f32.mrb[0].mxu0
        %v5001 = vadd.f32 0.0, %v5000
        %v5002 = vpop.f32.mrb[0].mxu0
        %v5003 = vpop.f32.mrb[0].mxu0
        %v5004 = vadd.f32 0.0, %v5003
        %v5005 = vpop.f32.mrb[0].mxu0
        %5006 = vmatprep.mubr.bf16.mxu0 0
        %5007 = vmatmul.mubr.bf16.gmra.mrb[0].mxu0 %v4881
        %v5008 = vpop.f32.mrb[0].mxu0
        %v5009 = vadd.f32 0.0, %v5008
        %v5010 = vpop.f32.mrb[0].mxu0
        %v5011 = vpop.f32.mrb[0].mxu0
        %v5012 = vadd.f32 0.0, %v5011
        %v5013 = vpop.f32.mrb[0].mxu0
        %5014 = vmatprep.mubr.bf16.mxu0 0
        %5015 = vmatmul.mubr.bf16.gmra.mrb[0].mxu0 %v4884
        %v5016 = vpop.f32.mrb[0].mxu0
        %v5017 = vadd.f32 0.0, %v5016
        %v5018 = vpop.f32.mrb[0].mxu0
        %v5019 = vpop.f32.mrb[0].mxu0
        %v5020 = vadd.f32 0.0, %v5019
        %v5021 = vpop.f32.mrb[0].mxu0
        %5022 = vmatprep.mubr.bf16.mxu0 0
        %5023 = vmatmul.mubr.bf16.gmra.mrb[0].mxu0 %v4887
        %v5024 = vpop.f32.mrb[0].mxu0
        %v5025 = vadd.f32 0.0, %v5024
        %v5026 = vpop.f32.mrb[0].mxu0
        %v5027 = vpop.f32.mrb[0].mxu0
        %v5028 = vadd.f32 0.0, %v5027
        %v5029 = vpop.f32.mrb[0].mxu0
        %5030 = vmatprep.mubr.bf16.mxu0 0
        %5031 = vmatmul.mubr.bf16.gmra.mrb[0].mxu0 %v4890
        %v5032 = vpop.f32.mrb[0].mxu0
        %v5033 = vadd.f32 0.0, %v5032
        %v5034 = vpop.f32.mrb[0].mxu0
        %v5035 = vpop.f32.mrb[0].mxu0
        %v5036 = vadd.f32 0.0, %v5035
        %v5037 = vpop.f32.mrb[0].mxu0
        %5038 = vmatprep.mubr.bf16.mxu0 0
        %5039 = vmatmul.mubr.bf16.gmra.mrb[0].mxu0 %v4893
        %v5040 = vpop.f32.mrb[0].mxu0
        %v5041 = vadd.f32 0.0, %v5040
        %v5042 = vpop.f32.mrb[0].mxu0
        %v5043 = vpop.f32.mrb[0].mxu0
        %v5044 = vadd.f32 0.0, %v5043
        %v5045 = vpop.f32.mrb[0].mxu0
        %5046 = vmatprep.mubr.bf16.mxu0 0
        %5047 = vmatmul.mubr.bf16.gmra.mrb[0].mxu0 %v4896
        %v5048 = vpop.f32.mrb[0].mxu0
        %v5049 = vadd.f32 0.0, %v5048
        %v5050 = vpop.f32.mrb[0].mxu0
        %v5051 = vpop.f32.mrb[0].mxu0
        %v5052 = vadd.f32 0.0, %v5051
        %v5053 = vpop.f32.mrb[0].mxu0
        %5054 = vmatprep.mubr.bf16.mxu0 0
        %5055 = vmatmul.mubr.bf16.gmra.mrb[0].mxu0 %v4899
        %v5056 = vpop.f32.mrb[0].mxu0
        %v5057 = vadd.f32 0.0, %v5056
        %v5058 = vpop.f32.mrb[0].mxu0
        %v5059 = vpop.f32.mrb[0].mxu0
        %v5060 = vadd.f32 0.0, %v5059
        %v5061 = vpop.f32.mrb[0].mxu0
        %5062 = vmatprep.mubr.bf16.mxu0 0
        %5063 = vmatmul.mubr.bf16.gmra.mrb[0].mxu0 %v4902
        %v5064 = vpop.f32.mrb[0].mxu0
        %v5065 = vadd.f32 0.0, %v5064
        %v5066 = vpop.f32.mrb[0].mxu0
        %v5067 = vpop.f32.mrb[0].mxu0
        %v5068 = vadd.f32 0.0, %v5067
        %v5069 = vpop.f32.mrb[0].mxu0
        %5070 = vmatprep.mubr.bf16.mxu0 0
        %5071 = vmatmul.mubr.bf16.gmra.mrb[0].mxu0 %v4905
        %v5072 = vpop.f32.mrb[0].mxu0
        %v5073 = vadd.f32 0.0, %v5072
        %v5074 = vpop.f32.mrb[0].mxu0
        %v5075 = vpop.f32.mrb[0].mxu0
        %v5076 = vadd.f32 0.0, %v5075
        %v5077 = vpop.f32.mrb[0].mxu0
        %5078 = vmatprep.mubr.bf16.mxu0 0
        %5079 = vmatmul.mubr.bf16.gmra.mrb[0].mxu0 %v4908
        %v5080 = vpop.f32.mrb[0].mxu0
        %v5081 = vadd.f32 0.0, %v5080
        %v5082 = vpop.f32.mrb[0].mxu0
        %v5083 = vpop.f32.mrb[0].mxu0
        %v5084 = vadd.f32 0.0, %v5083
        %v5085 = vpop.f32.mrb[0].mxu0
        %5086 = vdwg.mxu0
        %v5087 = vadd.f32 %v4757, %v4945
        %v5088 = vadd.f32 %v4758, %v4948
        %v5089 = vadd.f32 %v4759, %v4953
        %v5090 = vadd.f32 %v4760, %v4956
        %v5091 = vadd.f32 %v4761, %v4961
        %v5092 = vadd.f32 %v4762, %v4964
        %v5093 = vadd.f32 %v4763, %v4969
        %v5094 = vadd.f32 %v4764, %v4972
        %v5095 = vadd.f32 %v4765, %v4977
        %v5096 = vadd.f32 %v4766, %v4980
        %v5097 = vadd.f32 %v4767, %v4985
        %v5098 = vadd.f32 %v4768, %v4988
        %v5099 = vadd.f32 %v4769, %v4993
        %v5100 = vadd.f32 %v4770, %v4996
        %v5101 = vadd.f32 %v4771, %v5001
        %v5102 = vadd.f32 %v4772, %v5004
        %v5103 = vadd.f32 %v4773, %v5009
        %v5104 = vadd.f32 %v4774, %v5012
        %v5105 = vadd.f32 %v4775, %v5017
        %v5106 = vadd.f32 %v4776, %v5020
        %v5107 = vadd.f32 %v4777, %v5025
        %v5108 = vadd.f32 %v4778, %v5028
        %v5109 = vadd.f32 %v4779, %v5033
        %v5110 = vadd.f32 %v4780, %v5036
        %v5111 = vadd.f32 %v4781, %v5041
        %v5112 = vadd.f32 %v4782, %v5044
        %v5113 = vadd.f32 %v4783, %v5049
        %v5114 = vadd.f32 %v4784, %v5052
        %v5115 = vadd.f32 %v4785, %v5057
        %v5116 = vadd.f32 %v4786, %v5060
        %v5117 = vadd.f32 %v4787, %v5065
        %v5118 = vadd.f32 %v4788, %v5068
        %v5119 = vadd.f32 %v4789, %v5073
        %v5120 = vadd.f32 %v4790, %v5076
        %v5121 = vadd.f32 %v4791, %v5081
        %v5122 = vadd.f32 %v4792, %v5084
        %v5123 = vld [vmem:[#allocation2 + $0x14] sm:$0xff]
        %v5124 = vld [vmem:[#allocation2 + $0x1c] sm:$0xff]
        %v5125 = vld [vmem:[#allocation2 + $0x24] sm:$0xff]
        %v5126 = vld [vmem:[#allocation2 + $0x2c] sm:$0xff]
        %v5127 = vld [vmem:[#allocation2 + $0x34] sm:$0xff]
        %v5128 = vld [vmem:[#allocation2 + $0x3c] sm:$0xff]
        %v5129 = vld [vmem:[#allocation2 + $0x44] sm:$0xff]
        %v5130 = vld [vmem:[#allocation2 + $0x4c] sm:$0xff]
        %v5131 = vld [vmem:[#allocation2 + $0x54] sm:$0xff]
        %v5132 = vld [vmem:[#allocation2 + $0x5c] sm:$0xff]
        %v5133 = vld [vmem:[#allocation2 + $0x64] sm:$0xff]
        %v5134 = vld [vmem:[#allocation2 + $0x6c] sm:$0xff]
        %v5135 = vld [vmem:[#allocation2 + $0x74] sm:$0xff]
        %v5136 = vld [vmem:[#allocation2 + $0x7c] sm:$0xff]
        %v5137 = vld [vmem:[#allocation2 + $0x84] sm:$0xff]
        %v5138 = vld [vmem:[#allocation2 + $0x8c] sm:$0xff]
        %v5139 = vld [vmem:[#allocation2 + $0x94] sm:$0xff]
        %v5140 = vld [vmem:[#allocation2 + $0x9c] sm:$0xff]
        %v5141 = vld [vmem:[#allocation2 + $0xa4] sm:$0xff]
        %v5142 = vld [vmem:[#allocation2 + $0xac] sm:$0xff]
        %v5143 = vld [vmem:[#allocation2 + $0xb4] sm:$0xff]
        %v5144 = vld [vmem:[#allocation2 + $0xbc] sm:$0xff]
        %v5145 = vld [vmem:[#allocation2 + $0xc4] sm:$0xff]
        %v5146 = vld [vmem:[#allocation2 + $0xcc] sm:$0xff]
        %v5147 = vld [vmem:[#allocation2 + $0xd4] sm:$0xff]
        %v5148 = vld [vmem:[#allocation2 + $0xdc] sm:$0xff]
        %v5149 = vld [vmem:[#allocation2 + $0xe4] sm:$0xff]
        %v5150 = vld [vmem:[#allocation2 + $0xec] sm:$0xff]
        %v5151 = vld [vmem:[#allocation2 + $0xf4] sm:$0xff]
        %v5152 = vld [vmem:[#allocation2 + $0xfc] sm:$0xff]
        %v5153 = vld [vmem:[#allocation2 + $0x104] sm:$0xff]
        %v5154 = vld [vmem:[#allocation2 + $0x10c] sm:$0xff]
        %v5155 = vld [vmem:[#allocation2 + $0x114] sm:$0xff]
        %v5156 = vld [vmem:[#allocation2 + $0x11c] sm:$0xff]
        %v5157 = vld [vmem:[#allocation2 + $0x124] sm:$0xff]
        %v5158 = vld [vmem:[#allocation2 + $0x12c] sm:$0x3f]
        %v5159 = vpack.c.bf16 %v5124, %v5123
        %v5160 = vpack.c.bf16 %v5126, %v5125
        %v5161 = vpack.c.bf16 %v5128, %v5127
        %v5162 = vpack.c.bf16 %v5130, %v5129
        %v5163 = vpack.c.bf16 %v5132, %v5131
        %v5164 = vpack.c.bf16 %v5134, %v5133
        %v5165 = vpack.c.bf16 %v5136, %v5135
        %v5166 = vpack.c.bf16 %v5138, %v5137
        %v5167 = vpack.c.bf16 %v5140, %v5139
        %v5168 = vpack.c.bf16 %v5142, %v5141
        %v5169 = vpack.c.bf16 %v5144, %v5143
        %v5170 = vpack.c.bf16 %v5146, %v5145
        %v5171 = vpack.c.bf16 %v5148, %v5147
        %v5172 = vpack.c.bf16 %v5150, %v5149
        %v5173 = vpack.c.bf16 %v5152, %v5151
        %v5174 = vpack.c.bf16 %v5154, %v5153
        %v5175 = vpack.c.bf16 %v5156, %v5155
        %v5176 = vpack.c.bf16 %v5158, %v5157
        %s5177 = scalar_lea.vmem %s4, 40
        %v5178 = vld [vmem:[%s5177] sm:$0xf]
        %v5179 = vld [vmem:[%s5177 + $0x4] sm:$0xf]
        %v5182 = vunpack.c.l.b16 %v5178
        %v5183 = vunpack.c.l.b16 %v5179
        %v5184 = vpack.c.b16 %v5183, %v5182
        %v5187 = vsel %vm3501, %v5159, 0
        %v5190 = vsel %vm3501, %v5160, 0
        %v5193 = vsel %vm3501, %v5161, 0
        %v5196 = vsel %vm3501, %v5162, 0
        %v5199 = vsel %vm3501, %v5163, 0
        %v5202 = vsel %vm3501, %v5164, 0
        %v5205 = vsel %vm3501, %v5165, 0
        %v5208 = vsel %vm3501, %v5166, 0
        %v5211 = vsel %vm3501, %v5167, 0
        %v5214 = vsel %vm3501, %v5168, 0
        %v5217 = vsel %vm3501, %v5169, 0
        %v5220 = vsel %vm3501, %v5170, 0
        %v5223 = vsel %vm3501, %v5171, 0
        %v5226 = vsel %vm3501, %v5172, 0
        %v5229 = vsel %vm3501, %v5173, 0
        %v5232 = vsel %vm3501, %v5174, 0
        %v5235 = vsel %vm3501, %v5175, 0
        %v5238 = vsel %vm3501, %v5176, 0
        %5240 = vmatprep.subr.bf16.mxu0 0
        %5241 = vmatpush1.bf16.msra.mxu0 %v5184
        %5242 = vmatprep.subr.bf16.mxu0 0
        %5243 = vmatpush1.bf16.msra.mxu0 0
        %5244 = vmatprep.subr.bf16.mxu0 0
        %5245 = vmatpush1.bf16.msra.mxu0 0
        %5246 = vmatprep.subr.bf16.mxu0 0
        %5247 = vmatpush1.bf16.msra.mxu0 0
        %5248 = vmatprep.subr.bf16.mxu0 0
        %5249 = vmatpush1.bf16.msra.mxu0 0
        %5250 = vmatprep.subr.bf16.mxu0 0
        %5251 = vmatpush1.bf16.msra.mxu0 0
        %5252 = vmatprep.subr.bf16.mxu0 0
        %5253 = vmatpush1.bf16.msra.mxu0 0
        %5254 = vmatprep.subr.bf16.mxu0 0
        %5255 = vmatpush1.bf16.msra.mxu0 0
        %5256 = vmatprep.subr.bf16.mxu0 0
        %5257 = vmatpush1.bf16.msra.mxu0 0
        %5258 = vmatprep.subr.bf16.mxu0 0
        %5259 = vmatpush1.bf16.msra.mxu0 0
        %5260 = vmatprep.subr.bf16.mxu0 0
        %5261 = vmatpush1.bf16.msra.mxu0 0
        %5262 = vmatprep.subr.bf16.mxu0 0
        %5263 = vmatpush1.bf16.msra.mxu0 0
        %5264 = vmatprep.subr.bf16.mxu0 0
        %5265 = vmatpush1.bf16.msra.mxu0 0
        %5266 = vmatprep.subr.bf16.mxu0 0
        %5267 = vmatpush1.bf16.msra.mxu0 0
        %5268 = vmatprep.subr.bf16.mxu0 0
        %5269 = vmatpush1.bf16.msra.mxu0 0
        %5270 = vmatprep.subr.bf16.mxu0 0
        %5271 = vmatpush1.bf16.msra.mxu0 0
        %5272 = vmatprep.mubr.bf16.mxu0 0
        %5273 = vmatmul.mubr.bf16.gmra.mrb[0].mxu0 %v5187
        %v5274 = vpop.f32.mrb[0].mxu0
        %v5275 = vadd.f32 0.0, %v5274
        %v5276 = vpop.f32.mrb[0].mxu0
        %v5277 = vpop.f32.mrb[0].mxu0
        %v5278 = vadd.f32 0.0, %v5277
        %v5279 = vpop.f32.mrb[0].mxu0
        %5280 = vmatprep.mubr.bf16.mxu0 0
        %5281 = vmatmul.mubr.bf16.gmra.mrb[0].mxu0 %v5190
        %v5282 = vpop.f32.mrb[0].mxu0
        %v5283 = vadd.f32 0.0, %v5282
        %v5284 = vpop.f32.mrb[0].mxu0
        %v5285 = vpop.f32.mrb[0].mxu0
        %v5286 = vadd.f32 0.0, %v5285
        %v5287 = vpop.f32.mrb[0].mxu0
        %5288 = vmatprep.mubr.bf16.mxu0 0
        %5289 = vmatmul.mubr.bf16.gmra.mrb[0].mxu0 %v5193
        %v5290 = vpop.f32.mrb[0].mxu0
        %v5291 = vadd.f32 0.0, %v5290
        %v5292 = vpop.f32.mrb[0].mxu0
        %v5293 = vpop.f32.mrb[0].mxu0
        %v5294 = vadd.f32 0.0, %v5293
        %v5295 = vpop.f32.mrb[0].mxu0
        %5296 = vmatprep.mubr.bf16.mxu0 0
        %5297 = vmatmul.mubr.bf16.gmra.mrb[0].mxu0 %v5196
        %v5298 = vpop.f32.mrb[0].mxu0
        %v5299 = vadd.f32 0.0, %v5298
        %v5300 = vpop.f32.mrb[0].mxu0
        %v5301 = vpop.f32.mrb[0].mxu0
        %v5302 = vadd.f32 0.0, %v5301
        %v5303 = vpop.f32.mrb[0].mxu0
        %5304 = vmatprep.mubr.bf16.mxu0 0
        %5305 = vmatmul.mubr.bf16.gmra.mrb[0].mxu0 %v5199
        %v5306 = vpop.f32.mrb[0].mxu0
        %v5307 = vadd.f32 0.0, %v5306
        %v5308 = vpop.f32.mrb[0].mxu0
        %v5309 = vpop.f32.mrb[0].mxu0
        %v5310 = vadd.f32 0.0, %v5309
        %v5311 = vpop.f32.mrb[0].mxu0
        %5312 = vmatprep.mubr.bf16.mxu0 0
        %5313 = vmatmul.mubr.bf16.gmra.mrb[0].mxu0 %v5202
        %v5314 = vpop.f32.mrb[0].mxu0
        %v5315 = vadd.f32 0.0, %v5314
        %v5316 = vpop.f32.mrb[0].mxu0
        %v5317 = vpop.f32.mrb[0].mxu0
        %v5318 = vadd.f32 0.0, %v5317
        %v5319 = vpop.f32.mrb[0].mxu0
        %5320 = vmatprep.mubr.bf16.mxu0 0
        %5321 = vmatmul.mubr.bf16.gmra.mrb[0].mxu0 %v5205
        %v5322 = vpop.f32.mrb[0].mxu0
        %v5323 = vadd.f32 0.0, %v5322
        %v5324 = vpop.f32.mrb[0].mxu0
        %v5325 = vpop.f32.mrb[0].mxu0
        %v5326 = vadd.f32 0.0, %v5325
        %v5327 = vpop.f32.mrb[0].mxu0
        %5328 = vmatprep.mubr.bf16.mxu0 0
        %5329 = vmatmul.mubr.bf16.gmra.mrb[0].mxu0 %v5208
        %v5330 = vpop.f32.mrb[0].mxu0
        %v5331 = vadd.f32 0.0, %v5330
        %v5332 = vpop.f32.mrb[0].mxu0
        %v5333 = vpop.f32.mrb[0].mxu0
        %v5334 = vadd.f32 0.0, %v5333
        %v5335 = vpop.f32.mrb[0].mxu0
        %5336 = vmatprep.mubr.bf16.mxu0 0
        %5337 = vmatmul.mubr.bf16.gmra.mrb[0].mxu0 %v5211
        %v5338 = vpop.f32.mrb[0].mxu0
        %v5339 = vadd.f32 0.0, %v5338
        %v5340 = vpop.f32.mrb[0].mxu0
        %v5341 = vpop.f32.mrb[0].mxu0
        %v5342 = vadd.f32 0.0, %v5341
        %v5343 = vpop.f32.mrb[0].mxu0
        %5344 = vmatprep.mubr.bf16.mxu0 0
        %5345 = vmatmul.mubr.bf16.gmra.mrb[0].mxu0 %v5214
        %v5346 = vpop.f32.mrb[0].mxu0
        %v5347 = vadd.f32 0.0, %v5346
        %v5348 = vpop.f32.mrb[0].mxu0
        %v5349 = vpop.f32.mrb[0].mxu0
        %v5350 = vadd.f32 0.0, %v5349
        %v5351 = vpop.f32.mrb[0].mxu0
        %5352 = vmatprep.mubr.bf16.mxu0 0
        %5353 = vmatmul.mubr.bf16.gmra.mrb[0].mxu0 %v5217
        %v5354 = vpop.f32.mrb[0].mxu0
        %v5355 = vadd.f32 0.0, %v5354
        %v5356 = vpop.f32.mrb[0].mxu0
        %v5357 = vpop.f32.mrb[0].mxu0
        %v5358 = vadd.f32 0.0, %v5357
        %v5359 = vpop.f32.mrb[0].mxu0
        %5360 = vmatprep.mubr.bf16.mxu0 0
        %5361 = vmatmul.mubr.bf16.gmra.mrb[0].mxu0 %v5220
        %v5362 = vpop.f32.mrb[0].mxu0
        %v5363 = vadd.f32 0.0, %v5362
        %v5364 = vpop.f32.mrb[0].mxu0
        %v5365 = vpop.f32.mrb[0].mxu0
        %v5366 = vadd.f32 0.0, %v5365
        %v5367 = vpop.f32.mrb[0].mxu0
        %5368 = vmatprep.mubr.bf16.mxu0 0
        %5369 = vmatmul.mubr.bf16.gmra.mrb[0].mxu0 %v5223
        %v5370 = vpop.f32.mrb[0].mxu0
        %v5371 = vadd.f32 0.0, %v5370
        %v5372 = vpop.f32.mrb[0].mxu0
        %v5373 = vpop.f32.mrb[0].mxu0
        %v5374 = vadd.f32 0.0, %v5373
        %v5375 = vpop.f32.mrb[0].mxu0
        %5376 = vmatprep.mubr.bf16.mxu0 0
        %5377 = vmatmul.mubr.bf16.gmra.mrb[0].mxu0 %v5226
        %v5378 = vpop.f32.mrb[0].mxu0
        %v5379 = vadd.f32 0.0, %v5378
        %v5380 = vpop.f32.mrb[0].mxu0
        %v5381 = vpop.f32.mrb[0].mxu0
        %v5382 = vadd.f32 0.0, %v5381
        %v5383 = vpop.f32.mrb[0].mxu0
        %5384 = vmatprep.mubr.bf16.mxu0 0
        %5385 = vmatmul.mubr.bf16.gmra.mrb[0].mxu0 %v5229
        %v5386 = vpop.f32.mrb[0].mxu0
        %v5387 = vadd.f32 0.0, %v5386
        %v5388 = vpop.f32.mrb[0].mxu0
        %v5389 = vpop.f32.mrb[0].mxu0
        %v5390 = vadd.f32 0.0, %v5389
        %v5391 = vpop.f32.mrb[0].mxu0
        %5392 = vmatprep.mubr.bf16.mxu0 0
        %5393 = vmatmul.mubr.bf16.gmra.mrb[0].mxu0 %v5232
        %v5394 = vpop.f32.mrb[0].mxu0
        %v5395 = vadd.f32 0.0, %v5394
        %v5396 = vpop.f32.mrb[0].mxu0
        %v5397 = vpop.f32.mrb[0].mxu0
        %v5398 = vadd.f32 0.0, %v5397
        %v5399 = vpop.f32.mrb[0].mxu0
        %5400 = vmatprep.mubr.bf16.mxu0 0
        %5401 = vmatmul.mubr.bf16.gmra.mrb[0].mxu0 %v5235
        %v5402 = vpop.f32.mrb[0].mxu0
        %v5403 = vadd.f32 0.0, %v5402
        %v5404 = vpop.f32.mrb[0].mxu0
        %v5405 = vpop.f32.mrb[0].mxu0
        %v5406 = vadd.f32 0.0, %v5405
        %v5407 = vpop.f32.mrb[0].mxu0
        %5408 = vmatprep.mubr.bf16.mxu0 0
        %5409 = vmatmul.mubr.bf16.gmra.mrb[0].mxu0 %v5238
        %v5410 = vpop.f32.mrb[0].mxu0
        %v5411 = vadd.f32 0.0, %v5410
        %v5412 = vpop.f32.mrb[0].mxu0
        %v5413 = vpop.f32.mrb[0].mxu0
        %v5414 = vadd.f32 0.0, %v5413
        %v5415 = vpop.f32.mrb[0].mxu0
        %5416 = vdwg.mxu0
        %v5417 = vadd.f32 %v5087, %v5275
        %v5418 = vadd.f32 %v5088, %v5278
        %v5419 = vadd.f32 %v5089, %v5283
        %v5420 = vadd.f32 %v5090, %v5286
        %v5421 = vadd.f32 %v5091, %v5291
        %v5422 = vadd.f32 %v5092, %v5294
        %v5423 = vadd.f32 %v5093, %v5299
        %v5424 = vadd.f32 %v5094, %v5302
        %v5425 = vadd.f32 %v5095, %v5307
        %v5426 = vadd.f32 %v5096, %v5310
        %v5427 = vadd.f32 %v5097, %v5315
        %v5428 = vadd.f32 %v5098, %v5318
        %v5429 = vadd.f32 %v5099, %v5323
        %v5430 = vadd.f32 %v5100, %v5326
        %v5431 = vadd.f32 %v5101, %v5331
        %v5432 = vadd.f32 %v5102, %v5334
        %v5433 = vadd.f32 %v5103, %v5339
        %v5434 = vadd.f32 %v5104, %v5342
        %v5435 = vadd.f32 %v5105, %v5347
        %v5436 = vadd.f32 %v5106, %v5350
        %v5437 = vadd.f32 %v5107, %v5355
        %v5438 = vadd.f32 %v5108, %v5358
        %v5439 = vadd.f32 %v5109, %v5363
        %v5440 = vadd.f32 %v5110, %v5366
        %v5441 = vadd.f32 %v5111, %v5371
        %v5442 = vadd.f32 %v5112, %v5374
        %v5443 = vadd.f32 %v5113, %v5379
        %v5444 = vadd.f32 %v5114, %v5382
        %v5445 = vadd.f32 %v5115, %v5387
        %v5446 = vadd.f32 %v5116, %v5390
        %v5447 = vadd.f32 %v5117, %v5395
        %v5448 = vadd.f32 %v5118, %v5398
        %v5449 = vadd.f32 %v5119, %v5403
        %v5450 = vadd.f32 %v5120, %v5406
        %v5451 = vadd.f32 %v5121, %v5411
        %v5452 = vadd.f32 %v5122, %v5414
        %v5453 = vld [vmem:[#allocation2 + $0x24] sm:$0xff]
        %v5454 = vld [vmem:[#allocation2 + $0x2c] sm:$0xff]
        %v5455 = vld [vmem:[#allocation2 + $0x34] sm:$0xff]
        %v5456 = vld [vmem:[#allocation2 + $0x3c] sm:$0xff]
        %v5457 = vld [vmem:[#allocation2 + $0x44] sm:$0xff]
        %v5458 = vld [vmem:[#allocation2 + $0x4c] sm:$0xff]
        %v5459 = vld [vmem:[#allocation2 + $0x54] sm:$0xff]
        %v5460 = vld [vmem:[#allocation2 + $0x5c] sm:$0xff]
        %v5461 = vld [vmem:[#allocation2 + $0x64] sm:$0xff]
        %v5462 = vld [vmem:[#allocation2 + $0x6c] sm:$0xff]
        %v5463 = vld [vmem:[#allocation2 + $0x74] sm:$0xff]
        %v5464 = vld [vmem:[#allocation2 + $0x7c] sm:$0xff]
        %v5465 = vld [vmem:[#allocation2 + $0x84] sm:$0xff]
        %v5466 = vld [vmem:[#allocation2 + $0x8c] sm:$0xff]
        %v5467 = vld [vmem:[#allocation2 + $0x94] sm:$0xff]
        %v5468 = vld [vmem:[#allocation2 + $0x9c] sm:$0xff]
        %v5469 = vld [vmem:[#allocation2 + $0xa4] sm:$0xff]
        %v5470 = vld [vmem:[#allocation2 + $0xac] sm:$0xff]
        %v5471 = vld [vmem:[#allocation2 + $0xb4] sm:$0xff]
        %v5472 = vld [vmem:[#allocation2 + $0xbc] sm:$0xff]
        %v5473 = vld [vmem:[#allocation2 + $0xc4] sm:$0xff]
        %v5474 = vld [vmem:[#allocation2 + $0xcc] sm:$0xff]
        %v5475 = vld [vmem:[#allocation2 + $0xd4] sm:$0xff]
        %v5476 = vld [vmem:[#allocation2 + $0xdc] sm:$0xff]
        %v5477 = vld [vmem:[#allocation2 + $0xe4] sm:$0xff]
        %v5478 = vld [vmem:[#allocation2 + $0xec] sm:$0xff]
        %v5479 = vld [vmem:[#allocation2 + $0xf4] sm:$0xff]
        %v5480 = vld [vmem:[#allocation2 + $0xfc] sm:$0xff]
        %v5481 = vld [vmem:[#allocation2 + $0x104] sm:$0xff]
        %v5482 = vld [vmem:[#allocation2 + $0x10c] sm:$0xff]
        %v5483 = vld [vmem:[#allocation2 + $0x114] sm:$0xff]
        %v5484 = vld [vmem:[#allocation2 + $0x11c] sm:$0xff]
        %v5485 = vld [vmem:[#allocation2 + $0x124] sm:$0xff]
        %v5486 = vld [vmem:[#allocation2 + $0x12c] sm:$0xff]
        %v5487 = vld [vmem:[#allocation2 + $0x134] sm:$0xff]
        %v5488 = vld [vmem:[#allocation2 + $0x13c] sm:$0x3f]
        %v5489 = vpack.c.bf16 %v5454, %v5453
        %v5490 = vpack.c.bf16 %v5456, %v5455
        %v5491 = vpack.c.bf16 %v5458, %v5457
        %v5492 = vpack.c.bf16 %v5460, %v5459
        %v5493 = vpack.c.bf16 %v5462, %v5461
        %v5494 = vpack.c.bf16 %v5464, %v5463
        %v5495 = vpack.c.bf16 %v5466, %v5465
        %v5496 = vpack.c.bf16 %v5468, %v5467
        %v5497 = vpack.c.bf16 %v5470, %v5469
        %v5498 = vpack.c.bf16 %v5472, %v5471
        %v5499 = vpack.c.bf16 %v5474, %v5473
        %v5500 = vpack.c.bf16 %v5476, %v5475
        %v5501 = vpack.c.bf16 %v5478, %v5477
        %v5502 = vpack.c.bf16 %v5480, %v5479
        %v5503 = vpack.c.bf16 %v5482, %v5481
        %v5504 = vpack.c.bf16 %v5484, %v5483
        %v5505 = vpack.c.bf16 %v5486, %v5485
        %v5506 = vpack.c.bf16 %v5488, %v5487
        %s5507 = scalar_lea.vmem %s4, 48
        %v5508 = vld [vmem:[%s5507] sm:$0xf]
        %v5509 = vld [vmem:[%s5507 + $0x4] sm:$0xf]
        %v5512 = vunpack.c.l.b16 %v5508
        %v5513 = vunpack.c.l.b16 %v5509
        %v5514 = vpack.c.b16 %v5513, %v5512
        %v5517 = vsel %vm3501, %v5489, 0
        %v5520 = vsel %vm3501, %v5490, 0
        %v5523 = vsel %vm3501, %v5491, 0
        %v5526 = vsel %vm3501, %v5492, 0
        %v5529 = vsel %vm3501, %v5493, 0
        %v5532 = vsel %vm3501, %v5494, 0
        %v5535 = vsel %vm3501, %v5495, 0
        %v5538 = vsel %vm3501, %v5496, 0
        %v5541 = vsel %vm3501, %v5497, 0
        %v5544 = vsel %vm3501, %v5498, 0
        %v5547 = vsel %vm3501, %v5499, 0
        %v5550 = vsel %vm3501, %v5500, 0
        %v5553 = vsel %vm3501, %v5501, 0
        %v5556 = vsel %vm3501, %v5502, 0
        %v5559 = vsel %vm3501, %v5503, 0
        %v5562 = vsel %vm3501, %v5504, 0
        %v5565 = vsel %vm3501, %v5505, 0
        %v5568 = vsel %vm3501, %v5506, 0
        %5570 = vmatprep.subr.bf16.mxu0 0
        %5571 = vmatpush1.bf16.msra.mxu0 %v5514
        %5572 = vmatprep.subr.bf16.mxu0 0
        %5573 = vmatpush1.bf16.msra.mxu0 0
        %5574 = vmatprep.subr.bf16.mxu0 0
        %5575 = vmatpush1.bf16.msra.mxu0 0
        %5576 = vmatprep.subr.bf16.mxu0 0
        %5577 = vmatpush1.bf16.msra.mxu0 0
        %5578 = vmatprep.subr.bf16.mxu0 0
        %5579 = vmatpush1.bf16.msra.mxu0 0
        %5580 = vmatprep.subr.bf16.mxu0 0
        %5581 = vmatpush1.bf16.msra.mxu0 0
        %5582 = vmatprep.subr.bf16.mxu0 0
        %5583 = vmatpush1.bf16.msra.mxu0 0
        %5584 = vmatprep.subr.bf16.mxu0 0
        %5585 = vmatpush1.bf16.msra.mxu0 0
        %5586 = vmatprep.subr.bf16.mxu0 0
        %5587 = vmatpush1.bf16.msra.mxu0 0
        %5588 = vmatprep.subr.bf16.mxu0 0
        %5589 = vmatpush1.bf16.msra.mxu0 0
        %5590 = vmatprep.subr.bf16.mxu0 0
        %5591 = vmatpush1.bf16.msra.mxu0 0
        %5592 = vmatprep.subr.bf16.mxu0 0
        %5593 = vmatpush1.bf16.msra.mxu0 0
        %5594 = vmatprep.subr.bf16.mxu0 0
        %5595 = vmatpush1.bf16.msra.mxu0 0
        %5596 = vmatprep.subr.bf16.mxu0 0
        %5597 = vmatpush1.bf16.msra.mxu0 0
        %5598 = vmatprep.subr.bf16.mxu0 0
        %5599 = vmatpush1.bf16.msra.mxu0 0
        %5600 = vmatprep.subr.bf16.mxu0 0
        %5601 = vmatpush1.bf16.msra.mxu0 0
        %5602 = vmatprep.mubr.bf16.mxu0 0
        %5603 = vmatmul.mubr.bf16.gmra.mrb[0].mxu0 %v5517
        %v5604 = vpop.f32.mrb[0].mxu0
        %v5605 = vadd.f32 0.0, %v5604
        %v5606 = vpop.f32.mrb[0].mxu0
        %v5607 = vpop.f32.mrb[0].mxu0
        %v5608 = vadd.f32 0.0, %v5607
        %v5609 = vpop.f32.mrb[0].mxu0
        %5610 = vmatprep.mubr.bf16.mxu0 0
        %5611 = vmatmul.mubr.bf16.gmra.mrb[0].mxu0 %v5520
        %v5612 = vpop.f32.mrb[0].mxu0
        %v5613 = vadd.f32 0.0, %v5612
        %v5614 = vpop.f32.mrb[0].mxu0
        %v5615 = vpop.f32.mrb[0].mxu0
        %v5616 = vadd.f32 0.0, %v5615
        %v5617 = vpop.f32.mrb[0].mxu0
        %5618 = vmatprep.mubr.bf16.mxu0 0
        %5619 = vmatmul.mubr.bf16.gmra.mrb[0].mxu0 %v5523
        %v5620 = vpop.f32.mrb[0].mxu0
        %v5621 = vadd.f32 0.0, %v5620
        %v5622 = vpop.f32.mrb[0].mxu0
        %v5623 = vpop.f32.mrb[0].mxu0
        %v5624 = vadd.f32 0.0, %v5623
        %v5625 = vpop.f32.mrb[0].mxu0
        %5626 = vmatprep.mubr.bf16.mxu0 0
        %5627 = vmatmul.mubr.bf16.gmra.mrb[0].mxu0 %v5526
        %v5628 = vpop.f32.mrb[0].mxu0
        %v5629 = vadd.f32 0.0, %v5628
        %v5630 = vpop.f32.mrb[0].mxu0
        %v5631 = vpop.f32.mrb[0].mxu0
        %v5632 = vadd.f32 0.0, %v5631
        %v5633 = vpop.f32.mrb[0].mxu0
        %5634 = vmatprep.mubr.bf16.mxu0 0
        %5635 = vmatmul.mubr.bf16.gmra.mrb[0].mxu0 %v5529
        %v5636 = vpop.f32.mrb[0].mxu0
        %v5637 = vadd.f32 0.0, %v5636
        %v5638 = vpop.f32.mrb[0].mxu0
        %v5639 = vpop.f32.mrb[0].mxu0
        %v5640 = vadd.f32 0.0, %v5639
        %v5641 = vpop.f32.mrb[0].mxu0
        %5642 = vmatprep.mubr.bf16.mxu0 0
        %5643 = vmatmul.mubr.bf16.gmra.mrb[0].mxu0 %v5532
        %v5644 = vpop.f32.mrb[0].mxu0
        %v5645 = vadd.f32 0.0, %v5644
        %v5646 = vpop.f32.mrb[0].mxu0
        %v5647 = vpop.f32.mrb[0].mxu0
        %v5648 = vadd.f32 0.0, %v5647
        %v5649 = vpop.f32.mrb[0].mxu0
        %5650 = vmatprep.mubr.bf16.mxu0 0
        %5651 = vmatmul.mubr.bf16.gmra.mrb[0].mxu0 %v5535
        %v5652 = vpop.f32.mrb[0].mxu0
        %v5653 = vadd.f32 0.0, %v5652
        %v5654 = vpop.f32.mrb[0].mxu0
        %v5655 = vpop.f32.mrb[0].mxu0
        %v5656 = vadd.f32 0.0, %v5655
        %v5657 = vpop.f32.mrb[0].mxu0
        %5658 = vmatprep.mubr.bf16.mxu0 0
        %5659 = vmatmul.mubr.bf16.gmra.mrb[0].mxu0 %v5538
        %v5660 = vpop.f32.mrb[0].mxu0
        %v5661 = vadd.f32 0.0, %v5660
        %v5662 = vpop.f32.mrb[0].mxu0
        %v5663 = vpop.f32.mrb[0].mxu0
        %v5664 = vadd.f32 0.0, %v5663
        %v5665 = vpop.f32.mrb[0].mxu0
        %5666 = vmatprep.mubr.bf16.mxu0 0
        %5667 = vmatmul.mubr.bf16.gmra.mrb[0].mxu0 %v5541
        %v5668 = vpop.f32.mrb[0].mxu0
        %v5669 = vadd.f32 0.0, %v5668
        %v5670 = vpop.f32.mrb[0].mxu0
        %v5671 = vpop.f32.mrb[0].mxu0
        %v5672 = vadd.f32 0.0, %v5671
        %v5673 = vpop.f32.mrb[0].mxu0
        %5674 = vmatprep.mubr.bf16.mxu0 0
        %5675 = vmatmul.mubr.bf16.gmra.mrb[0].mxu0 %v5544
        %v5676 = vpop.f32.mrb[0].mxu0
        %v5677 = vadd.f32 0.0, %v5676
        %v5678 = vpop.f32.mrb[0].mxu0
        %v5679 = vpop.f32.mrb[0].mxu0
        %v5680 = vadd.f32 0.0, %v5679
        %v5681 = vpop.f32.mrb[0].mxu0
        %5682 = vmatprep.mubr.bf16.mxu0 0
        %5683 = vmatmul.mubr.bf16.gmra.mrb[0].mxu0 %v5547
        %v5684 = vpop.f32.mrb[0].mxu0
        %v5685 = vadd.f32 0.0, %v5684
        %v5686 = vpop.f32.mrb[0].mxu0
        %v5687 = vpop.f32.mrb[0].mxu0
        %v5688 = vadd.f32 0.0, %v5687
        %v5689 = vpop.f32.mrb[0].mxu0
        %5690 = vmatprep.mubr.bf16.mxu0 0
        %5691 = vmatmul.mubr.bf16.gmra.mrb[0].mxu0 %v5550
        %v5692 = vpop.f32.mrb[0].mxu0
        %v5693 = vadd.f32 0.0, %v5692
        %v5694 = vpop.f32.mrb[0].mxu0
        %v5695 = vpop.f32.mrb[0].mxu0
        %v5696 = vadd.f32 0.0, %v5695
        %v5697 = vpop.f32.mrb[0].mxu0
        %5698 = vmatprep.mubr.bf16.mxu0 0
        %5699 = vmatmul.mubr.bf16.gmra.mrb[0].mxu0 %v5553
        %v5700 = vpop.f32.mrb[0].mxu0
        %v5701 = vadd.f32 0.0, %v5700
        %v5702 = vpop.f32.mrb[0].mxu0
        %v5703 = vpop.f32.mrb[0].mxu0
        %v5704 = vadd.f32 0.0, %v5703
        %v5705 = vpop.f32.mrb[0].mxu0
        %5706 = vmatprep.mubr.bf16.mxu0 0
        %5707 = vmatmul.mubr.bf16.gmra.mrb[0].mxu0 %v5556
        %v5708 = vpop.f32.mrb[0].mxu0
        %v5709 = vadd.f32 0.0, %v5708
        %v5710 = vpop.f32.mrb[0].mxu0
        %v5711 = vpop.f32.mrb[0].mxu0
        %v5712 = vadd.f32 0.0, %v5711
        %v5713 = vpop.f32.mrb[0].mxu0
        %5714 = vmatprep.mubr.bf16.mxu0 0
        %5715 = vmatmul.mubr.bf16.gmra.mrb[0].mxu0 %v5559
        %v5716 = vpop.f32.mrb[0].mxu0
        %v5717 = vadd.f32 0.0, %v5716
        %v5718 = vpop.f32.mrb[0].mxu0
        %v5719 = vpop.f32.mrb[0].mxu0
        %v5720 = vadd.f32 0.0, %v5719
        %v5721 = vpop.f32.mrb[0].mxu0
        %5722 = vmatprep.mubr.bf16.mxu0 0
        %5723 = vmatmul.mubr.bf16.gmra.mrb[0].mxu0 %v5562
        %v5724 = vpop.f32.mrb[0].mxu0
        %v5725 = vadd.f32 0.0, %v5724
        %v5726 = vpop.f32.mrb[0].mxu0
        %v5727 = vpop.f32.mrb[0].mxu0
        %v5728 = vadd.f32 0.0, %v5727
        %v5729 = vpop.f32.mrb[0].mxu0
        %5730 = vmatprep.mubr.bf16.mxu0 0
        %5731 = vmatmul.mubr.bf16.gmra.mrb[0].mxu0 %v5565
        %v5732 = vpop.f32.mrb[0].mxu0
        %v5733 = vadd.f32 0.0, %v5732
        %v5734 = vpop.f32.mrb[0].mxu0
        %v5735 = vpop.f32.mrb[0].mxu0
        %v5736 = vadd.f32 0.0, %v5735
        %v5737 = vpop.f32.mrb[0].mxu0
        %5738 = vmatprep.mubr.bf16.mxu0 0
        %5739 = vmatmul.mubr.bf16.gmra.mrb[0].mxu0 %v5568
        %v5740 = vpop.f32.mrb[0].mxu0
        %v5741 = vadd.f32 0.0, %v5740
        %v5742 = vpop.f32.mrb[0].mxu0
        %v5743 = vpop.f32.mrb[0].mxu0
        %v5744 = vadd.f32 0.0, %v5743
        %v5745 = vpop.f32.mrb[0].mxu0
        %5746 = vdwg.mxu0
        %v5747 = vadd.f32 %v5417, %v5605
        %v5748 = vadd.f32 %v5418, %v5608
        %v5749 = vadd.f32 %v5419, %v5613
        %v5750 = vadd.f32 %v5420, %v5616
        %v5751 = vadd.f32 %v5421, %v5621
        %v5752 = vadd.f32 %v5422, %v5624
        %v5753 = vadd.f32 %v5423, %v5629
        %v5754 = vadd.f32 %v5424, %v5632
        %v5755 = vadd.f32 %v5425, %v5637
        %v5756 = vadd.f32 %v5426, %v5640
        %v5757 = vadd.f32 %v5427, %v5645
        %v5758 = vadd.f32 %v5428, %v5648
        %v5759 = vadd.f32 %v5429, %v5653
        %v5760 = vadd.f32 %v5430, %v5656
        %v5761 = vadd.f32 %v5431, %v5661
        %v5762 = vadd.f32 %v5432, %v5664
        %v5763 = vadd.f32 %v5433, %v5669
        %v5764 = vadd.f32 %v5434, %v5672
        %v5765 = vadd.f32 %v5435, %v5677
        %v5766 = vadd.f32 %v5436, %v5680
        %v5767 = vadd.f32 %v5437, %v5685
        %v5768 = vadd.f32 %v5438, %v5688
        %v5769 = vadd.f32 %v5439, %v5693
        %v5770 = vadd.f32 %v5440, %v5696
        %v5771 = vadd.f32 %v5441, %v5701
        %v5772 = vadd.f32 %v5442, %v5704
        %v5773 = vadd.f32 %v5443, %v5709
        %v5774 = vadd.f32 %v5444, %v5712
        %v5775 = vadd.f32 %v5445, %v5717
        %v5776 = vadd.f32 %v5446, %v5720
        %v5777 = vadd.f32 %v5447, %v5725
        %v5778 = vadd.f32 %v5448, %v5728
        %v5779 = vadd.f32 %v5449, %v5733
        %v5780 = vadd.f32 %v5450, %v5736
        %v5781 = vadd.f32 %v5451, %v5741
        %v5782 = vadd.f32 %v5452, %v5744
        %v5783 = vld [vmem:[#allocation2 + $0x25] sm:$0xff]
        %v5784 = vld [vmem:[#allocation2 + $0x2d] sm:$0xff]
        %v5785 = vld [vmem:[#allocation2 + $0x35] sm:$0xff]
        %v5786 = vld [vmem:[#allocation2 + $0x3d] sm:$0xff]
        %v5787 = vld [vmem:[#allocation2 + $0x45] sm:$0xff]
        %v5788 = vld [vmem:[#allocation2 + $0x4d] sm:$0xff]
        %v5789 = vld [vmem:[#allocation2 + $0x55] sm:$0xff]
        %v5790 = vld [vmem:[#allocation2 + $0x5d] sm:$0xff]
        %v5791 = vld [vmem:[#allocation2 + $0x65] sm:$0xff]
        %v5792 = vld [vmem:[#allocation2 + $0x6d] sm:$0xff]
        %v5793 = vld [vmem:[#allocation2 + $0x75] sm:$0xff]
        %v5794 = vld [vmem:[#allocation2 + $0x7d] sm:$0xff]
        %v5795 = vld [vmem:[#allocation2 + $0x85] sm:$0xff]
        %v5796 = vld [vmem:[#allocation2 + $0x8d] sm:$0xff]
        %v5797 = vld [vmem:[#allocation2 + $0x95] sm:$0xff]
        %v5798 = vld [vmem:[#allocation2 + $0x9d] sm:$0xff]
        %v5799 = vld [vmem:[#allocation2 + $0xa5] sm:$0xff]
        %v5800 = vld [vmem:[#allocation2 + $0xad] sm:$0xff]
        %v5801 = vld [vmem:[#allocation2 + $0xb5] sm:$0xff]
        %v5802 = vld [vmem:[#allocation2 + $0xbd] sm:$0xff]
        %v5803 = vld [vmem:[#allocation2 + $0xc5] sm:$0xff]
        %v5804 = vld [vmem:[#allocation2 + $0xcd] sm:$0xff]
        %v5805 = vld [vmem:[#allocation2 + $0xd5] sm:$0xff]
        %v5806 = vld [vmem:[#allocation2 + $0xdd] sm:$0xff]
        %v5807 = vld [vmem:[#allocation2 + $0xe5] sm:$0xff]
        %v5808 = vld [vmem:[#allocation2 + $0xed] sm:$0xff]
        %v5809 = vld [vmem:[#allocation2 + $0xf5] sm:$0xff]
        %v5810 = vld [vmem:[#allocation2 + $0xfd] sm:$0xff]
        %v5811 = vld [vmem:[#allocation2 + $0x105] sm:$0xff]
        %v5812 = vld [vmem:[#allocation2 + $0x10d] sm:$0xff]
        %v5813 = vld [vmem:[#allocation2 + $0x115] sm:$0xff]
        %v5814 = vld [vmem:[#allocation2 + $0x11d] sm:$0xff]
        %v5815 = vld [vmem:[#allocation2 + $0x125] sm:$0xff]
        %v5816 = vld [vmem:[#allocation2 + $0x12d] sm:$0xff]
        %v5817 = vld [vmem:[#allocation2 + $0x135] sm:$0xff]
        %v5818 = vld [vmem:[#allocation2 + $0x13d] sm:$0x3f]
        %v5819 = vpack.c.bf16 %v5784, %v5783
        %v5820 = vpack.c.bf16 %v5786, %v5785
        %v5821 = vpack.c.bf16 %v5788, %v5787
        %v5822 = vpack.c.bf16 %v5790, %v5789
        %v5823 = vpack.c.bf16 %v5792, %v5791
        %v5824 = vpack.c.bf16 %v5794, %v5793
        %v5825 = vpack.c.bf16 %v5796, %v5795
        %v5826 = vpack.c.bf16 %v5798, %v5797
        %v5827 = vpack.c.bf16 %v5800, %v5799
        %v5828 = vpack.c.bf16 %v5802, %v5801
        %v5829 = vpack.c.bf16 %v5804, %v5803
        %v5830 = vpack.c.bf16 %v5806, %v5805
        %v5831 = vpack.c.bf16 %v5808, %v5807
        %v5832 = vpack.c.bf16 %v5810, %v5809
        %v5833 = vpack.c.bf16 %v5812, %v5811
        %v5834 = vpack.c.bf16 %v5814, %v5813
        %v5835 = vpack.c.bf16 %v5816, %v5815
        %v5836 = vpack.c.bf16 %v5818, %v5817
        %s5837 = scalar_lea.vmem %s4, 56
        %v5838 = vld [vmem:[%s5837] sm:$0xf]
        %v5839 = vld [vmem:[%s5837 + $0x4] sm:$0xf]
        %v5842 = vunpack.c.l.b16 %v5838
        %v5843 = vunpack.c.l.b16 %v5839
        %v5844 = vpack.c.b16 %v5843, %v5842
        %v5847 = vsel %vm3501, %v5819, 0
        %v5850 = vsel %vm3501, %v5820, 0
        %v5853 = vsel %vm3501, %v5821, 0
        %v5856 = vsel %vm3501, %v5822, 0
        %v5859 = vsel %vm3501, %v5823, 0
        %v5862 = vsel %vm3501, %v5824, 0
        %v5865 = vsel %vm3501, %v5825, 0
        %v5868 = vsel %vm3501, %v5826, 0
        %v5871 = vsel %vm3501, %v5827, 0
        %v5874 = vsel %vm3501, %v5828, 0
        %v5877 = vsel %vm3501, %v5829, 0
        %v5880 = vsel %vm3501, %v5830, 0
        %v5883 = vsel %vm3501, %v5831, 0
        %v5886 = vsel %vm3501, %v5832, 0
        %v5889 = vsel %vm3501, %v5833, 0
        %v5892 = vsel %vm3501, %v5834, 0
        %v5895 = vsel %vm3501, %v5835, 0
        %v5898 = vsel %vm3501, %v5836, 0
        %5900 = vmatprep.subr.bf16.mxu0 0
        %5901 = vmatpush1.bf16.msra.mxu0 %v5844
        %5902 = vmatprep.subr.bf16.mxu0 0
        %5903 = vmatpush1.bf16.msra.mxu0 0
        %5904 = vmatprep.subr.bf16.mxu0 0
        %5905 = vmatpush1.bf16.msra.mxu0 0
        %5906 = vmatprep.subr.bf16.mxu0 0
        %5907 = vmatpush1.bf16.msra.mxu0 0
        %5908 = vmatprep.subr.bf16.mxu0 0
        %5909 = vmatpush1.bf16.msra.mxu0 0
        %5910 = vmatprep.subr.bf16.mxu0 0
        %5911 = vmatpush1.bf16.msra.mxu0 0
        %5912 = vmatprep.subr.bf16.mxu0 0
        %5913 = vmatpush1.bf16.msra.mxu0 0
        %5914 = vmatprep.subr.bf16.mxu0 0
        %5915 = vmatpush1.bf16.msra.mxu0 0
        %5916 = vmatprep.subr.bf16.mxu0 0
        %5917 = vmatpush1.bf16.msra.mxu0 0
        %5918 = vmatprep.subr.bf16.mxu0 0
        %5919 = vmatpush1.bf16.msra.mxu0 0
        %5920 = vmatprep.subr.bf16.mxu0 0
        %5921 = vmatpush1.bf16.msra.mxu0 0
        %5922 = vmatprep.subr.bf16.mxu0 0
        %5923 = vmatpush1.bf16.msra.mxu0 0
        %5924 = vmatprep.subr.bf16.mxu0 0
        %5925 = vmatpush1.bf16.msra.mxu0 0
        %5926 = vmatprep.subr.bf16.mxu0 0
        %5927 = vmatpush1.bf16.msra.mxu0 0
        %5928 = vmatprep.subr.bf16.mxu0 0
        %5929 = vmatpush1.bf16.msra.mxu0 0
        %5930 = vmatprep.subr.bf16.mxu0 0
        %5931 = vmatpush1.bf16.msra.mxu0 0
        %5932 = vmatprep.mubr.bf16.mxu0 0
        %5933 = vmatmul.mubr.bf16.gmra.mrb[0].mxu0 %v5847
        %v5934 = vpop.f32.mrb[0].mxu0
        %v5935 = vadd.f32 0.0, %v5934
        %v5936 = vpop.f32.mrb[0].mxu0
        %v5937 = vpop.f32.mrb[0].mxu0
        %v5938 = vadd.f32 0.0, %v5937
        %v5939 = vpop.f32.mrb[0].mxu0
        %5940 = vmatprep.mubr.bf16.mxu0 0
        %5941 = vmatmul.mubr.bf16.gmra.mrb[0].mxu0 %v5850
        %v5942 = vpop.f32.mrb[0].mxu0
        %v5943 = vadd.f32 0.0, %v5942
        %v5944 = vpop.f32.mrb[0].mxu0
        %v5945 = vpop.f32.mrb[0].mxu0
        %v5946 = vadd.f32 0.0, %v5945
        %v5947 = vpop.f32.mrb[0].mxu0
        %5948 = vmatprep.mubr.bf16.mxu0 0
        %5949 = vmatmul.mubr.bf16.gmra.mrb[0].mxu0 %v5853
        %v5950 = vpop.f32.mrb[0].mxu0
        %v5951 = vadd.f32 0.0, %v5950
        %v5952 = vpop.f32.mrb[0].mxu0
        %v5953 = vpop.f32.mrb[0].mxu0
        %v5954 = vadd.f32 0.0, %v5953
        %v5955 = vpop.f32.mrb[0].mxu0
        %5956 = vmatprep.mubr.bf16.mxu0 0
        %5957 = vmatmul.mubr.bf16.gmra.mrb[0].mxu0 %v5856
        %v5958 = vpop.f32.mrb[0].mxu0
        %v5959 = vadd.f32 0.0, %v5958
        %v5960 = vpop.f32.mrb[0].mxu0
        %v5961 = vpop.f32.mrb[0].mxu0
        %v5962 = vadd.f32 0.0, %v5961
        %v5963 = vpop.f32.mrb[0].mxu0
        %5964 = vmatprep.mubr.bf16.mxu0 0
        %5965 = vmatmul.mubr.bf16.gmra.mrb[0].mxu0 %v5859
        %v5966 = vpop.f32.mrb[0].mxu0
        %v5967 = vadd.f32 0.0, %v5966
        %v5968 = vpop.f32.mrb[0].mxu0
        %v5969 = vpop.f32.mrb[0].mxu0
        %v5970 = vadd.f32 0.0, %v5969
        %v5971 = vpop.f32.mrb[0].mxu0
        %5972 = vmatprep.mubr.bf16.mxu0 0
        %5973 = vmatmul.mubr.bf16.gmra.mrb[0].mxu0 %v5862
        %v5974 = vpop.f32.mrb[0].mxu0
        %v5975 = vadd.f32 0.0, %v5974
        %v5976 = vpop.f32.mrb[0].mxu0
        %v5977 = vpop.f32.mrb[0].mxu0
        %v5978 = vadd.f32 0.0, %v5977
        %v5979 = vpop.f32.mrb[0].mxu0
        %5980 = vmatprep.mubr.bf16.mxu0 0
        %5981 = vmatmul.mubr.bf16.gmra.mrb[0].mxu0 %v5865
        %v5982 = vpop.f32.mrb[0].mxu0
        %v5983 = vadd.f32 0.0, %v5982
        %v5984 = vpop.f32.mrb[0].mxu0
        %v5985 = vpop.f32.mrb[0].mxu0
        %v5986 = vadd.f32 0.0, %v5985
        %v5987 = vpop.f32.mrb[0].mxu0
        %5988 = vmatprep.mubr.bf16.mxu0 0
        %5989 = vmatmul.mubr.bf16.gmra.mrb[0].mxu0 %v5868
        %v5990 = vpop.f32.mrb[0].mxu0
        %v5991 = vadd.f32 0.0, %v5990
        %v5992 = vpop.f32.mrb[0].mxu0
        %v5993 = vpop.f32.mrb[0].mxu0
        %v5994 = vadd.f32 0.0, %v5993
        %v5995 = vpop.f32.mrb[0].mxu0
        %5996 = vmatprep.mubr.bf16.mxu0 0
        %5997 = vmatmul.mubr.bf16.gmra.mrb[0].mxu0 %v5871
        %v5998 = vpop.f32.mrb[0].mxu0
        %v5999 = vadd.f32 0.0, %v5998
        %v6000 = vpop.f32.mrb[0].mxu0
        %v6001 = vpop.f32.mrb[0].mxu0
        %v6002 = vadd.f32 0.0, %v6001
        %v6003 = vpop.f32.mrb[0].mxu0
        %6004 = vmatprep.mubr.bf16.mxu0 0
        %6005 = vmatmul.mubr.bf16.gmra.mrb[0].mxu0 %v5874
        %v6006 = vpop.f32.mrb[0].mxu0
        %v6007 = vadd.f32 0.0, %v6006
        %v6008 = vpop.f32.mrb[0].mxu0
        %v6009 = vpop.f32.mrb[0].mxu0
        %v6010 = vadd.f32 0.0, %v6009
        %v6011 = vpop.f32.mrb[0].mxu0
        %6012 = vmatprep.mubr.bf16.mxu0 0
        %6013 = vmatmul.mubr.bf16.gmra.mrb[0].mxu0 %v5877
        %v6014 = vpop.f32.mrb[0].mxu0
        %v6015 = vadd.f32 0.0, %v6014
        %v6016 = vpop.f32.mrb[0].mxu0
        %v6017 = vpop.f32.mrb[0].mxu0
        %v6018 = vadd.f32 0.0, %v6017
        %v6019 = vpop.f32.mrb[0].mxu0
        %6020 = vmatprep.mubr.bf16.mxu0 0
        %6021 = vmatmul.mubr.bf16.gmra.mrb[0].mxu0 %v5880
        %v6022 = vpop.f32.mrb[0].mxu0
        %v6023 = vadd.f32 0.0, %v6022
        %v6024 = vpop.f32.mrb[0].mxu0
        %v6025 = vpop.f32.mrb[0].mxu0
        %v6026 = vadd.f32 0.0, %v6025
        %v6027 = vpop.f32.mrb[0].mxu0
        %6028 = vmatprep.mubr.bf16.mxu0 0
        %6029 = vmatmul.mubr.bf16.gmra.mrb[0].mxu0 %v5883
        %v6030 = vpop.f32.mrb[0].mxu0
        %v6031 = vadd.f32 0.0, %v6030
        %v6032 = vpop.f32.mrb[0].mxu0
        %v6033 = vpop.f32.mrb[0].mxu0
        %v6034 = vadd.f32 0.0, %v6033
        %v6035 = vpop.f32.mrb[0].mxu0
        %6036 = vmatprep.mubr.bf16.mxu0 0
        %6037 = vmatmul.mubr.bf16.gmra.mrb[0].mxu0 %v5886
        %v6038 = vpop.f32.mrb[0].mxu0
        %v6039 = vadd.f32 0.0, %v6038
        %v6040 = vpop.f32.mrb[0].mxu0
        %v6041 = vpop.f32.mrb[0].mxu0
        %v6042 = vadd.f32 0.0, %v6041
        %v6043 = vpop.f32.mrb[0].mxu0
        %6044 = vmatprep.mubr.bf16.mxu0 0
        %6045 = vmatmul.mubr.bf16.gmra.mrb[0].mxu0 %v5889
        %v6046 = vpop.f32.mrb[0].mxu0
        %v6047 = vadd.f32 0.0, %v6046
        %v6048 = vpop.f32.mrb[0].mxu0
        %v6049 = vpop.f32.mrb[0].mxu0
        %v6050 = vadd.f32 0.0, %v6049
        %v6051 = vpop.f32.mrb[0].mxu0
        %6052 = vmatprep.mubr.bf16.mxu0 0
        %6053 = vmatmul.mubr.bf16.gmra.mrb[0].mxu0 %v5892
        %v6054 = vpop.f32.mrb[0].mxu0
        %v6055 = vadd.f32 0.0, %v6054
        %v6056 = vpop.f32.mrb[0].mxu0
        %v6057 = vpop.f32.mrb[0].mxu0
        %v6058 = vadd.f32 0.0, %v6057
        %v6059 = vpop.f32.mrb[0].mxu0
        %6060 = vmatprep.mubr.bf16.mxu0 0
        %6061 = vmatmul.mubr.bf16.gmra.mrb[0].mxu0 %v5895
        %v6062 = vpop.f32.mrb[0].mxu0
        %v6063 = vadd.f32 0.0, %v6062
        %v6064 = vpop.f32.mrb[0].mxu0
        %v6065 = vpop.f32.mrb[0].mxu0
        %v6066 = vadd.f32 0.0, %v6065
        %v6067 = vpop.f32.mrb[0].mxu0
        %6068 = vmatprep.mubr.bf16.mxu0 0
        %6069 = vmatmul.mubr.bf16.gmra.mrb[0].mxu0 %v5898
        %v6070 = vpop.f32.mrb[0].mxu0
        %v6071 = vadd.f32 0.0, %v6070
        %v6072 = vpop.f32.mrb[0].mxu0
        %v6073 = vpop.f32.mrb[0].mxu0
        %v6074 = vadd.f32 0.0, %v6073
        %v6075 = vpop.f32.mrb[0].mxu0
        %6076 = vdwg.mxu0
        %v6077 = vadd.f32 %v5747, %v5935
        %v6078 = vadd.f32 %v5748, %v5938
        %v6079 = vadd.f32 %v5749, %v5943
        %v6080 = vadd.f32 %v5750, %v5946
        %v6081 = vadd.f32 %v5751, %v5951
        %v6082 = vadd.f32 %v5752, %v5954
        %v6083 = vadd.f32 %v5753, %v5959
        %v6084 = vadd.f32 %v5754, %v5962
        %v6085 = vadd.f32 %v5755, %v5967
        %v6086 = vadd.f32 %v5756, %v5970
        %v6087 = vadd.f32 %v5757, %v5975
        %v6088 = vadd.f32 %v5758, %v5978
        %v6089 = vadd.f32 %v5759, %v5983
        %v6090 = vadd.f32 %v5760, %v5986
        %v6091 = vadd.f32 %v5761, %v5991
        %v6092 = vadd.f32 %v5762, %v5994
        %v6093 = vadd.f32 %v5763, %v5999
        %v6094 = vadd.f32 %v5764, %v6002
        %v6095 = vadd.f32 %v5765, %v6007
        %v6096 = vadd.f32 %v5766, %v6010
        %v6097 = vadd.f32 %v5767, %v6015
        %v6098 = vadd.f32 %v5768, %v6018
        %v6099 = vadd.f32 %v5769, %v6023
        %v6100 = vadd.f32 %v5770, %v6026
        %v6101 = vadd.f32 %v5771, %v6031
        %v6102 = vadd.f32 %v5772, %v6034
        %v6103 = vadd.f32 %v5773, %v6039
        %v6104 = vadd.f32 %v5774, %v6042
        %v6105 = vadd.f32 %v5775, %v6047
        %v6106 = vadd.f32 %v5776, %v6050
        %v6107 = vadd.f32 %v5777, %v6055
        %v6108 = vadd.f32 %v5778, %v6058
        %v6109 = vadd.f32 %v5779, %v6063
        %v6110 = vadd.f32 %v5780, %v6066
        %v6111 = vadd.f32 %v5781, %v6071
        %v6112 = vadd.f32 %v5782, %v6074
        %v6113 = vld [vmem:[#allocation2 + $0x26] sm:$0xff]
        %v6114 = vld [vmem:[#allocation2 + $0x2e] sm:$0xff]
        %v6115 = vld [vmem:[#allocation2 + $0x36] sm:$0xff]
        %v6116 = vld [vmem:[#allocation2 + $0x3e] sm:$0xff]
        %v6117 = vld [vmem:[#allocation2 + $0x46] sm:$0xff]
        %v6118 = vld [vmem:[#allocation2 + $0x4e] sm:$0xff]
        %v6119 = vld [vmem:[#allocation2 + $0x56] sm:$0xff]
        %v6120 = vld [vmem:[#allocation2 + $0x5e] sm:$0xff]
        %v6121 = vld [vmem:[#allocation2 + $0x66] sm:$0xff]
        %v6122 = vld [vmem:[#allocation2 + $0x6e] sm:$0xff]
        %v6123 = vld [vmem:[#allocation2 + $0x76] sm:$0xff]
        %v6124 = vld [vmem:[#allocation2 + $0x7e] sm:$0xff]
        %v6125 = vld [vmem:[#allocation2 + $0x86] sm:$0xff]
        %v6126 = vld [vmem:[#allocation2 + $0x8e] sm:$0xff]
        %v6127 = vld [vmem:[#allocation2 + $0x96] sm:$0xff]
        %v6128 = vld [vmem:[#allocation2 + $0x9e] sm:$0xff]
        %v6129 = vld [vmem:[#allocation2 + $0xa6] sm:$0xff]
        %v6130 = vld [vmem:[#allocation2 + $0xae] sm:$0xff]
        %v6131 = vld [vmem:[#allocation2 + $0xb6] sm:$0xff]
        %v6132 = vld [vmem:[#allocation2 + $0xbe] sm:$0xff]
        %v6133 = vld [vmem:[#allocation2 + $0xc6] sm:$0xff]
        %v6134 = vld [vmem:[#allocation2 + $0xce] sm:$0xff]
        %v6135 = vld [vmem:[#allocation2 + $0xd6] sm:$0xff]
        %v6136 = vld [vmem:[#allocation2 + $0xde] sm:$0xff]
        %v6137 = vld [vmem:[#allocation2 + $0xe6] sm:$0xff]
        %v6138 = vld [vmem:[#allocation2 + $0xee] sm:$0xff]
        %v6139 = vld [vmem:[#allocation2 + $0xf6] sm:$0xff]
        %v6140 = vld [vmem:[#allocation2 + $0xfe] sm:$0xff]
        %v6141 = vld [vmem:[#allocation2 + $0x106] sm:$0xff]
        %v6142 = vld [vmem:[#allocation2 + $0x10e] sm:$0xff]
        %v6143 = vld [vmem:[#allocation2 + $0x116] sm:$0xff]
        %v6144 = vld [vmem:[#allocation2 + $0x11e] sm:$0xff]
        %v6145 = vld [vmem:[#allocation2 + $0x126] sm:$0xff]
        %v6146 = vld [vmem:[#allocation2 + $0x12e] sm:$0xff]
        %v6147 = vld [vmem:[#allocation2 + $0x136] sm:$0xff]
        %v6148 = vld [vmem:[#allocation2 + $0x13e] sm:$0x3f]
        %v6149 = vpack.c.bf16 %v6114, %v6113
        %v6150 = vpack.c.bf16 %v6116, %v6115
        %v6151 = vpack.c.bf16 %v6118, %v6117
        %v6152 = vpack.c.bf16 %v6120, %v6119
        %v6153 = vpack.c.bf16 %v6122, %v6121
        %v6154 = vpack.c.bf16 %v6124, %v6123
        %v6155 = vpack.c.bf16 %v6126, %v6125
        %v6156 = vpack.c.bf16 %v6128, %v6127
        %v6157 = vpack.c.bf16 %v6130, %v6129
        %v6158 = vpack.c.bf16 %v6132, %v6131
        %v6159 = vpack.c.bf16 %v6134, %v6133
        %v6160 = vpack.c.bf16 %v6136, %v6135
        %v6161 = vpack.c.bf16 %v6138, %v6137
        %v6162 = vpack.c.bf16 %v6140, %v6139
        %v6163 = vpack.c.bf16 %v6142, %v6141
        %v6164 = vpack.c.bf16 %v6144, %v6143
        %v6165 = vpack.c.bf16 %v6146, %v6145
        %v6166 = vpack.c.bf16 %v6148, %v6147
        %s6167 = scalar_lea.vmem %s4, 64
        %v6168 = vld [vmem:[%s6167] sm:$0xf]
        %v6169 = vld [vmem:[%s6167 + $0x4] sm:$0xf]
        %v6172 = vunpack.c.l.b16 %v6168
        %v6173 = vunpack.c.l.b16 %v6169
        %v6174 = vpack.c.b16 %v6173, %v6172
        %v6177 = vsel %vm3501, %v6149, 0
        %v6180 = vsel %vm3501, %v6150, 0
        %v6183 = vsel %vm3501, %v6151, 0
        %v6186 = vsel %vm3501, %v6152, 0
        %v6189 = vsel %vm3501, %v6153, 0
        %v6192 = vsel %vm3501, %v6154, 0
        %v6195 = vsel %vm3501, %v6155, 0
        %v6198 = vsel %vm3501, %v6156, 0
        %v6201 = vsel %vm3501, %v6157, 0
        %v6204 = vsel %vm3501, %v6158, 0
        %v6207 = vsel %vm3501, %v6159, 0
        %v6210 = vsel %vm3501, %v6160, 0
        %v6213 = vsel %vm3501, %v6161, 0
        %v6216 = vsel %vm3501, %v6162, 0
        %v6219 = vsel %vm3501, %v6163, 0
        %v6222 = vsel %vm3501, %v6164, 0
        %v6225 = vsel %vm3501, %v6165, 0
        %v6228 = vsel %vm3501, %v6166, 0
        %6230 = vmatprep.subr.bf16.mxu0 0
        %6231 = vmatpush1.bf16.msra.mxu0 %v6174
        %6232 = vmatprep.subr.bf16.mxu0 0
        %6233 = vmatpush1.bf16.msra.mxu0 0
        %6234 = vmatprep.subr.bf16.mxu0 0
        %6235 = vmatpush1.bf16.msra.mxu0 0
        %6236 = vmatprep.subr.bf16.mxu0 0
        %6237 = vmatpush1.bf16.msra.mxu0 0
        %6238 = vmatprep.subr.bf16.mxu0 0
        %6239 = vmatpush1.bf16.msra.mxu0 0
        %6240 = vmatprep.subr.bf16.mxu0 0
        %6241 = vmatpush1.bf16.msra.mxu0 0
        %6242 = vmatprep.subr.bf16.mxu0 0
        %6243 = vmatpush1.bf16.msra.mxu0 0
        %6244 = vmatprep.subr.bf16.mxu0 0
        %6245 = vmatpush1.bf16.msra.mxu0 0
        %6246 = vmatprep.subr.bf16.mxu0 0
        %6247 = vmatpush1.bf16.msra.mxu0 0
        %6248 = vmatprep.subr.bf16.mxu0 0
        %6249 = vmatpush1.bf16.msra.mxu0 0
        %6250 = vmatprep.subr.bf16.mxu0 0
        %6251 = vmatpush1.bf16.msra.mxu0 0
        %6252 = vmatprep.subr.bf16.mxu0 0
        %6253 = vmatpush1.bf16.msra.mxu0 0
        %6254 = vmatprep.subr.bf16.mxu0 0
        %6255 = vmatpush1.bf16.msra.mxu0 0
        %6256 = vmatprep.subr.bf16.mxu0 0
        %6257 = vmatpush1.bf16.msra.mxu0 0
        %6258 = vmatprep.subr.bf16.mxu0 0
        %6259 = vmatpush1.bf16.msra.mxu0 0
        %6260 = vmatprep.subr.bf16.mxu0 0
        %6261 = vmatpush1.bf16.msra.mxu0 0
        %6262 = vmatprep.mubr.bf16.mxu0 0
        %6263 = vmatmul.mubr.bf16.gmra.mrb[0].mxu0 %v6177
        %v6264 = vpop.f32.mrb[0].mxu0
        %v6265 = vadd.f32 0.0, %v6264
        %v6266 = vpop.f32.mrb[0].mxu0
        %v6267 = vpop.f32.mrb[0].mxu0
        %v6268 = vadd.f32 0.0, %v6267
        %v6269 = vpop.f32.mrb[0].mxu0
        %6270 = vmatprep.mubr.bf16.mxu0 0
        %6271 = vmatmul.mubr.bf16.gmra.mrb[0].mxu0 %v6180
        %v6272 = vpop.f32.mrb[0].mxu0
        %v6273 = vadd.f32 0.0, %v6272
        %v6274 = vpop.f32.mrb[0].mxu0
        %v6275 = vpop.f32.mrb[0].mxu0
        %v6276 = vadd.f32 0.0, %v6275
        %v6277 = vpop.f32.mrb[0].mxu0
        %6278 = vmatprep.mubr.bf16.mxu0 0
        %6279 = vmatmul.mubr.bf16.gmra.mrb[0].mxu0 %v6183
        %v6280 = vpop.f32.mrb[0].mxu0
        %v6281 = vadd.f32 0.0, %v6280
        %v6282 = vpop.f32.mrb[0].mxu0
        %v6283 = vpop.f32.mrb[0].mxu0
        %v6284 = vadd.f32 0.0, %v6283
        %v6285 = vpop.f32.mrb[0].mxu0
        %6286 = vmatprep.mubr.bf16.mxu0 0
        %6287 = vmatmul.mubr.bf16.gmra.mrb[0].mxu0 %v6186
        %v6288 = vpop.f32.mrb[0].mxu0
        %v6289 = vadd.f32 0.0, %v6288
        %v6290 = vpop.f32.mrb[0].mxu0
        %v6291 = vpop.f32.mrb[0].mxu0
        %v6292 = vadd.f32 0.0, %v6291
        %v6293 = vpop.f32.mrb[0].mxu0
        %6294 = vmatprep.mubr.bf16.mxu0 0
        %6295 = vmatmul.mubr.bf16.gmra.mrb[0].mxu0 %v6189
        %v6296 = vpop.f32.mrb[0].mxu0
        %v6297 = vadd.f32 0.0, %v6296
        %v6298 = vpop.f32.mrb[0].mxu0
        %v6299 = vpop.f32.mrb[0].mxu0
        %v6300 = vadd.f32 0.0, %v6299
        %v6301 = vpop.f32.mrb[0].mxu0
        %6302 = vmatprep.mubr.bf16.mxu0 0
        %6303 = vmatmul.mubr.bf16.gmra.mrb[0].mxu0 %v6192
        %v6304 = vpop.f32.mrb[0].mxu0
        %v6305 = vadd.f32 0.0, %v6304
        %v6306 = vpop.f32.mrb[0].mxu0
        %v6307 = vpop.f32.mrb[0].mxu0
        %v6308 = vadd.f32 0.0, %v6307
        %v6309 = vpop.f32.mrb[0].mxu0
        %6310 = vmatprep.mubr.bf16.mxu0 0
        %6311 = vmatmul.mubr.bf16.gmra.mrb[0].mxu0 %v6195
        %v6312 = vpop.f32.mrb[0].mxu0
        %v6313 = vadd.f32 0.0, %v6312
        %v6314 = vpop.f32.mrb[0].mxu0
        %v6315 = vpop.f32.mrb[0].mxu0
        %v6316 = vadd.f32 0.0, %v6315
        %v6317 = vpop.f32.mrb[0].mxu0
        %6318 = vmatprep.mubr.bf16.mxu0 0
        %6319 = vmatmul.mubr.bf16.gmra.mrb[0].mxu0 %v6198
        %v6320 = vpop.f32.mrb[0].mxu0
        %v6321 = vadd.f32 0.0, %v6320
        %v6322 = vpop.f32.mrb[0].mxu0
        %v6323 = vpop.f32.mrb[0].mxu0
        %v6324 = vadd.f32 0.0, %v6323
        %v6325 = vpop.f32.mrb[0].mxu0
        %6326 = vmatprep.mubr.bf16.mxu0 0
        %6327 = vmatmul.mubr.bf16.gmra.mrb[0].mxu0 %v6201
        %v6328 = vpop.f32.mrb[0].mxu0
        %v6329 = vadd.f32 0.0, %v6328
        %v6330 = vpop.f32.mrb[0].mxu0
        %v6331 = vpop.f32.mrb[0].mxu0
        %v6332 = vadd.f32 0.0, %v6331
        %v6333 = vpop.f32.mrb[0].mxu0
        %6334 = vmatprep.mubr.bf16.mxu0 0
        %6335 = vmatmul.mubr.bf16.gmra.mrb[0].mxu0 %v6204
        %v6336 = vpop.f32.mrb[0].mxu0
        %v6337 = vadd.f32 0.0, %v6336
        %v6338 = vpop.f32.mrb[0].mxu0
        %v6339 = vpop.f32.mrb[0].mxu0
        %v6340 = vadd.f32 0.0, %v6339
        %v6341 = vpop.f32.mrb[0].mxu0
        %6342 = vmatprep.mubr.bf16.mxu0 0
        %6343 = vmatmul.mubr.bf16.gmra.mrb[0].mxu0 %v6207
        %v6344 = vpop.f32.mrb[0].mxu0
        %v6345 = vadd.f32 0.0, %v6344
        %v6346 = vpop.f32.mrb[0].mxu0
        %v6347 = vpop.f32.mrb[0].mxu0
        %v6348 = vadd.f32 0.0, %v6347
        %v6349 = vpop.f32.mrb[0].mxu0
        %6350 = vmatprep.mubr.bf16.mxu0 0
        %6351 = vmatmul.mubr.bf16.gmra.mrb[0].mxu0 %v6210
        %v6352 = vpop.f32.mrb[0].mxu0
        %v6353 = vadd.f32 0.0, %v6352
        %v6354 = vpop.f32.mrb[0].mxu0
        %v6355 = vpop.f32.mrb[0].mxu0
        %v6356 = vadd.f32 0.0, %v6355
        %v6357 = vpop.f32.mrb[0].mxu0
        %6358 = vmatprep.mubr.bf16.mxu0 0
        %6359 = vmatmul.mubr.bf16.gmra.mrb[0].mxu0 %v6213
        %v6360 = vpop.f32.mrb[0].mxu0
        %v6361 = vadd.f32 0.0, %v6360
        %v6362 = vpop.f32.mrb[0].mxu0
        %v6363 = vpop.f32.mrb[0].mxu0
        %v6364 = vadd.f32 0.0, %v6363
        %v6365 = vpop.f32.mrb[0].mxu0
        %6366 = vmatprep.mubr.bf16.mxu0 0
        %6367 = vmatmul.mubr.bf16.gmra.mrb[0].mxu0 %v6216
        %v6368 = vpop.f32.mrb[0].mxu0
        %v6369 = vadd.f32 0.0, %v6368
        %v6370 = vpop.f32.mrb[0].mxu0
        %v6371 = vpop.f32.mrb[0].mxu0
        %v6372 = vadd.f32 0.0, %v6371
        %v6373 = vpop.f32.mrb[0].mxu0
        %6374 = vmatprep.mubr.bf16.mxu0 0
        %6375 = vmatmul.mubr.bf16.gmra.mrb[0].mxu0 %v6219
        %v6376 = vpop.f32.mrb[0].mxu0
        %v6377 = vadd.f32 0.0, %v6376
        %v6378 = vpop.f32.mrb[0].mxu0
        %v6379 = vpop.f32.mrb[0].mxu0
        %v6380 = vadd.f32 0.0, %v6379
        %v6381 = vpop.f32.mrb[0].mxu0
        %6382 = vmatprep.mubr.bf16.mxu0 0
        %6383 = vmatmul.mubr.bf16.gmra.mrb[0].mxu0 %v6222
        %v6384 = vpop.f32.mrb[0].mxu0
        %v6385 = vadd.f32 0.0, %v6384
        %v6386 = vpop.f32.mrb[0].mxu0
        %v6387 = vpop.f32.mrb[0].mxu0
        %v6388 = vadd.f32 0.0, %v6387
        %v6389 = vpop.f32.mrb[0].mxu0
        %6390 = vmatprep.mubr.bf16.mxu0 0
        %6391 = vmatmul.mubr.bf16.gmra.mrb[0].mxu0 %v6225
        %v6392 = vpop.f32.mrb[0].mxu0
        %v6393 = vadd.f32 0.0, %v6392
        %v6394 = vpop.f32.mrb[0].mxu0
        %v6395 = vpop.f32.mrb[0].mxu0
        %v6396 = vadd.f32 0.0, %v6395
        %v6397 = vpop.f32.mrb[0].mxu0
        %6398 = vmatprep.mubr.bf16.mxu0 0
        %6399 = vmatmul.mubr.bf16.gmra.mrb[0].mxu0 %v6228
        %v6400 = vpop.f32.mrb[0].mxu0
        %v6401 = vadd.f32 0.0, %v6400
        %v6402 = vpop.f32.mrb[0].mxu0
        %v6403 = vpop.f32.mrb[0].mxu0
        %v6404 = vadd.f32 0.0, %v6403
        %v6405 = vpop.f32.mrb[0].mxu0
        %6406 = vdwg.mxu0
        %v6407 = vadd.f32 %v6077, %v6265
        %v6408 = vadd.f32 %v6078, %v6268
        %v6409 = vadd.f32 %v6079, %v6273
        %v6410 = vadd.f32 %v6080, %v6276
        %v6411 = vadd.f32 %v6081, %v6281
        %v6412 = vadd.f32 %v6082, %v6284
        %v6413 = vadd.f32 %v6083, %v6289
        %v6414 = vadd.f32 %v6084, %v6292
        %v6415 = vadd.f32 %v6085, %v6297
        %v6416 = vadd.f32 %v6086, %v6300
        %v6417 = vadd.f32 %v6087, %v6305
        %v6418 = vadd.f32 %v6088, %v6308
        %v6419 = vadd.f32 %v6089, %v6313
        %v6420 = vadd.f32 %v6090, %v6316
        %v6421 = vadd.f32 %v6091, %v6321
        %v6422 = vadd.f32 %v6092, %v6324
        %v6423 = vadd.f32 %v6093, %v6329
        %v6424 = vadd.f32 %v6094, %v6332
        %v6425 = vadd.f32 %v6095, %v6337
        %v6426 = vadd.f32 %v6096, %v6340
        %v6427 = vadd.f32 %v6097, %v6345
        %v6428 = vadd.f32 %v6098, %v6348
        %v6429 = vadd.f32 %v6099, %v6353
        %v6430 = vadd.f32 %v6100, %v6356
        %v6431 = vadd.f32 %v6101, %v6361
        %v6432 = vadd.f32 %v6102, %v6364
        %v6433 = vadd.f32 %v6103, %v6369
        %v6434 = vadd.f32 %v6104, %v6372
        %v6435 = vadd.f32 %v6105, %v6377
        %v6436 = vadd.f32 %v6106, %v6380
        %v6437 = vadd.f32 %v6107, %v6385
        %v6438 = vadd.f32 %v6108, %v6388
        %v6439 = vadd.f32 %v6109, %v6393
        %v6440 = vadd.f32 %v6110, %v6396
        %v6441 = vadd.f32 %v6111, %v6401
        %v6442 = vadd.f32 %v6112, %v6404
        %v6443 = vld [vmem:[%s5] sm:$0x1]
        %v6445 = vlaneseq
        %v6446 = vshrl.u32 %v6445, 7
        %v6447 = vsub.s32 0, %v6446
        %v6448 = vrot.slane %v6443, %v6447
        %v6450 = vadd.f32 %v6407, %v6448
        %v6451 = vadd.f32 %v6408, %v6448
        %v6452 = vadd.f32 %v6409, %v6448
        %v6453 = vadd.f32 %v6410, %v6448
        %v6454 = vadd.f32 %v6411, %v6448
        %v6455 = vadd.f32 %v6412, %v6448
        %v6456 = vadd.f32 %v6413, %v6448
        %v6457 = vadd.f32 %v6414, %v6448
        %v6458 = vadd.f32 %v6415, %v6448
        %v6459 = vadd.f32 %v6416, %v6448
        %v6460 = vadd.f32 %v6417, %v6448
        %v6461 = vadd.f32 %v6418, %v6448
        %v6462 = vadd.f32 %v6419, %v6448
        %v6463 = vadd.f32 %v6420, %v6448
        %v6464 = vadd.f32 %v6421, %v6448
        %v6465 = vadd.f32 %v6422, %v6448
        %v6466 = vadd.f32 %v6423, %v6448
        %v6467 = vadd.f32 %v6424, %v6448
        %v6468 = vadd.f32 %v6425, %v6448
        %v6469 = vadd.f32 %v6426, %v6448
        %v6470 = vadd.f32 %v6427, %v6448
        %v6471 = vadd.f32 %v6428, %v6448
        %v6472 = vadd.f32 %v6429, %v6448
        %v6473 = vadd.f32 %v6430, %v6448
        %v6474 = vadd.f32 %v6431, %v6448
        %v6475 = vadd.f32 %v6432, %v6448
        %v6476 = vadd.f32 %v6433, %v6448
        %v6477 = vadd.f32 %v6434, %v6448
        %v6478 = vadd.f32 %v6435, %v6448
        %v6479 = vadd.f32 %v6436, %v6448
        %v6480 = vadd.f32 %v6437, %v6448
        %v6481 = vadd.f32 %v6438, %v6448
        %v6482 = vadd.f32 %v6439, %v6448
        %v6483 = vadd.f32 %v6440, %v6448
        %v6484 = vadd.f32 %v6441, %v6448
        %v6485 = vadd.f32 %v6442, %v6448
        %v6486 = vmax.f32 %v6450, 0.0
        %v6487 = vmax.f32 %v6451, 0.0
        %v6488 = vmax.f32 %v6452, 0.0
        %v6489 = vmax.f32 %v6453, 0.0
        %v6490 = vmax.f32 %v6454, 0.0
        %v6491 = vmax.f32 %v6455, 0.0
        %v6492 = vmax.f32 %v6456, 0.0
        %v6493 = vmax.f32 %v6457, 0.0
        %v6494 = vmax.f32 %v6458, 0.0
        %v6495 = vmax.f32 %v6459, 0.0
        %v6496 = vmax.f32 %v6460, 0.0
        %v6497 = vmax.f32 %v6461, 0.0
        %v6498 = vmax.f32 %v6462, 0.0
        %v6499 = vmax.f32 %v6463, 0.0
        %v6500 = vmax.f32 %v6464, 0.0
        %v6501 = vmax.f32 %v6465, 0.0
        %v6502 = vmax.f32 %v6466, 0.0
        %v6503 = vmax.f32 %v6467, 0.0
        %v6504 = vmax.f32 %v6468, 0.0
        %v6505 = vmax.f32 %v6469, 0.0
        %v6506 = vmax.f32 %v6470, 0.0
        %v6507 = vmax.f32 %v6471, 0.0
        %v6508 = vmax.f32 %v6472, 0.0
        %v6509 = vmax.f32 %v6473, 0.0
        %v6510 = vmax.f32 %v6474, 0.0
        %v6511 = vmax.f32 %v6475, 0.0
        %v6512 = vmax.f32 %v6476, 0.0
        %v6513 = vmax.f32 %v6477, 0.0
        %v6514 = vmax.f32 %v6478, 0.0
        %v6515 = vmax.f32 %v6479, 0.0
        %v6516 = vmax.f32 %v6480, 0.0
        %v6517 = vmax.f32 %v6481, 0.0
        %v6518 = vmax.f32 %v6482, 0.0
        %v6519 = vmax.f32 %v6483, 0.0
        %v6520 = vmax.f32 %v6484, 0.0
        %v6521 = vmax.f32 %v6485, 0.0
        %v6522 = vmul.f32 %v6486, %v3288
        %v6523 = vmul.f32 %v6487, %v3293
        %v6524 = vmul.f32 %v6488, %v3298
        %v6525 = vmul.f32 %v6489, %v3303
        %v6526 = vmul.f32 %v6490, %v3308
        %v6527 = vmul.f32 %v6491, %v3313
        %v6528 = vmul.f32 %v6492, %v3318
        %v6529 = vmul.f32 %v6493, %v3323
        %v6530 = vmul.f32 %v6494, %v3328
        %v6531 = vmul.f32 %v6495, %v3333
        %v6532 = vmul.f32 %v6496, %v3338
        %v6533 = vmul.f32 %v6497, %v3343
        %v6534 = vmul.f32 %v6498, %v3348
        %v6535 = vmul.f32 %v6499, %v3353
        %v6536 = vmul.f32 %v6500, %v3358
        %v6537 = vmul.f32 %v6501, %v3363
        %v6538 = vmul.f32 %v6502, %v3368
        %v6539 = vmul.f32 %v6503, %v3373
        %v6540 = vmul.f32 %v6504, %v3378
        %v6541 = vmul.f32 %v6505, %v3383
        %v6542 = vmul.f32 %v6506, %v3388
        %v6543 = vmul.f32 %v6507, %v3393
        %v6544 = vmul.f32 %v6508, %v3398
        %v6545 = vmul.f32 %v6509, %v3403
        %v6546 = vmul.f32 %v6510, %v3408
        %v6547 = vmul.f32 %v6511, %v3413
        %v6548 = vmul.f32 %v6512, %v3418
        %v6549 = vmul.f32 %v6513, %v3423
        %v6550 = vmul.f32 %v6514, %v3428
        %v6551 = vmul.f32 %v6515, %v3433
        %v6552 = vmul.f32 %v6516, %v3438
        %v6553 = vmul.f32 %v6517, %v3443
        %v6554 = vmul.f32 %v6518, %v3448
        %v6555 = vmul.f32 %v6519, %v3453
        %v6556 = vmul.f32 %v6520, %v3458
        %v6557 = vmul.f32 %v6521, %v3463
        %vm6558 = vcmask 261120
        %v6559 = vsel %vm6558, %v6522, 0.0
        %v6560 = vsel %vm6558, %v6523, 0.0
        %v6561 = vadd.f32 %v6559, %v6560
        %v6562 = vsel %vm6558, %v6524, 0.0
        %v6563 = vadd.f32 %v6561, %v6562
        %v6564 = vsel %vm6558, %v6525, 0.0
        %v6565 = vadd.f32 %v6563, %v6564
        %v6566 = vsel %vm6558, %v6526, 0.0
        %v6567 = vadd.f32 %v6565, %v6566
        %v6568 = vsel %vm6558, %v6527, 0.0
        %v6569 = vadd.f32 %v6567, %v6568
        %v6570 = vsel %vm6558, %v6528, 0.0
        %v6571 = vadd.f32 %v6569, %v6570
        %v6572 = vsel %vm6558, %v6529, 0.0
        %v6573 = vadd.f32 %v6571, %v6572
        %v6574 = vsel %vm6558, %v6530, 0.0
        %v6575 = vadd.f32 %v6573, %v6574
        %v6576 = vsel %vm6558, %v6531, 0.0
        %v6577 = vadd.f32 %v6575, %v6576
        %v6578 = vsel %vm6558, %v6532, 0.0
        %v6579 = vadd.f32 %v6577, %v6578
        %v6580 = vsel %vm6558, %v6533, 0.0
        %v6581 = vadd.f32 %v6579, %v6580
        %v6582 = vsel %vm6558, %v6534, 0.0
        %v6583 = vadd.f32 %v6581, %v6582
        %v6584 = vsel %vm6558, %v6535, 0.0
        %v6585 = vadd.f32 %v6583, %v6584
        %v6586 = vsel %vm6558, %v6536, 0.0
        %v6587 = vadd.f32 %v6585, %v6586
        %v6588 = vsel %vm6558, %v6537, 0.0
        %v6589 = vadd.f32 %v6587, %v6588
        %v6590 = vsel %vm6558, %v6538, 0.0
        %v6591 = vadd.f32 %v6589, %v6590
        %v6592 = vsel %vm6558, %v6539, 0.0
        %v6593 = vadd.f32 %v6591, %v6592
        %v6594 = vsel %vm6558, %v6540, 0.0
        %v6595 = vadd.f32 %v6593, %v6594
        %v6596 = vsel %vm6558, %v6541, 0.0
        %v6597 = vadd.f32 %v6595, %v6596
        %v6598 = vsel %vm6558, %v6542, 0.0
        %v6599 = vadd.f32 %v6597, %v6598
        %v6600 = vsel %vm6558, %v6543, 0.0
        %v6601 = vadd.f32 %v6599, %v6600
        %v6602 = vsel %vm6558, %v6544, 0.0
        %v6603 = vadd.f32 %v6601, %v6602
        %v6604 = vsel %vm6558, %v6545, 0.0
        %v6605 = vadd.f32 %v6603, %v6604
        %v6606 = vsel %vm6558, %v6546, 0.0
        %v6607 = vadd.f32 %v6605, %v6606
        %v6608 = vsel %vm6558, %v6547, 0.0
        %v6609 = vadd.f32 %v6607, %v6608
        %v6610 = vsel %vm6558, %v6548, 0.0
        %v6611 = vadd.f32 %v6609, %v6610
        %v6612 = vsel %vm6558, %v6549, 0.0
        %v6613 = vadd.f32 %v6611, %v6612
        %v6614 = vsel %vm6558, %v6550, 0.0
        %v6615 = vadd.f32 %v6613, %v6614
        %v6616 = vsel %vm6558, %v6551, 0.0
        %v6617 = vadd.f32 %v6615, %v6616
        %v6618 = vsel %vm6558, %v6552, 0.0
        %v6619 = vadd.f32 %v6617, %v6618
        %v6620 = vsel %vm6558, %v6553, 0.0
        %v6621 = vadd.f32 %v6619, %v6620
        %v6622 = vsel %vm6558, %v6554, 0.0
        %v6623 = vadd.f32 %v6621, %v6622
        %v6624 = vsel %vm6558, %v6555, 0.0
        %v6625 = vadd.f32 %v6623, %v6624
        %v6626 = vsel %vm6558, %v6556, 0.0
        %v6627 = vadd.f32 %v6625, %v6626
        %vm6628 = vcmask 259072
        %v6629 = vsel %vm6628, %v6557, 0.0
        %v6630 = vadd.f32 %v6627, %v6629
        %v6631 = vrot.slane %v6630, 4
        %v6632 = vadd.f32 %v6630, %v6631
        %v6633 = vrot.slane %v6632, 2
        %v6634 = vadd.f32 %v6632, %v6633
        %v6635 = vrot.slane %v6634, 1
        %v6636 = vadd.f32 %v6634, %v6635
        %v6637 = vmul.f32 %v6636, 0.00390625
        %v6638 = vld [vmem:[%s6] sm:$0xff]
        %v6639 = vld [vmem:[%s6 + $0x8] sm:$0xff]
        %v6640 = vld [vmem:[%s6 + $0x10] sm:$0xff]
        %v6641 = vld [vmem:[%s6 + $0x18] sm:$0xff]
        %v6642 = vld [vmem:[%s7] sm:$0x1]
        %v6644 = vsel %vm6558, %v6637, 0
        %6646 = vmatprep.subr.mxu0 0.0
        %6647 = vmatpush1.msra.mxu0 %v6638
        %6648 = vmatprep.subr.mxu0 0.0
        %6649 = vmatpush1.msra.mxu0 %v6639
        %6650 = vmatprep.subr.mxu0 0.0
        %6651 = vmatpush1.msra.mxu0 %v6640
        %6652 = vmatprep.subr.mxu0 0.0
        %6653 = vmatpush1.msra.mxu0 %v6641
        %6654 = vmatprep.subr.mxu0 0.0
        %6655 = vmatpush1.msra.mxu0 0.0
        %6656 = vmatprep.subr.mxu0 0.0
        %6657 = vmatpush1.msra.mxu0 0.0
        %6658 = vmatprep.subr.mxu0 0.0
        %6659 = vmatpush1.msra.mxu0 0.0
        %6660 = vmatprep.subr.mxu0 0.0
        %6661 = vmatpush1.msra.mxu0 0.0
        %6662 = vmatprep.subr.mxu0 0.0
        %6663 = vmatpush1.msra.mxu0 0.0
        %6664 = vmatprep.subr.mxu0 0.0
        %6665 = vmatpush1.msra.mxu0 0.0
        %6666 = vmatprep.subr.mxu0 0.0
        %6667 = vmatpush1.msra.mxu0 0.0
        %6668 = vmatprep.subr.mxu0 0.0
        %6669 = vmatpush1.msra.mxu0 0.0
        %6670 = vmatprep.subr.mxu0 0.0
        %6671 = vmatpush1.msra.mxu0 0.0
        %6672 = vmatprep.subr.mxu0 0.0
        %6673 = vmatpush1.msra.mxu0 0.0
        %6674 = vmatprep.subr.mxu0 0.0
        %6675 = vmatpush1.msra.mxu0 0.0
        %6676 = vmatprep.subr.mxu0 0.0
        %6677 = vmatpush1.msra.mxu0 0.0
        %6678 = vmatprep.subr.mxu0 0.0
        %6679 = vmatpush1.msra.mxu0 0.0
        %6680 = vmatprep.subr.mxu0 0.0
        %6681 = vmatpush1.msra.mxu0 0.0
        %6682 = vmatprep.subr.mxu0 0.0
        %6683 = vmatpush1.msra.mxu0 0.0
        %6684 = vmatprep.subr.mxu0 0.0
        %6685 = vmatpush1.msra.mxu0 0.0
        %6686 = vmatprep.subr.mxu0 0.0
        %6687 = vmatpush1.msra.mxu0 0.0
        %6688 = vmatprep.subr.mxu0 0.0
        %6689 = vmatpush1.msra.mxu0 0.0
        %6690 = vmatprep.subr.mxu0 0.0
        %6691 = vmatpush1.msra.mxu0 0.0
        %6692 = vmatprep.subr.mxu0 0.0
        %6693 = vmatpush1.msra.mxu0 0.0
        %6694 = vmatprep.subr.mxu0 0.0
        %6695 = vmatpush1.msra.mxu0 0.0
        %6696 = vmatprep.subr.mxu0 0.0
        %6697 = vmatpush1.msra.mxu0 0.0
        %6698 = vmatprep.subr.mxu0 0.0
        %6699 = vmatpush1.msra.mxu0 0.0
        %6700 = vmatprep.subr.mxu0 0.0
        %6701 = vmatpush1.msra.mxu0 0.0
        %6702 = vmatprep.subr.mxu0 0.0
        %6703 = vmatpush1.msra.mxu0 0.0
        %6704 = vmatprep.subr.mxu0 0.0
        %6705 = vmatpush1.msra.mxu0 0.0
        %6706 = vmatprep.subr.mxu0 0.0
        %6707 = vmatpush1.msra.mxu0 0.0
        %6708 = vmatprep.subr.mxu0 0.0
        %6709 = vmatpush1.msra.mxu0 0.0
        %6710 = vmatprep.mubr.f32.mxu0 0.0
        %6711 = vmatmul.mubr.f32.gmra.mrb[0].mxu0 %v6644
        %v6712 = vpop.f32.mrb[0].mxu0
        %v6713 = vadd.f32 %v6642, %v6712
        %v6714 = vpop.f32.mrb[0].mxu0
        %6715 = vdwg.mxu0
        %vm6716 = vcmask 57344
        %6717 = vst.msk [vmem:[%s297] sm:$0x1] %vm6716, %v6713
        %s6718 = sand.u32 %s203, 1
        %s6719 = scalar_lea.sflag [#allocation4], %s6718
        %s6720 = sand.u32 %s203, 1
        %s6721 = scalar_lea.vmem [#allocation3], %s6720
        // Predicated region
        $region53: #{unified_network_forward.1} parent=51 // pred_check
          %p6722 = pneg %p213
        $region54: #{unified_network_forward.1} parent=51 // pred_check_branch
          %6724 = sbr.rel (%p6722) target = $region56
        $region55: #{unified_network_forward.1} parent=51 // pred_region
          %s6726 = ssub.s32 16, 16
          %6727 = vsyncadd %s6719, %s6726
          %s6728 = smul.addr %s22, 16
          %s6729 = scalar_lea.hbm %s8, %s6728
          %s6731 = sshll.u32 %s6721, 4
          %s6732 = int_to_ptr.vmem [resolvable:$true] %s6731
          %6734 = dma.vmem_to_hbm [thread:$0]  %s6732, 16, %s6729, %s6719
        $region56: #{unified_network_forward.1} parent=51 // pred_fallthru
          _
      $region52: #{unified_network_forward.1} parent=5 // pred_fallthru
        _
      %p6735 = scmp.le.s32.totalorder 2, %s17
      // Predicated region
      $region57: #{unified_network_forward.1} parent=5 // pred_check
        %p6736 = pneg %p6735
      $region58: #{unified_network_forward.1} parent=5 // pred_check_branch
        %6738 = sbr.rel (%p6736) target = $region60
      $region59: #{unified_network_forward.1} parent=5 // pred_region
        %s6739 = ssub.s32 %s17, 2
        // Predicated region
        $region61: #{unified_network_forward.1} parent=59 // pred_check
          %p6740 = pneg %p219
        $region62: #{unified_network_forward.1} parent=59 // pred_check_branch
          %6742 = sbr.rel (%p6740) target = $region64
        $region63: #{unified_network_forward.1} parent=59 // pred_region
          %s6743 = sand.u32 %s204, 1
          %s6744 = scalar_lea.sflag [#allocation4], %s6743
          %s6745 = sand.u32 %s204, 1
          %s6746 = scalar_lea.vmem [#allocation3], %s6745
          %6747 = dma.done %s6744, 16
        $region64: #{unified_network_forward.1} parent=59 // pred_fallthru
          _
      $region60: #{unified_network_forward.1} parent=5 // pred_fallthru
        _
    $region6: #{unified_network_forward.1} parent=1 // loop_footer
      %s21 = sadd.s32 1, %s17
    $region7: #{unified_network_forward.1} parent=1 // loop_footer_branch
      %16 = sbr.rel target = $region3
    $region8: #{unified_network_forward.1} parent=1 // loop_exit
      _
    %6748 = vsyncpa [#allocation4], 1
    %s6749 = scalar_lea.sflag [#allocation4], 1
    %6750 = vsyncpa %s6749, 1

</llo_original>
